<compile_context>
chip_gen: v6e
topology: v6e:2x2x1
jax: 0.10.0
libtpu: 0.0.40
codegen_flags: <defaults>
</compile_context>

<pallas_src>
import numpy as np
import jax
import jax.numpy as jnp
from jax.experimental import pallas as pl
from jax.experimental.pallas import tpu as pltpu

N_FFT = 1024
HOP = 256
WIN = 1024
N_FREQ = N_FFT // 2 + 1          # 513 one-sided bins
NF_PAD = 640                     # 513 padded up to a multiple of 128 (lane dense)
HOPS_PER_FRAME = N_FFT // HOP    # 4


class Hp:
    norm = "inf"                 # CNN normalizes input rows by their inf-norm
    n_layers = 4                 # 32 -> 64 -> 128 -> 256 -> 512 so Linear(512, 1) applies


# ------------------------------ fused kernel -------------------------------

def _leaky(x):
    return jnp.where(x >= 0, x, 0.2 * x)


def _avgpool_matrix(t_out, t_in):
    # AvgPool1d(2): out[p] = 0.5 * (y[2p] + y[2p+1]); floor drops a trailing odd row.
    # Built as a tiny constant matrix so pooling is one MXU pass (no strided slices,
    # no per-row concatenate).
    rows = jax.lax.broadcasted_iota(jnp.int32, (t_out, t_in), 0)
    cols = jax.lax.broadcasted_iota(jnp.int32, (t_out, t_in), 1)
    hit = (cols == 2 * rows) | (cols == 2 * rows + 1)
    return jnp.where(hit, 0.5, 0.0).astype(jnp.float32)


def _conv_block(x, w_ref, b_ref, *, pre_leaky, pool):
    # Conv1d(k=3, padding=1) on a channels-last (T, C_in) activation: three shifted
    # bf16 tap matmuls with f32 accumulation, optional preceding LeakyReLU(0.2)
    # and following AvgPool1d(2).
    t_in, c_in = x.shape
    if pre_leaky:
        x = _leaky(x)
    zrow = jnp.zeros((1, c_in), x.dtype)
    xpad = jnp.concatenate([zrow, x, zrow], axis=0).astype(jnp.bfloat16)
    y = (jnp.dot(xpad[0:t_in], w_ref[0], preferred_element_type=jnp.float32)
         + jnp.dot(xpad[1:t_in + 1], w_ref[1], preferred_element_type=jnp.float32)
         + jnp.dot(xpad[2:t_in + 2], w_ref[2], preferred_element_type=jnp.float32)
         + b_ref[...])
    if pool:
        t_out = t_in // 2
        y = jnp.dot(_avgpool_matrix(t_out, t_in), y,
                    preferred_element_type=jnp.float32)
    return y


def predictor_kernel(hops_ref, basis_ref,
                     w0_ref, b0_ref, w1_ref, b1_ref, w2_ref, b2_ref,
                     w3_ref, b3_ref, w4_ref, b4_ref,
                     pw_ref, pb_ref, o_ref):
    conv_refs = [(w0_ref, b0_ref), (w1_ref, b1_ref), (w2_ref, b2_ref),
                 (w3_ref, b3_ref), (w4_ref, b4_ref)]

    h = hops_ref[0]                                   # (n_hops, 256) f32 padded audio
    n_frames = h.shape[0] - (HOPS_PER_FRAME - 1)

    # x / ||x||_inf : reflect padding only copies original samples, so the max of
    # the padded hops equals the inf-norm of the raw row (no eps, same as torch).
    m = jnp.max(jnp.abs(h), axis=1, keepdims=True)
    m = jnp.max(m, axis=0, keepdims=True)             # (1, 1)
    hs = (h * pl.reciprocal(m, approx=True)).astype(jnp.bfloat16)

    # Windowed one-sided DFT as hop-chunked matmuls against the combined
    # (cos | sin) basis: frame f = hops[f:f+4] flattened, so
    #   re|im = sum_j hops[j : j + n_frames] @ basis[j]        (bf16 in, f32 acc)
    acc = jnp.dot(hs[0:n_frames], basis_ref[0], preferred_element_type=jnp.float32)
    for j in range(1, HOPS_PER_FRAME):
        acc = acc + jnp.dot(hs[j:j + n_frames], basis_ref[j],
                            preferred_element_type=jnp.float32)
    re = acc[:, :NF_PAD]
    im = acc[:, NF_PAD:]
    x = re * re + im * im                             # (n_frames, 640) power, f32

    x = _conv_block(x, *conv_refs[0], pre_leaky=False, pool=False)
    for wr, br in conv_refs[1:]:
        x = _conv_block(x, wr, br, pre_leaky=True, pool=True)

    # mean over time + Linear(512, 1) as multiply + lane reduction (no N=1 matmul)
    xm = jnp.mean(x, axis=0, keepdims=True)           # (1, 512)
    o_ref[0] = jnp.sum(xm * pw_ref[...], axis=1, keepdims=True) + pb_ref[...]


# --------------------------------- glue ------------------------------------

def _stft_basis():
    # Hann-windowed one-sided DFT basis; cos and sin concatenated along N and
    # zero-padded 513 -> 640 (lane dense), reshaped to hop-chunked K (4, 256, 1280).
    n = np.arange(N_FFT)
    k = np.arange(N_FREQ)
    win = 0.5 * (1.0 - np.cos(2.0 * np.pi * n / WIN))          # periodic hann window
    ang = 2.0 * np.pi * np.outer(n, k) / N_FFT
    basis = np.zeros((N_FFT, 2 * NF_PAD), np.float32)
    basis[:, :N_FREQ] = win[:, None] * np.cos(ang)
    basis[:, NF_PAD:NF_PAD + N_FREQ] = win[:, None] * np.sin(ang)
    return jnp.asarray(basis.reshape(HOPS_PER_FRAME, HOP, 2 * NF_PAD), jnp.bfloat16)


def _prepare_hops(x):
    # Audio2Spec framing prep: manual reflect pad + torch.stft(center=True) reflect
    # pad, then a free reshape into 256-sample hop rows.  Frames themselves are
    # assembled inside the kernel from shifted hop slices (no XLA gather).
    p = (N_FFT - HOP) // 2
    x = jnp.pad(x, ((0, 0), (p, p)), mode="reflect")
    x = jnp.pad(x, ((0, 0), (N_FFT // 2, N_FFT // 2)), mode="reflect")
    bsz, length = x.shape
    n_frames = (length - N_FFT) // HOP + 1
    n_hops = n_frames + HOPS_PER_FRAME - 1
    x = x[:, :n_hops * HOP]                                    # drop partial tail frame
    return x.reshape(bsz, n_hops, HOP), n_frames


def init_wn_conv(key, c_in, c_out, c_in_pad=None):
    """weight_norm(Conv1d): w = g * v / ||v|| (norm over (c_in, k) per out channel).
    Stored as (3, c_in[_pad], c_out) bf16 tap matrices + (1, c_out) f32 bias."""
    k_v, k_g, k_b = jax.random.split(key, 3)
    v = 0.05 * jax.random.normal(k_v, (c_out, c_in, 3), jnp.float32)
    g = 0.5 + 0.05 * jax.random.normal(k_g, (c_out,), jnp.float32)
    norm = jnp.sqrt(jnp.sum(v * v, axis=(1, 2), keepdims=True))
    w = g[:, None, None] * v / norm                            # (c_out, c_in, 3)
    b = 0.01 * jax.random.normal(k_b, (c_out,), jnp.float32)
    wt = jnp.transpose(w, (2, 1, 0))                           # (3, c_in, c_out)
    if c_in_pad is not None and c_in_pad > c_in:
        wt = jnp.pad(wt, ((0, 0), (0, c_in_pad - c_in), (0, 0)))  # zero rows: no-op
    return wt.astype(jnp.bfloat16), b.reshape(1, c_out)


def init_params(key):
    params = {"basis": _stft_basis()}
    keys = jax.random.split(key, Hp.n_layers + 2)
    params["conv0"] = init_wn_conv(keys[0], N_FREQ, 32, c_in_pad=NF_PAD)
    dim = 32
    for i in range(Hp.n_layers):
        c_out = min(512, dim * 2)
        params[f"conv{i + 1}"] = init_wn_conv(keys[i + 1], dim, c_out)
        dim = c_out
    kw, kb = jax.random.split(keys[-1])
    params["proj_w"] = 0.05 * jax.random.normal(kw, (1, 512), jnp.float32)
    params["proj_b"] = 0.01 * jax.random.normal(kb, (1, 1), jnp.float32)
    return params


def predictor_forward(params, x):
    # TODO(synk): only the inference forward pass is implemented; fit()/optim_inputs()
    # (training / input-search loops) have no kernel equivalent here.
    hops, _ = _prepare_hops(x)
    bsz, n_hops, _ = hops.shape

    def const3(shape):
        return pl.BlockSpec(shape, lambda b: (0, 0, 0))

    def const2(shape):
        return pl.BlockSpec(shape, lambda b: (0, 0))

    args = [hops, params["basis"]]
    in_specs = [pl.BlockSpec((1, n_hops, HOP), lambda b: (b, 0, 0)),
                const3(params["basis"].shape)]
    for i in range(Hp.n_layers + 1):
        w, bias = params[f"conv{i}"]
        args += [w, bias]
        in_specs += [const3(w.shape), const2(bias.shape)]
    args += [params["proj_w"], params["proj_b"]]
    in_specs += [const2(params["proj_w"].shape), const2(params["proj_b"].shape)]

    out = pl.pallas_call(
        predictor_kernel,
        out_shape=jax.ShapeDtypeStruct((bsz, 1, 1), jnp.float32),
        grid=(bsz,),
        in_specs=in_specs,
        out_specs=pl.BlockSpec((1, 1, 1), lambda b: (b, 0, 0)),
        compiler_params=pltpu.CompilerParams(dimension_semantics=("parallel",)),
    )(*args)
    return out.reshape(bsz, 1)


if __name__ == "__main__":
    # D must accommodate the reflect pads and 4 AvgPool1d(2) stages:
    # D = 3328 -> 17 STFT frames -> 8 -> 4 -> 2 -> 1 after pooling.
    B, D = 2, 3328
    key = jax.random.PRNGKey(0)
    kx, kp = jax.random.split(key)
    x = jax.random.uniform(kx, (B, D), jnp.float32, -1.0, 1.0)
    params = init_params(kp)

    y = jax.jit(predictor_forward)(params, x)
    y = jax.block_until_ready(y)
    assert y.shape == (B, 1), y.shape
    assert bool(jnp.all(jnp.isfinite(y)))
    print("KERNEL_OK")
</pallas_src>

<mosaic_0001>
module attributes {stable_mosaic.version = 11 : i64} {
  func.func @predictor_kernel(%arg0: i32, %arg1: memref<1x20x256xf32, #tpu.memory_space<vmem>>, %arg2: memref<4x256x1280xbf16, #tpu.memory_space<vmem>>, %arg3: memref<3x640x32xbf16, #tpu.memory_space<vmem>>, %arg4: memref<1x32xf32, #tpu.memory_space<vmem>>, %arg5: memref<3x32x64xbf16, #tpu.memory_space<vmem>>, %arg6: memref<1x64xf32, #tpu.memory_space<vmem>>, %arg7: memref<3x64x128xbf16, #tpu.memory_space<vmem>>, %arg8: memref<1x128xf32, #tpu.memory_space<vmem>>, %arg9: memref<3x128x256xbf16, #tpu.memory_space<vmem>>, %arg10: memref<1x256xf32, #tpu.memory_space<vmem>>, %arg11: memref<3x256x512xbf16, #tpu.memory_space<vmem>>, %arg12: memref<1x512xf32, #tpu.memory_space<vmem>>, %arg13: memref<1x512xf32, #tpu.memory_space<vmem>>, %arg14: memref<1x1xf32, #tpu.memory_space<vmem>>, %arg15: memref<1x1x1xf32, #tpu.memory_space<vmem>>) attributes {dimension_semantics = [#tpu.dimension_semantics<parallel>], iteration_bounds = array<i64: 2>, scalar_prefetch = 0 : i64, scratch_operands = 0 : i64, tpu.core_type = #tpu.core_type<tc>, window_params = [{transform_indices = @transform_0, window_bounds = array<i64: 1, 20, 256>}, {pipeline_mode = #tpu.pipeline_mode<synchronous>, transform_indices = @transform_1, window_bounds = array<i64: 4, 256, 1280>}, {pipeline_mode = #tpu.pipeline_mode<synchronous>, transform_indices = @transform_2, window_bounds = array<i64: 3, 640, 32>}, {pipeline_mode = #tpu.pipeline_mode<synchronous>, transform_indices = @transform_3, window_bounds = array<i64: 1, 32>}, {pipeline_mode = #tpu.pipeline_mode<synchronous>, transform_indices = @transform_4, window_bounds = array<i64: 3, 32, 64>}, {pipeline_mode = #tpu.pipeline_mode<synchronous>, transform_indices = @transform_5, window_bounds = array<i64: 1, 64>}, {pipeline_mode = #tpu.pipeline_mode<synchronous>, transform_indices = @transform_6, window_bounds = array<i64: 3, 64, 128>}, {pipeline_mode = #tpu.pipeline_mode<synchronous>, transform_indices = @transform_7, window_bounds = array<i64: 1, 128>}, {pipeline_mode = #tpu.pipeline_mode<synchronous>, transform_indices = @transform_8, window_bounds = array<i64: 3, 128, 256>}, {pipeline_mode = #tpu.pipeline_mode<synchronous>, transform_indices = @transform_9, window_bounds = array<i64: 1, 256>}, {pipeline_mode = #tpu.pipeline_mode<synchronous>, transform_indices = @transform_10, window_bounds = array<i64: 3, 256, 512>}, {pipeline_mode = #tpu.pipeline_mode<synchronous>, transform_indices = @transform_11, window_bounds = array<i64: 1, 512>}, {pipeline_mode = #tpu.pipeline_mode<synchronous>, transform_indices = @transform_12, window_bounds = array<i64: 1, 512>}, {pipeline_mode = #tpu.pipeline_mode<synchronous>, transform_indices = @transform_13, window_bounds = array<i64: 1, 1>}, {transform_indices = @transform_14, window_bounds = array<i64: 1, 1, 1>}]} {
    %c0 = arith.constant 0 : index
    %c0_0 = arith.constant 0 : index
    %c0_1 = arith.constant 0 : index
    %0 = vector.load %arg1[%c0, %c0_0, %c0_1] : memref<1x20x256xf32, #tpu.memory_space<vmem>>, vector<1x20x256xf32>
    %1 = vector.shape_cast %0 : vector<1x20x256xf32> to vector<20x256xf32>
    %2 = math.absf %1 : vector<20x256xf32>
    %cst = arith.constant dense<0xFF800000> : vector<20xf32>
    %3 = vector.multi_reduction <maximumf>, %2, %cst [1] : vector<20x256xf32> to vector<20xf32>
    %4 = vector.shape_cast %3 : vector<20xf32> to vector<20x1xf32>
    %cst_2 = arith.constant dense<0xFF800000> : vector<1xf32>
    %5 = vector.multi_reduction <maximumf>, %4, %cst_2 [0] : vector<20x1xf32> to vector<1xf32>
    %6 = vector.shape_cast %5 : vector<1xf32> to vector<1x1xf32>
    %7 = tpu.reciprocal %6 {approx = true} : vector<1x1xf32> -> vector<1x1xf32>
    %8 = vector.broadcast %7 : vector<1x1xf32> to vector<20x256xf32>
    %9 = arith.mulf %1, %8 : vector<20x256xf32>
    %10 = arith.truncf %9 : vector<20x256xf32> to vector<20x256xbf16>
    %11 = vector.extract_strided_slice %10 {offsets = [0, 0], sizes = [17, 256], strides = [1, 1]} : vector<20x256xbf16> to vector<17x256xbf16>
    %c0_3 = arith.constant 0 : index
    %c0_4 = arith.constant 0 : index
    %c0_5 = arith.constant 0 : index
    %12 = vector.load %arg2[%c0_3, %c0_4, %c0_5] : memref<4x256x1280xbf16, #tpu.memory_space<vmem>>, vector<1x256x1280xbf16>
    %13 = vector.shape_cast %12 : vector<1x256x1280xbf16> to vector<256x1280xbf16>
    %cst_6 = arith.constant dense<0.000000e+00> : vector<17x1280xf32>
    %14 = tpu.matmul %11, %13, %cst_6 {dimension_numbers = #tpu.dot_dimension_numbers<[1], [0], [0], [1], [0, 0, 1, 1], [], []>} : vector<17x256xbf16>, vector<256x1280xbf16>, vector<17x1280xf32> -> vector<17x1280xf32>
    %15 = vector.extract_strided_slice %10 {offsets = [1, 0], sizes = [17, 256], strides = [1, 1]} : vector<20x256xbf16> to vector<17x256xbf16>
    %c1 = arith.constant 1 : index
    %c0_7 = arith.constant 0 : index
    %c0_8 = arith.constant 0 : index
    %16 = vector.load %arg2[%c1, %c0_7, %c0_8] : memref<4x256x1280xbf16, #tpu.memory_space<vmem>>, vector<1x256x1280xbf16>
    %17 = vector.shape_cast %16 : vector<1x256x1280xbf16> to vector<256x1280xbf16>
    %cst_9 = arith.constant dense<0.000000e+00> : vector<17x1280xf32>
    %18 = tpu.matmul %15, %17, %cst_9 {dimension_numbers = #tpu.dot_dimension_numbers<[1], [0], [0], [1], [0, 0, 1, 1], [], []>} : vector<17x256xbf16>, vector<256x1280xbf16>, vector<17x1280xf32> -> vector<17x1280xf32>
    %19 = arith.addf %14, %18 : vector<17x1280xf32>
    %20 = vector.extract_strided_slice %10 {offsets = [2, 0], sizes = [17, 256], strides = [1, 1]} : vector<20x256xbf16> to vector<17x256xbf16>
    %c2 = arith.constant 2 : index
    %c0_10 = arith.constant 0 : index
    %c0_11 = arith.constant 0 : index
    %21 = vector.load %arg2[%c2, %c0_10, %c0_11] : memref<4x256x1280xbf16, #tpu.memory_space<vmem>>, vector<1x256x1280xbf16>
    %22 = vector.shape_cast %21 : vector<1x256x1280xbf16> to vector<256x1280xbf16>
    %cst_12 = arith.constant dense<0.000000e+00> : vector<17x1280xf32>
    %23 = tpu.matmul %20, %22, %cst_12 {dimension_numbers = #tpu.dot_dimension_numbers<[1], [0], [0], [1], [0, 0, 1, 1], [], []>} : vector<17x256xbf16>, vector<256x1280xbf16>, vector<17x1280xf32> -> vector<17x1280xf32>
    %24 = arith.addf %19, %23 : vector<17x1280xf32>
    %25 = vector.extract_strided_slice %10 {offsets = [3, 0], sizes = [17, 256], strides = [1, 1]} : vector<20x256xbf16> to vector<17x256xbf16>
    %c3 = arith.constant 3 : index
    %c0_13 = arith.constant 0 : index
    %c0_14 = arith.constant 0 : index
    %26 = vector.load %arg2[%c3, %c0_13, %c0_14] : memref<4x256x1280xbf16, #tpu.memory_space<vmem>>, vector<1x256x1280xbf16>
    %27 = vector.shape_cast %26 : vector<1x256x1280xbf16> to vector<256x1280xbf16>
    %cst_15 = arith.constant dense<0.000000e+00> : vector<17x1280xf32>
    %28 = tpu.matmul %25, %27, %cst_15 {dimension_numbers = #tpu.dot_dimension_numbers<[1], [0], [0], [1], [0, 0, 1, 1], [], []>} : vector<17x256xbf16>, vector<256x1280xbf16>, vector<17x1280xf32> -> vector<17x1280xf32>
    %29 = arith.addf %24, %28 : vector<17x1280xf32>
    %30 = vector.extract_strided_slice %29 {offsets = [0, 0], sizes = [17, 640], strides = [1, 1]} : vector<17x1280xf32> to vector<17x640xf32>
    %31 = vector.extract_strided_slice %29 {offsets = [0, 640], sizes = [17, 640], strides = [1, 1]} : vector<17x1280xf32> to vector<17x640xf32>
    %32 = arith.mulf %30, %30 : vector<17x640xf32>
    %33 = arith.mulf %31, %31 : vector<17x640xf32>
    %34 = arith.addf %32, %33 : vector<17x640xf32>
    %cst_16 = arith.constant 0.000000e+00 : f32
    %35 = vector.broadcast %cst_16 : f32 to vector<1x640xf32>
    %36 = tpu.concatenate %35, %34, %35 in 0 : vector<1x640xf32>, vector<17x640xf32>, vector<1x640xf32> -> vector<19x640xf32>
    %37 = arith.truncf %36 : vector<19x640xf32> to vector<19x640xbf16>
    %38 = vector.extract_strided_slice %37 {offsets = [0, 0], sizes = [17, 640], strides = [1, 1]} : vector<19x640xbf16> to vector<17x640xbf16>
    %c0_17 = arith.constant 0 : index
    %c0_18 = arith.constant 0 : index
    %c0_19 = arith.constant 0 : index
    %39 = vector.load %arg3[%c0_17, %c0_18, %c0_19] : memref<3x640x32xbf16, #tpu.memory_space<vmem>>, vector<1x640x32xbf16>
    %40 = vector.shape_cast %39 : vector<1x640x32xbf16> to vector<640x32xbf16>
    %cst_20 = arith.constant dense<0.000000e+00> : vector<17x32xf32>
    %41 = tpu.matmul %38, %40, %cst_20 {dimension_numbers = #tpu.dot_dimension_numbers<[1], [0], [0], [1], [0, 0, 1, 1], [], []>} : vector<17x640xbf16>, vector<640x32xbf16>, vector<17x32xf32> -> vector<17x32xf32>
    %42 = vector.extract_strided_slice %37 {offsets = [1, 0], sizes = [17, 640], strides = [1, 1]} : vector<19x640xbf16> to vector<17x640xbf16>
    %c1_21 = arith.constant 1 : index
    %c0_22 = arith.constant 0 : index
    %c0_23 = arith.constant 0 : index
    %43 = vector.load %arg3[%c1_21, %c0_22, %c0_23] : memref<3x640x32xbf16, #tpu.memory_space<vmem>>, vector<1x640x32xbf16>
    %44 = vector.shape_cast %43 : vector<1x640x32xbf16> to vector<640x32xbf16>
    %cst_24 = arith.constant dense<0.000000e+00> : vector<17x32xf32>
    %45 = tpu.matmul %42, %44, %cst_24 {dimension_numbers = #tpu.dot_dimension_numbers<[1], [0], [0], [1], [0, 0, 1, 1], [], []>} : vector<17x640xbf16>, vector<640x32xbf16>, vector<17x32xf32> -> vector<17x32xf32>
    %46 = arith.addf %41, %45 : vector<17x32xf32>
    %47 = vector.extract_strided_slice %37 {offsets = [2, 0], sizes = [17, 640], strides = [1, 1]} : vector<19x640xbf16> to vector<17x640xbf16>
    %c2_25 = arith.constant 2 : index
    %c0_26 = arith.constant 0 : index
    %c0_27 = arith.constant 0 : index
    %48 = vector.load %arg3[%c2_25, %c0_26, %c0_27] : memref<3x640x32xbf16, #tpu.memory_space<vmem>>, vector<1x640x32xbf16>
    %49 = vector.shape_cast %48 : vector<1x640x32xbf16> to vector<640x32xbf16>
    %cst_28 = arith.constant dense<0.000000e+00> : vector<17x32xf32>
    %50 = tpu.matmul %47, %49, %cst_28 {dimension_numbers = #tpu.dot_dimension_numbers<[1], [0], [0], [1], [0, 0, 1, 1], [], []>} : vector<17x640xbf16>, vector<640x32xbf16>, vector<17x32xf32> -> vector<17x32xf32>
    %51 = arith.addf %46, %50 : vector<17x32xf32>
    %c0_29 = arith.constant 0 : index
    %c0_30 = arith.constant 0 : index
    %52 = vector.load %arg4[%c0_29, %c0_30] : memref<1x32xf32, #tpu.memory_space<vmem>>, vector<1x32xf32>
    %53 = vector.broadcast %52 : vector<1x32xf32> to vector<17x32xf32>
    %54 = arith.addf %51, %53 : vector<17x32xf32>
    %cst_31 = arith.constant 0.000000e+00 : f32
    %55 = vector.broadcast %cst_31 : f32 to vector<17x32xf32>
    %56 = arith.cmpf oge, %54, %55 : vector<17x32xf32>
    %cst_32 = arith.constant 2.000000e-01 : f32
    %57 = vector.broadcast %cst_32 : f32 to vector<17x32xf32>
    %58 = arith.mulf %57, %54 : vector<17x32xf32>
    %59 = arith.select %56, %54, %58 : vector<17x32xi1>, vector<17x32xf32>
    %cst_33 = arith.constant 0.000000e+00 : f32
    %60 = vector.broadcast %cst_33 : f32 to vector<1x32xf32>
    %61 = tpu.concatenate %60, %59, %60 in 0 : vector<1x32xf32>, vector<17x32xf32>, vector<1x32xf32> -> vector<19x32xf32>
    %62 = arith.truncf %61 : vector<19x32xf32> to vector<19x32xbf16>
    %63 = vector.extract_strided_slice %62 {offsets = [0, 0], sizes = [17, 32], strides = [1, 1]} : vector<19x32xbf16> to vector<17x32xbf16>
    %c0_34 = arith.constant 0 : index
    %c0_35 = arith.constant 0 : index
    %c0_36 = arith.constant 0 : index
    %64 = vector.load %arg5[%c0_34, %c0_35, %c0_36] : memref<3x32x64xbf16, #tpu.memory_space<vmem>>, vector<1x32x64xbf16>
    %65 = vector.shape_cast %64 : vector<1x32x64xbf16> to vector<32x64xbf16>
    %cst_37 = arith.constant dense<0.000000e+00> : vector<17x64xf32>
    %66 = tpu.matmul %63, %65, %cst_37 {dimension_numbers = #tpu.dot_dimension_numbers<[1], [0], [0], [1], [0, 0, 1, 1], [], []>} : vector<17x32xbf16>, vector<32x64xbf16>, vector<17x64xf32> -> vector<17x64xf32>
    %67 = vector.extract_strided_slice %62 {offsets = [1, 0], sizes = [17, 32], strides = [1, 1]} : vector<19x32xbf16> to vector<17x32xbf16>
    %c1_38 = arith.constant 1 : index
    %c0_39 = arith.constant 0 : index
    %c0_40 = arith.constant 0 : index
    %68 = vector.load %arg5[%c1_38, %c0_39, %c0_40] : memref<3x32x64xbf16, #tpu.memory_space<vmem>>, vector<1x32x64xbf16>
    %69 = vector.shape_cast %68 : vector<1x32x64xbf16> to vector<32x64xbf16>
    %cst_41 = arith.constant dense<0.000000e+00> : vector<17x64xf32>
    %70 = tpu.matmul %67, %69, %cst_41 {dimension_numbers = #tpu.dot_dimension_numbers<[1], [0], [0], [1], [0, 0, 1, 1], [], []>} : vector<17x32xbf16>, vector<32x64xbf16>, vector<17x64xf32> -> vector<17x64xf32>
    %71 = arith.addf %66, %70 : vector<17x64xf32>
    %72 = vector.extract_strided_slice %62 {offsets = [2, 0], sizes = [17, 32], strides = [1, 1]} : vector<19x32xbf16> to vector<17x32xbf16>
    %c2_42 = arith.constant 2 : index
    %c0_43 = arith.constant 0 : index
    %c0_44 = arith.constant 0 : index
    %73 = vector.load %arg5[%c2_42, %c0_43, %c0_44] : memref<3x32x64xbf16, #tpu.memory_space<vmem>>, vector<1x32x64xbf16>
    %74 = vector.shape_cast %73 : vector<1x32x64xbf16> to vector<32x64xbf16>
    %cst_45 = arith.constant dense<0.000000e+00> : vector<17x64xf32>
    %75 = tpu.matmul %72, %74, %cst_45 {dimension_numbers = #tpu.dot_dimension_numbers<[1], [0], [0], [1], [0, 0, 1, 1], [], []>} : vector<17x32xbf16>, vector<32x64xbf16>, vector<17x64xf32> -> vector<17x64xf32>
    %76 = arith.addf %71, %75 : vector<17x64xf32>
    %c0_46 = arith.constant 0 : index
    %c0_47 = arith.constant 0 : index
    %77 = vector.load %arg6[%c0_46, %c0_47] : memref<1x64xf32, #tpu.memory_space<vmem>>, vector<1x64xf32>
    %78 = vector.broadcast %77 : vector<1x64xf32> to vector<17x64xf32>
    %79 = arith.addf %76, %78 : vector<17x64xf32>
    %80 = tpu.iota {dimensions = array<i32: 0>} : vector<8x17xi32>
    %81 = tpu.iota {dimensions = array<i32: 1>} : vector<8x17xi32>
    %c2_i32 = arith.constant 2 : i32
    %82 = vector.broadcast %c2_i32 : i32 to vector<8x17xi32>
    %83 = arith.muli %82, %80 : vector<8x17xi32>
    %84 = arith.cmpi eq, %81, %83 : vector<8x17xi32>
    %c2_i32_48 = arith.constant 2 : i32
    %85 = vector.broadcast %c2_i32_48 : i32 to vector<8x17xi32>
    %86 = arith.muli %85, %80 : vector<8x17xi32>
    %c1_i32 = arith.constant 1 : i32
    %87 = vector.broadcast %c1_i32 : i32 to vector<8x17xi32>
    %88 = arith.addi %86, %87 : vector<8x17xi32>
    %89 = arith.cmpi eq, %81, %88 : vector<8x17xi32>
    %90 = arith.ori %84, %89 : vector<8x17xi1>
    %cst_49 = arith.constant 5.000000e-01 : f32
    %cst_50 = arith.constant 0.000000e+00 : f32
    %91 = vector.broadcast %cst_49 : f32 to vector<8x17xf32>
    %92 = vector.broadcast %cst_50 : f32 to vector<8x17xf32>
    %93 = arith.select %90, %91, %92 : vector<8x17xi1>, vector<8x17xf32>
    %cst_51 = arith.constant dense<0.000000e+00> : vector<8x64xf32>
    %94 = tpu.matmul %93, %79, %cst_51 {dimension_numbers = #tpu.dot_dimension_numbers<[1], [0], [0], [1], [0, 0, 1, 1], [], []>} : vector<8x17xf32>, vector<17x64xf32>, vector<8x64xf32> -> vector<8x64xf32>
    %cst_52 = arith.constant 0.000000e+00 : f32
    %95 = vector.broadcast %cst_52 : f32 to vector<8x64xf32>
    %96 = arith.cmpf oge, %94, %95 : vector<8x64xf32>
    %cst_53 = arith.constant 2.000000e-01 : f32
    %97 = vector.broadcast %cst_53 : f32 to vector<8x64xf32>
    %98 = arith.mulf %97, %94 : vector<8x64xf32>
    %99 = arith.select %96, %94, %98 : vector<8x64xi1>, vector<8x64xf32>
    %cst_54 = arith.constant 0.000000e+00 : f32
    %100 = vector.broadcast %cst_54 : f32 to vector<1x64xf32>
    %101 = tpu.concatenate %100, %99, %100 in 0 : vector<1x64xf32>, vector<8x64xf32>, vector<1x64xf32> -> vector<10x64xf32>
    %102 = arith.truncf %101 : vector<10x64xf32> to vector<10x64xbf16>
    %103 = vector.extract_strided_slice %102 {offsets = [0, 0], sizes = [8, 64], strides = [1, 1]} : vector<10x64xbf16> to vector<8x64xbf16>
    %c0_55 = arith.constant 0 : index
    %c0_56 = arith.constant 0 : index
    %c0_57 = arith.constant 0 : index
    %104 = vector.load %arg7[%c0_55, %c0_56, %c0_57] : memref<3x64x128xbf16, #tpu.memory_space<vmem>>, vector<1x64x128xbf16>
    %105 = vector.shape_cast %104 : vector<1x64x128xbf16> to vector<64x128xbf16>
    %cst_58 = arith.constant dense<0.000000e+00> : vector<8x128xf32>
    %106 = tpu.matmul %103, %105, %cst_58 {dimension_numbers = #tpu.dot_dimension_numbers<[1], [0], [0], [1], [0, 0, 1, 1], [], []>} : vector<8x64xbf16>, vector<64x128xbf16>, vector<8x128xf32> -> vector<8x128xf32>
    %107 = vector.extract_strided_slice %102 {offsets = [1, 0], sizes = [8, 64], strides = [1, 1]} : vector<10x64xbf16> to vector<8x64xbf16>
    %c1_59 = arith.constant 1 : index
    %c0_60 = arith.constant 0 : index
    %c0_61 = arith.constant 0 : index
    %108 = vector.load %arg7[%c1_59, %c0_60, %c0_61] : memref<3x64x128xbf16, #tpu.memory_space<vmem>>, vector<1x64x128xbf16>
    %109 = vector.shape_cast %108 : vector<1x64x128xbf16> to vector<64x128xbf16>
    %cst_62 = arith.constant dense<0.000000e+00> : vector<8x128xf32>
    %110 = tpu.matmul %107, %109, %cst_62 {dimension_numbers = #tpu.dot_dimension_numbers<[1], [0], [0], [1], [0, 0, 1, 1], [], []>} : vector<8x64xbf16>, vector<64x128xbf16>, vector<8x128xf32> -> vector<8x128xf32>
    %111 = arith.addf %106, %110 : vector<8x128xf32>
    %112 = vector.extract_strided_slice %102 {offsets = [2, 0], sizes = [8, 64], strides = [1, 1]} : vector<10x64xbf16> to vector<8x64xbf16>
    %c2_63 = arith.constant 2 : index
    %c0_64 = arith.constant 0 : index
    %c0_65 = arith.constant 0 : index
    %113 = vector.load %arg7[%c2_63, %c0_64, %c0_65] : memref<3x64x128xbf16, #tpu.memory_space<vmem>>, vector<1x64x128xbf16>
    %114 = vector.shape_cast %113 : vector<1x64x128xbf16> to vector<64x128xbf16>
    %cst_66 = arith.constant dense<0.000000e+00> : vector<8x128xf32>
    %115 = tpu.matmul %112, %114, %cst_66 {dimension_numbers = #tpu.dot_dimension_numbers<[1], [0], [0], [1], [0, 0, 1, 1], [], []>} : vector<8x64xbf16>, vector<64x128xbf16>, vector<8x128xf32> -> vector<8x128xf32>
    %116 = arith.addf %111, %115 : vector<8x128xf32>
    %c0_67 = arith.constant 0 : index
    %c0_68 = arith.constant 0 : index
    %117 = vector.load %arg8[%c0_67, %c0_68] : memref<1x128xf32, #tpu.memory_space<vmem>>, vector<1x128xf32>
    %118 = vector.broadcast %117 : vector<1x128xf32> to vector<8x128xf32>
    %119 = arith.addf %116, %118 : vector<8x128xf32>
    %120 = tpu.iota {dimensions = array<i32: 0>} : vector<4x8xi32>
    %121 = tpu.iota {dimensions = array<i32: 1>} : vector<4x8xi32>
    %c2_i32_69 = arith.constant 2 : i32
    %122 = vector.broadcast %c2_i32_69 : i32 to vector<4x8xi32>
    %123 = arith.muli %122, %120 : vector<4x8xi32>
    %124 = arith.cmpi eq, %121, %123 : vector<4x8xi32>
    %c2_i32_70 = arith.constant 2 : i32
    %125 = vector.broadcast %c2_i32_70 : i32 to vector<4x8xi32>
    %126 = arith.muli %125, %120 : vector<4x8xi32>
    %c1_i32_71 = arith.constant 1 : i32
    %127 = vector.broadcast %c1_i32_71 : i32 to vector<4x8xi32>
    %128 = arith.addi %126, %127 : vector<4x8xi32>
    %129 = arith.cmpi eq, %121, %128 : vector<4x8xi32>
    %130 = arith.ori %124, %129 : vector<4x8xi1>
    %cst_72 = arith.constant 5.000000e-01 : f32
    %cst_73 = arith.constant 0.000000e+00 : f32
    %131 = vector.broadcast %cst_72 : f32 to vector<4x8xf32>
    %132 = vector.broadcast %cst_73 : f32 to vector<4x8xf32>
    %133 = arith.select %130, %131, %132 : vector<4x8xi1>, vector<4x8xf32>
    %cst_74 = arith.constant dense<0.000000e+00> : vector<4x128xf32>
    %134 = tpu.matmul %133, %119, %cst_74 {dimension_numbers = #tpu.dot_dimension_numbers<[1], [0], [0], [1], [0, 0, 1, 1], [], []>} : vector<4x8xf32>, vector<8x128xf32>, vector<4x128xf32> -> vector<4x128xf32>
    %cst_75 = arith.constant 0.000000e+00 : f32
    %135 = vector.broadcast %cst_75 : f32 to vector<4x128xf32>
    %136 = arith.cmpf oge, %134, %135 : vector<4x128xf32>
    %cst_76 = arith.constant 2.000000e-01 : f32
    %137 = vector.broadcast %cst_76 : f32 to vector<4x128xf32>
    %138 = arith.mulf %137, %134 : vector<4x128xf32>
    %139 = arith.select %136, %134, %138 : vector<4x128xi1>, vector<4x128xf32>
    %cst_77 = arith.constant 0.000000e+00 : f32
    %140 = vector.broadcast %cst_77 : f32 to vector<1x128xf32>
    %141 = tpu.concatenate %140, %139, %140 in 0 : vector<1x128xf32>, vector<4x128xf32>, vector<1x128xf32> -> vector<6x128xf32>
    %142 = arith.truncf %141 : vector<6x128xf32> to vector<6x128xbf16>
    %143 = vector.extract_strided_slice %142 {offsets = [0, 0], sizes = [4, 128], strides = [1, 1]} : vector<6x128xbf16> to vector<4x128xbf16>
    %c0_78 = arith.constant 0 : index
    %c0_79 = arith.constant 0 : index
    %c0_80 = arith.constant 0 : index
    %144 = vector.load %arg9[%c0_78, %c0_79, %c0_80] : memref<3x128x256xbf16, #tpu.memory_space<vmem>>, vector<1x128x256xbf16>
    %145 = vector.shape_cast %144 : vector<1x128x256xbf16> to vector<128x256xbf16>
    %cst_81 = arith.constant dense<0.000000e+00> : vector<4x256xf32>
    %146 = tpu.matmul %143, %145, %cst_81 {dimension_numbers = #tpu.dot_dimension_numbers<[1], [0], [0], [1], [0, 0, 1, 1], [], []>} : vector<4x128xbf16>, vector<128x256xbf16>, vector<4x256xf32> -> vector<4x256xf32>
    %147 = vector.extract_strided_slice %142 {offsets = [1, 0], sizes = [4, 128], strides = [1, 1]} : vector<6x128xbf16> to vector<4x128xbf16>
    %c1_82 = arith.constant 1 : index
    %c0_83 = arith.constant 0 : index
    %c0_84 = arith.constant 0 : index
    %148 = vector.load %arg9[%c1_82, %c0_83, %c0_84] : memref<3x128x256xbf16, #tpu.memory_space<vmem>>, vector<1x128x256xbf16>
    %149 = vector.shape_cast %148 : vector<1x128x256xbf16> to vector<128x256xbf16>
    %cst_85 = arith.constant dense<0.000000e+00> : vector<4x256xf32>
    %150 = tpu.matmul %147, %149, %cst_85 {dimension_numbers = #tpu.dot_dimension_numbers<[1], [0], [0], [1], [0, 0, 1, 1], [], []>} : vector<4x128xbf16>, vector<128x256xbf16>, vector<4x256xf32> -> vector<4x256xf32>
    %151 = arith.addf %146, %150 : vector<4x256xf32>
    %152 = vector.extract_strided_slice %142 {offsets = [2, 0], sizes = [4, 128], strides = [1, 1]} : vector<6x128xbf16> to vector<4x128xbf16>
    %c2_86 = arith.constant 2 : index
    %c0_87 = arith.constant 0 : index
    %c0_88 = arith.constant 0 : index
    %153 = vector.load %arg9[%c2_86, %c0_87, %c0_88] : memref<3x128x256xbf16, #tpu.memory_space<vmem>>, vector<1x128x256xbf16>
    %154 = vector.shape_cast %153 : vector<1x128x256xbf16> to vector<128x256xbf16>
    %cst_89 = arith.constant dense<0.000000e+00> : vector<4x256xf32>
    %155 = tpu.matmul %152, %154, %cst_89 {dimension_numbers = #tpu.dot_dimension_numbers<[1], [0], [0], [1], [0, 0, 1, 1], [], []>} : vector<4x128xbf16>, vector<128x256xbf16>, vector<4x256xf32> -> vector<4x256xf32>
    %156 = arith.addf %151, %155 : vector<4x256xf32>
    %c0_90 = arith.constant 0 : index
    %c0_91 = arith.constant 0 : index
    %157 = vector.load %arg10[%c0_90, %c0_91] : memref<1x256xf32, #tpu.memory_space<vmem>>, vector<1x256xf32>
    %158 = vector.broadcast %157 : vector<1x256xf32> to vector<4x256xf32>
    %159 = arith.addf %156, %158 : vector<4x256xf32>
    %160 = tpu.iota {dimensions = array<i32: 0>} : vector<2x4xi32>
    %161 = tpu.iota {dimensions = array<i32: 1>} : vector<2x4xi32>
    %c2_i32_92 = arith.constant 2 : i32
    %162 = vector.broadcast %c2_i32_92 : i32 to vector<2x4xi32>
    %163 = arith.muli %162, %160 : vector<2x4xi32>
    %164 = arith.cmpi eq, %161, %163 : vector<2x4xi32>
    %c2_i32_93 = arith.constant 2 : i32
    %165 = vector.broadcast %c2_i32_93 : i32 to vector<2x4xi32>
    %166 = arith.muli %165, %160 : vector<2x4xi32>
    %c1_i32_94 = arith.constant 1 : i32
    %167 = vector.broadcast %c1_i32_94 : i32 to vector<2x4xi32>
    %168 = arith.addi %166, %167 : vector<2x4xi32>
    %169 = arith.cmpi eq, %161, %168 : vector<2x4xi32>
    %170 = arith.ori %164, %169 : vector<2x4xi1>
    %cst_95 = arith.constant 5.000000e-01 : f32
    %cst_96 = arith.constant 0.000000e+00 : f32
    %171 = vector.broadcast %cst_95 : f32 to vector<2x4xf32>
    %172 = vector.broadcast %cst_96 : f32 to vector<2x4xf32>
    %173 = arith.select %170, %171, %172 : vector<2x4xi1>, vector<2x4xf32>
    %cst_97 = arith.constant dense<0.000000e+00> : vector<2x256xf32>
    %174 = tpu.matmul %173, %159, %cst_97 {dimension_numbers = #tpu.dot_dimension_numbers<[1], [0], [0], [1], [0, 0, 1, 1], [], []>} : vector<2x4xf32>, vector<4x256xf32>, vector<2x256xf32> -> vector<2x256xf32>
    %cst_98 = arith.constant 0.000000e+00 : f32
    %175 = vector.broadcast %cst_98 : f32 to vector<2x256xf32>
    %176 = arith.cmpf oge, %174, %175 : vector<2x256xf32>
    %cst_99 = arith.constant 2.000000e-01 : f32
    %177 = vector.broadcast %cst_99 : f32 to vector<2x256xf32>
    %178 = arith.mulf %177, %174 : vector<2x256xf32>
    %179 = arith.select %176, %174, %178 : vector<2x256xi1>, vector<2x256xf32>
    %cst_100 = arith.constant 0.000000e+00 : f32
    %180 = vector.broadcast %cst_100 : f32 to vector<1x256xf32>
    %181 = tpu.concatenate %180, %179, %180 in 0 : vector<1x256xf32>, vector<2x256xf32>, vector<1x256xf32> -> vector<4x256xf32>
    %182 = arith.truncf %181 : vector<4x256xf32> to vector<4x256xbf16>
    %183 = vector.extract_strided_slice %182 {offsets = [0, 0], sizes = [2, 256], strides = [1, 1]} : vector<4x256xbf16> to vector<2x256xbf16>
    %c0_101 = arith.constant 0 : index
    %c0_102 = arith.constant 0 : index
    %c0_103 = arith.constant 0 : index
    %184 = vector.load %arg11[%c0_101, %c0_102, %c0_103] : memref<3x256x512xbf16, #tpu.memory_space<vmem>>, vector<1x256x512xbf16>
    %185 = vector.shape_cast %184 : vector<1x256x512xbf16> to vector<256x512xbf16>
    %cst_104 = arith.constant dense<0.000000e+00> : vector<2x512xf32>
    %186 = tpu.matmul %183, %185, %cst_104 {dimension_numbers = #tpu.dot_dimension_numbers<[1], [0], [0], [1], [0, 0, 1, 1], [], []>} : vector<2x256xbf16>, vector<256x512xbf16>, vector<2x512xf32> -> vector<2x512xf32>
    %187 = vector.extract_strided_slice %182 {offsets = [1, 0], sizes = [2, 256], strides = [1, 1]} : vector<4x256xbf16> to vector<2x256xbf16>
    %c1_105 = arith.constant 1 : index
    %c0_106 = arith.constant 0 : index
    %c0_107 = arith.constant 0 : index
    %188 = vector.load %arg11[%c1_105, %c0_106, %c0_107] : memref<3x256x512xbf16, #tpu.memory_space<vmem>>, vector<1x256x512xbf16>
    %189 = vector.shape_cast %188 : vector<1x256x512xbf16> to vector<256x512xbf16>
    %cst_108 = arith.constant dense<0.000000e+00> : vector<2x512xf32>
    %190 = tpu.matmul %187, %189, %cst_108 {dimension_numbers = #tpu.dot_dimension_numbers<[1], [0], [0], [1], [0, 0, 1, 1], [], []>} : vector<2x256xbf16>, vector<256x512xbf16>, vector<2x512xf32> -> vector<2x512xf32>
    %191 = arith.addf %186, %190 : vector<2x512xf32>
    %192 = vector.extract_strided_slice %182 {offsets = [2, 0], sizes = [2, 256], strides = [1, 1]} : vector<4x256xbf16> to vector<2x256xbf16>
    %c2_109 = arith.constant 2 : index
    %c0_110 = arith.constant 0 : index
    %c0_111 = arith.constant 0 : index
    %193 = vector.load %arg11[%c2_109, %c0_110, %c0_111] : memref<3x256x512xbf16, #tpu.memory_space<vmem>>, vector<1x256x512xbf16>
    %194 = vector.shape_cast %193 : vector<1x256x512xbf16> to vector<256x512xbf16>
    %cst_112 = arith.constant dense<0.000000e+00> : vector<2x512xf32>
    %195 = tpu.matmul %192, %194, %cst_112 {dimension_numbers = #tpu.dot_dimension_numbers<[1], [0], [0], [1], [0, 0, 1, 1], [], []>} : vector<2x256xbf16>, vector<256x512xbf16>, vector<2x512xf32> -> vector<2x512xf32>
    %196 = arith.addf %191, %195 : vector<2x512xf32>
    %c0_113 = arith.constant 0 : index
    %c0_114 = arith.constant 0 : index
    %197 = vector.load %arg12[%c0_113, %c0_114] : memref<1x512xf32, #tpu.memory_space<vmem>>, vector<1x512xf32>
    %198 = vector.broadcast %197 : vector<1x512xf32> to vector<2x512xf32>
    %199 = arith.addf %196, %198 : vector<2x512xf32>
    %200 = tpu.iota {dimensions = array<i32: 0>} : vector<1x2xi32>
    %201 = tpu.iota {dimensions = array<i32: 1>} : vector<1x2xi32>
    %c2_i32_115 = arith.constant 2 : i32
    %202 = vector.broadcast %c2_i32_115 : i32 to vector<1x2xi32>
    %203 = arith.muli %202, %200 : vector<1x2xi32>
    %204 = arith.cmpi eq, %201, %203 : vector<1x2xi32>
    %c2_i32_116 = arith.constant 2 : i32
    %205 = vector.broadcast %c2_i32_116 : i32 to vector<1x2xi32>
    %206 = arith.muli %205, %200 : vector<1x2xi32>
    %c1_i32_117 = arith.constant 1 : i32
    %207 = vector.broadcast %c1_i32_117 : i32 to vector<1x2xi32>
    %208 = arith.addi %206, %207 : vector<1x2xi32>
    %209 = arith.cmpi eq, %201, %208 : vector<1x2xi32>
    %210 = arith.ori %204, %209 : vector<1x2xi1>
    %cst_118 = arith.constant 5.000000e-01 : f32
    %cst_119 = arith.constant 0.000000e+00 : f32
    %211 = vector.broadcast %cst_118 : f32 to vector<1x2xf32>
    %212 = vector.broadcast %cst_119 : f32 to vector<1x2xf32>
    %213 = arith.select %210, %211, %212 : vector<1x2xi1>, vector<1x2xf32>
    %cst_120 = arith.constant dense<0.000000e+00> : vector<1x512xf32>
    %214 = tpu.matmul %213, %199, %cst_120 {dimension_numbers = #tpu.dot_dimension_numbers<[1], [0], [0], [1], [0, 0, 1, 1], [], []>} : vector<1x2xf32>, vector<2x512xf32>, vector<1x512xf32> -> vector<1x512xf32>
    %cst_121 = arith.constant dense<0.000000e+00> : vector<512xf32>
    %215 = vector.multi_reduction <add>, %214, %cst_121 [0] : vector<1x512xf32> to vector<512xf32>
    %216 = vector.shape_cast %215 : vector<512xf32> to vector<1x512xf32>
    %cst_122 = arith.constant 1.000000e+00 : f32
    %217 = vector.broadcast %cst_122 : f32 to vector<1x512xf32>
    %218 = arith.divf %216, %217 : vector<1x512xf32>
    %c0_123 = arith.constant 0 : index
    %c0_124 = arith.constant 0 : index
    %219 = vector.load %arg13[%c0_123, %c0_124] : memref<1x512xf32, #tpu.memory_space<vmem>>, vector<1x512xf32>
    %220 = arith.mulf %218, %219 : vector<1x512xf32>
    %cst_125 = arith.constant dense<0.000000e+00> : vector<1xf32>
    %221 = vector.multi_reduction <add>, %220, %cst_125 [1] : vector<1x512xf32> to vector<1xf32>
    %222 = vector.shape_cast %221 : vector<1xf32> to vector<1x1xf32>
    %c0_126 = arith.constant 0 : index
    %c0_127 = arith.constant 0 : index
    %223 = vector.load %arg14[%c0_126, %c0_127] : memref<1x1xf32, #tpu.memory_space<vmem>>, vector<1x1xf32>
    %224 = arith.addf %222, %223 : vector<1x1xf32>
    %c0_128 = arith.constant 0 : index
    %c0_129 = arith.constant 0 : index
    %c0_130 = arith.constant 0 : index
    %225 = vector.load %arg15[%c0_128, %c0_129, %c0_130] : memref<1x1x1xf32, #tpu.memory_space<vmem>>, vector<1x1x1xf32>
    %226 = vector.shape_cast %225 : vector<1x1x1xf32> to vector<1x1xf32>
    %227 = vector.shape_cast %224 : vector<1x1xf32> to vector<1x1x1xf32>
    tpu.vector_store %arg15[%c0_128, %c0_129, %c0_130], %227 {strides = array<i32>} : memref<1x1x1xf32, #tpu.memory_space<vmem>>, vector<1x1x1xf32>,
    return
  }
  func.func @transform_0(%arg0: i32) -> (i32, i32, i32) {
    %c0_i32 = arith.constant 0 : i32
    %c0_i32_0 = arith.constant 0 : i32
    %c0_i32_1 = arith.constant 0 : i32
    return %arg0, %c0_i32, %c0_i32_0 : i32, i32, i32
  }
  func.func @transform_1(%arg0: i32) -> (i32, i32, i32) {
    %c0_i32 = arith.constant 0 : i32
    %c0_i32_0 = arith.constant 0 : i32
    %c0_i32_1 = arith.constant 0 : i32
    %c0_i32_2 = arith.constant 0 : i32
    return %c0_i32, %c0_i32_0, %c0_i32_1 : i32, i32, i32
  }
  func.func @transform_2(%arg0: i32) -> (i32, i32, i32) {
    %c0_i32 = arith.constant 0 : i32
    %c0_i32_0 = arith.constant 0 : i32
    %c0_i32_1 = arith.constant 0 : i32
    %c0_i32_2 = arith.constant 0 : i32
    return %c0_i32, %c0_i32_0, %c0_i32_1 : i32, i32, i32
  }
  func.func @transform_3(%arg0: i32) -> (i32, i32) {
    %c0_i32 = arith.constant 0 : i32
    %c0_i32_0 = arith.constant 0 : i32
    %c0_i32_1 = arith.constant 0 : i32
    return %c0_i32, %c0_i32_0 : i32, i32
  }
  func.func @transform_4(%arg0: i32) -> (i32, i32, i32) {
    %c0_i32 = arith.constant 0 : i32
    %c0_i32_0 = arith.constant 0 : i32
    %c0_i32_1 = arith.constant 0 : i32
    %c0_i32_2 = arith.constant 0 : i32
    return %c0_i32, %c0_i32_0, %c0_i32_1 : i32, i32, i32
  }
  func.func @transform_5(%arg0: i32) -> (i32, i32) {
    %c0_i32 = arith.constant 0 : i32
    %c0_i32_0 = arith.constant 0 : i32
    %c0_i32_1 = arith.constant 0 : i32
    return %c0_i32, %c0_i32_0 : i32, i32
  }
  func.func @transform_6(%arg0: i32) -> (i32, i32, i32) {
    %c0_i32 = arith.constant 0 : i32
    %c0_i32_0 = arith.constant 0 : i32
    %c0_i32_1 = arith.constant 0 : i32
    %c0_i32_2 = arith.constant 0 : i32
    return %c0_i32, %c0_i32_0, %c0_i32_1 : i32, i32, i32
  }
  func.func @transform_7(%arg0: i32) -> (i32, i32) {
    %c0_i32 = arith.constant 0 : i32
    %c0_i32_0 = arith.constant 0 : i32
    %c0_i32_1 = arith.constant 0 : i32
    return %c0_i32, %c0_i32_0 : i32, i32
  }
  func.func @transform_8(%arg0: i32) -> (i32, i32, i32) {
    %c0_i32 = arith.constant 0 : i32
    %c0_i32_0 = arith.constant 0 : i32
    %c0_i32_1 = arith.constant 0 : i32
    %c0_i32_2 = arith.constant 0 : i32
    return %c0_i32, %c0_i32_0, %c0_i32_1 : i32, i32, i32
  }
  func.func @transform_9(%arg0: i32) -> (i32, i32) {
    %c0_i32 = arith.constant 0 : i32
    %c0_i32_0 = arith.constant 0 : i32
    %c0_i32_1 = arith.constant 0 : i32
    return %c0_i32, %c0_i32_0 : i32, i32
  }
  func.func @transform_10(%arg0: i32) -> (i32, i32, i32) {
    %c0_i32 = arith.constant 0 : i32
    %c0_i32_0 = arith.constant 0 : i32
    %c0_i32_1 = arith.constant 0 : i32
    %c0_i32_2 = arith.constant 0 : i32
    return %c0_i32, %c0_i32_0, %c0_i32_1 : i32, i32, i32
  }
  func.func @transform_11(%arg0: i32) -> (i32, i32) {
    %c0_i32 = arith.constant 0 : i32
    %c0_i32_0 = arith.constant 0 : i32
    %c0_i32_1 = arith.constant 0 : i32
    return %c0_i32, %c0_i32_0 : i32, i32
  }
  func.func @transform_12(%arg0: i32) -> (i32, i32) {
    %c0_i32 = arith.constant 0 : i32
    %c0_i32_0 = arith.constant 0 : i32
    %c0_i32_1 = arith.constant 0 : i32
    return %c0_i32, %c0_i32_0 : i32, i32
  }
  func.func @transform_13(%arg0: i32) -> (i32, i32) {
    %c0_i32 = arith.constant 0 : i32
    %c0_i32_0 = arith.constant 0 : i32
    %c0_i32_1 = arith.constant 0 : i32
    return %c0_i32, %c0_i32_0 : i32, i32
  }
  func.func @transform_14(%arg0: i32) -> (i32, i32, i32) {
    %c0_i32 = arith.constant 0 : i32
    %c0_i32_0 = arith.constant 0 : i32
    %c0_i32_1 = arith.constant 0 : i32
    return %arg0, %c0_i32, %c0_i32_0 : i32, i32, i32
  }
}

</mosaic_0001>

<llo_original>
// kernel: predictor_forward.1
$region0: #{predictor_forward.1}
  #allocation0 [shape = 'u32[]', space=smem, size = 0x4, offset = 0x4, fixed_abs, tag = 'smem constant byte address 0x4 - core index']
  #allocation1 [shape = 'u32[144,128]{1,0:T(1,128)}', space=vmem, size = 0x12000, scoped, tag = 'internal scratch']
  #allocation2 [shape = 'f32[1,1]{1,0:T(1,128)S(1)}', space=vmem, size = 0x200, scoped, tag = 'scoped memory for predictor_forward.1']
  %s0 = inlined_call_operand.vmem [shape: f32[2,20,256], index: 0, kind: input, shape index: {}]
  %s1 = inlined_call_operand.hbm [shape: bf16[4,256,1280], index: 1, kind: input, shape index: {}]
  %s2 = inlined_call_operand.vmem [shape: bf16[3,640,32], index: 2, kind: input, shape index: {}]
  %s3 = inlined_call_operand.hbm [shape: f32[1,32], index: 3, kind: input, shape index: {}]
  %s4 = inlined_call_operand.hbm [shape: bf16[3,32,64], index: 4, kind: input, shape index: {}]
  %s5 = inlined_call_operand.hbm [shape: f32[1,64], index: 5, kind: input, shape index: {}]
  %s6 = inlined_call_operand.hbm [shape: bf16[3,64,128], index: 6, kind: input, shape index: {}]
  %s7 = inlined_call_operand.hbm [shape: f32[1,128], index: 7, kind: input, shape index: {}]
  %s8 = inlined_call_operand.hbm [shape: bf16[3,128,256], index: 8, kind: input, shape index: {}]
  %s9 = inlined_call_operand.hbm [shape: f32[1,256], index: 9, kind: input, shape index: {}]
  %s10 = inlined_call_operand.hbm [shape: bf16[3,256,512], index: 10, kind: input, shape index: {}]
  %s11 = inlined_call_operand.hbm [shape: f32[1,512], index: 11, kind: input, shape index: {}]
  %s12 = inlined_call_operand.hbm [shape: f32[1,512], index: 12, kind: input, shape index: {}]
  %s13 = inlined_call_operand.<no memory space> [shape: f32[1,1], index: 13, kind: input, shape index: {}]
  %s14 = inlined_call_operand.vmem [shape: f32[2,1,1], index: 14, kind: output, shape index: {}]
  %s15 = sld [smem:[#allocation0]]
  $region133: #{predictor_forward.1} parent=0
    _
  %s17 = ssub.s32 1, %s15
  %s18 = scalar_select 0, %s17, %s15
  %v19 = vstv %s13
  %20 = vst [vmem:[#allocation2] sm:$0x1] %v19
  $region1: #{predictor_forward.1} parent=0
    #allocation3 [shape = 'u8[2621440]{0}', space=vmem, size = 0x280000, scoped, tag = 'input window, operand 1, single buffered']
    #allocation4 [shape = 's32[2]{0}', space=sflag, size = 0x8, scoped, tag = 'scoped memory for predictor_forward.1']
    #allocation5 [shape = 'u8[512]{0}', space=vmem, size = 0x400, scoped, tag = 'input window, operand 3, single buffered']
    #allocation6 [shape = 's32[1]{0}', space=sflag, size = 0x4, scoped, tag = 'scoped memory for predictor_forward.1']
    #allocation7 [shape = 'u8[24576]{0}', space=vmem, size = 0x6000, scoped, tag = 'input window, operand 4, single buffered']
    #allocation8 [shape = 'u8[512]{0}', space=vmem, size = 0x400, scoped, tag = 'input window, operand 5, single buffered']
    #allocation9 [shape = 's32[1]{0}', space=sflag, size = 0x4, scoped, tag = 'scoped memory for predictor_forward.1']
    #allocation10 [shape = 'u8[49152]{0}', space=vmem, size = 0xc000, scoped, tag = 'input window, operand 6, single buffered']
    #allocation11 [shape = 'u8[512]{0}', space=vmem, size = 0x400, scoped, tag = 'input window, operand 7, single buffered']
    #allocation12 [shape = 's32[1]{0}', space=sflag, size = 0x4, scoped, tag = 'scoped memory for predictor_forward.1']
    #allocation13 [shape = 'u8[196608]{0}', space=vmem, size = 0x30000, scoped, tag = 'input window, operand 8, single buffered']
    #allocation14 [shape = 'u8[1024]{0}', space=vmem, size = 0x400, scoped, tag = 'input window, operand 9, single buffered']
    #allocation15 [shape = 's32[1]{0}', space=sflag, size = 0x4, scoped, tag = 'scoped memory for predictor_forward.1']
    #allocation16 [shape = 'u8[786432]{0}', space=vmem, size = 0xc0000, scoped, tag = 'input window, operand 10, single buffered']
    #allocation17 [shape = 'u8[2048]{0}', space=vmem, size = 0x800, scoped, tag = 'input window, operand 11, single buffered']
    #allocation18 [shape = 's32[1]{0}', space=sflag, size = 0x4, scoped, tag = 'scoped memory for predictor_forward.1']
    #allocation19 [shape = 'u8[2048]{0}', space=vmem, size = 0x800, scoped, tag = 'input window, operand 12, single buffered']
    %21 = vsyncpa [#allocation4], 0
    %22 = vsyncpa [#allocation6], 0
    %23 = vsyncpa [#allocation9], 0
    %24 = vsyncpa [#allocation12], 0
    %25 = vsyncpa [#allocation15], 0
    %26 = vsyncpa [#allocation18], 0
    loop: start=0, step=1, limit=4
    $region2: #{predictor_forward.1} parent=1 // loop_pre_header
      _
    $region3: #{predictor_forward.1} parent=1 // loop_header
      %s28 = sphi 0, %s32
      %p29 = scmp.ge.s32.totalorder %s28, 4
      %s38 = sphi 0, %s40
      %s41 = sphi 0, %s38
      %s42 = sphi 0, %s41
      %s58 = sphi 0, %s42
      %s62 = sphi 0, %s62
      %s64 = sphi 0, %s62
      %s65 = sphi 0, %s64
      %s79 = sphi 0, %s65
      %s83 = sphi 0, %s83
      %s85 = sphi 0, %s83
      %s86 = sphi 0, %s85
      %s100 = sphi 0, %s86
      %s104 = sphi 0, %s104
      %s106 = sphi 0, %s104
      %s107 = sphi 0, %s106
      %s121 = sphi 0, %s107
      %s125 = sphi 0, %s125
      %s127 = sphi 0, %s125
      %s128 = sphi 0, %s127
      %s142 = sphi 0, %s128
      %s146 = sphi 0, %s146
      %s148 = sphi 0, %s146
      %s149 = sphi 0, %s148
      %s163 = sphi 0, %s149
      %s167 = sphi 0, %s167
      %s169 = sphi 0, %s167
      %s170 = sphi 0, %s169
      %s184 = sphi 0, %s170
      %s188 = sphi 0, %s188
      %s190 = sphi 0, %s188
      %s191 = sphi 0, %s190
      %s205 = sphi 0, %s191
      %s209 = sphi 0, %s209
      %s211 = sphi 0, %s209
      %s212 = sphi 0, %s211
      %s226 = sphi 0, %s212
      %s230 = sphi 0, %s230
      %s232 = sphi 0, %s230
      %s233 = sphi 0, %s232
      %s247 = sphi 0, %s233
      %s251 = sphi 0, %s251
      %s253 = sphi 0, %s251
      %s254 = sphi 0, %s253
      %s268 = sphi 0, %s254
      %s272 = sphi 0, %s272
      %s274 = sphi 0, %s272
      %s275 = sphi 0, %s274
      %s289 = sphi 0, %s275
      %s293 = sphi 0, %s293
      %s295 = sphi 0, %s293
      %s296 = sphi 0, %s295
      %s310 = sphi 0, %s296
      %s314 = sphi 0, %s314
      %s316 = sphi 0, %s314
      %s317 = sphi 0, %s316
      %s331 = sphi 0, %s317
      %s337 = sphi 0, %s339
      %s340 = sphi 0, %s337
      %s341 = sphi 0, %s340
      %s357 = sphi 0, %s341
    $region4: #{predictor_forward.1} parent=1 // loop_header_branch
      %31 = sbr.rel (%p29) target = $region8
    $region5: #{predictor_forward.1} parent=1 // loop_body
      %s33 = ssub.s32 %s28, 1
      %s34 = ssub.s32 %s28, 2
      %s35 = sadd.s32 %s28, 1
      %s36 = ssub.s32 %s28, %s35
      %p37 = scmp.eq.s32.totalorder %s36, 0
      %s39 = sadd.s32 %s38, 1
      %s40 = scalar_select %p37, %s38, %s39
      %p43 = pneg %p37
      %p44 = scmp.eq.s32.totalorder %s28, 1
      %p45 = por %p43, %p44
      %p46 = scmp.ne.s32.totalorder %s38, %s41
      %p47 = scmp.eq.s32.totalorder %s28, 0
      %p48 = por %p46, %p47
      %p49 = scmp.ne.s32.totalorder %s38, %s41
      %p50 = scmp.eq.s32.totalorder %s33, 1
      %p51 = por %p49, %p50
      %p52 = scmp.ne.s32.totalorder %s41, %s42
      %p53 = scmp.eq.s32.totalorder %s33, 0
      %p54 = por %p52, %p53
      %p55 = scmp.ne.s32.totalorder %s41, %s42
      %p56 = scmp.eq.s32.totalorder %s34, 1
      %p57 = por %p55, %p56
      %p59 = scmp.ne.s32.totalorder %s42, %s58
      %p60 = scmp.eq.s32.totalorder %s34, 0
      %p61 = por %p59, %p60
      %s63 = sadd.s32 %s62, 1
      %p66 = scmp.eq.s32.totalorder %s28, 1
      %p67 = scmp.ne.s32.totalorder %s62, %s64
      %p68 = scmp.eq.s32.totalorder %s28, 0
      %p69 = por %p67, %p68
      %p70 = scmp.ne.s32.totalorder %s62, %s64
      %p71 = scmp.eq.s32.totalorder %s33, 1
      %p72 = por %p70, %p71
      %p73 = scmp.ne.s32.totalorder %s64, %s65
      %p74 = scmp.eq.s32.totalorder %s33, 0
      %p75 = por %p73, %p74
      %p76 = scmp.ne.s32.totalorder %s64, %s65
      %p77 = scmp.eq.s32.totalorder %s34, 1
      %p78 = por %p76, %p77
      %p80 = scmp.ne.s32.totalorder %s65, %s79
      %p81 = scmp.eq.s32.totalorder %s34, 0
      %p82 = por %p80, %p81
      %s84 = sadd.s32 %s83, 1
      %p87 = scmp.eq.s32.totalorder %s28, 1
      %p88 = scmp.ne.s32.totalorder %s83, %s85
      %p89 = scmp.eq.s32.totalorder %s28, 0
      %p90 = por %p88, %p89
      %p91 = scmp.ne.s32.totalorder %s83, %s85
      %p92 = scmp.eq.s32.totalorder %s33, 1
      %p93 = por %p91, %p92
      %p94 = scmp.ne.s32.totalorder %s85, %s86
      %p95 = scmp.eq.s32.totalorder %s33, 0
      %p96 = por %p94, %p95
      %p97 = scmp.ne.s32.totalorder %s85, %s86
      %p98 = scmp.eq.s32.totalorder %s34, 1
      %p99 = por %p97, %p98
      %p101 = scmp.ne.s32.totalorder %s86, %s100
      %p102 = scmp.eq.s32.totalorder %s34, 0
      %p103 = por %p101, %p102
      %s105 = sadd.s32 %s104, 1
      %p108 = scmp.eq.s32.totalorder %s28, 1
      %p109 = scmp.ne.s32.totalorder %s104, %s106
      %p110 = scmp.eq.s32.totalorder %s28, 0
      %p111 = por %p109, %p110
      %p112 = scmp.ne.s32.totalorder %s104, %s106
      %p113 = scmp.eq.s32.totalorder %s33, 1
      %p114 = por %p112, %p113
      %p115 = scmp.ne.s32.totalorder %s106, %s107
      %p116 = scmp.eq.s32.totalorder %s33, 0
      %p117 = por %p115, %p116
      %p118 = scmp.ne.s32.totalorder %s106, %s107
      %p119 = scmp.eq.s32.totalorder %s34, 1
      %p120 = por %p118, %p119
      %p122 = scmp.ne.s32.totalorder %s107, %s121
      %p123 = scmp.eq.s32.totalorder %s34, 0
      %p124 = por %p122, %p123
      %s126 = sadd.s32 %s125, 1
      %p129 = scmp.eq.s32.totalorder %s28, 1
      %p130 = scmp.ne.s32.totalorder %s125, %s127
      %p131 = scmp.eq.s32.totalorder %s28, 0
      %p132 = por %p130, %p131
      %p133 = scmp.ne.s32.totalorder %s125, %s127
      %p134 = scmp.eq.s32.totalorder %s33, 1
      %p135 = por %p133, %p134
      %p136 = scmp.ne.s32.totalorder %s127, %s128
      %p137 = scmp.eq.s32.totalorder %s33, 0
      %p138 = por %p136, %p137
      %p139 = scmp.ne.s32.totalorder %s127, %s128
      %p140 = scmp.eq.s32.totalorder %s34, 1
      %p141 = por %p139, %p140
      %p143 = scmp.ne.s32.totalorder %s128, %s142
      %p144 = scmp.eq.s32.totalorder %s34, 0
      %p145 = por %p143, %p144
      %s147 = sadd.s32 %s146, 1
      %p150 = scmp.eq.s32.totalorder %s28, 1
      %p151 = scmp.ne.s32.totalorder %s146, %s148
      %p152 = scmp.eq.s32.totalorder %s28, 0
      %p153 = por %p151, %p152
      %p154 = scmp.ne.s32.totalorder %s146, %s148
      %p155 = scmp.eq.s32.totalorder %s33, 1
      %p156 = por %p154, %p155
      %p157 = scmp.ne.s32.totalorder %s148, %s149
      %p158 = scmp.eq.s32.totalorder %s33, 0
      %p159 = por %p157, %p158
      %p160 = scmp.ne.s32.totalorder %s148, %s149
      %p161 = scmp.eq.s32.totalorder %s34, 1
      %p162 = por %p160, %p161
      %p164 = scmp.ne.s32.totalorder %s149, %s163
      %p165 = scmp.eq.s32.totalorder %s34, 0
      %p166 = por %p164, %p165
      %s168 = sadd.s32 %s167, 1
      %p171 = scmp.eq.s32.totalorder %s28, 1
      %p172 = scmp.ne.s32.totalorder %s167, %s169
      %p173 = scmp.eq.s32.totalorder %s28, 0
      %p174 = por %p172, %p173
      %p175 = scmp.ne.s32.totalorder %s167, %s169
      %p176 = scmp.eq.s32.totalorder %s33, 1
      %p177 = por %p175, %p176
      %p178 = scmp.ne.s32.totalorder %s169, %s170
      %p179 = scmp.eq.s32.totalorder %s33, 0
      %p180 = por %p178, %p179
      %p181 = scmp.ne.s32.totalorder %s169, %s170
      %p182 = scmp.eq.s32.totalorder %s34, 1
      %p183 = por %p181, %p182
      %p185 = scmp.ne.s32.totalorder %s170, %s184
      %p186 = scmp.eq.s32.totalorder %s34, 0
      %p187 = por %p185, %p186
      %s189 = sadd.s32 %s188, 1
      %p192 = scmp.eq.s32.totalorder %s28, 1
      %p193 = scmp.ne.s32.totalorder %s188, %s190
      %p194 = scmp.eq.s32.totalorder %s28, 0
      %p195 = por %p193, %p194
      %p196 = scmp.ne.s32.totalorder %s188, %s190
      %p197 = scmp.eq.s32.totalorder %s33, 1
      %p198 = por %p196, %p197
      %p199 = scmp.ne.s32.totalorder %s190, %s191
      %p200 = scmp.eq.s32.totalorder %s33, 0
      %p201 = por %p199, %p200
      %p202 = scmp.ne.s32.totalorder %s190, %s191
      %p203 = scmp.eq.s32.totalorder %s34, 1
      %p204 = por %p202, %p203
      %p206 = scmp.ne.s32.totalorder %s191, %s205
      %p207 = scmp.eq.s32.totalorder %s34, 0
      %p208 = por %p206, %p207
      %s210 = sadd.s32 %s209, 1
      %p213 = scmp.eq.s32.totalorder %s28, 1
      %p214 = scmp.ne.s32.totalorder %s209, %s211
      %p215 = scmp.eq.s32.totalorder %s28, 0
      %p216 = por %p214, %p215
      %p217 = scmp.ne.s32.totalorder %s209, %s211
      %p218 = scmp.eq.s32.totalorder %s33, 1
      %p219 = por %p217, %p218
      %p220 = scmp.ne.s32.totalorder %s211, %s212
      %p221 = scmp.eq.s32.totalorder %s33, 0
      %p222 = por %p220, %p221
      %p223 = scmp.ne.s32.totalorder %s211, %s212
      %p224 = scmp.eq.s32.totalorder %s34, 1
      %p225 = por %p223, %p224
      %p227 = scmp.ne.s32.totalorder %s212, %s226
      %p228 = scmp.eq.s32.totalorder %s34, 0
      %p229 = por %p227, %p228
      %s231 = sadd.s32 %s230, 1
      %p234 = scmp.eq.s32.totalorder %s28, 1
      %p235 = scmp.ne.s32.totalorder %s230, %s232
      %p236 = scmp.eq.s32.totalorder %s28, 0
      %p237 = por %p235, %p236
      %p238 = scmp.ne.s32.totalorder %s230, %s232
      %p239 = scmp.eq.s32.totalorder %s33, 1
      %p240 = por %p238, %p239
      %p241 = scmp.ne.s32.totalorder %s232, %s233
      %p242 = scmp.eq.s32.totalorder %s33, 0
      %p243 = por %p241, %p242
      %p244 = scmp.ne.s32.totalorder %s232, %s233
      %p245 = scmp.eq.s32.totalorder %s34, 1
      %p246 = por %p244, %p245
      %p248 = scmp.ne.s32.totalorder %s233, %s247
      %p249 = scmp.eq.s32.totalorder %s34, 0
      %p250 = por %p248, %p249
      %s252 = sadd.s32 %s251, 1
      %p255 = scmp.eq.s32.totalorder %s28, 1
      %p256 = scmp.ne.s32.totalorder %s251, %s253
      %p257 = scmp.eq.s32.totalorder %s28, 0
      %p258 = por %p256, %p257
      %p259 = scmp.ne.s32.totalorder %s251, %s253
      %p260 = scmp.eq.s32.totalorder %s33, 1
      %p261 = por %p259, %p260
      %p262 = scmp.ne.s32.totalorder %s253, %s254
      %p263 = scmp.eq.s32.totalorder %s33, 0
      %p264 = por %p262, %p263
      %p265 = scmp.ne.s32.totalorder %s253, %s254
      %p266 = scmp.eq.s32.totalorder %s34, 1
      %p267 = por %p265, %p266
      %p269 = scmp.ne.s32.totalorder %s254, %s268
      %p270 = scmp.eq.s32.totalorder %s34, 0
      %p271 = por %p269, %p270
      %s273 = sadd.s32 %s272, 1
      %p276 = scmp.eq.s32.totalorder %s28, 1
      %p277 = scmp.ne.s32.totalorder %s272, %s274
      %p278 = scmp.eq.s32.totalorder %s28, 0
      %p279 = por %p277, %p278
      %p280 = scmp.ne.s32.totalorder %s272, %s274
      %p281 = scmp.eq.s32.totalorder %s33, 1
      %p282 = por %p280, %p281
      %p283 = scmp.ne.s32.totalorder %s274, %s275
      %p284 = scmp.eq.s32.totalorder %s33, 0
      %p285 = por %p283, %p284
      %p286 = scmp.ne.s32.totalorder %s274, %s275
      %p287 = scmp.eq.s32.totalorder %s34, 1
      %p288 = por %p286, %p287
      %p290 = scmp.ne.s32.totalorder %s275, %s289
      %p291 = scmp.eq.s32.totalorder %s34, 0
      %p292 = por %p290, %p291
      %s294 = sadd.s32 %s293, 1
      %p297 = scmp.eq.s32.totalorder %s28, 1
      %p298 = scmp.ne.s32.totalorder %s293, %s295
      %p299 = scmp.eq.s32.totalorder %s28, 0
      %p300 = por %p298, %p299
      %p301 = scmp.ne.s32.totalorder %s293, %s295
      %p302 = scmp.eq.s32.totalorder %s33, 1
      %p303 = por %p301, %p302
      %p304 = scmp.ne.s32.totalorder %s295, %s296
      %p305 = scmp.eq.s32.totalorder %s33, 0
      %p306 = por %p304, %p305
      %p307 = scmp.ne.s32.totalorder %s295, %s296
      %p308 = scmp.eq.s32.totalorder %s34, 1
      %p309 = por %p307, %p308
      %p311 = scmp.ne.s32.totalorder %s296, %s310
      %p312 = scmp.eq.s32.totalorder %s34, 0
      %p313 = por %p311, %p312
      %s315 = sadd.s32 %s314, 1
      %p318 = scmp.eq.s32.totalorder %s28, 1
      %p319 = scmp.ne.s32.totalorder %s314, %s316
      %p320 = scmp.eq.s32.totalorder %s28, 0
      %p321 = por %p319, %p320
      %p322 = scmp.ne.s32.totalorder %s314, %s316
      %p323 = scmp.eq.s32.totalorder %s33, 1
      %p324 = por %p322, %p323
      %p325 = scmp.ne.s32.totalorder %s316, %s317
      %p326 = scmp.eq.s32.totalorder %s33, 0
      %p327 = por %p325, %p326
      %p328 = scmp.ne.s32.totalorder %s316, %s317
      %p329 = scmp.eq.s32.totalorder %s34, 1
      %p330 = por %p328, %p329
      %p332 = scmp.ne.s32.totalorder %s317, %s331
      %p333 = scmp.eq.s32.totalorder %s34, 0
      %p334 = por %p332, %p333
      %s335 = ssub.s32 %s28, %s35
      %p336 = scmp.eq.s32.totalorder %s335, 0
      %s338 = sadd.s32 %s337, 1
      %s339 = scalar_select %p336, %s337, %s338
      %p342 = pneg %p336
      %p343 = scmp.eq.s32.totalorder %s28, 1
      %p344 = por %p342, %p343
      %p345 = scmp.ne.s32.totalorder %s337, %s340
      %p346 = scmp.eq.s32.totalorder %s28, 0
      %p347 = por %p345, %p346
      %p348 = scmp.ne.s32.totalorder %s337, %s340
      %p349 = scmp.eq.s32.totalorder %s33, 1
      %p350 = por %p348, %p349
      %p351 = scmp.ne.s32.totalorder %s340, %s341
      %p352 = scmp.eq.s32.totalorder %s33, 0
      %p353 = por %p351, %p352
      %p354 = scmp.ne.s32.totalorder %s340, %s341
      %p355 = scmp.eq.s32.totalorder %s34, 1
      %p356 = por %p354, %p355
      %p358 = scmp.ne.s32.totalorder %s341, %s357
      %p359 = scmp.eq.s32.totalorder %s34, 0
      %p360 = por %p358, %p359
      %p361 = scmp.le.s32.totalorder 1, %s28
      %p362 = scmp.lt.s32.totalorder %s28, 3
      %p363 = pnand %p361, %p362
      %p364 = pneg %p363
      // Predicated region
      $region9: #{predictor_forward.1} parent=5 // pred_check
        _
      $region10: #{predictor_forward.1} parent=5 // pred_check_branch
        %366 = sbr.rel (%p363) target = $region12
      $region11: #{predictor_forward.1} parent=5 // pred_region
        %s367 = ssub.s32 %s28, 1
        // Predicated region
        $region13: #{predictor_forward.1} parent=11 // pred_check
          %p368 = pneg %p75
        $region14: #{predictor_forward.1} parent=11 // pred_check_branch
          %370 = sbr.rel (%p368) target = $region16
        $region15: #{predictor_forward.1} parent=11 // pred_region
          %s372 = ssub.s32 81920, 81920
          %373 = vsyncadd [#allocation4], %s372
          %s374 = sshll.u32 [#allocation3], 4
          %s375 = int_to_ptr.vmem [resolvable:$true] %s374
          %380 = dma.hbm_to_vmem [thread:$0]  %s1, 81920, %s375, [#allocation4], 640, 640, 40
        $region16: #{predictor_forward.1} parent=11 // pred_fallthru
          _
        // Predicated region
        $region17: #{predictor_forward.1} parent=11 // pred_check
          %p381 = pneg %p96
        $region18: #{predictor_forward.1} parent=11 // pred_check_branch
          %383 = sbr.rel (%p381) target = $region20
        $region19: #{predictor_forward.1} parent=11 // pred_region
          _
        $region20: #{predictor_forward.1} parent=11 // pred_fallthru
          _
        // Predicated region
        $region21: #{predictor_forward.1} parent=11 // pred_check
          %p384 = pneg %p117
        $region22: #{predictor_forward.1} parent=11 // pred_check_branch
          %386 = sbr.rel (%p384) target = $region24
        $region23: #{predictor_forward.1} parent=11 // pred_region
          %s388 = ssub.s32 16, 16
          %389 = vsyncadd [#allocation6], %s388
          %s391 = sshll.u32 [#allocation5], 4
          %s392 = int_to_ptr.vmem [resolvable:$true] %s391
          %394 = dma.hbm_to_vmem [thread:$0]  %s3, 16, %s392, [#allocation6]
        $region24: #{predictor_forward.1} parent=11 // pred_fallthru
          _
        // Predicated region
        $region25: #{predictor_forward.1} parent=11 // pred_check
          %p395 = pneg %p138
        $region26: #{predictor_forward.1} parent=11 // pred_check_branch
          %397 = sbr.rel (%p395) target = $region28
        $region27: #{predictor_forward.1} parent=11 // pred_region
          %s399 = ssub.s32 768, 768
          %400 = vsyncadd [#allocation6], %s399
          %s401 = sshll.u32 [#allocation7], 4
          %s402 = int_to_ptr.vmem [resolvable:$true] %s401
          %407 = dma.hbm_to_vmem [thread:$0]  %s4, 768, %s402, [#allocation6], 64, 64, 4
        $region28: #{predictor_forward.1} parent=11 // pred_fallthru
          _
        // Predicated region
        $region29: #{predictor_forward.1} parent=11 // pred_check
          %p408 = pneg %p159
        $region30: #{predictor_forward.1} parent=11 // pred_check_branch
          %410 = sbr.rel (%p408) target = $region32
        $region31: #{predictor_forward.1} parent=11 // pred_region
          %s412 = ssub.s32 16, 16
          %413 = vsyncadd [#allocation9], %s412
          %s415 = sshll.u32 [#allocation8], 4
          %s416 = int_to_ptr.vmem [resolvable:$true] %s415
          %418 = dma.hbm_to_vmem [thread:$0]  %s5, 16, %s416, [#allocation9]
        $region32: #{predictor_forward.1} parent=11 // pred_fallthru
          _
        // Predicated region
        $region33: #{predictor_forward.1} parent=11 // pred_check
          %p419 = pneg %p180
        $region34: #{predictor_forward.1} parent=11 // pred_check_branch
          %421 = sbr.rel (%p419) target = $region36
        $region35: #{predictor_forward.1} parent=11 // pred_region
          %s423 = ssub.s32 1536, 1536
          %424 = vsyncadd [#allocation9], %s423
          %s425 = sshll.u32 [#allocation10], 4
          %s426 = int_to_ptr.vmem [resolvable:$true] %s425
          %431 = dma.hbm_to_vmem [thread:$0]  %s6, 1536, %s426, [#allocation9], 64, 64, 4
        $region36: #{predictor_forward.1} parent=11 // pred_fallthru
          _
        // Predicated region
        $region37: #{predictor_forward.1} parent=11 // pred_check
          %p432 = pneg %p201
        $region38: #{predictor_forward.1} parent=11 // pred_check_branch
          %434 = sbr.rel (%p432) target = $region40
        $region39: #{predictor_forward.1} parent=11 // pred_region
          %s436 = ssub.s32 16, 16
          %437 = vsyncadd [#allocation12], %s436
          %s439 = sshll.u32 [#allocation11], 4
          %s440 = int_to_ptr.vmem [resolvable:$true] %s439
          %442 = dma.hbm_to_vmem [thread:$0]  %s7, 16, %s440, [#allocation12]
        $region40: #{predictor_forward.1} parent=11 // pred_fallthru
          _
        // Predicated region
        $region41: #{predictor_forward.1} parent=11 // pred_check
          %p443 = pneg %p222
        $region42: #{predictor_forward.1} parent=11 // pred_check_branch
          %445 = sbr.rel (%p443) target = $region44
        $region43: #{predictor_forward.1} parent=11 // pred_region
          %s447 = ssub.s32 6144, 6144
          %448 = vsyncadd [#allocation12], %s447
          %s449 = sshll.u32 [#allocation13], 4
          %s450 = int_to_ptr.vmem [resolvable:$true] %s449
          %455 = dma.hbm_to_vmem [thread:$0]  %s8, 6144, %s450, [#allocation12], 128, 128, 8
        $region44: #{predictor_forward.1} parent=11 // pred_fallthru
          _
        // Predicated region
        $region45: #{predictor_forward.1} parent=11 // pred_check
          %p456 = pneg %p243
        $region46: #{predictor_forward.1} parent=11 // pred_check_branch
          %458 = sbr.rel (%p456) target = $region48
        $region47: #{predictor_forward.1} parent=11 // pred_region
          %s460 = ssub.s32 32, 32
          %461 = vsyncadd [#allocation15], %s460
          %s463 = sshll.u32 [#allocation14], 4
          %s464 = int_to_ptr.vmem [resolvable:$true] %s463
          %466 = dma.hbm_to_vmem [thread:$0]  %s9, 32, %s464, [#allocation15]
        $region48: #{predictor_forward.1} parent=11 // pred_fallthru
          _
        // Predicated region
        $region49: #{predictor_forward.1} parent=11 // pred_check
          %p467 = pneg %p264
        $region50: #{predictor_forward.1} parent=11 // pred_check_branch
          %469 = sbr.rel (%p467) target = $region52
        $region51: #{predictor_forward.1} parent=11 // pred_region
          %s471 = ssub.s32 24576, 24576
          %472 = vsyncadd [#allocation15], %s471
          %s473 = sshll.u32 [#allocation16], 4
          %s474 = int_to_ptr.vmem [resolvable:$true] %s473
          %479 = dma.hbm_to_vmem [thread:$0]  %s10, 24576, %s474, [#allocation15], 256, 256, 16
        $region52: #{predictor_forward.1} parent=11 // pred_fallthru
          _
        // Predicated region
        $region53: #{predictor_forward.1} parent=11 // pred_check
          %p480 = pneg %p285
        $region54: #{predictor_forward.1} parent=11 // pred_check_branch
          %482 = sbr.rel (%p480) target = $region56
        $region55: #{predictor_forward.1} parent=11 // pred_region
          %s484 = ssub.s32 64, 64
          %485 = vsyncadd [#allocation18], %s484
          %s487 = sshll.u32 [#allocation17], 4
          %s488 = int_to_ptr.vmem [resolvable:$true] %s487
          %490 = dma.hbm_to_vmem [thread:$0]  %s11, 64, %s488, [#allocation18]
        $region56: #{predictor_forward.1} parent=11 // pred_fallthru
          _
        // Predicated region
        $region57: #{predictor_forward.1} parent=11 // pred_check
          %p491 = pneg %p306
        $region58: #{predictor_forward.1} parent=11 // pred_check_branch
          %493 = sbr.rel (%p491) target = $region60
        $region59: #{predictor_forward.1} parent=11 // pred_region
          %s495 = ssub.s32 64, 64
          %496 = vsyncadd [#allocation18], %s495
          %s498 = sshll.u32 [#allocation19], 4
          %s499 = int_to_ptr.vmem [resolvable:$true] %s498
          %501 = dma.hbm_to_vmem [thread:$0]  %s12, 64, %s499, [#allocation18]
        $region60: #{predictor_forward.1} parent=11 // pred_fallthru
          _
        // Predicated region
        $region61: #{predictor_forward.1} parent=11 // pred_check
          %p502 = pneg %p327
        $region62: #{predictor_forward.1} parent=11 // pred_check_branch
          %504 = sbr.rel (%p502) target = $region64
        $region63: #{predictor_forward.1} parent=11 // pred_region
          _
        $region64: #{predictor_forward.1} parent=11 // pred_fallthru
          _
      $region12: #{predictor_forward.1} parent=5 // pred_fallthru
        _
      %p505 = scmp.lt.s32.totalorder %s28, 2
      // Predicated region
      $region65: #{predictor_forward.1} parent=5 // pred_check
        %p506 = pneg %p505
      $region66: #{predictor_forward.1} parent=5 // pred_check_branch
        %508 = sbr.rel (%p506) target = $region68
      $region67: #{predictor_forward.1} parent=5 // pred_region
        // Predicated region
        $region69: #{predictor_forward.1} parent=67 // pred_check
          %p509 = pneg %p48
        $region70: #{predictor_forward.1} parent=67 // pred_check_branch
          %511 = sbr.rel (%p509) target = $region72
        $region71: #{predictor_forward.1} parent=67 // pred_region
          %p512 = scmp.lt.s32.totalorder %s28, 1
          %s513 = scalar_select %p512, %s28, 1
          %s514 = smul.addr %s513, 6
          %s515 = smul.addr %s514, 8
          %s516 = scalar_lea.vmem %s0, %s515
        $region72: #{predictor_forward.1} parent=67 // pred_fallthru
          _
      $region68: #{predictor_forward.1} parent=5 // pred_fallthru
        _
      %p517 = scmp.le.s32.totalorder 1, %s28
      %p518 = scmp.lt.s32.totalorder %s28, 3
      %p519 = pnand %p517, %p518
      %p520 = pneg %p519
      // Predicated region
      $region73: #{predictor_forward.1} parent=5 // pred_check
        _
      $region74: #{predictor_forward.1} parent=5 // pred_check_branch
        %522 = sbr.rel (%p519) target = $region76
      $region75: #{predictor_forward.1} parent=5 // pred_region
        %s523 = ssub.s32 %s28, 1
        // Predicated region
        $region77: #{predictor_forward.1} parent=75 // pred_check
          %p524 = pneg %p75
        $region78: #{predictor_forward.1} parent=75 // pred_check_branch
          %526 = sbr.rel (%p524) target = $region80
        $region79: #{predictor_forward.1} parent=75 // pred_region
          %527 = dma.done [#allocation4], 81920
        $region80: #{predictor_forward.1} parent=75 // pred_fallthru
          _
        // Predicated region
        $region81: #{predictor_forward.1} parent=75 // pred_check
          %p528 = pneg %p117
        $region82: #{predictor_forward.1} parent=75 // pred_check_branch
          %530 = sbr.rel (%p528) target = $region84
        $region83: #{predictor_forward.1} parent=75 // pred_region
          %531 = dma.done [#allocation6], 16
        $region84: #{predictor_forward.1} parent=75 // pred_fallthru
          _
        // Predicated region
        $region85: #{predictor_forward.1} parent=75 // pred_check
          %p532 = pneg %p138
        $region86: #{predictor_forward.1} parent=75 // pred_check_branch
          %534 = sbr.rel (%p532) target = $region88
        $region87: #{predictor_forward.1} parent=75 // pred_region
          %535 = dma.done [#allocation6], 768
        $region88: #{predictor_forward.1} parent=75 // pred_fallthru
          _
        // Predicated region
        $region89: #{predictor_forward.1} parent=75 // pred_check
          %p536 = pneg %p159
        $region90: #{predictor_forward.1} parent=75 // pred_check_branch
          %538 = sbr.rel (%p536) target = $region92
        $region91: #{predictor_forward.1} parent=75 // pred_region
          %539 = dma.done [#allocation9], 16
        $region92: #{predictor_forward.1} parent=75 // pred_fallthru
          _
        // Predicated region
        $region93: #{predictor_forward.1} parent=75 // pred_check
          %p540 = pneg %p180
        $region94: #{predictor_forward.1} parent=75 // pred_check_branch
          %542 = sbr.rel (%p540) target = $region96
        $region95: #{predictor_forward.1} parent=75 // pred_region
          %543 = dma.done [#allocation9], 1536
        $region96: #{predictor_forward.1} parent=75 // pred_fallthru
          _
        // Predicated region
        $region97: #{predictor_forward.1} parent=75 // pred_check
          %p544 = pneg %p201
        $region98: #{predictor_forward.1} parent=75 // pred_check_branch
          %546 = sbr.rel (%p544) target = $region100
        $region99: #{predictor_forward.1} parent=75 // pred_region
          %547 = dma.done [#allocation12], 16
        $region100: #{predictor_forward.1} parent=75 // pred_fallthru
          _
        // Predicated region
        $region101: #{predictor_forward.1} parent=75 // pred_check
          %p548 = pneg %p222
        $region102: #{predictor_forward.1} parent=75 // pred_check_branch
          %550 = sbr.rel (%p548) target = $region104
        $region103: #{predictor_forward.1} parent=75 // pred_region
          %551 = dma.done [#allocation12], 6144
        $region104: #{predictor_forward.1} parent=75 // pred_fallthru
          _
        // Predicated region
        $region105: #{predictor_forward.1} parent=75 // pred_check
          %p552 = pneg %p243
        $region106: #{predictor_forward.1} parent=75 // pred_check_branch
          %554 = sbr.rel (%p552) target = $region108
        $region107: #{predictor_forward.1} parent=75 // pred_region
          %555 = dma.done [#allocation15], 32
        $region108: #{predictor_forward.1} parent=75 // pred_fallthru
          _
        // Predicated region
        $region109: #{predictor_forward.1} parent=75 // pred_check
          %p556 = pneg %p264
        $region110: #{predictor_forward.1} parent=75 // pred_check_branch
          %558 = sbr.rel (%p556) target = $region112
        $region111: #{predictor_forward.1} parent=75 // pred_region
          %559 = dma.done [#allocation15], 24576
        $region112: #{predictor_forward.1} parent=75 // pred_fallthru
          _
        // Predicated region
        $region113: #{predictor_forward.1} parent=75 // pred_check
          %p560 = pneg %p285
        $region114: #{predictor_forward.1} parent=75 // pred_check_branch
          %562 = sbr.rel (%p560) target = $region116
        $region115: #{predictor_forward.1} parent=75 // pred_region
          %563 = dma.done [#allocation18], 64
        $region116: #{predictor_forward.1} parent=75 // pred_fallthru
          _
        // Predicated region
        $region117: #{predictor_forward.1} parent=75 // pred_check
          %p564 = pneg %p306
        $region118: #{predictor_forward.1} parent=75 // pred_check_branch
          %566 = sbr.rel (%p564) target = $region120
        $region119: #{predictor_forward.1} parent=75 // pred_region
          %567 = dma.done [#allocation18], 64
        $region120: #{predictor_forward.1} parent=75 // pred_fallthru
          _
        %p568 = scmp.lt.s32.totalorder %s33, 1
        %s569 = scalar_select %p568, %s33, 1
        %s570 = smul.addr %s569, 6
        %s571 = smul.addr %s570, 8
        %s572 = scalar_lea.vmem %s0, %s571
        %p573 = pneg %p54
        %p574 = pneg %p51
        %p575 = pneg %p75
        %p576 = pneg %p72
        %p577 = pneg %p96
        %p578 = pneg %p93
        %p579 = pneg %p117
        %p580 = pneg %p114
        %p581 = pneg %p138
        %p582 = pneg %p135
        %p583 = pneg %p159
        %p584 = pneg %p156
        %p585 = pneg %p180
        %p586 = pneg %p177
        %p587 = pneg %p201
        %p588 = pneg %p198
        %p589 = pneg %p222
        %p590 = pneg %p219
        %p591 = pneg %p243
        %p592 = pneg %p240
        %p593 = pneg %p264
        %p594 = pneg %p261
        %p595 = pneg %p285
        %p596 = pneg %p282
        %p597 = pneg %p306
        %p598 = pneg %p303
        %p599 = pneg %p327
        %p600 = pneg %p324
        %p601 = pneg %p353
        %p602 = pneg %p350
        %p603 = scmp.lt.s32.totalorder %s33, 1
        %s604 = scalar_select %p603, %s33, 1
        %s605 = scalar_lea.vmem %s14, %s604
        %p606 = scmp.lt.s32.totalorder %s33, 1
        %s607 = scalar_select %p606, %s33, 1
        %s608 = smul.addr %s607, 6
        %s609 = smul.addr %s608, 8
        %s610 = scalar_lea.vmem %s0, %s609
        %p611 = scmp.lt.s32.totalorder %s33, 1
        %s612 = scalar_select %p611, %s33, 1
        %s613 = scalar_lea.vmem %s14, %s612
        %v615 = vld [vmem:[%s610] sm:$0xff]
        %v616 = vld [vmem:[%s610 + $0x8] sm:$0xff]
        %v617 = vld [vmem:[%s610 + $0x10] sm:$0xff]
        %v618 = vld [vmem:[%s610 + $0x18] sm:$0xff]
        %v619 = vld [vmem:[%s610 + $0x20] sm:$0xf]
        %v620 = vld [vmem:[%s610 + $0x28] sm:$0xf]
        %v621 = vand.u32 2147483647, %v615
        %v622 = vand.u32 2147483647, %v616
        %v623 = vand.u32 2147483647, %v617
        %v624 = vand.u32 2147483647, %v618
        %v625 = vand.u32 2147483647, %v619
        %v626 = vand.u32 2147483647, %v620
        %v627 = vmax.f32 %v621, %v622
        %628 = vmax.xlane.f32.xlu0 %v627
        %v629 = vpop.xlane.xlu0 %628
        %v630 = vmax.f32 %v623, %v624
        %631 = vmax.xlane.f32.xlu0 %v630
        %v632 = vpop.xlane.xlu0 %631
        %vm633 = vcmask 1043456
        %v634 = vsel %vm633, %v625, -inf
        %v635 = vsel %vm633, %v626, -inf
        %v636 = vmax.f32 %v634, %v635
        %637 = vmax.xlane.f32.xlu0 %v636
        %v638 = vpop.xlane.xlu0 %637
        %v639 = vsel %vm633, %v638, -inf
        %v640 = vmax.f32 %v629, %v632
        %v641 = vmax.f32 %v640, %v639
        %v642 = vrot.slane %v641, 4
        %v643 = vmax.f32 %v641, %v642
        %v644 = vrot.slane %v643, 2
        %v645 = vmax.f32 %v643, %v644
        %v646 = vrot.slane %v645, 1
        %v647 = vmax.f32 %v645, %v646
        %v648 = vrcp.pop %v647
        %v649 = vmul.f32 %v615, %v648
        %v650 = vmul.f32 %v616, %v648
        %v651 = vmul.f32 %v617, %v648
        %v652 = vmul.f32 %v618, %v648
        %v653 = vmul.f32 %v619, %v648
        %v654 = vmul.f32 %v620, %v648
        %v655 = vpack.c.bf16 %v651, %v649
        %v656 = vpack.c.bf16 %v652, %v650
        %v657 = vpack.c.bf16 %v653, %v653
        %v658 = vpack.c.bf16 %v654, %v654
        %v659 = vld [vmem:[#allocation3] sm:$0xff]
        %v660 = vld [vmem:[#allocation3 + $0x8] sm:$0xff]
        %v661 = vld [vmem:[#allocation3 + $0x10] sm:$0xff]
        %v662 = vld [vmem:[#allocation3 + $0x18] sm:$0xff]
        %v663 = vld [vmem:[#allocation3 + $0x20] sm:$0xff]
        %v664 = vld [vmem:[#allocation3 + $0x28] sm:$0xff]
        %v665 = vld [vmem:[#allocation3 + $0x30] sm:$0xff]
        %v666 = vld [vmem:[#allocation3 + $0x38] sm:$0xff]
        %v667 = vld [vmem:[#allocation3 + $0x40] sm:$0xff]
        %v668 = vld [vmem:[#allocation3 + $0x48] sm:$0xff]
        %v669 = vld [vmem:[#allocation3 + $0x50] sm:$0xff]
        %v670 = vld [vmem:[#allocation3 + $0x58] sm:$0xff]
        %v671 = vld [vmem:[#allocation3 + $0x60] sm:$0xff]
        %v672 = vld [vmem:[#allocation3 + $0x68] sm:$0xff]
        %v673 = vld [vmem:[#allocation3 + $0x70] sm:$0xff]
        %v674 = vld [vmem:[#allocation3 + $0x78] sm:$0xff]
        %v675 = vld [vmem:[#allocation3 + $0x80] sm:$0xff]
        %v676 = vld [vmem:[#allocation3 + $0x88] sm:$0xff]
        %v677 = vld [vmem:[#allocation3 + $0x90] sm:$0xff]
        %v678 = vld [vmem:[#allocation3 + $0x98] sm:$0xff]
        %v679 = vld [vmem:[#allocation3 + $0xa0] sm:$0xff]
        %v680 = vld [vmem:[#allocation3 + $0xa8] sm:$0xff]
        %v681 = vld [vmem:[#allocation3 + $0xb0] sm:$0xff]
        %v682 = vld [vmem:[#allocation3 + $0xb8] sm:$0xff]
        %v683 = vld [vmem:[#allocation3 + $0xc0] sm:$0xff]
        %v684 = vld [vmem:[#allocation3 + $0xc8] sm:$0xff]
        %v685 = vld [vmem:[#allocation3 + $0xd0] sm:$0xff]
        %v686 = vld [vmem:[#allocation3 + $0xd8] sm:$0xff]
        %v687 = vld [vmem:[#allocation3 + $0xe0] sm:$0xff]
        %v688 = vld [vmem:[#allocation3 + $0xe8] sm:$0xff]
        %v689 = vld [vmem:[#allocation3 + $0xf0] sm:$0xff]
        %v690 = vld [vmem:[#allocation3 + $0xf8] sm:$0xff]
        %v691 = vld [vmem:[#allocation3 + $0x100] sm:$0xff]
        %v692 = vld [vmem:[#allocation3 + $0x108] sm:$0xff]
        %v693 = vld [vmem:[#allocation3 + $0x110] sm:$0xff]
        %v694 = vld [vmem:[#allocation3 + $0x118] sm:$0xff]
        %v695 = vld [vmem:[#allocation3 + $0x120] sm:$0xff]
        %v696 = vld [vmem:[#allocation3 + $0x128] sm:$0xff]
        %v697 = vld [vmem:[#allocation3 + $0x130] sm:$0xff]
        %v698 = vld [vmem:[#allocation3 + $0x138] sm:$0xff]
        %v699 = vld [vmem:[#allocation3 + $0x140] sm:$0xff]
        %v700 = vld [vmem:[#allocation3 + $0x148] sm:$0xff]
        %v701 = vld [vmem:[#allocation3 + $0x150] sm:$0xff]
        %v702 = vld [vmem:[#allocation3 + $0x158] sm:$0xff]
        %v703 = vld [vmem:[#allocation3 + $0x160] sm:$0xff]
        %v704 = vld [vmem:[#allocation3 + $0x168] sm:$0xff]
        %v705 = vld [vmem:[#allocation3 + $0x170] sm:$0xff]
        %v706 = vld [vmem:[#allocation3 + $0x178] sm:$0xff]
        %v707 = vld [vmem:[#allocation3 + $0x180] sm:$0xff]
        %v708 = vld [vmem:[#allocation3 + $0x188] sm:$0xff]
        %v709 = vld [vmem:[#allocation3 + $0x190] sm:$0xff]
        %v710 = vld [vmem:[#allocation3 + $0x198] sm:$0xff]
        %v711 = vld [vmem:[#allocation3 + $0x1a0] sm:$0xff]
        %v712 = vld [vmem:[#allocation3 + $0x1a8] sm:$0xff]
        %v713 = vld [vmem:[#allocation3 + $0x1b0] sm:$0xff]
        %v714 = vld [vmem:[#allocation3 + $0x1b8] sm:$0xff]
        %v715 = vld [vmem:[#allocation3 + $0x1c0] sm:$0xff]
        %v716 = vld [vmem:[#allocation3 + $0x1c8] sm:$0xff]
        %v717 = vld [vmem:[#allocation3 + $0x1d0] sm:$0xff]
        %v718 = vld [vmem:[#allocation3 + $0x1d8] sm:$0xff]
        %v719 = vld [vmem:[#allocation3 + $0x1e0] sm:$0xff]
        %v720 = vld [vmem:[#allocation3 + $0x1e8] sm:$0xff]
        %v721 = vld [vmem:[#allocation3 + $0x1f0] sm:$0xff]
        %v722 = vld [vmem:[#allocation3 + $0x1f8] sm:$0xff]
        %v723 = vld [vmem:[#allocation3 + $0x200] sm:$0xff]
        %v724 = vld [vmem:[#allocation3 + $0x208] sm:$0xff]
        %v725 = vld [vmem:[#allocation3 + $0x210] sm:$0xff]
        %v726 = vld [vmem:[#allocation3 + $0x218] sm:$0xff]
        %v727 = vld [vmem:[#allocation3 + $0x220] sm:$0xff]
        %v728 = vld [vmem:[#allocation3 + $0x228] sm:$0xff]
        %v729 = vld [vmem:[#allocation3 + $0x230] sm:$0xff]
        %v730 = vld [vmem:[#allocation3 + $0x238] sm:$0xff]
        %v731 = vld [vmem:[#allocation3 + $0x240] sm:$0xff]
        %v732 = vld [vmem:[#allocation3 + $0x248] sm:$0xff]
        %v733 = vld [vmem:[#allocation3 + $0x250] sm:$0xff]
        %v734 = vld [vmem:[#allocation3 + $0x258] sm:$0xff]
        %v735 = vld [vmem:[#allocation3 + $0x260] sm:$0xff]
        %v736 = vld [vmem:[#allocation3 + $0x268] sm:$0xff]
        %v737 = vld [vmem:[#allocation3 + $0x270] sm:$0xff]
        %v738 = vld [vmem:[#allocation3 + $0x278] sm:$0xff]
        %v739 = vld [vmem:[#allocation3 + $0x280] sm:$0xff]
        %v740 = vld [vmem:[#allocation3 + $0x288] sm:$0xff]
        %v741 = vld [vmem:[#allocation3 + $0x290] sm:$0xff]
        %v742 = vld [vmem:[#allocation3 + $0x298] sm:$0xff]
        %v743 = vld [vmem:[#allocation3 + $0x2a0] sm:$0xff]
        %v744 = vld [vmem:[#allocation3 + $0x2a8] sm:$0xff]
        %v745 = vld [vmem:[#allocation3 + $0x2b0] sm:$0xff]
        %v746 = vld [vmem:[#allocation3 + $0x2b8] sm:$0xff]
        %v747 = vld [vmem:[#allocation3 + $0x2c0] sm:$0xff]
        %v748 = vld [vmem:[#allocation3 + $0x2c8] sm:$0xff]
        %v749 = vld [vmem:[#allocation3 + $0x2d0] sm:$0xff]
        %v750 = vld [vmem:[#allocation3 + $0x2d8] sm:$0xff]
        %v751 = vld [vmem:[#allocation3 + $0x2e0] sm:$0xff]
        %v752 = vld [vmem:[#allocation3 + $0x2e8] sm:$0xff]
        %v753 = vld [vmem:[#allocation3 + $0x2f0] sm:$0xff]
        %v754 = vld [vmem:[#allocation3 + $0x2f8] sm:$0xff]
        %v755 = vld [vmem:[#allocation3 + $0x300] sm:$0xff]
        %v756 = vld [vmem:[#allocation3 + $0x308] sm:$0xff]
        %v757 = vld [vmem:[#allocation3 + $0x310] sm:$0xff]
        %v758 = vld [vmem:[#allocation3 + $0x318] sm:$0xff]
        %v759 = vld [vmem:[#allocation3 + $0x320] sm:$0xff]
        %v760 = vld [vmem:[#allocation3 + $0x328] sm:$0xff]
        %v761 = vld [vmem:[#allocation3 + $0x330] sm:$0xff]
        %v762 = vld [vmem:[#allocation3 + $0x338] sm:$0xff]
        %v763 = vld [vmem:[#allocation3 + $0x340] sm:$0xff]
        %v764 = vld [vmem:[#allocation3 + $0x348] sm:$0xff]
        %v765 = vld [vmem:[#allocation3 + $0x350] sm:$0xff]
        %v766 = vld [vmem:[#allocation3 + $0x358] sm:$0xff]
        %v767 = vld [vmem:[#allocation3 + $0x360] sm:$0xff]
        %v768 = vld [vmem:[#allocation3 + $0x368] sm:$0xff]
        %v769 = vld [vmem:[#allocation3 + $0x370] sm:$0xff]
        %v770 = vld [vmem:[#allocation3 + $0x378] sm:$0xff]
        %v771 = vld [vmem:[#allocation3 + $0x380] sm:$0xff]
        %v772 = vld [vmem:[#allocation3 + $0x388] sm:$0xff]
        %v773 = vld [vmem:[#allocation3 + $0x390] sm:$0xff]
        %v774 = vld [vmem:[#allocation3 + $0x398] sm:$0xff]
        %v775 = vld [vmem:[#allocation3 + $0x3a0] sm:$0xff]
        %v776 = vld [vmem:[#allocation3 + $0x3a8] sm:$0xff]
        %v777 = vld [vmem:[#allocation3 + $0x3b0] sm:$0xff]
        %v778 = vld [vmem:[#allocation3 + $0x3b8] sm:$0xff]
        %v779 = vld [vmem:[#allocation3 + $0x3c0] sm:$0xff]
        %v780 = vld [vmem:[#allocation3 + $0x3c8] sm:$0xff]
        %v781 = vld [vmem:[#allocation3 + $0x3d0] sm:$0xff]
        %v782 = vld [vmem:[#allocation3 + $0x3d8] sm:$0xff]
        %v783 = vld [vmem:[#allocation3 + $0x3e0] sm:$0xff]
        %v784 = vld [vmem:[#allocation3 + $0x3e8] sm:$0xff]
        %v785 = vld [vmem:[#allocation3 + $0x3f0] sm:$0xff]
        %v786 = vld [vmem:[#allocation3 + $0x3f8] sm:$0xff]
        %v787 = vld [vmem:[#allocation3 + $0x400] sm:$0xff]
        %v788 = vld [vmem:[#allocation3 + $0x408] sm:$0xff]
        %v789 = vld [vmem:[#allocation3 + $0x410] sm:$0xff]
        %v790 = vld [vmem:[#allocation3 + $0x418] sm:$0xff]
        %v791 = vld [vmem:[#allocation3 + $0x420] sm:$0xff]
        %v792 = vld [vmem:[#allocation3 + $0x428] sm:$0xff]
        %v793 = vld [vmem:[#allocation3 + $0x430] sm:$0xff]
        %v794 = vld [vmem:[#allocation3 + $0x438] sm:$0xff]
        %v795 = vld [vmem:[#allocation3 + $0x440] sm:$0xff]
        %v796 = vld [vmem:[#allocation3 + $0x448] sm:$0xff]
        %v797 = vld [vmem:[#allocation3 + $0x450] sm:$0xff]
        %v798 = vld [vmem:[#allocation3 + $0x458] sm:$0xff]
        %v799 = vld [vmem:[#allocation3 + $0x460] sm:$0xff]
        %v800 = vld [vmem:[#allocation3 + $0x468] sm:$0xff]
        %v801 = vld [vmem:[#allocation3 + $0x470] sm:$0xff]
        %v802 = vld [vmem:[#allocation3 + $0x478] sm:$0xff]
        %v803 = vld [vmem:[#allocation3 + $0x480] sm:$0xff]
        %v804 = vld [vmem:[#allocation3 + $0x488] sm:$0xff]
        %v805 = vld [vmem:[#allocation3 + $0x490] sm:$0xff]
        %v806 = vld [vmem:[#allocation3 + $0x498] sm:$0xff]
        %v807 = vld [vmem:[#allocation3 + $0x4a0] sm:$0xff]
        %v808 = vld [vmem:[#allocation3 + $0x4a8] sm:$0xff]
        %v809 = vld [vmem:[#allocation3 + $0x4b0] sm:$0xff]
        %v810 = vld [vmem:[#allocation3 + $0x4b8] sm:$0xff]
        %v811 = vld [vmem:[#allocation3 + $0x4c0] sm:$0xff]
        %v812 = vld [vmem:[#allocation3 + $0x4c8] sm:$0xff]
        %v813 = vld [vmem:[#allocation3 + $0x4d0] sm:$0xff]
        %v814 = vld [vmem:[#allocation3 + $0x4d8] sm:$0xff]
        %v815 = vld [vmem:[#allocation3 + $0x4e0] sm:$0xff]
        %v816 = vld [vmem:[#allocation3 + $0x4e8] sm:$0xff]
        %v817 = vld [vmem:[#allocation3 + $0x4f0] sm:$0xff]
        %v818 = vld [vmem:[#allocation3 + $0x4f8] sm:$0xff]
        %s819 = scalar_lea.vmem [#allocation3], 1280
        %v820 = vld [vmem:[%s819] sm:$0xff]
        %v821 = vld [vmem:[%s819 + $0x8] sm:$0xff]
        %v822 = vld [vmem:[%s819 + $0x10] sm:$0xff]
        %v823 = vld [vmem:[%s819 + $0x18] sm:$0xff]
        %v824 = vld [vmem:[%s819 + $0x20] sm:$0xff]
        %v825 = vld [vmem:[%s819 + $0x28] sm:$0xff]
        %v826 = vld [vmem:[%s819 + $0x30] sm:$0xff]
        %v827 = vld [vmem:[%s819 + $0x38] sm:$0xff]
        %v828 = vld [vmem:[%s819 + $0x40] sm:$0xff]
        %v829 = vld [vmem:[%s819 + $0x48] sm:$0xff]
        %v830 = vld [vmem:[%s819 + $0x50] sm:$0xff]
        %v831 = vld [vmem:[%s819 + $0x58] sm:$0xff]
        %v832 = vld [vmem:[%s819 + $0x60] sm:$0xff]
        %v833 = vld [vmem:[%s819 + $0x68] sm:$0xff]
        %v834 = vld [vmem:[%s819 + $0x70] sm:$0xff]
        %v835 = vld [vmem:[%s819 + $0x78] sm:$0xff]
        %v836 = vld [vmem:[%s819 + $0x80] sm:$0xff]
        %v837 = vld [vmem:[%s819 + $0x88] sm:$0xff]
        %v838 = vld [vmem:[%s819 + $0x90] sm:$0xff]
        %v839 = vld [vmem:[%s819 + $0x98] sm:$0xff]
        %v840 = vld [vmem:[%s819 + $0xa0] sm:$0xff]
        %v841 = vld [vmem:[%s819 + $0xa8] sm:$0xff]
        %v842 = vld [vmem:[%s819 + $0xb0] sm:$0xff]
        %v843 = vld [vmem:[%s819 + $0xb8] sm:$0xff]
        %v844 = vld [vmem:[%s819 + $0xc0] sm:$0xff]
        %v845 = vld [vmem:[%s819 + $0xc8] sm:$0xff]
        %v846 = vld [vmem:[%s819 + $0xd0] sm:$0xff]
        %v847 = vld [vmem:[%s819 + $0xd8] sm:$0xff]
        %v848 = vld [vmem:[%s819 + $0xe0] sm:$0xff]
        %v849 = vld [vmem:[%s819 + $0xe8] sm:$0xff]
        %v850 = vld [vmem:[%s819 + $0xf0] sm:$0xff]
        %v851 = vld [vmem:[%s819 + $0xf8] sm:$0xff]
        %v852 = vld [vmem:[%s819 + $0x100] sm:$0xff]
        %v853 = vld [vmem:[%s819 + $0x108] sm:$0xff]
        %v854 = vld [vmem:[%s819 + $0x110] sm:$0xff]
        %v855 = vld [vmem:[%s819 + $0x118] sm:$0xff]
        %v856 = vld [vmem:[%s819 + $0x120] sm:$0xff]
        %v857 = vld [vmem:[%s819 + $0x128] sm:$0xff]
        %v858 = vld [vmem:[%s819 + $0x130] sm:$0xff]
        %v859 = vld [vmem:[%s819 + $0x138] sm:$0xff]
        %v860 = vld [vmem:[%s819 + $0x140] sm:$0xff]
        %v861 = vld [vmem:[%s819 + $0x148] sm:$0xff]
        %v862 = vld [vmem:[%s819 + $0x150] sm:$0xff]
        %v863 = vld [vmem:[%s819 + $0x158] sm:$0xff]
        %v864 = vld [vmem:[%s819 + $0x160] sm:$0xff]
        %v865 = vld [vmem:[%s819 + $0x168] sm:$0xff]
        %v866 = vld [vmem:[%s819 + $0x170] sm:$0xff]
        %v867 = vld [vmem:[%s819 + $0x178] sm:$0xff]
        %v868 = vld [vmem:[%s819 + $0x180] sm:$0xff]
        %v869 = vld [vmem:[%s819 + $0x188] sm:$0xff]
        %v870 = vld [vmem:[%s819 + $0x190] sm:$0xff]
        %v871 = vld [vmem:[%s819 + $0x198] sm:$0xff]
        %v872 = vld [vmem:[%s819 + $0x1a0] sm:$0xff]
        %v873 = vld [vmem:[%s819 + $0x1a8] sm:$0xff]
        %v874 = vld [vmem:[%s819 + $0x1b0] sm:$0xff]
        %v875 = vld [vmem:[%s819 + $0x1b8] sm:$0xff]
        %v876 = vld [vmem:[%s819 + $0x1c0] sm:$0xff]
        %v877 = vld [vmem:[%s819 + $0x1c8] sm:$0xff]
        %v878 = vld [vmem:[%s819 + $0x1d0] sm:$0xff]
        %v879 = vld [vmem:[%s819 + $0x1d8] sm:$0xff]
        %v880 = vld [vmem:[%s819 + $0x1e0] sm:$0xff]
        %v881 = vld [vmem:[%s819 + $0x1e8] sm:$0xff]
        %v882 = vld [vmem:[%s819 + $0x1f0] sm:$0xff]
        %v883 = vld [vmem:[%s819 + $0x1f8] sm:$0xff]
        %v884 = vld [vmem:[%s819 + $0x200] sm:$0xff]
        %v885 = vld [vmem:[%s819 + $0x208] sm:$0xff]
        %v886 = vld [vmem:[%s819 + $0x210] sm:$0xff]
        %v887 = vld [vmem:[%s819 + $0x218] sm:$0xff]
        %v888 = vld [vmem:[%s819 + $0x220] sm:$0xff]
        %v889 = vld [vmem:[%s819 + $0x228] sm:$0xff]
        %v890 = vld [vmem:[%s819 + $0x230] sm:$0xff]
        %v891 = vld [vmem:[%s819 + $0x238] sm:$0xff]
        %v892 = vld [vmem:[%s819 + $0x240] sm:$0xff]
        %v893 = vld [vmem:[%s819 + $0x248] sm:$0xff]
        %v894 = vld [vmem:[%s819 + $0x250] sm:$0xff]
        %v895 = vld [vmem:[%s819 + $0x258] sm:$0xff]
        %v896 = vld [vmem:[%s819 + $0x260] sm:$0xff]
        %v897 = vld [vmem:[%s819 + $0x268] sm:$0xff]
        %v898 = vld [vmem:[%s819 + $0x270] sm:$0xff]
        %v899 = vld [vmem:[%s819 + $0x278] sm:$0xff]
        %v900 = vld [vmem:[%s819 + $0x280] sm:$0xff]
        %v901 = vld [vmem:[%s819 + $0x288] sm:$0xff]
        %v902 = vld [vmem:[%s819 + $0x290] sm:$0xff]
        %v903 = vld [vmem:[%s819 + $0x298] sm:$0xff]
        %v904 = vld [vmem:[%s819 + $0x2a0] sm:$0xff]
        %v905 = vld [vmem:[%s819 + $0x2a8] sm:$0xff]
        %v906 = vld [vmem:[%s819 + $0x2b0] sm:$0xff]
        %v907 = vld [vmem:[%s819 + $0x2b8] sm:$0xff]
        %v908 = vld [vmem:[%s819 + $0x2c0] sm:$0xff]
        %v909 = vld [vmem:[%s819 + $0x2c8] sm:$0xff]
        %v910 = vld [vmem:[%s819 + $0x2d0] sm:$0xff]
        %v911 = vld [vmem:[%s819 + $0x2d8] sm:$0xff]
        %v912 = vld [vmem:[%s819 + $0x2e0] sm:$0xff]
        %v913 = vld [vmem:[%s819 + $0x2e8] sm:$0xff]
        %v914 = vld [vmem:[%s819 + $0x2f0] sm:$0xff]
        %v915 = vld [vmem:[%s819 + $0x2f8] sm:$0xff]
        %v916 = vld [vmem:[%s819 + $0x300] sm:$0xff]
        %v917 = vld [vmem:[%s819 + $0x308] sm:$0xff]
        %v918 = vld [vmem:[%s819 + $0x310] sm:$0xff]
        %v919 = vld [vmem:[%s819 + $0x318] sm:$0xff]
        %v920 = vld [vmem:[%s819 + $0x320] sm:$0xff]
        %v921 = vld [vmem:[%s819 + $0x328] sm:$0xff]
        %v922 = vld [vmem:[%s819 + $0x330] sm:$0xff]
        %v923 = vld [vmem:[%s819 + $0x338] sm:$0xff]
        %v924 = vld [vmem:[%s819 + $0x340] sm:$0xff]
        %v925 = vld [vmem:[%s819 + $0x348] sm:$0xff]
        %v926 = vld [vmem:[%s819 + $0x350] sm:$0xff]
        %v927 = vld [vmem:[%s819 + $0x358] sm:$0xff]
        %v928 = vld [vmem:[%s819 + $0x360] sm:$0xff]
        %v929 = vld [vmem:[%s819 + $0x368] sm:$0xff]
        %v930 = vld [vmem:[%s819 + $0x370] sm:$0xff]
        %v931 = vld [vmem:[%s819 + $0x378] sm:$0xff]
        %v932 = vld [vmem:[%s819 + $0x380] sm:$0xff]
        %v933 = vld [vmem:[%s819 + $0x388] sm:$0xff]
        %v934 = vld [vmem:[%s819 + $0x390] sm:$0xff]
        %v935 = vld [vmem:[%s819 + $0x398] sm:$0xff]
        %v936 = vld [vmem:[%s819 + $0x3a0] sm:$0xff]
        %v937 = vld [vmem:[%s819 + $0x3a8] sm:$0xff]
        %v938 = vld [vmem:[%s819 + $0x3b0] sm:$0xff]
        %v939 = vld [vmem:[%s819 + $0x3b8] sm:$0xff]
        %v940 = vld [vmem:[%s819 + $0x3c0] sm:$0xff]
        %v941 = vld [vmem:[%s819 + $0x3c8] sm:$0xff]
        %v942 = vld [vmem:[%s819 + $0x3d0] sm:$0xff]
        %v943 = vld [vmem:[%s819 + $0x3d8] sm:$0xff]
        %v944 = vld [vmem:[%s819 + $0x3e0] sm:$0xff]
        %v945 = vld [vmem:[%s819 + $0x3e8] sm:$0xff]
        %v946 = vld [vmem:[%s819 + $0x3f0] sm:$0xff]
        %v947 = vld [vmem:[%s819 + $0x3f8] sm:$0xff]
        %v948 = vld [vmem:[%s819 + $0x400] sm:$0xff]
        %v949 = vld [vmem:[%s819 + $0x408] sm:$0xff]
        %v950 = vld [vmem:[%s819 + $0x410] sm:$0xff]
        %v951 = vld [vmem:[%s819 + $0x418] sm:$0xff]
        %v952 = vld [vmem:[%s819 + $0x420] sm:$0xff]
        %v953 = vld [vmem:[%s819 + $0x428] sm:$0xff]
        %v954 = vld [vmem:[%s819 + $0x430] sm:$0xff]
        %v955 = vld [vmem:[%s819 + $0x438] sm:$0xff]
        %v956 = vld [vmem:[%s819 + $0x440] sm:$0xff]
        %v957 = vld [vmem:[%s819 + $0x448] sm:$0xff]
        %v958 = vld [vmem:[%s819 + $0x450] sm:$0xff]
        %v959 = vld [vmem:[%s819 + $0x458] sm:$0xff]
        %v960 = vld [vmem:[%s819 + $0x460] sm:$0xff]
        %v961 = vld [vmem:[%s819 + $0x468] sm:$0xff]
        %v962 = vld [vmem:[%s819 + $0x470] sm:$0xff]
        %v963 = vld [vmem:[%s819 + $0x478] sm:$0xff]
        %v964 = vld [vmem:[%s819 + $0x480] sm:$0xff]
        %v965 = vld [vmem:[%s819 + $0x488] sm:$0xff]
        %v966 = vld [vmem:[%s819 + $0x490] sm:$0xff]
        %v967 = vld [vmem:[%s819 + $0x498] sm:$0xff]
        %v968 = vld [vmem:[%s819 + $0x4a0] sm:$0xff]
        %v969 = vld [vmem:[%s819 + $0x4a8] sm:$0xff]
        %v970 = vld [vmem:[%s819 + $0x4b0] sm:$0xff]
        %v971 = vld [vmem:[%s819 + $0x4b8] sm:$0xff]
        %v972 = vld [vmem:[%s819 + $0x4c0] sm:$0xff]
        %v973 = vld [vmem:[%s819 + $0x4c8] sm:$0xff]
        %v974 = vld [vmem:[%s819 + $0x4d0] sm:$0xff]
        %v975 = vld [vmem:[%s819 + $0x4d8] sm:$0xff]
        %v976 = vld [vmem:[%s819 + $0x4e0] sm:$0xff]
        %v977 = vld [vmem:[%s819 + $0x4e8] sm:$0xff]
        %v978 = vld [vmem:[%s819 + $0x4f0] sm:$0xff]
        %v979 = vld [vmem:[%s819 + $0x4f8] sm:$0xff]
        %vm980 = vsmask.f32 7424
        %v982 = vshrl.u32 %v655, 16
        %v984 = vshll.u32 %v655, 16
        %v986 = vrot.slane %v984, 1
        %v987 = vor.u32 %v982, %v986
        %v989 = vshll.u32 %v657, 16
        %v991 = vrot.slane %v989, 1
        %v992 = vsel %vm980, %v987, %v991
        %v994 = vshrl.u32 %v656, 16
        %v996 = vshll.u32 %v656, 16
        %v998 = vrot.slane %v996, 1
        %v999 = vor.u32 %v994, %v998
        %v1001 = vshll.u32 %v658, 16
        %v1003 = vrot.slane %v1001, 1
        %v1004 = vsel %vm980, %v999, %v1003
        %v1005 = vshrl.u32 %v657, 16
        %v1007 = vshrl.u32 %v658, 16
        %v1173 = vunpack.c.l.b16 %v820
        %v1174 = vunpack.c.h.b16 %v820
        %v1175 = vunpack.c.l.b16 %v821
        %v1176 = vunpack.c.h.b16 %v821
        %v1177 = vunpack.c.l.b16 %v822
        %v1178 = vunpack.c.h.b16 %v822
        %v1179 = vunpack.c.l.b16 %v823
        %v1180 = vunpack.c.h.b16 %v823
        %v1181 = vunpack.c.l.b16 %v824
        %v1182 = vunpack.c.h.b16 %v824
        %v1183 = vunpack.c.l.b16 %v825
        %v1184 = vunpack.c.h.b16 %v825
        %v1185 = vunpack.c.l.b16 %v826
        %v1186 = vunpack.c.h.b16 %v826
        %v1187 = vunpack.c.l.b16 %v827
        %v1188 = vunpack.c.h.b16 %v827
        %v1189 = vunpack.c.l.b16 %v828
        %v1190 = vunpack.c.h.b16 %v828
        %v1191 = vunpack.c.l.b16 %v829
        %v1192 = vunpack.c.h.b16 %v829
        %v1193 = vunpack.c.l.b16 %v830
        %v1194 = vunpack.c.h.b16 %v830
        %v1195 = vunpack.c.l.b16 %v831
        %v1196 = vunpack.c.h.b16 %v831
        %v1197 = vunpack.c.l.b16 %v832
        %v1198 = vunpack.c.h.b16 %v832
        %v1199 = vunpack.c.l.b16 %v833
        %v1200 = vunpack.c.h.b16 %v833
        %v1201 = vunpack.c.l.b16 %v834
        %v1202 = vunpack.c.h.b16 %v834
        %v1203 = vunpack.c.l.b16 %v835
        %v1204 = vunpack.c.h.b16 %v835
        %v1205 = vunpack.c.l.b16 %v836
        %v1206 = vunpack.c.h.b16 %v836
        %v1207 = vunpack.c.l.b16 %v837
        %v1208 = vunpack.c.h.b16 %v837
        %v1209 = vunpack.c.l.b16 %v838
        %v1210 = vunpack.c.h.b16 %v838
        %v1211 = vunpack.c.l.b16 %v839
        %v1212 = vunpack.c.h.b16 %v839
        %v1213 = vunpack.c.l.b16 %v840
        %v1214 = vunpack.c.h.b16 %v840
        %v1215 = vunpack.c.l.b16 %v841
        %v1216 = vunpack.c.h.b16 %v841
        %v1217 = vunpack.c.l.b16 %v842
        %v1218 = vunpack.c.h.b16 %v842
        %v1219 = vunpack.c.l.b16 %v843
        %v1220 = vunpack.c.h.b16 %v843
        %v1221 = vunpack.c.l.b16 %v844
        %v1222 = vunpack.c.h.b16 %v844
        %v1223 = vunpack.c.l.b16 %v845
        %v1224 = vunpack.c.h.b16 %v845
        %v1225 = vunpack.c.l.b16 %v846
        %v1226 = vunpack.c.h.b16 %v846
        %v1227 = vunpack.c.l.b16 %v847
        %v1228 = vunpack.c.h.b16 %v847
        %v1229 = vunpack.c.l.b16 %v848
        %v1230 = vunpack.c.h.b16 %v848
        %v1231 = vunpack.c.l.b16 %v849
        %v1232 = vunpack.c.h.b16 %v849
        %v1233 = vunpack.c.l.b16 %v850
        %v1234 = vunpack.c.h.b16 %v850
        %v1235 = vunpack.c.l.b16 %v851
        %v1236 = vunpack.c.h.b16 %v851
        %v1237 = vunpack.c.l.b16 %v852
        %v1238 = vunpack.c.h.b16 %v852
        %v1239 = vunpack.c.l.b16 %v853
        %v1240 = vunpack.c.h.b16 %v853
        %v1241 = vunpack.c.l.b16 %v854
        %v1242 = vunpack.c.h.b16 %v854
        %v1243 = vunpack.c.l.b16 %v855
        %v1244 = vunpack.c.h.b16 %v855
        %v1245 = vunpack.c.l.b16 %v856
        %v1246 = vunpack.c.h.b16 %v856
        %v1247 = vunpack.c.l.b16 %v857
        %v1248 = vunpack.c.h.b16 %v857
        %v1249 = vunpack.c.l.b16 %v858
        %v1250 = vunpack.c.h.b16 %v858
        %v1251 = vunpack.c.l.b16 %v859
        %v1252 = vunpack.c.h.b16 %v859
        %v1253 = vunpack.c.l.b16 %v860
        %v1254 = vunpack.c.h.b16 %v860
        %v1255 = vunpack.c.l.b16 %v861
        %v1256 = vunpack.c.h.b16 %v861
        %v1257 = vunpack.c.l.b16 %v862
        %v1258 = vunpack.c.h.b16 %v862
        %v1259 = vunpack.c.l.b16 %v863
        %v1260 = vunpack.c.h.b16 %v863
        %v1261 = vunpack.c.l.b16 %v864
        %v1262 = vunpack.c.h.b16 %v864
        %v1263 = vunpack.c.l.b16 %v865
        %v1264 = vunpack.c.h.b16 %v865
        %v1265 = vunpack.c.l.b16 %v866
        %v1266 = vunpack.c.h.b16 %v866
        %v1267 = vunpack.c.l.b16 %v867
        %v1268 = vunpack.c.h.b16 %v867
        %v1269 = vunpack.c.l.b16 %v868
        %v1270 = vunpack.c.h.b16 %v868
        %v1271 = vunpack.c.l.b16 %v869
        %v1272 = vunpack.c.h.b16 %v869
        %v1273 = vunpack.c.l.b16 %v870
        %v1274 = vunpack.c.h.b16 %v870
        %v1275 = vunpack.c.l.b16 %v871
        %v1276 = vunpack.c.h.b16 %v871
        %v1277 = vunpack.c.l.b16 %v872
        %v1278 = vunpack.c.h.b16 %v872
        %v1279 = vunpack.c.l.b16 %v873
        %v1280 = vunpack.c.h.b16 %v873
        %v1281 = vunpack.c.l.b16 %v874
        %v1282 = vunpack.c.h.b16 %v874
        %v1283 = vunpack.c.l.b16 %v875
        %v1284 = vunpack.c.h.b16 %v875
        %v1285 = vunpack.c.l.b16 %v876
        %v1286 = vunpack.c.h.b16 %v876
        %v1287 = vunpack.c.l.b16 %v877
        %v1288 = vunpack.c.h.b16 %v877
        %v1289 = vunpack.c.l.b16 %v878
        %v1290 = vunpack.c.h.b16 %v878
        %v1291 = vunpack.c.l.b16 %v879
        %v1292 = vunpack.c.h.b16 %v879
        %v1293 = vunpack.c.l.b16 %v880
        %v1294 = vunpack.c.h.b16 %v880
        %v1295 = vunpack.c.l.b16 %v881
        %v1296 = vunpack.c.h.b16 %v881
        %v1297 = vunpack.c.l.b16 %v882
        %v1298 = vunpack.c.h.b16 %v882
        %v1299 = vunpack.c.l.b16 %v883
        %v1300 = vunpack.c.h.b16 %v883
        %v1301 = vunpack.c.l.b16 %v884
        %v1302 = vunpack.c.h.b16 %v884
        %v1303 = vunpack.c.l.b16 %v885
        %v1304 = vunpack.c.h.b16 %v885
        %v1305 = vunpack.c.l.b16 %v886
        %v1306 = vunpack.c.h.b16 %v886
        %v1307 = vunpack.c.l.b16 %v887
        %v1308 = vunpack.c.h.b16 %v887
        %v1309 = vunpack.c.l.b16 %v888
        %v1310 = vunpack.c.h.b16 %v888
        %v1311 = vunpack.c.l.b16 %v889
        %v1312 = vunpack.c.h.b16 %v889
        %v1313 = vunpack.c.l.b16 %v890
        %v1314 = vunpack.c.h.b16 %v890
        %v1315 = vunpack.c.l.b16 %v891
        %v1316 = vunpack.c.h.b16 %v891
        %v1317 = vunpack.c.l.b16 %v892
        %v1318 = vunpack.c.h.b16 %v892
        %v1319 = vunpack.c.l.b16 %v893
        %v1320 = vunpack.c.h.b16 %v893
        %v1321 = vunpack.c.l.b16 %v894
        %v1322 = vunpack.c.h.b16 %v894
        %v1323 = vunpack.c.l.b16 %v895
        %v1324 = vunpack.c.h.b16 %v895
        %v1325 = vunpack.c.l.b16 %v896
        %v1326 = vunpack.c.h.b16 %v896
        %v1327 = vunpack.c.l.b16 %v897
        %v1328 = vunpack.c.h.b16 %v897
        %v1329 = vunpack.c.l.b16 %v898
        %v1330 = vunpack.c.h.b16 %v898
        %v1331 = vunpack.c.l.b16 %v899
        %v1332 = vunpack.c.h.b16 %v899
        %v1333 = vunpack.c.l.b16 %v900
        %v1334 = vunpack.c.h.b16 %v900
        %v1335 = vunpack.c.l.b16 %v901
        %v1336 = vunpack.c.h.b16 %v901
        %v1337 = vunpack.c.l.b16 %v902
        %v1338 = vunpack.c.h.b16 %v902
        %v1339 = vunpack.c.l.b16 %v903
        %v1340 = vunpack.c.h.b16 %v903
        %v1341 = vunpack.c.l.b16 %v904
        %v1342 = vunpack.c.h.b16 %v904
        %v1343 = vunpack.c.l.b16 %v905
        %v1344 = vunpack.c.h.b16 %v905
        %v1345 = vunpack.c.l.b16 %v906
        %v1346 = vunpack.c.h.b16 %v906
        %v1347 = vunpack.c.l.b16 %v907
        %v1348 = vunpack.c.h.b16 %v907
        %v1349 = vunpack.c.l.b16 %v908
        %v1350 = vunpack.c.h.b16 %v908
        %v1351 = vunpack.c.l.b16 %v909
        %v1352 = vunpack.c.h.b16 %v909
        %v1353 = vunpack.c.l.b16 %v910
        %v1354 = vunpack.c.h.b16 %v910
        %v1355 = vunpack.c.l.b16 %v911
        %v1356 = vunpack.c.h.b16 %v911
        %v1357 = vunpack.c.l.b16 %v912
        %v1358 = vunpack.c.h.b16 %v912
        %v1359 = vunpack.c.l.b16 %v913
        %v1360 = vunpack.c.h.b16 %v913
        %v1361 = vunpack.c.l.b16 %v914
        %v1362 = vunpack.c.h.b16 %v914
        %v1363 = vunpack.c.l.b16 %v915
        %v1364 = vunpack.c.h.b16 %v915
        %v1365 = vunpack.c.l.b16 %v916
        %v1366 = vunpack.c.h.b16 %v916
        %v1367 = vunpack.c.l.b16 %v917
        %v1368 = vunpack.c.h.b16 %v917
        %v1369 = vunpack.c.l.b16 %v918
        %v1370 = vunpack.c.h.b16 %v918
        %v1371 = vunpack.c.l.b16 %v919
        %v1372 = vunpack.c.h.b16 %v919
        %v1373 = vunpack.c.l.b16 %v920
        %v1374 = vunpack.c.h.b16 %v920
        %v1375 = vunpack.c.l.b16 %v921
        %v1376 = vunpack.c.h.b16 %v921
        %v1377 = vunpack.c.l.b16 %v922
        %v1378 = vunpack.c.h.b16 %v922
        %v1379 = vunpack.c.l.b16 %v923
        %v1380 = vunpack.c.h.b16 %v923
        %v1381 = vunpack.c.l.b16 %v924
        %v1382 = vunpack.c.h.b16 %v924
        %v1383 = vunpack.c.l.b16 %v925
        %v1384 = vunpack.c.h.b16 %v925
        %v1385 = vunpack.c.l.b16 %v926
        %v1386 = vunpack.c.h.b16 %v926
        %v1387 = vunpack.c.l.b16 %v927
        %v1388 = vunpack.c.h.b16 %v927
        %v1389 = vunpack.c.l.b16 %v928
        %v1390 = vunpack.c.h.b16 %v928
        %v1391 = vunpack.c.l.b16 %v929
        %v1392 = vunpack.c.h.b16 %v929
        %v1393 = vunpack.c.l.b16 %v930
        %v1394 = vunpack.c.h.b16 %v930
        %v1395 = vunpack.c.l.b16 %v931
        %v1396 = vunpack.c.h.b16 %v931
        %v1397 = vunpack.c.l.b16 %v932
        %v1398 = vunpack.c.h.b16 %v932
        %v1399 = vunpack.c.l.b16 %v933
        %v1400 = vunpack.c.h.b16 %v933
        %v1401 = vunpack.c.l.b16 %v934
        %v1402 = vunpack.c.h.b16 %v934
        %v1403 = vunpack.c.l.b16 %v935
        %v1404 = vunpack.c.h.b16 %v935
        %v1405 = vunpack.c.l.b16 %v936
        %v1406 = vunpack.c.h.b16 %v936
        %v1407 = vunpack.c.l.b16 %v937
        %v1408 = vunpack.c.h.b16 %v937
        %v1409 = vunpack.c.l.b16 %v938
        %v1410 = vunpack.c.h.b16 %v938
        %v1411 = vunpack.c.l.b16 %v939
        %v1412 = vunpack.c.h.b16 %v939
        %v1413 = vunpack.c.l.b16 %v940
        %v1414 = vunpack.c.h.b16 %v940
        %v1415 = vunpack.c.l.b16 %v941
        %v1416 = vunpack.c.h.b16 %v941
        %v1417 = vunpack.c.l.b16 %v942
        %v1418 = vunpack.c.h.b16 %v942
        %v1419 = vunpack.c.l.b16 %v943
        %v1420 = vunpack.c.h.b16 %v943
        %v1421 = vunpack.c.l.b16 %v944
        %v1422 = vunpack.c.h.b16 %v944
        %v1423 = vunpack.c.l.b16 %v945
        %v1424 = vunpack.c.h.b16 %v945
        %v1425 = vunpack.c.l.b16 %v946
        %v1426 = vunpack.c.h.b16 %v946
        %v1427 = vunpack.c.l.b16 %v947
        %v1428 = vunpack.c.h.b16 %v947
        %v1429 = vunpack.c.l.b16 %v948
        %v1430 = vunpack.c.h.b16 %v948
        %v1431 = vunpack.c.l.b16 %v949
        %v1432 = vunpack.c.h.b16 %v949
        %v1433 = vunpack.c.l.b16 %v950
        %v1434 = vunpack.c.h.b16 %v950
        %v1435 = vunpack.c.l.b16 %v951
        %v1436 = vunpack.c.h.b16 %v951
        %v1437 = vunpack.c.l.b16 %v952
        %v1438 = vunpack.c.h.b16 %v952
        %v1439 = vunpack.c.l.b16 %v953
        %v1440 = vunpack.c.h.b16 %v953
        %v1441 = vunpack.c.l.b16 %v954
        %v1442 = vunpack.c.h.b16 %v954
        %v1443 = vunpack.c.l.b16 %v955
        %v1444 = vunpack.c.h.b16 %v955
        %v1445 = vunpack.c.l.b16 %v956
        %v1446 = vunpack.c.h.b16 %v956
        %v1447 = vunpack.c.l.b16 %v957
        %v1448 = vunpack.c.h.b16 %v957
        %v1449 = vunpack.c.l.b16 %v958
        %v1450 = vunpack.c.h.b16 %v958
        %v1451 = vunpack.c.l.b16 %v959
        %v1452 = vunpack.c.h.b16 %v959
        %v1453 = vunpack.c.l.b16 %v960
        %v1454 = vunpack.c.h.b16 %v960
        %v1455 = vunpack.c.l.b16 %v961
        %v1456 = vunpack.c.h.b16 %v961
        %v1457 = vunpack.c.l.b16 %v962
        %v1458 = vunpack.c.h.b16 %v962
        %v1459 = vunpack.c.l.b16 %v963
        %v1460 = vunpack.c.h.b16 %v963
        %v1461 = vunpack.c.l.b16 %v964
        %v1462 = vunpack.c.h.b16 %v964
        %v1463 = vunpack.c.l.b16 %v965
        %v1464 = vunpack.c.h.b16 %v965
        %v1465 = vunpack.c.l.b16 %v966
        %v1466 = vunpack.c.h.b16 %v966
        %v1467 = vunpack.c.l.b16 %v967
        %v1468 = vunpack.c.h.b16 %v967
        %v1469 = vunpack.c.l.b16 %v968
        %v1470 = vunpack.c.h.b16 %v968
        %v1471 = vunpack.c.l.b16 %v969
        %v1472 = vunpack.c.h.b16 %v969
        %v1473 = vunpack.c.l.b16 %v970
        %v1474 = vunpack.c.h.b16 %v970
        %v1475 = vunpack.c.l.b16 %v971
        %v1476 = vunpack.c.h.b16 %v971
        %v1477 = vunpack.c.l.b16 %v972
        %v1478 = vunpack.c.h.b16 %v972
        %v1479 = vunpack.c.l.b16 %v973
        %v1480 = vunpack.c.h.b16 %v973
        %v1481 = vunpack.c.l.b16 %v974
        %v1482 = vunpack.c.h.b16 %v974
        %v1483 = vunpack.c.l.b16 %v975
        %v1484 = vunpack.c.h.b16 %v975
        %v1485 = vunpack.c.l.b16 %v976
        %v1486 = vunpack.c.h.b16 %v976
        %v1487 = vunpack.c.l.b16 %v977
        %v1488 = vunpack.c.h.b16 %v977
        %v1489 = vunpack.c.l.b16 %v978
        %v1490 = vunpack.c.h.b16 %v978
        %v1491 = vunpack.c.l.b16 %v979
        %v1492 = vunpack.c.h.b16 %v979
        %v1493 = vpack.c.b16 %v1183, %v1173
        %v1494 = vpack.c.b16 %v1184, %v1174
        %v1495 = vpack.c.b16 %v1185, %v1175
        %v1496 = vpack.c.b16 %v1186, %v1176
        %v1497 = vpack.c.b16 %v1187, %v1177
        %v1498 = vpack.c.b16 %v1188, %v1178
        %v1499 = vpack.c.b16 %v1189, %v1179
        %v1500 = vpack.c.b16 %v1190, %v1180
        %v1501 = vpack.c.b16 %v1191, %v1181
        %v1502 = vpack.c.b16 %v1192, %v1182
        %v1503 = vpack.c.b16 %v1203, %v1193
        %v1504 = vpack.c.b16 %v1204, %v1194
        %v1505 = vpack.c.b16 %v1205, %v1195
        %v1506 = vpack.c.b16 %v1206, %v1196
        %v1507 = vpack.c.b16 %v1207, %v1197
        %v1508 = vpack.c.b16 %v1208, %v1198
        %v1509 = vpack.c.b16 %v1209, %v1199
        %v1510 = vpack.c.b16 %v1210, %v1200
        %v1511 = vpack.c.b16 %v1211, %v1201
        %v1512 = vpack.c.b16 %v1212, %v1202
        %v1513 = vpack.c.b16 %v1223, %v1213
        %v1514 = vpack.c.b16 %v1224, %v1214
        %v1515 = vpack.c.b16 %v1225, %v1215
        %v1516 = vpack.c.b16 %v1226, %v1216
        %v1517 = vpack.c.b16 %v1227, %v1217
        %v1518 = vpack.c.b16 %v1228, %v1218
        %v1519 = vpack.c.b16 %v1229, %v1219
        %v1520 = vpack.c.b16 %v1230, %v1220
        %v1521 = vpack.c.b16 %v1231, %v1221
        %v1522 = vpack.c.b16 %v1232, %v1222
        %v1523 = vpack.c.b16 %v1243, %v1233
        %v1524 = vpack.c.b16 %v1244, %v1234
        %v1525 = vpack.c.b16 %v1245, %v1235
        %v1526 = vpack.c.b16 %v1246, %v1236
        %v1527 = vpack.c.b16 %v1247, %v1237
        %v1528 = vpack.c.b16 %v1248, %v1238
        %v1529 = vpack.c.b16 %v1249, %v1239
        %v1530 = vpack.c.b16 %v1250, %v1240
        %v1531 = vpack.c.b16 %v1251, %v1241
        %v1532 = vpack.c.b16 %v1252, %v1242
        %v1533 = vpack.c.b16 %v1263, %v1253
        %v1534 = vpack.c.b16 %v1264, %v1254
        %v1535 = vpack.c.b16 %v1265, %v1255
        %v1536 = vpack.c.b16 %v1266, %v1256
        %v1537 = vpack.c.b16 %v1267, %v1257
        %v1538 = vpack.c.b16 %v1268, %v1258
        %v1539 = vpack.c.b16 %v1269, %v1259
        %v1540 = vpack.c.b16 %v1270, %v1260
        %v1541 = vpack.c.b16 %v1271, %v1261
        %v1542 = vpack.c.b16 %v1272, %v1262
        %v1543 = vpack.c.b16 %v1283, %v1273
        %v1544 = vpack.c.b16 %v1284, %v1274
        %v1545 = vpack.c.b16 %v1285, %v1275
        %v1546 = vpack.c.b16 %v1286, %v1276
        %v1547 = vpack.c.b16 %v1287, %v1277
        %v1548 = vpack.c.b16 %v1288, %v1278
        %v1549 = vpack.c.b16 %v1289, %v1279
        %v1550 = vpack.c.b16 %v1290, %v1280
        %v1551 = vpack.c.b16 %v1291, %v1281
        %v1552 = vpack.c.b16 %v1292, %v1282
        %v1553 = vpack.c.b16 %v1303, %v1293
        %v1554 = vpack.c.b16 %v1304, %v1294
        %v1555 = vpack.c.b16 %v1305, %v1295
        %v1556 = vpack.c.b16 %v1306, %v1296
        %v1557 = vpack.c.b16 %v1307, %v1297
        %v1558 = vpack.c.b16 %v1308, %v1298
        %v1559 = vpack.c.b16 %v1309, %v1299
        %v1560 = vpack.c.b16 %v1310, %v1300
        %v1561 = vpack.c.b16 %v1311, %v1301
        %v1562 = vpack.c.b16 %v1312, %v1302
        %v1563 = vpack.c.b16 %v1323, %v1313
        %v1564 = vpack.c.b16 %v1324, %v1314
        %v1565 = vpack.c.b16 %v1325, %v1315
        %v1566 = vpack.c.b16 %v1326, %v1316
        %v1567 = vpack.c.b16 %v1327, %v1317
        %v1568 = vpack.c.b16 %v1328, %v1318
        %v1569 = vpack.c.b16 %v1329, %v1319
        %v1570 = vpack.c.b16 %v1330, %v1320
        %v1571 = vpack.c.b16 %v1331, %v1321
        %v1572 = vpack.c.b16 %v1332, %v1322
        %v1573 = vpack.c.b16 %v1343, %v1333
        %v1574 = vpack.c.b16 %v1344, %v1334
        %v1575 = vpack.c.b16 %v1345, %v1335
        %v1576 = vpack.c.b16 %v1346, %v1336
        %v1577 = vpack.c.b16 %v1347, %v1337
        %v1578 = vpack.c.b16 %v1348, %v1338
        %v1579 = vpack.c.b16 %v1349, %v1339
        %v1580 = vpack.c.b16 %v1350, %v1340
        %v1581 = vpack.c.b16 %v1351, %v1341
        %v1582 = vpack.c.b16 %v1352, %v1342
        %v1583 = vpack.c.b16 %v1363, %v1353
        %v1584 = vpack.c.b16 %v1364, %v1354
        %v1585 = vpack.c.b16 %v1365, %v1355
        %v1586 = vpack.c.b16 %v1366, %v1356
        %v1587 = vpack.c.b16 %v1367, %v1357
        %v1588 = vpack.c.b16 %v1368, %v1358
        %v1589 = vpack.c.b16 %v1369, %v1359
        %v1590 = vpack.c.b16 %v1370, %v1360
        %v1591 = vpack.c.b16 %v1371, %v1361
        %v1592 = vpack.c.b16 %v1372, %v1362
        %v1593 = vpack.c.b16 %v1383, %v1373
        %v1594 = vpack.c.b16 %v1384, %v1374
        %v1595 = vpack.c.b16 %v1385, %v1375
        %v1596 = vpack.c.b16 %v1386, %v1376
        %v1597 = vpack.c.b16 %v1387, %v1377
        %v1598 = vpack.c.b16 %v1388, %v1378
        %v1599 = vpack.c.b16 %v1389, %v1379
        %v1600 = vpack.c.b16 %v1390, %v1380
        %v1601 = vpack.c.b16 %v1391, %v1381
        %v1602 = vpack.c.b16 %v1392, %v1382
        %v1603 = vpack.c.b16 %v1403, %v1393
        %v1604 = vpack.c.b16 %v1404, %v1394
        %v1605 = vpack.c.b16 %v1405, %v1395
        %v1606 = vpack.c.b16 %v1406, %v1396
        %v1607 = vpack.c.b16 %v1407, %v1397
        %v1608 = vpack.c.b16 %v1408, %v1398
        %v1609 = vpack.c.b16 %v1409, %v1399
        %v1610 = vpack.c.b16 %v1410, %v1400
        %v1611 = vpack.c.b16 %v1411, %v1401
        %v1612 = vpack.c.b16 %v1412, %v1402
        %v1613 = vpack.c.b16 %v1423, %v1413
        %v1614 = vpack.c.b16 %v1424, %v1414
        %v1615 = vpack.c.b16 %v1425, %v1415
        %v1616 = vpack.c.b16 %v1426, %v1416
        %v1617 = vpack.c.b16 %v1427, %v1417
        %v1618 = vpack.c.b16 %v1428, %v1418
        %v1619 = vpack.c.b16 %v1429, %v1419
        %v1620 = vpack.c.b16 %v1430, %v1420
        %v1621 = vpack.c.b16 %v1431, %v1421
        %v1622 = vpack.c.b16 %v1432, %v1422
        %v1623 = vpack.c.b16 %v1443, %v1433
        %v1624 = vpack.c.b16 %v1444, %v1434
        %v1625 = vpack.c.b16 %v1445, %v1435
        %v1626 = vpack.c.b16 %v1446, %v1436
        %v1627 = vpack.c.b16 %v1447, %v1437
        %v1628 = vpack.c.b16 %v1448, %v1438
        %v1629 = vpack.c.b16 %v1449, %v1439
        %v1630 = vpack.c.b16 %v1450, %v1440
        %v1631 = vpack.c.b16 %v1451, %v1441
        %v1632 = vpack.c.b16 %v1452, %v1442
        %v1633 = vpack.c.b16 %v1463, %v1453
        %v1634 = vpack.c.b16 %v1464, %v1454
        %v1635 = vpack.c.b16 %v1465, %v1455
        %v1636 = vpack.c.b16 %v1466, %v1456
        %v1637 = vpack.c.b16 %v1467, %v1457
        %v1638 = vpack.c.b16 %v1468, %v1458
        %v1639 = vpack.c.b16 %v1469, %v1459
        %v1640 = vpack.c.b16 %v1470, %v1460
        %v1641 = vpack.c.b16 %v1471, %v1461
        %v1642 = vpack.c.b16 %v1472, %v1462
        %v1643 = vpack.c.b16 %v1483, %v1473
        %v1644 = vpack.c.b16 %v1484, %v1474
        %v1645 = vpack.c.b16 %v1485, %v1475
        %v1646 = vpack.c.b16 %v1486, %v1476
        %v1647 = vpack.c.b16 %v1487, %v1477
        %v1648 = vpack.c.b16 %v1488, %v1478
        %v1649 = vpack.c.b16 %v1489, %v1479
        %v1650 = vpack.c.b16 %v1490, %v1480
        %v1651 = vpack.c.b16 %v1491, %v1481
        %v1652 = vpack.c.b16 %v1492, %v1482
        %1813 = vmatprep.subr.bf16.mxu0 %v1564
        %1814 = vmatpush1.bf16.msra.mxu0 %v1563
        %1815 = vmatprep.subr.bf16.mxu0 %v1554
        %1816 = vmatpush1.bf16.msra.mxu0 %v1553
        %1817 = vmatprep.subr.bf16.mxu0 %v1544
        %1818 = vmatpush1.bf16.msra.mxu0 %v1543
        %1819 = vmatprep.subr.bf16.mxu0 %v1534
        %1820 = vmatpush1.bf16.msra.mxu0 %v1533
        %1821 = vmatprep.subr.bf16.mxu0 %v1524
        %1822 = vmatpush1.bf16.msra.mxu0 %v1523
        %1823 = vmatprep.subr.bf16.mxu0 %v1514
        %1824 = vmatpush1.bf16.msra.mxu0 %v1513
        %1825 = vmatprep.subr.bf16.mxu0 %v1504
        %1826 = vmatpush1.bf16.msra.mxu0 %v1503
        %1827 = vmatprep.subr.bf16.mxu0 %v1494
        %1828 = vmatpush1.bf16.msra.mxu0 %v1493
        %1829 = vmatprep.subr.bf16.mxu0 %v1644
        %1830 = vmatpush2.bf16.msra.mxu0 %v1643
        %1831 = vmatprep.subr.bf16.mxu0 %v1634
        %1832 = vmatpush2.bf16.msra.mxu0 %v1633
        %1833 = vmatprep.subr.bf16.mxu0 %v1624
        %1834 = vmatpush2.bf16.msra.mxu0 %v1623
        %1835 = vmatprep.subr.bf16.mxu0 %v1614
        %1836 = vmatpush2.bf16.msra.mxu0 %v1613
        %1837 = vmatprep.subr.bf16.mxu0 %v1604
        %1838 = vmatpush2.bf16.msra.mxu0 %v1603
        %1839 = vmatprep.subr.bf16.mxu0 %v1594
        %1840 = vmatpush2.bf16.msra.mxu0 %v1593
        %1841 = vmatprep.subr.bf16.mxu0 %v1584
        %1842 = vmatpush2.bf16.msra.mxu0 %v1583
        %1843 = vmatprep.subr.bf16.mxu0 %v1574
        %1844 = vmatpush2.bf16.msra.mxu0 %v1573
        %1845 = vmatprep.mubr.bf16.mxu0 %v1004
        %1846 = vmatmul.mubr.bf16.gmra.mxu0 %v992
        %v1847 = vpop.f32.mrf.mxu0
        %v1848 = vadd.f32 0.0, %v1847
        %v1849 = vpop.f32.mrf.mxu0
        %v1850 = vadd.f32 0.0, %v1849
        %v1851 = vpop.f32.mrf.mxu0
        %v1852 = vadd.f32 0.0, %v1851
        %v1853 = vpop.f32.mrf.mxu0
        %v1854 = vadd.f32 0.0, %v1853
        %1855 = vmatprep.mubr.bf16.mxu0 %v1007
        %1856 = vmatmul.mubr.bf16.gmra.mxu0 %v1005
        %v1857 = vpop.f32.mrf.mxu0
        %v1858 = vadd.f32 0.0, %v1857
        %v1859 = vpop.f32.mrf.mxu0
        %v1860 = vadd.f32 0.0, %v1859
        %v1861 = vpop.f32.mrf.mxu0
        %v1862 = vpop.f32.mrf.mxu0
        %1863 = vdwg.mxu0
        %1864 = vmatprep.subr.bf16.mxu0 %v1566
        %1865 = vmatpush1.bf16.msra.mxu0 %v1565
        %1866 = vmatprep.subr.bf16.mxu0 %v1556
        %1867 = vmatpush1.bf16.msra.mxu0 %v1555
        %1868 = vmatprep.subr.bf16.mxu0 %v1546
        %1869 = vmatpush1.bf16.msra.mxu0 %v1545
        %1870 = vmatprep.subr.bf16.mxu0 %v1536
        %1871 = vmatpush1.bf16.msra.mxu0 %v1535
        %1872 = vmatprep.subr.bf16.mxu0 %v1526
        %1873 = vmatpush1.bf16.msra.mxu0 %v1525
        %1874 = vmatprep.subr.bf16.mxu0 %v1516
        %1875 = vmatpush1.bf16.msra.mxu0 %v1515
        %1876 = vmatprep.subr.bf16.mxu0 %v1506
        %1877 = vmatpush1.bf16.msra.mxu0 %v1505
        %1878 = vmatprep.subr.bf16.mxu0 %v1496
        %1879 = vmatpush1.bf16.msra.mxu0 %v1495
        %1880 = vmatprep.subr.bf16.mxu0 %v1646
        %1881 = vmatpush2.bf16.msra.mxu0 %v1645
        %1882 = vmatprep.subr.bf16.mxu0 %v1636
        %1883 = vmatpush2.bf16.msra.mxu0 %v1635
        %1884 = vmatprep.subr.bf16.mxu0 %v1626
        %1885 = vmatpush2.bf16.msra.mxu0 %v1625
        %1886 = vmatprep.subr.bf16.mxu0 %v1616
        %1887 = vmatpush2.bf16.msra.mxu0 %v1615
        %1888 = vmatprep.subr.bf16.mxu0 %v1606
        %1889 = vmatpush2.bf16.msra.mxu0 %v1605
        %1890 = vmatprep.subr.bf16.mxu0 %v1596
        %1891 = vmatpush2.bf16.msra.mxu0 %v1595
        %1892 = vmatprep.subr.bf16.mxu0 %v1586
        %1893 = vmatpush2.bf16.msra.mxu0 %v1585
        %1894 = vmatprep.subr.bf16.mxu0 %v1576
        %1895 = vmatpush2.bf16.msra.mxu0 %v1575
        %1896 = vmatprep.mubr.bf16.mxu0 %v1004
        %1897 = vmatmul.mubr.bf16.gmra.mxu0 %v992
        %v1898 = vpop.f32.mrf.mxu0
        %v1899 = vadd.f32 0.0, %v1898
        %v1900 = vpop.f32.mrf.mxu0
        %v1901 = vadd.f32 0.0, %v1900
        %v1902 = vpop.f32.mrf.mxu0
        %v1903 = vadd.f32 0.0, %v1902
        %v1904 = vpop.f32.mrf.mxu0
        %v1905 = vadd.f32 0.0, %v1904
        %1906 = vmatprep.mubr.bf16.mxu0 %v1007
        %1907 = vmatmul.mubr.bf16.gmra.mxu0 %v1005
        %v1908 = vpop.f32.mrf.mxu0
        %v1909 = vadd.f32 0.0, %v1908
        %v1910 = vpop.f32.mrf.mxu0
        %v1911 = vadd.f32 0.0, %v1910
        %v1912 = vpop.f32.mrf.mxu0
        %v1913 = vpop.f32.mrf.mxu0
        %1914 = vdwg.mxu0
        %1915 = vmatprep.subr.bf16.mxu0 %v1568
        %1916 = vmatpush1.bf16.msra.mxu0 %v1567
        %1917 = vmatprep.subr.bf16.mxu0 %v1558
        %1918 = vmatpush1.bf16.msra.mxu0 %v1557
        %1919 = vmatprep.subr.bf16.mxu0 %v1548
        %1920 = vmatpush1.bf16.msra.mxu0 %v1547
        %1921 = vmatprep.subr.bf16.mxu0 %v1538
        %1922 = vmatpush1.bf16.msra.mxu0 %v1537
        %1923 = vmatprep.subr.bf16.mxu0 %v1528
        %1924 = vmatpush1.bf16.msra.mxu0 %v1527
        %1925 = vmatprep.subr.bf16.mxu0 %v1518
        %1926 = vmatpush1.bf16.msra.mxu0 %v1517
        %1927 = vmatprep.subr.bf16.mxu0 %v1508
        %1928 = vmatpush1.bf16.msra.mxu0 %v1507
        %1929 = vmatprep.subr.bf16.mxu0 %v1498
        %1930 = vmatpush1.bf16.msra.mxu0 %v1497
        %1931 = vmatprep.subr.bf16.mxu0 %v1648
        %1932 = vmatpush2.bf16.msra.mxu0 %v1647
        %1933 = vmatprep.subr.bf16.mxu0 %v1638
        %1934 = vmatpush2.bf16.msra.mxu0 %v1637
        %1935 = vmatprep.subr.bf16.mxu0 %v1628
        %1936 = vmatpush2.bf16.msra.mxu0 %v1627
        %1937 = vmatprep.subr.bf16.mxu0 %v1618
        %1938 = vmatpush2.bf16.msra.mxu0 %v1617
        %1939 = vmatprep.subr.bf16.mxu0 %v1608
        %1940 = vmatpush2.bf16.msra.mxu0 %v1607
        %1941 = vmatprep.subr.bf16.mxu0 %v1598
        %1942 = vmatpush2.bf16.msra.mxu0 %v1597
        %1943 = vmatprep.subr.bf16.mxu0 %v1588
        %1944 = vmatpush2.bf16.msra.mxu0 %v1587
        %1945 = vmatprep.subr.bf16.mxu0 %v1578
        %1946 = vmatpush2.bf16.msra.mxu0 %v1577
        %1947 = vmatprep.mubr.bf16.mxu0 %v1004
        %1948 = vmatmul.mubr.bf16.gmra.mxu0 %v992
        %v1949 = vpop.f32.mrf.mxu0
        %v1950 = vadd.f32 0.0, %v1949
        %v1951 = vpop.f32.mrf.mxu0
        %v1952 = vadd.f32 0.0, %v1951
        %v1953 = vpop.f32.mrf.mxu0
        %v1954 = vadd.f32 0.0, %v1953
        %v1955 = vpop.f32.mrf.mxu0
        %v1956 = vadd.f32 0.0, %v1955
        %1957 = vmatprep.mubr.bf16.mxu0 %v1007
        %1958 = vmatmul.mubr.bf16.gmra.mxu0 %v1005
        %v1959 = vpop.f32.mrf.mxu0
        %v1960 = vadd.f32 0.0, %v1959
        %v1961 = vpop.f32.mrf.mxu0
        %v1962 = vadd.f32 0.0, %v1961
        %v1963 = vpop.f32.mrf.mxu0
        %v1964 = vpop.f32.mrf.mxu0
        %1965 = vdwg.mxu0
        %1966 = vmatprep.subr.bf16.mxu0 %v1570
        %1967 = vmatpush1.bf16.msra.mxu0 %v1569
        %1968 = vmatprep.subr.bf16.mxu0 %v1560
        %1969 = vmatpush1.bf16.msra.mxu0 %v1559
        %1970 = vmatprep.subr.bf16.mxu0 %v1550
        %1971 = vmatpush1.bf16.msra.mxu0 %v1549
        %1972 = vmatprep.subr.bf16.mxu0 %v1540
        %1973 = vmatpush1.bf16.msra.mxu0 %v1539
        %1974 = vmatprep.subr.bf16.mxu0 %v1530
        %1975 = vmatpush1.bf16.msra.mxu0 %v1529
        %1976 = vmatprep.subr.bf16.mxu0 %v1520
        %1977 = vmatpush1.bf16.msra.mxu0 %v1519
        %1978 = vmatprep.subr.bf16.mxu0 %v1510
        %1979 = vmatpush1.bf16.msra.mxu0 %v1509
        %1980 = vmatprep.subr.bf16.mxu0 %v1500
        %1981 = vmatpush1.bf16.msra.mxu0 %v1499
        %1982 = vmatprep.subr.bf16.mxu0 %v1650
        %1983 = vmatpush2.bf16.msra.mxu0 %v1649
        %1984 = vmatprep.subr.bf16.mxu0 %v1640
        %1985 = vmatpush2.bf16.msra.mxu0 %v1639
        %1986 = vmatprep.subr.bf16.mxu0 %v1630
        %1987 = vmatpush2.bf16.msra.mxu0 %v1629
        %1988 = vmatprep.subr.bf16.mxu0 %v1620
        %1989 = vmatpush2.bf16.msra.mxu0 %v1619
        %1990 = vmatprep.subr.bf16.mxu0 %v1610
        %1991 = vmatpush2.bf16.msra.mxu0 %v1609
        %1992 = vmatprep.subr.bf16.mxu0 %v1600
        %1993 = vmatpush2.bf16.msra.mxu0 %v1599
        %1994 = vmatprep.subr.bf16.mxu0 %v1590
        %1995 = vmatpush2.bf16.msra.mxu0 %v1589
        %1996 = vmatprep.subr.bf16.mxu0 %v1580
        %1997 = vmatpush2.bf16.msra.mxu0 %v1579
        %1998 = vmatprep.mubr.bf16.mxu0 %v1004
        %1999 = vmatmul.mubr.bf16.gmra.mxu0 %v992
        %v2000 = vpop.f32.mrf.mxu0
        %v2001 = vadd.f32 0.0, %v2000
        %v2002 = vpop.f32.mrf.mxu0
        %v2003 = vadd.f32 0.0, %v2002
        %v2004 = vpop.f32.mrf.mxu0
        %v2005 = vadd.f32 0.0, %v2004
        %v2006 = vpop.f32.mrf.mxu0
        %v2007 = vadd.f32 0.0, %v2006
        %2008 = vmatprep.mubr.bf16.mxu0 %v1007
        %2009 = vmatmul.mubr.bf16.gmra.mxu0 %v1005
        %v2010 = vpop.f32.mrf.mxu0
        %v2011 = vadd.f32 0.0, %v2010
        %v2012 = vpop.f32.mrf.mxu0
        %v2013 = vadd.f32 0.0, %v2012
        %v2014 = vpop.f32.mrf.mxu0
        %v2015 = vpop.f32.mrf.mxu0
        %2016 = vdwg.mxu0
        %2017 = vmatprep.subr.bf16.mxu0 %v1572
        %2018 = vmatpush1.bf16.msra.mxu0 %v1571
        %2019 = vmatprep.subr.bf16.mxu0 %v1562
        %2020 = vmatpush1.bf16.msra.mxu0 %v1561
        %2021 = vmatprep.subr.bf16.mxu0 %v1552
        %2022 = vmatpush1.bf16.msra.mxu0 %v1551
        %2023 = vmatprep.subr.bf16.mxu0 %v1542
        %2024 = vmatpush1.bf16.msra.mxu0 %v1541
        %2025 = vmatprep.subr.bf16.mxu0 %v1532
        %2026 = vmatpush1.bf16.msra.mxu0 %v1531
        %2027 = vmatprep.subr.bf16.mxu0 %v1522
        %2028 = vmatpush1.bf16.msra.mxu0 %v1521
        %2029 = vmatprep.subr.bf16.mxu0 %v1512
        %2030 = vmatpush1.bf16.msra.mxu0 %v1511
        %2031 = vmatprep.subr.bf16.mxu0 %v1502
        %2032 = vmatpush1.bf16.msra.mxu0 %v1501
        %2033 = vmatprep.subr.bf16.mxu0 %v1652
        %2034 = vmatpush2.bf16.msra.mxu0 %v1651
        %2035 = vmatprep.subr.bf16.mxu0 %v1642
        %2036 = vmatpush2.bf16.msra.mxu0 %v1641
        %2037 = vmatprep.subr.bf16.mxu0 %v1632
        %2038 = vmatpush2.bf16.msra.mxu0 %v1631
        %2039 = vmatprep.subr.bf16.mxu0 %v1622
        %2040 = vmatpush2.bf16.msra.mxu0 %v1621
        %2041 = vmatprep.subr.bf16.mxu0 %v1612
        %2042 = vmatpush2.bf16.msra.mxu0 %v1611
        %2043 = vmatprep.subr.bf16.mxu0 %v1602
        %2044 = vmatpush2.bf16.msra.mxu0 %v1601
        %2045 = vmatprep.subr.bf16.mxu0 %v1592
        %2046 = vmatpush2.bf16.msra.mxu0 %v1591
        %2047 = vmatprep.subr.bf16.mxu0 %v1582
        %2048 = vmatpush2.bf16.msra.mxu0 %v1581
        %2049 = vmatprep.mubr.bf16.mxu0 %v1004
        %2050 = vmatmul.mubr.bf16.gmra.mxu0 %v992
        %v2051 = vpop.f32.mrf.mxu0
        %v2052 = vadd.f32 0.0, %v2051
        %v2053 = vpop.f32.mrf.mxu0
        %v2054 = vadd.f32 0.0, %v2053
        %v2055 = vpop.f32.mrf.mxu0
        %v2056 = vadd.f32 0.0, %v2055
        %v2057 = vpop.f32.mrf.mxu0
        %v2058 = vadd.f32 0.0, %v2057
        %2059 = vmatprep.mubr.bf16.mxu0 %v1007
        %2060 = vmatmul.mubr.bf16.gmra.mxu0 %v1005
        %v2061 = vpop.f32.mrf.mxu0
        %v2062 = vadd.f32 0.0, %v2061
        %v2063 = vpop.f32.mrf.mxu0
        %v2064 = vadd.f32 0.0, %v2063
        %v2065 = vpop.f32.mrf.mxu0
        %v2066 = vpop.f32.mrf.mxu0
        %2067 = vdwg.mxu0
        %v2228 = vunpack.c.l.b16 %v659
        %v2229 = vunpack.c.h.b16 %v659
        %v2230 = vunpack.c.l.b16 %v660
        %v2231 = vunpack.c.h.b16 %v660
        %v2232 = vunpack.c.l.b16 %v661
        %v2233 = vunpack.c.h.b16 %v661
        %v2234 = vunpack.c.l.b16 %v662
        %v2235 = vunpack.c.h.b16 %v662
        %v2236 = vunpack.c.l.b16 %v663
        %v2237 = vunpack.c.h.b16 %v663
        %v2238 = vunpack.c.l.b16 %v664
        %v2239 = vunpack.c.h.b16 %v664
        %v2240 = vunpack.c.l.b16 %v665
        %v2241 = vunpack.c.h.b16 %v665
        %v2242 = vunpack.c.l.b16 %v666
        %v2243 = vunpack.c.h.b16 %v666
        %v2244 = vunpack.c.l.b16 %v667
        %v2245 = vunpack.c.h.b16 %v667
        %v2246 = vunpack.c.l.b16 %v668
        %v2247 = vunpack.c.h.b16 %v668
        %v2248 = vunpack.c.l.b16 %v669
        %v2249 = vunpack.c.h.b16 %v669
        %v2250 = vunpack.c.l.b16 %v670
        %v2251 = vunpack.c.h.b16 %v670
        %v2252 = vunpack.c.l.b16 %v671
        %v2253 = vunpack.c.h.b16 %v671
        %v2254 = vunpack.c.l.b16 %v672
        %v2255 = vunpack.c.h.b16 %v672
        %v2256 = vunpack.c.l.b16 %v673
        %v2257 = vunpack.c.h.b16 %v673
        %v2258 = vunpack.c.l.b16 %v674
        %v2259 = vunpack.c.h.b16 %v674
        %v2260 = vunpack.c.l.b16 %v675
        %v2261 = vunpack.c.h.b16 %v675
        %v2262 = vunpack.c.l.b16 %v676
        %v2263 = vunpack.c.h.b16 %v676
        %v2264 = vunpack.c.l.b16 %v677
        %v2265 = vunpack.c.h.b16 %v677
        %v2266 = vunpack.c.l.b16 %v678
        %v2267 = vunpack.c.h.b16 %v678
        %v2268 = vunpack.c.l.b16 %v679
        %v2269 = vunpack.c.h.b16 %v679
        %v2270 = vunpack.c.l.b16 %v680
        %v2271 = vunpack.c.h.b16 %v680
        %v2272 = vunpack.c.l.b16 %v681
        %v2273 = vunpack.c.h.b16 %v681
        %v2274 = vunpack.c.l.b16 %v682
        %v2275 = vunpack.c.h.b16 %v682
        %v2276 = vunpack.c.l.b16 %v683
        %v2277 = vunpack.c.h.b16 %v683
        %v2278 = vunpack.c.l.b16 %v684
        %v2279 = vunpack.c.h.b16 %v684
        %v2280 = vunpack.c.l.b16 %v685
        %v2281 = vunpack.c.h.b16 %v685
        %v2282 = vunpack.c.l.b16 %v686
        %v2283 = vunpack.c.h.b16 %v686
        %v2284 = vunpack.c.l.b16 %v687
        %v2285 = vunpack.c.h.b16 %v687
        %v2286 = vunpack.c.l.b16 %v688
        %v2287 = vunpack.c.h.b16 %v688
        %v2288 = vunpack.c.l.b16 %v689
        %v2289 = vunpack.c.h.b16 %v689
        %v2290 = vunpack.c.l.b16 %v690
        %v2291 = vunpack.c.h.b16 %v690
        %v2292 = vunpack.c.l.b16 %v691
        %v2293 = vunpack.c.h.b16 %v691
        %v2294 = vunpack.c.l.b16 %v692
        %v2295 = vunpack.c.h.b16 %v692
        %v2296 = vunpack.c.l.b16 %v693
        %v2297 = vunpack.c.h.b16 %v693
        %v2298 = vunpack.c.l.b16 %v694
        %v2299 = vunpack.c.h.b16 %v694
        %v2300 = vunpack.c.l.b16 %v695
        %v2301 = vunpack.c.h.b16 %v695
        %v2302 = vunpack.c.l.b16 %v696
        %v2303 = vunpack.c.h.b16 %v696
        %v2304 = vunpack.c.l.b16 %v697
        %v2305 = vunpack.c.h.b16 %v697
        %v2306 = vunpack.c.l.b16 %v698
        %v2307 = vunpack.c.h.b16 %v698
        %v2308 = vunpack.c.l.b16 %v699
        %v2309 = vunpack.c.h.b16 %v699
        %v2310 = vunpack.c.l.b16 %v700
        %v2311 = vunpack.c.h.b16 %v700
        %v2312 = vunpack.c.l.b16 %v701
        %v2313 = vunpack.c.h.b16 %v701
        %v2314 = vunpack.c.l.b16 %v702
        %v2315 = vunpack.c.h.b16 %v702
        %v2316 = vunpack.c.l.b16 %v703
        %v2317 = vunpack.c.h.b16 %v703
        %v2318 = vunpack.c.l.b16 %v704
        %v2319 = vunpack.c.h.b16 %v704
        %v2320 = vunpack.c.l.b16 %v705
        %v2321 = vunpack.c.h.b16 %v705
        %v2322 = vunpack.c.l.b16 %v706
        %v2323 = vunpack.c.h.b16 %v706
        %v2324 = vunpack.c.l.b16 %v707
        %v2325 = vunpack.c.h.b16 %v707
        %v2326 = vunpack.c.l.b16 %v708
        %v2327 = vunpack.c.h.b16 %v708
        %v2328 = vunpack.c.l.b16 %v709
        %v2329 = vunpack.c.h.b16 %v709
        %v2330 = vunpack.c.l.b16 %v710
        %v2331 = vunpack.c.h.b16 %v710
        %v2332 = vunpack.c.l.b16 %v711
        %v2333 = vunpack.c.h.b16 %v711
        %v2334 = vunpack.c.l.b16 %v712
        %v2335 = vunpack.c.h.b16 %v712
        %v2336 = vunpack.c.l.b16 %v713
        %v2337 = vunpack.c.h.b16 %v713
        %v2338 = vunpack.c.l.b16 %v714
        %v2339 = vunpack.c.h.b16 %v714
        %v2340 = vunpack.c.l.b16 %v715
        %v2341 = vunpack.c.h.b16 %v715
        %v2342 = vunpack.c.l.b16 %v716
        %v2343 = vunpack.c.h.b16 %v716
        %v2344 = vunpack.c.l.b16 %v717
        %v2345 = vunpack.c.h.b16 %v717
        %v2346 = vunpack.c.l.b16 %v718
        %v2347 = vunpack.c.h.b16 %v718
        %v2348 = vunpack.c.l.b16 %v719
        %v2349 = vunpack.c.h.b16 %v719
        %v2350 = vunpack.c.l.b16 %v720
        %v2351 = vunpack.c.h.b16 %v720
        %v2352 = vunpack.c.l.b16 %v721
        %v2353 = vunpack.c.h.b16 %v721
        %v2354 = vunpack.c.l.b16 %v722
        %v2355 = vunpack.c.h.b16 %v722
        %v2356 = vunpack.c.l.b16 %v723
        %v2357 = vunpack.c.h.b16 %v723
        %v2358 = vunpack.c.l.b16 %v724
        %v2359 = vunpack.c.h.b16 %v724
        %v2360 = vunpack.c.l.b16 %v725
        %v2361 = vunpack.c.h.b16 %v725
        %v2362 = vunpack.c.l.b16 %v726
        %v2363 = vunpack.c.h.b16 %v726
        %v2364 = vunpack.c.l.b16 %v727
        %v2365 = vunpack.c.h.b16 %v727
        %v2366 = vunpack.c.l.b16 %v728
        %v2367 = vunpack.c.h.b16 %v728
        %v2368 = vunpack.c.l.b16 %v729
        %v2369 = vunpack.c.h.b16 %v729
        %v2370 = vunpack.c.l.b16 %v730
        %v2371 = vunpack.c.h.b16 %v730
        %v2372 = vunpack.c.l.b16 %v731
        %v2373 = vunpack.c.h.b16 %v731
        %v2374 = vunpack.c.l.b16 %v732
        %v2375 = vunpack.c.h.b16 %v732
        %v2376 = vunpack.c.l.b16 %v733
        %v2377 = vunpack.c.h.b16 %v733
        %v2378 = vunpack.c.l.b16 %v734
        %v2379 = vunpack.c.h.b16 %v734
        %v2380 = vunpack.c.l.b16 %v735
        %v2381 = vunpack.c.h.b16 %v735
        %v2382 = vunpack.c.l.b16 %v736
        %v2383 = vunpack.c.h.b16 %v736
        %v2384 = vunpack.c.l.b16 %v737
        %v2385 = vunpack.c.h.b16 %v737
        %v2386 = vunpack.c.l.b16 %v738
        %v2387 = vunpack.c.h.b16 %v738
        %v2388 = vunpack.c.l.b16 %v739
        %v2389 = vunpack.c.h.b16 %v739
        %v2390 = vunpack.c.l.b16 %v740
        %v2391 = vunpack.c.h.b16 %v740
        %v2392 = vunpack.c.l.b16 %v741
        %v2393 = vunpack.c.h.b16 %v741
        %v2394 = vunpack.c.l.b16 %v742
        %v2395 = vunpack.c.h.b16 %v742
        %v2396 = vunpack.c.l.b16 %v743
        %v2397 = vunpack.c.h.b16 %v743
        %v2398 = vunpack.c.l.b16 %v744
        %v2399 = vunpack.c.h.b16 %v744
        %v2400 = vunpack.c.l.b16 %v745
        %v2401 = vunpack.c.h.b16 %v745
        %v2402 = vunpack.c.l.b16 %v746
        %v2403 = vunpack.c.h.b16 %v746
        %v2404 = vunpack.c.l.b16 %v747
        %v2405 = vunpack.c.h.b16 %v747
        %v2406 = vunpack.c.l.b16 %v748
        %v2407 = vunpack.c.h.b16 %v748
        %v2408 = vunpack.c.l.b16 %v749
        %v2409 = vunpack.c.h.b16 %v749
        %v2410 = vunpack.c.l.b16 %v750
        %v2411 = vunpack.c.h.b16 %v750
        %v2412 = vunpack.c.l.b16 %v751
        %v2413 = vunpack.c.h.b16 %v751
        %v2414 = vunpack.c.l.b16 %v752
        %v2415 = vunpack.c.h.b16 %v752
        %v2416 = vunpack.c.l.b16 %v753
        %v2417 = vunpack.c.h.b16 %v753
        %v2418 = vunpack.c.l.b16 %v754
        %v2419 = vunpack.c.h.b16 %v754
        %v2420 = vunpack.c.l.b16 %v755
        %v2421 = vunpack.c.h.b16 %v755
        %v2422 = vunpack.c.l.b16 %v756
        %v2423 = vunpack.c.h.b16 %v756
        %v2424 = vunpack.c.l.b16 %v757
        %v2425 = vunpack.c.h.b16 %v757
        %v2426 = vunpack.c.l.b16 %v758
        %v2427 = vunpack.c.h.b16 %v758
        %v2428 = vunpack.c.l.b16 %v759
        %v2429 = vunpack.c.h.b16 %v759
        %v2430 = vunpack.c.l.b16 %v760
        %v2431 = vunpack.c.h.b16 %v760
        %v2432 = vunpack.c.l.b16 %v761
        %v2433 = vunpack.c.h.b16 %v761
        %v2434 = vunpack.c.l.b16 %v762
        %v2435 = vunpack.c.h.b16 %v762
        %v2436 = vunpack.c.l.b16 %v763
        %v2437 = vunpack.c.h.b16 %v763
        %v2438 = vunpack.c.l.b16 %v764
        %v2439 = vunpack.c.h.b16 %v764
        %v2440 = vunpack.c.l.b16 %v765
        %v2441 = vunpack.c.h.b16 %v765
        %v2442 = vunpack.c.l.b16 %v766
        %v2443 = vunpack.c.h.b16 %v766
        %v2444 = vunpack.c.l.b16 %v767
        %v2445 = vunpack.c.h.b16 %v767
        %v2446 = vunpack.c.l.b16 %v768
        %v2447 = vunpack.c.h.b16 %v768
        %v2448 = vunpack.c.l.b16 %v769
        %v2449 = vunpack.c.h.b16 %v769
        %v2450 = vunpack.c.l.b16 %v770
        %v2451 = vunpack.c.h.b16 %v770
        %v2452 = vunpack.c.l.b16 %v771
        %v2453 = vunpack.c.h.b16 %v771
        %v2454 = vunpack.c.l.b16 %v772
        %v2455 = vunpack.c.h.b16 %v772
        %v2456 = vunpack.c.l.b16 %v773
        %v2457 = vunpack.c.h.b16 %v773
        %v2458 = vunpack.c.l.b16 %v774
        %v2459 = vunpack.c.h.b16 %v774
        %v2460 = vunpack.c.l.b16 %v775
        %v2461 = vunpack.c.h.b16 %v775
        %v2462 = vunpack.c.l.b16 %v776
        %v2463 = vunpack.c.h.b16 %v776
        %v2464 = vunpack.c.l.b16 %v777
        %v2465 = vunpack.c.h.b16 %v777
        %v2466 = vunpack.c.l.b16 %v778
        %v2467 = vunpack.c.h.b16 %v778
        %v2468 = vunpack.c.l.b16 %v779
        %v2469 = vunpack.c.h.b16 %v779
        %v2470 = vunpack.c.l.b16 %v780
        %v2471 = vunpack.c.h.b16 %v780
        %v2472 = vunpack.c.l.b16 %v781
        %v2473 = vunpack.c.h.b16 %v781
        %v2474 = vunpack.c.l.b16 %v782
        %v2475 = vunpack.c.h.b16 %v782
        %v2476 = vunpack.c.l.b16 %v783
        %v2477 = vunpack.c.h.b16 %v783
        %v2478 = vunpack.c.l.b16 %v784
        %v2479 = vunpack.c.h.b16 %v784
        %v2480 = vunpack.c.l.b16 %v785
        %v2481 = vunpack.c.h.b16 %v785
        %v2482 = vunpack.c.l.b16 %v786
        %v2483 = vunpack.c.h.b16 %v786
        %v2484 = vunpack.c.l.b16 %v787
        %v2485 = vunpack.c.h.b16 %v787
        %v2486 = vunpack.c.l.b16 %v788
        %v2487 = vunpack.c.h.b16 %v788
        %v2488 = vunpack.c.l.b16 %v789
        %v2489 = vunpack.c.h.b16 %v789
        %v2490 = vunpack.c.l.b16 %v790
        %v2491 = vunpack.c.h.b16 %v790
        %v2492 = vunpack.c.l.b16 %v791
        %v2493 = vunpack.c.h.b16 %v791
        %v2494 = vunpack.c.l.b16 %v792
        %v2495 = vunpack.c.h.b16 %v792
        %v2496 = vunpack.c.l.b16 %v793
        %v2497 = vunpack.c.h.b16 %v793
        %v2498 = vunpack.c.l.b16 %v794
        %v2499 = vunpack.c.h.b16 %v794
        %v2500 = vunpack.c.l.b16 %v795
        %v2501 = vunpack.c.h.b16 %v795
        %v2502 = vunpack.c.l.b16 %v796
        %v2503 = vunpack.c.h.b16 %v796
        %v2504 = vunpack.c.l.b16 %v797
        %v2505 = vunpack.c.h.b16 %v797
        %v2506 = vunpack.c.l.b16 %v798
        %v2507 = vunpack.c.h.b16 %v798
        %v2508 = vunpack.c.l.b16 %v799
        %v2509 = vunpack.c.h.b16 %v799
        %v2510 = vunpack.c.l.b16 %v800
        %v2511 = vunpack.c.h.b16 %v800
        %v2512 = vunpack.c.l.b16 %v801
        %v2513 = vunpack.c.h.b16 %v801
        %v2514 = vunpack.c.l.b16 %v802
        %v2515 = vunpack.c.h.b16 %v802
        %v2516 = vunpack.c.l.b16 %v803
        %v2517 = vunpack.c.h.b16 %v803
        %v2518 = vunpack.c.l.b16 %v804
        %v2519 = vunpack.c.h.b16 %v804
        %v2520 = vunpack.c.l.b16 %v805
        %v2521 = vunpack.c.h.b16 %v805
        %v2522 = vunpack.c.l.b16 %v806
        %v2523 = vunpack.c.h.b16 %v806
        %v2524 = vunpack.c.l.b16 %v807
        %v2525 = vunpack.c.h.b16 %v807
        %v2526 = vunpack.c.l.b16 %v808
        %v2527 = vunpack.c.h.b16 %v808
        %v2528 = vunpack.c.l.b16 %v809
        %v2529 = vunpack.c.h.b16 %v809
        %v2530 = vunpack.c.l.b16 %v810
        %v2531 = vunpack.c.h.b16 %v810
        %v2532 = vunpack.c.l.b16 %v811
        %v2533 = vunpack.c.h.b16 %v811
        %v2534 = vunpack.c.l.b16 %v812
        %v2535 = vunpack.c.h.b16 %v812
        %v2536 = vunpack.c.l.b16 %v813
        %v2537 = vunpack.c.h.b16 %v813
        %v2538 = vunpack.c.l.b16 %v814
        %v2539 = vunpack.c.h.b16 %v814
        %v2540 = vunpack.c.l.b16 %v815
        %v2541 = vunpack.c.h.b16 %v815
        %v2542 = vunpack.c.l.b16 %v816
        %v2543 = vunpack.c.h.b16 %v816
        %v2544 = vunpack.c.l.b16 %v817
        %v2545 = vunpack.c.h.b16 %v817
        %v2546 = vunpack.c.l.b16 %v818
        %v2547 = vunpack.c.h.b16 %v818
        %v2548 = vpack.c.b16 %v2238, %v2228
        %v2549 = vpack.c.b16 %v2239, %v2229
        %v2550 = vpack.c.b16 %v2240, %v2230
        %v2551 = vpack.c.b16 %v2241, %v2231
        %v2552 = vpack.c.b16 %v2242, %v2232
        %v2553 = vpack.c.b16 %v2243, %v2233
        %v2554 = vpack.c.b16 %v2244, %v2234
        %v2555 = vpack.c.b16 %v2245, %v2235
        %v2556 = vpack.c.b16 %v2246, %v2236
        %v2557 = vpack.c.b16 %v2247, %v2237
        %v2558 = vpack.c.b16 %v2258, %v2248
        %v2559 = vpack.c.b16 %v2259, %v2249
        %v2560 = vpack.c.b16 %v2260, %v2250
        %v2561 = vpack.c.b16 %v2261, %v2251
        %v2562 = vpack.c.b16 %v2262, %v2252
        %v2563 = vpack.c.b16 %v2263, %v2253
        %v2564 = vpack.c.b16 %v2264, %v2254
        %v2565 = vpack.c.b16 %v2265, %v2255
        %v2566 = vpack.c.b16 %v2266, %v2256
        %v2567 = vpack.c.b16 %v2267, %v2257
        %v2568 = vpack.c.b16 %v2278, %v2268
        %v2569 = vpack.c.b16 %v2279, %v2269
        %v2570 = vpack.c.b16 %v2280, %v2270
        %v2571 = vpack.c.b16 %v2281, %v2271
        %v2572 = vpack.c.b16 %v2282, %v2272
        %v2573 = vpack.c.b16 %v2283, %v2273
        %v2574 = vpack.c.b16 %v2284, %v2274
        %v2575 = vpack.c.b16 %v2285, %v2275
        %v2576 = vpack.c.b16 %v2286, %v2276
        %v2577 = vpack.c.b16 %v2287, %v2277
        %v2578 = vpack.c.b16 %v2298, %v2288
        %v2579 = vpack.c.b16 %v2299, %v2289
        %v2580 = vpack.c.b16 %v2300, %v2290
        %v2581 = vpack.c.b16 %v2301, %v2291
        %v2582 = vpack.c.b16 %v2302, %v2292
        %v2583 = vpack.c.b16 %v2303, %v2293
        %v2584 = vpack.c.b16 %v2304, %v2294
        %v2585 = vpack.c.b16 %v2305, %v2295
        %v2586 = vpack.c.b16 %v2306, %v2296
        %v2587 = vpack.c.b16 %v2307, %v2297
        %v2588 = vpack.c.b16 %v2318, %v2308
        %v2589 = vpack.c.b16 %v2319, %v2309
        %v2590 = vpack.c.b16 %v2320, %v2310
        %v2591 = vpack.c.b16 %v2321, %v2311
        %v2592 = vpack.c.b16 %v2322, %v2312
        %v2593 = vpack.c.b16 %v2323, %v2313
        %v2594 = vpack.c.b16 %v2324, %v2314
        %v2595 = vpack.c.b16 %v2325, %v2315
        %v2596 = vpack.c.b16 %v2326, %v2316
        %v2597 = vpack.c.b16 %v2327, %v2317
        %v2598 = vpack.c.b16 %v2338, %v2328
        %v2599 = vpack.c.b16 %v2339, %v2329
        %v2600 = vpack.c.b16 %v2340, %v2330
        %v2601 = vpack.c.b16 %v2341, %v2331
        %v2602 = vpack.c.b16 %v2342, %v2332
        %v2603 = vpack.c.b16 %v2343, %v2333
        %v2604 = vpack.c.b16 %v2344, %v2334
        %v2605 = vpack.c.b16 %v2345, %v2335
        %v2606 = vpack.c.b16 %v2346, %v2336
        %v2607 = vpack.c.b16 %v2347, %v2337
        %v2608 = vpack.c.b16 %v2358, %v2348
        %v2609 = vpack.c.b16 %v2359, %v2349
        %v2610 = vpack.c.b16 %v2360, %v2350
        %v2611 = vpack.c.b16 %v2361, %v2351
        %v2612 = vpack.c.b16 %v2362, %v2352
        %v2613 = vpack.c.b16 %v2363, %v2353
        %v2614 = vpack.c.b16 %v2364, %v2354
        %v2615 = vpack.c.b16 %v2365, %v2355
        %v2616 = vpack.c.b16 %v2366, %v2356
        %v2617 = vpack.c.b16 %v2367, %v2357
        %v2618 = vpack.c.b16 %v2378, %v2368
        %v2619 = vpack.c.b16 %v2379, %v2369
        %v2620 = vpack.c.b16 %v2380, %v2370
        %v2621 = vpack.c.b16 %v2381, %v2371
        %v2622 = vpack.c.b16 %v2382, %v2372
        %v2623 = vpack.c.b16 %v2383, %v2373
        %v2624 = vpack.c.b16 %v2384, %v2374
        %v2625 = vpack.c.b16 %v2385, %v2375
        %v2626 = vpack.c.b16 %v2386, %v2376
        %v2627 = vpack.c.b16 %v2387, %v2377
        %v2628 = vpack.c.b16 %v2398, %v2388
        %v2629 = vpack.c.b16 %v2399, %v2389
        %v2630 = vpack.c.b16 %v2400, %v2390
        %v2631 = vpack.c.b16 %v2401, %v2391
        %v2632 = vpack.c.b16 %v2402, %v2392
        %v2633 = vpack.c.b16 %v2403, %v2393
        %v2634 = vpack.c.b16 %v2404, %v2394
        %v2635 = vpack.c.b16 %v2405, %v2395
        %v2636 = vpack.c.b16 %v2406, %v2396
        %v2637 = vpack.c.b16 %v2407, %v2397
        %v2638 = vpack.c.b16 %v2418, %v2408
        %v2639 = vpack.c.b16 %v2419, %v2409
        %v2640 = vpack.c.b16 %v2420, %v2410
        %v2641 = vpack.c.b16 %v2421, %v2411
        %v2642 = vpack.c.b16 %v2422, %v2412
        %v2643 = vpack.c.b16 %v2423, %v2413
        %v2644 = vpack.c.b16 %v2424, %v2414
        %v2645 = vpack.c.b16 %v2425, %v2415
        %v2646 = vpack.c.b16 %v2426, %v2416
        %v2647 = vpack.c.b16 %v2427, %v2417
        %v2648 = vpack.c.b16 %v2438, %v2428
        %v2649 = vpack.c.b16 %v2439, %v2429
        %v2650 = vpack.c.b16 %v2440, %v2430
        %v2651 = vpack.c.b16 %v2441, %v2431
        %v2652 = vpack.c.b16 %v2442, %v2432
        %v2653 = vpack.c.b16 %v2443, %v2433
        %v2654 = vpack.c.b16 %v2444, %v2434
        %v2655 = vpack.c.b16 %v2445, %v2435
        %v2656 = vpack.c.b16 %v2446, %v2436
        %v2657 = vpack.c.b16 %v2447, %v2437
        %v2658 = vpack.c.b16 %v2458, %v2448
        %v2659 = vpack.c.b16 %v2459, %v2449
        %v2660 = vpack.c.b16 %v2460, %v2450
        %v2661 = vpack.c.b16 %v2461, %v2451
        %v2662 = vpack.c.b16 %v2462, %v2452
        %v2663 = vpack.c.b16 %v2463, %v2453
        %v2664 = vpack.c.b16 %v2464, %v2454
        %v2665 = vpack.c.b16 %v2465, %v2455
        %v2666 = vpack.c.b16 %v2466, %v2456
        %v2667 = vpack.c.b16 %v2467, %v2457
        %v2668 = vpack.c.b16 %v2478, %v2468
        %v2669 = vpack.c.b16 %v2479, %v2469
        %v2670 = vpack.c.b16 %v2480, %v2470
        %v2671 = vpack.c.b16 %v2481, %v2471
        %v2672 = vpack.c.b16 %v2482, %v2472
        %v2673 = vpack.c.b16 %v2483, %v2473
        %v2674 = vpack.c.b16 %v2484, %v2474
        %v2675 = vpack.c.b16 %v2485, %v2475
        %v2676 = vpack.c.b16 %v2486, %v2476
        %v2677 = vpack.c.b16 %v2487, %v2477
        %v2678 = vpack.c.b16 %v2498, %v2488
        %v2679 = vpack.c.b16 %v2499, %v2489
        %v2680 = vpack.c.b16 %v2500, %v2490
        %v2681 = vpack.c.b16 %v2501, %v2491
        %v2682 = vpack.c.b16 %v2502, %v2492
        %v2683 = vpack.c.b16 %v2503, %v2493
        %v2684 = vpack.c.b16 %v2504, %v2494
        %v2685 = vpack.c.b16 %v2505, %v2495
        %v2686 = vpack.c.b16 %v2506, %v2496
        %v2687 = vpack.c.b16 %v2507, %v2497
        %v2688 = vpack.c.b16 %v2518, %v2508
        %v2689 = vpack.c.b16 %v2519, %v2509
        %v2690 = vpack.c.b16 %v2520, %v2510
        %v2691 = vpack.c.b16 %v2521, %v2511
        %v2692 = vpack.c.b16 %v2522, %v2512
        %v2693 = vpack.c.b16 %v2523, %v2513
        %v2694 = vpack.c.b16 %v2524, %v2514
        %v2695 = vpack.c.b16 %v2525, %v2515
        %v2696 = vpack.c.b16 %v2526, %v2516
        %v2697 = vpack.c.b16 %v2527, %v2517
        %v2698 = vpack.c.b16 %v2538, %v2528
        %v2699 = vpack.c.b16 %v2539, %v2529
        %v2700 = vpack.c.b16 %v2540, %v2530
        %v2701 = vpack.c.b16 %v2541, %v2531
        %v2702 = vpack.c.b16 %v2542, %v2532
        %v2703 = vpack.c.b16 %v2543, %v2533
        %v2704 = vpack.c.b16 %v2544, %v2534
        %v2705 = vpack.c.b16 %v2545, %v2535
        %v2706 = vpack.c.b16 %v2546, %v2536
        %v2707 = vpack.c.b16 %v2547, %v2537
        %2868 = vmatprep.subr.bf16.mxu0 %v2619
        %2869 = vmatpush1.bf16.msra.mxu0 %v2618
        %2870 = vmatprep.subr.bf16.mxu0 %v2609
        %2871 = vmatpush1.bf16.msra.mxu0 %v2608
        %2872 = vmatprep.subr.bf16.mxu0 %v2599
        %2873 = vmatpush1.bf16.msra.mxu0 %v2598
        %2874 = vmatprep.subr.bf16.mxu0 %v2589
        %2875 = vmatpush1.bf16.msra.mxu0 %v2588
        %2876 = vmatprep.subr.bf16.mxu0 %v2579
        %2877 = vmatpush1.bf16.msra.mxu0 %v2578
        %2878 = vmatprep.subr.bf16.mxu0 %v2569
        %2879 = vmatpush1.bf16.msra.mxu0 %v2568
        %2880 = vmatprep.subr.bf16.mxu0 %v2559
        %2881 = vmatpush1.bf16.msra.mxu0 %v2558
        %2882 = vmatprep.subr.bf16.mxu0 %v2549
        %2883 = vmatpush1.bf16.msra.mxu0 %v2548
        %2884 = vmatprep.subr.bf16.mxu0 %v2699
        %2885 = vmatpush2.bf16.msra.mxu0 %v2698
        %2886 = vmatprep.subr.bf16.mxu0 %v2689
        %2887 = vmatpush2.bf16.msra.mxu0 %v2688
        %2888 = vmatprep.subr.bf16.mxu0 %v2679
        %2889 = vmatpush2.bf16.msra.mxu0 %v2678
        %2890 = vmatprep.subr.bf16.mxu0 %v2669
        %2891 = vmatpush2.bf16.msra.mxu0 %v2668
        %2892 = vmatprep.subr.bf16.mxu0 %v2659
        %2893 = vmatpush2.bf16.msra.mxu0 %v2658
        %2894 = vmatprep.subr.bf16.mxu0 %v2649
        %2895 = vmatpush2.bf16.msra.mxu0 %v2648
        %2896 = vmatprep.subr.bf16.mxu0 %v2639
        %2897 = vmatpush2.bf16.msra.mxu0 %v2638
        %2898 = vmatprep.subr.bf16.mxu0 %v2629
        %2899 = vmatpush2.bf16.msra.mxu0 %v2628
        %2900 = vmatprep.mubr.bf16.mxu0 %v656
        %2901 = vmatmul.mubr.bf16.gmra.mxu0 %v655
        %v2902 = vpop.f32.mrf.mxu0
        %v2903 = vadd.f32 %v1848, %v2902
        %v2904 = vpop.f32.mrf.mxu0
        %v2905 = vadd.f32 %v1850, %v2904
        %v2906 = vpop.f32.mrf.mxu0
        %v2907 = vadd.f32 %v1852, %v2906
        %v2908 = vpop.f32.mrf.mxu0
        %v2909 = vadd.f32 %v1854, %v2908
        %2910 = vmatprep.mubr.bf16.mxu0 %v658
        %2911 = vmatmul.mubr.bf16.gmra.mxu0 %v657
        %v2912 = vpop.f32.mrf.mxu0
        %v2913 = vadd.f32 %v1858, %v2912
        %v2914 = vpop.f32.mrf.mxu0
        %v2915 = vadd.f32 %v1860, %v2914
        %v2916 = vpop.f32.mrf.mxu0
        %v2917 = vpop.f32.mrf.mxu0
        %2918 = vdwg.mxu0
        %2919 = vmatprep.subr.bf16.mxu0 %v2621
        %2920 = vmatpush1.bf16.msra.mxu0 %v2620
        %2921 = vmatprep.subr.bf16.mxu0 %v2611
        %2922 = vmatpush1.bf16.msra.mxu0 %v2610
        %2923 = vmatprep.subr.bf16.mxu0 %v2601
        %2924 = vmatpush1.bf16.msra.mxu0 %v2600
        %2925 = vmatprep.subr.bf16.mxu0 %v2591
        %2926 = vmatpush1.bf16.msra.mxu0 %v2590
        %2927 = vmatprep.subr.bf16.mxu0 %v2581
        %2928 = vmatpush1.bf16.msra.mxu0 %v2580
        %2929 = vmatprep.subr.bf16.mxu0 %v2571
        %2930 = vmatpush1.bf16.msra.mxu0 %v2570
        %2931 = vmatprep.subr.bf16.mxu0 %v2561
        %2932 = vmatpush1.bf16.msra.mxu0 %v2560
        %2933 = vmatprep.subr.bf16.mxu0 %v2551
        %2934 = vmatpush1.bf16.msra.mxu0 %v2550
        %2935 = vmatprep.subr.bf16.mxu0 %v2701
        %2936 = vmatpush2.bf16.msra.mxu0 %v2700
        %2937 = vmatprep.subr.bf16.mxu0 %v2691
        %2938 = vmatpush2.bf16.msra.mxu0 %v2690
        %2939 = vmatprep.subr.bf16.mxu0 %v2681
        %2940 = vmatpush2.bf16.msra.mxu0 %v2680
        %2941 = vmatprep.subr.bf16.mxu0 %v2671
        %2942 = vmatpush2.bf16.msra.mxu0 %v2670
        %2943 = vmatprep.subr.bf16.mxu0 %v2661
        %2944 = vmatpush2.bf16.msra.mxu0 %v2660
        %2945 = vmatprep.subr.bf16.mxu0 %v2651
        %2946 = vmatpush2.bf16.msra.mxu0 %v2650
        %2947 = vmatprep.subr.bf16.mxu0 %v2641
        %2948 = vmatpush2.bf16.msra.mxu0 %v2640
        %2949 = vmatprep.subr.bf16.mxu0 %v2631
        %2950 = vmatpush2.bf16.msra.mxu0 %v2630
        %2951 = vmatprep.mubr.bf16.mxu0 %v656
        %2952 = vmatmul.mubr.bf16.gmra.mxu0 %v655
        %v2953 = vpop.f32.mrf.mxu0
        %v2954 = vadd.f32 %v1899, %v2953
        %v2955 = vpop.f32.mrf.mxu0
        %v2956 = vadd.f32 %v1901, %v2955
        %v2957 = vpop.f32.mrf.mxu0
        %v2958 = vadd.f32 %v1903, %v2957
        %v2959 = vpop.f32.mrf.mxu0
        %v2960 = vadd.f32 %v1905, %v2959
        %2961 = vmatprep.mubr.bf16.mxu0 %v658
        %2962 = vmatmul.mubr.bf16.gmra.mxu0 %v657
        %v2963 = vpop.f32.mrf.mxu0
        %v2964 = vadd.f32 %v1909, %v2963
        %v2965 = vpop.f32.mrf.mxu0
        %v2966 = vadd.f32 %v1911, %v2965
        %v2967 = vpop.f32.mrf.mxu0
        %v2968 = vpop.f32.mrf.mxu0
        %2969 = vdwg.mxu0
        %2970 = vmatprep.subr.bf16.mxu0 %v2623
        %2971 = vmatpush1.bf16.msra.mxu0 %v2622
        %2972 = vmatprep.subr.bf16.mxu0 %v2613
        %2973 = vmatpush1.bf16.msra.mxu0 %v2612
        %2974 = vmatprep.subr.bf16.mxu0 %v2603
        %2975 = vmatpush1.bf16.msra.mxu0 %v2602
        %2976 = vmatprep.subr.bf16.mxu0 %v2593
        %2977 = vmatpush1.bf16.msra.mxu0 %v2592
        %2978 = vmatprep.subr.bf16.mxu0 %v2583
        %2979 = vmatpush1.bf16.msra.mxu0 %v2582
        %2980 = vmatprep.subr.bf16.mxu0 %v2573
        %2981 = vmatpush1.bf16.msra.mxu0 %v2572
        %2982 = vmatprep.subr.bf16.mxu0 %v2563
        %2983 = vmatpush1.bf16.msra.mxu0 %v2562
        %2984 = vmatprep.subr.bf16.mxu0 %v2553
        %2985 = vmatpush1.bf16.msra.mxu0 %v2552
        %2986 = vmatprep.subr.bf16.mxu0 %v2703
        %2987 = vmatpush2.bf16.msra.mxu0 %v2702
        %2988 = vmatprep.subr.bf16.mxu0 %v2693
        %2989 = vmatpush2.bf16.msra.mxu0 %v2692
        %2990 = vmatprep.subr.bf16.mxu0 %v2683
        %2991 = vmatpush2.bf16.msra.mxu0 %v2682
        %2992 = vmatprep.subr.bf16.mxu0 %v2673
        %2993 = vmatpush2.bf16.msra.mxu0 %v2672
        %2994 = vmatprep.subr.bf16.mxu0 %v2663
        %2995 = vmatpush2.bf16.msra.mxu0 %v2662
        %2996 = vmatprep.subr.bf16.mxu0 %v2653
        %2997 = vmatpush2.bf16.msra.mxu0 %v2652
        %2998 = vmatprep.subr.bf16.mxu0 %v2643
        %2999 = vmatpush2.bf16.msra.mxu0 %v2642
        %3000 = vmatprep.subr.bf16.mxu0 %v2633
        %3001 = vmatpush2.bf16.msra.mxu0 %v2632
        %3002 = vmatprep.mubr.bf16.mxu0 %v656
        %3003 = vmatmul.mubr.bf16.gmra.mxu0 %v655
        %v3004 = vpop.f32.mrf.mxu0
        %v3005 = vadd.f32 %v1950, %v3004
        %v3006 = vpop.f32.mrf.mxu0
        %v3007 = vadd.f32 %v1952, %v3006
        %v3008 = vpop.f32.mrf.mxu0
        %v3009 = vadd.f32 %v1954, %v3008
        %v3010 = vpop.f32.mrf.mxu0
        %v3011 = vadd.f32 %v1956, %v3010
        %3012 = vmatprep.mubr.bf16.mxu0 %v658
        %3013 = vmatmul.mubr.bf16.gmra.mxu0 %v657
        %v3014 = vpop.f32.mrf.mxu0
        %v3015 = vadd.f32 %v1960, %v3014
        %v3016 = vpop.f32.mrf.mxu0
        %v3017 = vadd.f32 %v1962, %v3016
        %v3018 = vpop.f32.mrf.mxu0
        %v3019 = vpop.f32.mrf.mxu0
        %3020 = vdwg.mxu0
        %3021 = vmatprep.subr.bf16.mxu0 %v2625
        %3022 = vmatpush1.bf16.msra.mxu0 %v2624
        %3023 = vmatprep.subr.bf16.mxu0 %v2615
        %3024 = vmatpush1.bf16.msra.mxu0 %v2614
        %3025 = vmatprep.subr.bf16.mxu0 %v2605
        %3026 = vmatpush1.bf16.msra.mxu0 %v2604
        %3027 = vmatprep.subr.bf16.mxu0 %v2595
        %3028 = vmatpush1.bf16.msra.mxu0 %v2594
        %3029 = vmatprep.subr.bf16.mxu0 %v2585
        %3030 = vmatpush1.bf16.msra.mxu0 %v2584
        %3031 = vmatprep.subr.bf16.mxu0 %v2575
        %3032 = vmatpush1.bf16.msra.mxu0 %v2574
        %3033 = vmatprep.subr.bf16.mxu0 %v2565
        %3034 = vmatpush1.bf16.msra.mxu0 %v2564
        %3035 = vmatprep.subr.bf16.mxu0 %v2555
        %3036 = vmatpush1.bf16.msra.mxu0 %v2554
        %3037 = vmatprep.subr.bf16.mxu0 %v2705
        %3038 = vmatpush2.bf16.msra.mxu0 %v2704
        %3039 = vmatprep.subr.bf16.mxu0 %v2695
        %3040 = vmatpush2.bf16.msra.mxu0 %v2694
        %3041 = vmatprep.subr.bf16.mxu0 %v2685
        %3042 = vmatpush2.bf16.msra.mxu0 %v2684
        %3043 = vmatprep.subr.bf16.mxu0 %v2675
        %3044 = vmatpush2.bf16.msra.mxu0 %v2674
        %3045 = vmatprep.subr.bf16.mxu0 %v2665
        %3046 = vmatpush2.bf16.msra.mxu0 %v2664
        %3047 = vmatprep.subr.bf16.mxu0 %v2655
        %3048 = vmatpush2.bf16.msra.mxu0 %v2654
        %3049 = vmatprep.subr.bf16.mxu0 %v2645
        %3050 = vmatpush2.bf16.msra.mxu0 %v2644
        %3051 = vmatprep.subr.bf16.mxu0 %v2635
        %3052 = vmatpush2.bf16.msra.mxu0 %v2634
        %3053 = vmatprep.mubr.bf16.mxu0 %v656
        %3054 = vmatmul.mubr.bf16.gmra.mxu0 %v655
        %v3055 = vpop.f32.mrf.mxu0
        %v3056 = vadd.f32 %v2001, %v3055
        %v3057 = vpop.f32.mrf.mxu0
        %v3058 = vadd.f32 %v2003, %v3057
        %v3059 = vpop.f32.mrf.mxu0
        %v3060 = vadd.f32 %v2005, %v3059
        %v3061 = vpop.f32.mrf.mxu0
        %v3062 = vadd.f32 %v2007, %v3061
        %3063 = vmatprep.mubr.bf16.mxu0 %v658
        %3064 = vmatmul.mubr.bf16.gmra.mxu0 %v657
        %v3065 = vpop.f32.mrf.mxu0
        %v3066 = vadd.f32 %v2011, %v3065
        %v3067 = vpop.f32.mrf.mxu0
        %v3068 = vadd.f32 %v2013, %v3067
        %v3069 = vpop.f32.mrf.mxu0
        %v3070 = vpop.f32.mrf.mxu0
        %3071 = vdwg.mxu0
        %3072 = vmatprep.subr.bf16.mxu0 %v2627
        %3073 = vmatpush1.bf16.msra.mxu0 %v2626
        %3074 = vmatprep.subr.bf16.mxu0 %v2617
        %3075 = vmatpush1.bf16.msra.mxu0 %v2616
        %3076 = vmatprep.subr.bf16.mxu0 %v2607
        %3077 = vmatpush1.bf16.msra.mxu0 %v2606
        %3078 = vmatprep.subr.bf16.mxu0 %v2597
        %3079 = vmatpush1.bf16.msra.mxu0 %v2596
        %3080 = vmatprep.subr.bf16.mxu0 %v2587
        %3081 = vmatpush1.bf16.msra.mxu0 %v2586
        %3082 = vmatprep.subr.bf16.mxu0 %v2577
        %3083 = vmatpush1.bf16.msra.mxu0 %v2576
        %3084 = vmatprep.subr.bf16.mxu0 %v2567
        %3085 = vmatpush1.bf16.msra.mxu0 %v2566
        %3086 = vmatprep.subr.bf16.mxu0 %v2557
        %3087 = vmatpush1.bf16.msra.mxu0 %v2556
        %3088 = vmatprep.subr.bf16.mxu0 %v2707
        %3089 = vmatpush2.bf16.msra.mxu0 %v2706
        %3090 = vmatprep.subr.bf16.mxu0 %v2697
        %3091 = vmatpush2.bf16.msra.mxu0 %v2696
        %3092 = vmatprep.subr.bf16.mxu0 %v2687
        %3093 = vmatpush2.bf16.msra.mxu0 %v2686
        %3094 = vmatprep.subr.bf16.mxu0 %v2677
        %3095 = vmatpush2.bf16.msra.mxu0 %v2676
        %3096 = vmatprep.subr.bf16.mxu0 %v2667
        %3097 = vmatpush2.bf16.msra.mxu0 %v2666
        %3098 = vmatprep.subr.bf16.mxu0 %v2657
        %3099 = vmatpush2.bf16.msra.mxu0 %v2656
        %3100 = vmatprep.subr.bf16.mxu0 %v2647
        %3101 = vmatpush2.bf16.msra.mxu0 %v2646
        %3102 = vmatprep.subr.bf16.mxu0 %v2637
        %3103 = vmatpush2.bf16.msra.mxu0 %v2636
        %3104 = vmatprep.mubr.bf16.mxu0 %v656
        %3105 = vmatmul.mubr.bf16.gmra.mxu0 %v655
        %v3106 = vpop.f32.mrf.mxu0
        %v3107 = vadd.f32 %v2052, %v3106
        %v3108 = vpop.f32.mrf.mxu0
        %v3109 = vadd.f32 %v2054, %v3108
        %v3110 = vpop.f32.mrf.mxu0
        %v3111 = vadd.f32 %v2056, %v3110
        %v3112 = vpop.f32.mrf.mxu0
        %v3113 = vadd.f32 %v2058, %v3112
        %3114 = vmatprep.mubr.bf16.mxu0 %v658
        %3115 = vmatmul.mubr.bf16.gmra.mxu0 %v657
        %v3116 = vpop.f32.mrf.mxu0
        %v3117 = vadd.f32 %v2062, %v3116
        %v3118 = vpop.f32.mrf.mxu0
        %v3119 = vadd.f32 %v2064, %v3118
        %v3120 = vpop.f32.mrf.mxu0
        %v3121 = vpop.f32.mrf.mxu0
        %3122 = vdwg.mxu0
        %s3123 = scalar_lea.vmem [#allocation3], 2560
        %v3124 = vld [vmem:[%s3123] sm:$0xff]
        %v3125 = vld [vmem:[%s3123 + $0x8] sm:$0xff]
        %v3126 = vld [vmem:[%s3123 + $0x10] sm:$0xff]
        %v3127 = vld [vmem:[%s3123 + $0x18] sm:$0xff]
        %v3128 = vld [vmem:[%s3123 + $0x20] sm:$0xff]
        %v3129 = vld [vmem:[%s3123 + $0x28] sm:$0xff]
        %v3130 = vld [vmem:[%s3123 + $0x30] sm:$0xff]
        %v3131 = vld [vmem:[%s3123 + $0x38] sm:$0xff]
        %v3132 = vld [vmem:[%s3123 + $0x40] sm:$0xff]
        %v3133 = vld [vmem:[%s3123 + $0x48] sm:$0xff]
        %v3134 = vld [vmem:[%s3123 + $0x50] sm:$0xff]
        %v3135 = vld [vmem:[%s3123 + $0x58] sm:$0xff]
        %v3136 = vld [vmem:[%s3123 + $0x60] sm:$0xff]
        %v3137 = vld [vmem:[%s3123 + $0x68] sm:$0xff]
        %v3138 = vld [vmem:[%s3123 + $0x70] sm:$0xff]
        %v3139 = vld [vmem:[%s3123 + $0x78] sm:$0xff]
        %v3140 = vld [vmem:[%s3123 + $0x80] sm:$0xff]
        %v3141 = vld [vmem:[%s3123 + $0x88] sm:$0xff]
        %v3142 = vld [vmem:[%s3123 + $0x90] sm:$0xff]
        %v3143 = vld [vmem:[%s3123 + $0x98] sm:$0xff]
        %v3144 = vld [vmem:[%s3123 + $0xa0] sm:$0xff]
        %v3145 = vld [vmem:[%s3123 + $0xa8] sm:$0xff]
        %v3146 = vld [vmem:[%s3123 + $0xb0] sm:$0xff]
        %v3147 = vld [vmem:[%s3123 + $0xb8] sm:$0xff]
        %v3148 = vld [vmem:[%s3123 + $0xc0] sm:$0xff]
        %v3149 = vld [vmem:[%s3123 + $0xc8] sm:$0xff]
        %v3150 = vld [vmem:[%s3123 + $0xd0] sm:$0xff]
        %v3151 = vld [vmem:[%s3123 + $0xd8] sm:$0xff]
        %v3152 = vld [vmem:[%s3123 + $0xe0] sm:$0xff]
        %v3153 = vld [vmem:[%s3123 + $0xe8] sm:$0xff]
        %v3154 = vld [vmem:[%s3123 + $0xf0] sm:$0xff]
        %v3155 = vld [vmem:[%s3123 + $0xf8] sm:$0xff]
        %v3156 = vld [vmem:[%s3123 + $0x100] sm:$0xff]
        %v3157 = vld [vmem:[%s3123 + $0x108] sm:$0xff]
        %v3158 = vld [vmem:[%s3123 + $0x110] sm:$0xff]
        %v3159 = vld [vmem:[%s3123 + $0x118] sm:$0xff]
        %v3160 = vld [vmem:[%s3123 + $0x120] sm:$0xff]
        %v3161 = vld [vmem:[%s3123 + $0x128] sm:$0xff]
        %v3162 = vld [vmem:[%s3123 + $0x130] sm:$0xff]
        %v3163 = vld [vmem:[%s3123 + $0x138] sm:$0xff]
        %v3164 = vld [vmem:[%s3123 + $0x140] sm:$0xff]
        %v3165 = vld [vmem:[%s3123 + $0x148] sm:$0xff]
        %v3166 = vld [vmem:[%s3123 + $0x150] sm:$0xff]
        %v3167 = vld [vmem:[%s3123 + $0x158] sm:$0xff]
        %v3168 = vld [vmem:[%s3123 + $0x160] sm:$0xff]
        %v3169 = vld [vmem:[%s3123 + $0x168] sm:$0xff]
        %v3170 = vld [vmem:[%s3123 + $0x170] sm:$0xff]
        %v3171 = vld [vmem:[%s3123 + $0x178] sm:$0xff]
        %v3172 = vld [vmem:[%s3123 + $0x180] sm:$0xff]
        %v3173 = vld [vmem:[%s3123 + $0x188] sm:$0xff]
        %v3174 = vld [vmem:[%s3123 + $0x190] sm:$0xff]
        %v3175 = vld [vmem:[%s3123 + $0x198] sm:$0xff]
        %v3176 = vld [vmem:[%s3123 + $0x1a0] sm:$0xff]
        %v3177 = vld [vmem:[%s3123 + $0x1a8] sm:$0xff]
        %v3178 = vld [vmem:[%s3123 + $0x1b0] sm:$0xff]
        %v3179 = vld [vmem:[%s3123 + $0x1b8] sm:$0xff]
        %v3180 = vld [vmem:[%s3123 + $0x1c0] sm:$0xff]
        %v3181 = vld [vmem:[%s3123 + $0x1c8] sm:$0xff]
        %v3182 = vld [vmem:[%s3123 + $0x1d0] sm:$0xff]
        %v3183 = vld [vmem:[%s3123 + $0x1d8] sm:$0xff]
        %v3184 = vld [vmem:[%s3123 + $0x1e0] sm:$0xff]
        %v3185 = vld [vmem:[%s3123 + $0x1e8] sm:$0xff]
        %v3186 = vld [vmem:[%s3123 + $0x1f0] sm:$0xff]
        %v3187 = vld [vmem:[%s3123 + $0x1f8] sm:$0xff]
        %v3188 = vld [vmem:[%s3123 + $0x200] sm:$0xff]
        %v3189 = vld [vmem:[%s3123 + $0x208] sm:$0xff]
        %v3190 = vld [vmem:[%s3123 + $0x210] sm:$0xff]
        %v3191 = vld [vmem:[%s3123 + $0x218] sm:$0xff]
        %v3192 = vld [vmem:[%s3123 + $0x220] sm:$0xff]
        %v3193 = vld [vmem:[%s3123 + $0x228] sm:$0xff]
        %v3194 = vld [vmem:[%s3123 + $0x230] sm:$0xff]
        %v3195 = vld [vmem:[%s3123 + $0x238] sm:$0xff]
        %v3196 = vld [vmem:[%s3123 + $0x240] sm:$0xff]
        %v3197 = vld [vmem:[%s3123 + $0x248] sm:$0xff]
        %v3198 = vld [vmem:[%s3123 + $0x250] sm:$0xff]
        %v3199 = vld [vmem:[%s3123 + $0x258] sm:$0xff]
        %v3200 = vld [vmem:[%s3123 + $0x260] sm:$0xff]
        %v3201 = vld [vmem:[%s3123 + $0x268] sm:$0xff]
        %v3202 = vld [vmem:[%s3123 + $0x270] sm:$0xff]
        %v3203 = vld [vmem:[%s3123 + $0x278] sm:$0xff]
        %v3204 = vld [vmem:[%s3123 + $0x280] sm:$0xff]
        %v3205 = vld [vmem:[%s3123 + $0x288] sm:$0xff]
        %v3206 = vld [vmem:[%s3123 + $0x290] sm:$0xff]
        %v3207 = vld [vmem:[%s3123 + $0x298] sm:$0xff]
        %v3208 = vld [vmem:[%s3123 + $0x2a0] sm:$0xff]
        %v3209 = vld [vmem:[%s3123 + $0x2a8] sm:$0xff]
        %v3210 = vld [vmem:[%s3123 + $0x2b0] sm:$0xff]
        %v3211 = vld [vmem:[%s3123 + $0x2b8] sm:$0xff]
        %v3212 = vld [vmem:[%s3123 + $0x2c0] sm:$0xff]
        %v3213 = vld [vmem:[%s3123 + $0x2c8] sm:$0xff]
        %v3214 = vld [vmem:[%s3123 + $0x2d0] sm:$0xff]
        %v3215 = vld [vmem:[%s3123 + $0x2d8] sm:$0xff]
        %v3216 = vld [vmem:[%s3123 + $0x2e0] sm:$0xff]
        %v3217 = vld [vmem:[%s3123 + $0x2e8] sm:$0xff]
        %v3218 = vld [vmem:[%s3123 + $0x2f0] sm:$0xff]
        %v3219 = vld [vmem:[%s3123 + $0x2f8] sm:$0xff]
        %v3220 = vld [vmem:[%s3123 + $0x300] sm:$0xff]
        %v3221 = vld [vmem:[%s3123 + $0x308] sm:$0xff]
        %v3222 = vld [vmem:[%s3123 + $0x310] sm:$0xff]
        %v3223 = vld [vmem:[%s3123 + $0x318] sm:$0xff]
        %v3224 = vld [vmem:[%s3123 + $0x320] sm:$0xff]
        %v3225 = vld [vmem:[%s3123 + $0x328] sm:$0xff]
        %v3226 = vld [vmem:[%s3123 + $0x330] sm:$0xff]
        %v3227 = vld [vmem:[%s3123 + $0x338] sm:$0xff]
        %v3228 = vld [vmem:[%s3123 + $0x340] sm:$0xff]
        %v3229 = vld [vmem:[%s3123 + $0x348] sm:$0xff]
        %v3230 = vld [vmem:[%s3123 + $0x350] sm:$0xff]
        %v3231 = vld [vmem:[%s3123 + $0x358] sm:$0xff]
        %v3232 = vld [vmem:[%s3123 + $0x360] sm:$0xff]
        %v3233 = vld [vmem:[%s3123 + $0x368] sm:$0xff]
        %v3234 = vld [vmem:[%s3123 + $0x370] sm:$0xff]
        %v3235 = vld [vmem:[%s3123 + $0x378] sm:$0xff]
        %v3236 = vld [vmem:[%s3123 + $0x380] sm:$0xff]
        %v3237 = vld [vmem:[%s3123 + $0x388] sm:$0xff]
        %v3238 = vld [vmem:[%s3123 + $0x390] sm:$0xff]
        %v3239 = vld [vmem:[%s3123 + $0x398] sm:$0xff]
        %v3240 = vld [vmem:[%s3123 + $0x3a0] sm:$0xff]
        %v3241 = vld [vmem:[%s3123 + $0x3a8] sm:$0xff]
        %v3242 = vld [vmem:[%s3123 + $0x3b0] sm:$0xff]
        %v3243 = vld [vmem:[%s3123 + $0x3b8] sm:$0xff]
        %v3244 = vld [vmem:[%s3123 + $0x3c0] sm:$0xff]
        %v3245 = vld [vmem:[%s3123 + $0x3c8] sm:$0xff]
        %v3246 = vld [vmem:[%s3123 + $0x3d0] sm:$0xff]
        %v3247 = vld [vmem:[%s3123 + $0x3d8] sm:$0xff]
        %v3248 = vld [vmem:[%s3123 + $0x3e0] sm:$0xff]
        %v3249 = vld [vmem:[%s3123 + $0x3e8] sm:$0xff]
        %v3250 = vld [vmem:[%s3123 + $0x3f0] sm:$0xff]
        %v3251 = vld [vmem:[%s3123 + $0x3f8] sm:$0xff]
        %v3252 = vld [vmem:[%s3123 + $0x400] sm:$0xff]
        %v3253 = vld [vmem:[%s3123 + $0x408] sm:$0xff]
        %v3254 = vld [vmem:[%s3123 + $0x410] sm:$0xff]
        %v3255 = vld [vmem:[%s3123 + $0x418] sm:$0xff]
        %v3256 = vld [vmem:[%s3123 + $0x420] sm:$0xff]
        %v3257 = vld [vmem:[%s3123 + $0x428] sm:$0xff]
        %v3258 = vld [vmem:[%s3123 + $0x430] sm:$0xff]
        %v3259 = vld [vmem:[%s3123 + $0x438] sm:$0xff]
        %v3260 = vld [vmem:[%s3123 + $0x440] sm:$0xff]
        %v3261 = vld [vmem:[%s3123 + $0x448] sm:$0xff]
        %v3262 = vld [vmem:[%s3123 + $0x450] sm:$0xff]
        %v3263 = vld [vmem:[%s3123 + $0x458] sm:$0xff]
        %v3264 = vld [vmem:[%s3123 + $0x460] sm:$0xff]
        %v3265 = vld [vmem:[%s3123 + $0x468] sm:$0xff]
        %v3266 = vld [vmem:[%s3123 + $0x470] sm:$0xff]
        %v3267 = vld [vmem:[%s3123 + $0x478] sm:$0xff]
        %v3268 = vld [vmem:[%s3123 + $0x480] sm:$0xff]
        %v3269 = vld [vmem:[%s3123 + $0x488] sm:$0xff]
        %v3270 = vld [vmem:[%s3123 + $0x490] sm:$0xff]
        %v3271 = vld [vmem:[%s3123 + $0x498] sm:$0xff]
        %v3272 = vld [vmem:[%s3123 + $0x4a0] sm:$0xff]
        %v3273 = vld [vmem:[%s3123 + $0x4a8] sm:$0xff]
        %v3274 = vld [vmem:[%s3123 + $0x4b0] sm:$0xff]
        %v3275 = vld [vmem:[%s3123 + $0x4b8] sm:$0xff]
        %v3276 = vld [vmem:[%s3123 + $0x4c0] sm:$0xff]
        %v3277 = vld [vmem:[%s3123 + $0x4c8] sm:$0xff]
        %v3278 = vld [vmem:[%s3123 + $0x4d0] sm:$0xff]
        %v3279 = vld [vmem:[%s3123 + $0x4d8] sm:$0xff]
        %v3280 = vld [vmem:[%s3123 + $0x4e0] sm:$0xff]
        %v3281 = vld [vmem:[%s3123 + $0x4e8] sm:$0xff]
        %v3282 = vld [vmem:[%s3123 + $0x4f0] sm:$0xff]
        %v3283 = vld [vmem:[%s3123 + $0x4f8] sm:$0xff]
        %vm3288 = vcmask 1046528
        %v3289 = vrot.slane %v655, 1
        %v3290 = vrot.slane %v657, 1
        %v3291 = vsel %vm3288, %v3289, %v3290
        %v3292 = vrot.slane %v656, 1
        %v3293 = vrot.slane %v658, 1
        %v3294 = vsel %vm3288, %v3292, %v3293
        %v3459 = vunpack.c.l.b16 %v3124
        %v3460 = vunpack.c.h.b16 %v3124
        %v3461 = vunpack.c.l.b16 %v3125
        %v3462 = vunpack.c.h.b16 %v3125
        %v3463 = vunpack.c.l.b16 %v3126
        %v3464 = vunpack.c.h.b16 %v3126
        %v3465 = vunpack.c.l.b16 %v3127
        %v3466 = vunpack.c.h.b16 %v3127
        %v3467 = vunpack.c.l.b16 %v3128
        %v3468 = vunpack.c.h.b16 %v3128
        %v3469 = vunpack.c.l.b16 %v3129
        %v3470 = vunpack.c.h.b16 %v3129
        %v3471 = vunpack.c.l.b16 %v3130
        %v3472 = vunpack.c.h.b16 %v3130
        %v3473 = vunpack.c.l.b16 %v3131
        %v3474 = vunpack.c.h.b16 %v3131
        %v3475 = vunpack.c.l.b16 %v3132
        %v3476 = vunpack.c.h.b16 %v3132
        %v3477 = vunpack.c.l.b16 %v3133
        %v3478 = vunpack.c.h.b16 %v3133
        %v3479 = vunpack.c.l.b16 %v3134
        %v3480 = vunpack.c.h.b16 %v3134
        %v3481 = vunpack.c.l.b16 %v3135
        %v3482 = vunpack.c.h.b16 %v3135
        %v3483 = vunpack.c.l.b16 %v3136
        %v3484 = vunpack.c.h.b16 %v3136
        %v3485 = vunpack.c.l.b16 %v3137
        %v3486 = vunpack.c.h.b16 %v3137
        %v3487 = vunpack.c.l.b16 %v3138
        %v3488 = vunpack.c.h.b16 %v3138
        %v3489 = vunpack.c.l.b16 %v3139
        %v3490 = vunpack.c.h.b16 %v3139
        %v3491 = vunpack.c.l.b16 %v3140
        %v3492 = vunpack.c.h.b16 %v3140
        %v3493 = vunpack.c.l.b16 %v3141
        %v3494 = vunpack.c.h.b16 %v3141
        %v3495 = vunpack.c.l.b16 %v3142
        %v3496 = vunpack.c.h.b16 %v3142
        %v3497 = vunpack.c.l.b16 %v3143
        %v3498 = vunpack.c.h.b16 %v3143
        %v3499 = vunpack.c.l.b16 %v3144
        %v3500 = vunpack.c.h.b16 %v3144
        %v3501 = vunpack.c.l.b16 %v3145
        %v3502 = vunpack.c.h.b16 %v3145
        %v3503 = vunpack.c.l.b16 %v3146
        %v3504 = vunpack.c.h.b16 %v3146
        %v3505 = vunpack.c.l.b16 %v3147
        %v3506 = vunpack.c.h.b16 %v3147
        %v3507 = vunpack.c.l.b16 %v3148
        %v3508 = vunpack.c.h.b16 %v3148
        %v3509 = vunpack.c.l.b16 %v3149
        %v3510 = vunpack.c.h.b16 %v3149
        %v3511 = vunpack.c.l.b16 %v3150
        %v3512 = vunpack.c.h.b16 %v3150
        %v3513 = vunpack.c.l.b16 %v3151
        %v3514 = vunpack.c.h.b16 %v3151
        %v3515 = vunpack.c.l.b16 %v3152
        %v3516 = vunpack.c.h.b16 %v3152
        %v3517 = vunpack.c.l.b16 %v3153
        %v3518 = vunpack.c.h.b16 %v3153
        %v3519 = vunpack.c.l.b16 %v3154
        %v3520 = vunpack.c.h.b16 %v3154
        %v3521 = vunpack.c.l.b16 %v3155
        %v3522 = vunpack.c.h.b16 %v3155
        %v3523 = vunpack.c.l.b16 %v3156
        %v3524 = vunpack.c.h.b16 %v3156
        %v3525 = vunpack.c.l.b16 %v3157
        %v3526 = vunpack.c.h.b16 %v3157
        %v3527 = vunpack.c.l.b16 %v3158
        %v3528 = vunpack.c.h.b16 %v3158
        %v3529 = vunpack.c.l.b16 %v3159
        %v3530 = vunpack.c.h.b16 %v3159
        %v3531 = vunpack.c.l.b16 %v3160
        %v3532 = vunpack.c.h.b16 %v3160
        %v3533 = vunpack.c.l.b16 %v3161
        %v3534 = vunpack.c.h.b16 %v3161
        %v3535 = vunpack.c.l.b16 %v3162
        %v3536 = vunpack.c.h.b16 %v3162
        %v3537 = vunpack.c.l.b16 %v3163
        %v3538 = vunpack.c.h.b16 %v3163
        %v3539 = vunpack.c.l.b16 %v3164
        %v3540 = vunpack.c.h.b16 %v3164
        %v3541 = vunpack.c.l.b16 %v3165
        %v3542 = vunpack.c.h.b16 %v3165
        %v3543 = vunpack.c.l.b16 %v3166
        %v3544 = vunpack.c.h.b16 %v3166
        %v3545 = vunpack.c.l.b16 %v3167
        %v3546 = vunpack.c.h.b16 %v3167
        %v3547 = vunpack.c.l.b16 %v3168
        %v3548 = vunpack.c.h.b16 %v3168
        %v3549 = vunpack.c.l.b16 %v3169
        %v3550 = vunpack.c.h.b16 %v3169
        %v3551 = vunpack.c.l.b16 %v3170
        %v3552 = vunpack.c.h.b16 %v3170
        %v3553 = vunpack.c.l.b16 %v3171
        %v3554 = vunpack.c.h.b16 %v3171
        %v3555 = vunpack.c.l.b16 %v3172
        %v3556 = vunpack.c.h.b16 %v3172
        %v3557 = vunpack.c.l.b16 %v3173
        %v3558 = vunpack.c.h.b16 %v3173
        %v3559 = vunpack.c.l.b16 %v3174
        %v3560 = vunpack.c.h.b16 %v3174
        %v3561 = vunpack.c.l.b16 %v3175
        %v3562 = vunpack.c.h.b16 %v3175
        %v3563 = vunpack.c.l.b16 %v3176
        %v3564 = vunpack.c.h.b16 %v3176
        %v3565 = vunpack.c.l.b16 %v3177
        %v3566 = vunpack.c.h.b16 %v3177
        %v3567 = vunpack.c.l.b16 %v3178
        %v3568 = vunpack.c.h.b16 %v3178
        %v3569 = vunpack.c.l.b16 %v3179
        %v3570 = vunpack.c.h.b16 %v3179
        %v3571 = vunpack.c.l.b16 %v3180
        %v3572 = vunpack.c.h.b16 %v3180
        %v3573 = vunpack.c.l.b16 %v3181
        %v3574 = vunpack.c.h.b16 %v3181
        %v3575 = vunpack.c.l.b16 %v3182
        %v3576 = vunpack.c.h.b16 %v3182
        %v3577 = vunpack.c.l.b16 %v3183
        %v3578 = vunpack.c.h.b16 %v3183
        %v3579 = vunpack.c.l.b16 %v3184
        %v3580 = vunpack.c.h.b16 %v3184
        %v3581 = vunpack.c.l.b16 %v3185
        %v3582 = vunpack.c.h.b16 %v3185
        %v3583 = vunpack.c.l.b16 %v3186
        %v3584 = vunpack.c.h.b16 %v3186
        %v3585 = vunpack.c.l.b16 %v3187
        %v3586 = vunpack.c.h.b16 %v3187
        %v3587 = vunpack.c.l.b16 %v3188
        %v3588 = vunpack.c.h.b16 %v3188
        %v3589 = vunpack.c.l.b16 %v3189
        %v3590 = vunpack.c.h.b16 %v3189
        %v3591 = vunpack.c.l.b16 %v3190
        %v3592 = vunpack.c.h.b16 %v3190
        %v3593 = vunpack.c.l.b16 %v3191
        %v3594 = vunpack.c.h.b16 %v3191
        %v3595 = vunpack.c.l.b16 %v3192
        %v3596 = vunpack.c.h.b16 %v3192
        %v3597 = vunpack.c.l.b16 %v3193
        %v3598 = vunpack.c.h.b16 %v3193
        %v3599 = vunpack.c.l.b16 %v3194
        %v3600 = vunpack.c.h.b16 %v3194
        %v3601 = vunpack.c.l.b16 %v3195
        %v3602 = vunpack.c.h.b16 %v3195
        %v3603 = vunpack.c.l.b16 %v3196
        %v3604 = vunpack.c.h.b16 %v3196
        %v3605 = vunpack.c.l.b16 %v3197
        %v3606 = vunpack.c.h.b16 %v3197
        %v3607 = vunpack.c.l.b16 %v3198
        %v3608 = vunpack.c.h.b16 %v3198
        %v3609 = vunpack.c.l.b16 %v3199
        %v3610 = vunpack.c.h.b16 %v3199
        %v3611 = vunpack.c.l.b16 %v3200
        %v3612 = vunpack.c.h.b16 %v3200
        %v3613 = vunpack.c.l.b16 %v3201
        %v3614 = vunpack.c.h.b16 %v3201
        %v3615 = vunpack.c.l.b16 %v3202
        %v3616 = vunpack.c.h.b16 %v3202
        %v3617 = vunpack.c.l.b16 %v3203
        %v3618 = vunpack.c.h.b16 %v3203
        %v3619 = vunpack.c.l.b16 %v3204
        %v3620 = vunpack.c.h.b16 %v3204
        %v3621 = vunpack.c.l.b16 %v3205
        %v3622 = vunpack.c.h.b16 %v3205
        %v3623 = vunpack.c.l.b16 %v3206
        %v3624 = vunpack.c.h.b16 %v3206
        %v3625 = vunpack.c.l.b16 %v3207
        %v3626 = vunpack.c.h.b16 %v3207
        %v3627 = vunpack.c.l.b16 %v3208
        %v3628 = vunpack.c.h.b16 %v3208
        %v3629 = vunpack.c.l.b16 %v3209
        %v3630 = vunpack.c.h.b16 %v3209
        %v3631 = vunpack.c.l.b16 %v3210
        %v3632 = vunpack.c.h.b16 %v3210
        %v3633 = vunpack.c.l.b16 %v3211
        %v3634 = vunpack.c.h.b16 %v3211
        %v3635 = vunpack.c.l.b16 %v3212
        %v3636 = vunpack.c.h.b16 %v3212
        %v3637 = vunpack.c.l.b16 %v3213
        %v3638 = vunpack.c.h.b16 %v3213
        %v3639 = vunpack.c.l.b16 %v3214
        %v3640 = vunpack.c.h.b16 %v3214
        %v3641 = vunpack.c.l.b16 %v3215
        %v3642 = vunpack.c.h.b16 %v3215
        %v3643 = vunpack.c.l.b16 %v3216
        %v3644 = vunpack.c.h.b16 %v3216
        %v3645 = vunpack.c.l.b16 %v3217
        %v3646 = vunpack.c.h.b16 %v3217
        %v3647 = vunpack.c.l.b16 %v3218
        %v3648 = vunpack.c.h.b16 %v3218
        %v3649 = vunpack.c.l.b16 %v3219
        %v3650 = vunpack.c.h.b16 %v3219
        %v3651 = vunpack.c.l.b16 %v3220
        %v3652 = vunpack.c.h.b16 %v3220
        %v3653 = vunpack.c.l.b16 %v3221
        %v3654 = vunpack.c.h.b16 %v3221
        %v3655 = vunpack.c.l.b16 %v3222
        %v3656 = vunpack.c.h.b16 %v3222
        %v3657 = vunpack.c.l.b16 %v3223
        %v3658 = vunpack.c.h.b16 %v3223
        %v3659 = vunpack.c.l.b16 %v3224
        %v3660 = vunpack.c.h.b16 %v3224
        %v3661 = vunpack.c.l.b16 %v3225
        %v3662 = vunpack.c.h.b16 %v3225
        %v3663 = vunpack.c.l.b16 %v3226
        %v3664 = vunpack.c.h.b16 %v3226
        %v3665 = vunpack.c.l.b16 %v3227
        %v3666 = vunpack.c.h.b16 %v3227
        %v3667 = vunpack.c.l.b16 %v3228
        %v3668 = vunpack.c.h.b16 %v3228
        %v3669 = vunpack.c.l.b16 %v3229
        %v3670 = vunpack.c.h.b16 %v3229
        %v3671 = vunpack.c.l.b16 %v3230
        %v3672 = vunpack.c.h.b16 %v3230
        %v3673 = vunpack.c.l.b16 %v3231
        %v3674 = vunpack.c.h.b16 %v3231
        %v3675 = vunpack.c.l.b16 %v3232
        %v3676 = vunpack.c.h.b16 %v3232
        %v3677 = vunpack.c.l.b16 %v3233
        %v3678 = vunpack.c.h.b16 %v3233
        %v3679 = vunpack.c.l.b16 %v3234
        %v3680 = vunpack.c.h.b16 %v3234
        %v3681 = vunpack.c.l.b16 %v3235
        %v3682 = vunpack.c.h.b16 %v3235
        %v3683 = vunpack.c.l.b16 %v3236
        %v3684 = vunpack.c.h.b16 %v3236
        %v3685 = vunpack.c.l.b16 %v3237
        %v3686 = vunpack.c.h.b16 %v3237
        %v3687 = vunpack.c.l.b16 %v3238
        %v3688 = vunpack.c.h.b16 %v3238
        %v3689 = vunpack.c.l.b16 %v3239
        %v3690 = vunpack.c.h.b16 %v3239
        %v3691 = vunpack.c.l.b16 %v3240
        %v3692 = vunpack.c.h.b16 %v3240
        %v3693 = vunpack.c.l.b16 %v3241
        %v3694 = vunpack.c.h.b16 %v3241
        %v3695 = vunpack.c.l.b16 %v3242
        %v3696 = vunpack.c.h.b16 %v3242
        %v3697 = vunpack.c.l.b16 %v3243
        %v3698 = vunpack.c.h.b16 %v3243
        %v3699 = vunpack.c.l.b16 %v3244
        %v3700 = vunpack.c.h.b16 %v3244
        %v3701 = vunpack.c.l.b16 %v3245
        %v3702 = vunpack.c.h.b16 %v3245
        %v3703 = vunpack.c.l.b16 %v3246
        %v3704 = vunpack.c.h.b16 %v3246
        %v3705 = vunpack.c.l.b16 %v3247
        %v3706 = vunpack.c.h.b16 %v3247
        %v3707 = vunpack.c.l.b16 %v3248
        %v3708 = vunpack.c.h.b16 %v3248
        %v3709 = vunpack.c.l.b16 %v3249
        %v3710 = vunpack.c.h.b16 %v3249
        %v3711 = vunpack.c.l.b16 %v3250
        %v3712 = vunpack.c.h.b16 %v3250
        %v3713 = vunpack.c.l.b16 %v3251
        %v3714 = vunpack.c.h.b16 %v3251
        %v3715 = vunpack.c.l.b16 %v3252
        %v3716 = vunpack.c.h.b16 %v3252
        %v3717 = vunpack.c.l.b16 %v3253
        %v3718 = vunpack.c.h.b16 %v3253
        %v3719 = vunpack.c.l.b16 %v3254
        %v3720 = vunpack.c.h.b16 %v3254
        %v3721 = vunpack.c.l.b16 %v3255
        %v3722 = vunpack.c.h.b16 %v3255
        %v3723 = vunpack.c.l.b16 %v3256
        %v3724 = vunpack.c.h.b16 %v3256
        %v3725 = vunpack.c.l.b16 %v3257
        %v3726 = vunpack.c.h.b16 %v3257
        %v3727 = vunpack.c.l.b16 %v3258
        %v3728 = vunpack.c.h.b16 %v3258
        %v3729 = vunpack.c.l.b16 %v3259
        %v3730 = vunpack.c.h.b16 %v3259
        %v3731 = vunpack.c.l.b16 %v3260
        %v3732 = vunpack.c.h.b16 %v3260
        %v3733 = vunpack.c.l.b16 %v3261
        %v3734 = vunpack.c.h.b16 %v3261
        %v3735 = vunpack.c.l.b16 %v3262
        %v3736 = vunpack.c.h.b16 %v3262
        %v3737 = vunpack.c.l.b16 %v3263
        %v3738 = vunpack.c.h.b16 %v3263
        %v3739 = vunpack.c.l.b16 %v3264
        %v3740 = vunpack.c.h.b16 %v3264
        %v3741 = vunpack.c.l.b16 %v3265
        %v3742 = vunpack.c.h.b16 %v3265
        %v3743 = vunpack.c.l.b16 %v3266
        %v3744 = vunpack.c.h.b16 %v3266
        %v3745 = vunpack.c.l.b16 %v3267
        %v3746 = vunpack.c.h.b16 %v3267
        %v3747 = vunpack.c.l.b16 %v3268
        %v3748 = vunpack.c.h.b16 %v3268
        %v3749 = vunpack.c.l.b16 %v3269
        %v3750 = vunpack.c.h.b16 %v3269
        %v3751 = vunpack.c.l.b16 %v3270
        %v3752 = vunpack.c.h.b16 %v3270
        %v3753 = vunpack.c.l.b16 %v3271
        %v3754 = vunpack.c.h.b16 %v3271
        %v3755 = vunpack.c.l.b16 %v3272
        %v3756 = vunpack.c.h.b16 %v3272
        %v3757 = vunpack.c.l.b16 %v3273
        %v3758 = vunpack.c.h.b16 %v3273
        %v3759 = vunpack.c.l.b16 %v3274
        %v3760 = vunpack.c.h.b16 %v3274
        %v3761 = vunpack.c.l.b16 %v3275
        %v3762 = vunpack.c.h.b16 %v3275
        %v3763 = vunpack.c.l.b16 %v3276
        %v3764 = vunpack.c.h.b16 %v3276
        %v3765 = vunpack.c.l.b16 %v3277
        %v3766 = vunpack.c.h.b16 %v3277
        %v3767 = vunpack.c.l.b16 %v3278
        %v3768 = vunpack.c.h.b16 %v3278
        %v3769 = vunpack.c.l.b16 %v3279
        %v3770 = vunpack.c.h.b16 %v3279
        %v3771 = vunpack.c.l.b16 %v3280
        %v3772 = vunpack.c.h.b16 %v3280
        %v3773 = vunpack.c.l.b16 %v3281
        %v3774 = vunpack.c.h.b16 %v3281
        %v3775 = vunpack.c.l.b16 %v3282
        %v3776 = vunpack.c.h.b16 %v3282
        %v3777 = vunpack.c.l.b16 %v3283
        %v3778 = vunpack.c.h.b16 %v3283
        %v3779 = vpack.c.b16 %v3469, %v3459
        %v3780 = vpack.c.b16 %v3470, %v3460
        %v3781 = vpack.c.b16 %v3471, %v3461
        %v3782 = vpack.c.b16 %v3472, %v3462
        %v3783 = vpack.c.b16 %v3473, %v3463
        %v3784 = vpack.c.b16 %v3474, %v3464
        %v3785 = vpack.c.b16 %v3475, %v3465
        %v3786 = vpack.c.b16 %v3476, %v3466
        %v3787 = vpack.c.b16 %v3477, %v3467
        %v3788 = vpack.c.b16 %v3478, %v3468
        %v3789 = vpack.c.b16 %v3489, %v3479
        %v3790 = vpack.c.b16 %v3490, %v3480
        %v3791 = vpack.c.b16 %v3491, %v3481
        %v3792 = vpack.c.b16 %v3492, %v3482
        %v3793 = vpack.c.b16 %v3493, %v3483
        %v3794 = vpack.c.b16 %v3494, %v3484
        %v3795 = vpack.c.b16 %v3495, %v3485
        %v3796 = vpack.c.b16 %v3496, %v3486
        %v3797 = vpack.c.b16 %v3497, %v3487
        %v3798 = vpack.c.b16 %v3498, %v3488
        %v3799 = vpack.c.b16 %v3509, %v3499
        %v3800 = vpack.c.b16 %v3510, %v3500
        %v3801 = vpack.c.b16 %v3511, %v3501
        %v3802 = vpack.c.b16 %v3512, %v3502
        %v3803 = vpack.c.b16 %v3513, %v3503
        %v3804 = vpack.c.b16 %v3514, %v3504
        %v3805 = vpack.c.b16 %v3515, %v3505
        %v3806 = vpack.c.b16 %v3516, %v3506
        %v3807 = vpack.c.b16 %v3517, %v3507
        %v3808 = vpack.c.b16 %v3518, %v3508
        %v3809 = vpack.c.b16 %v3529, %v3519
        %v3810 = vpack.c.b16 %v3530, %v3520
        %v3811 = vpack.c.b16 %v3531, %v3521
        %v3812 = vpack.c.b16 %v3532, %v3522
        %v3813 = vpack.c.b16 %v3533, %v3523
        %v3814 = vpack.c.b16 %v3534, %v3524
        %v3815 = vpack.c.b16 %v3535, %v3525
        %v3816 = vpack.c.b16 %v3536, %v3526
        %v3817 = vpack.c.b16 %v3537, %v3527
        %v3818 = vpack.c.b16 %v3538, %v3528
        %v3819 = vpack.c.b16 %v3549, %v3539
        %v3820 = vpack.c.b16 %v3550, %v3540
        %v3821 = vpack.c.b16 %v3551, %v3541
        %v3822 = vpack.c.b16 %v3552, %v3542
        %v3823 = vpack.c.b16 %v3553, %v3543
        %v3824 = vpack.c.b16 %v3554, %v3544
        %v3825 = vpack.c.b16 %v3555, %v3545
        %v3826 = vpack.c.b16 %v3556, %v3546
        %v3827 = vpack.c.b16 %v3557, %v3547
        %v3828 = vpack.c.b16 %v3558, %v3548
        %v3829 = vpack.c.b16 %v3569, %v3559
        %v3830 = vpack.c.b16 %v3570, %v3560
        %v3831 = vpack.c.b16 %v3571, %v3561
        %v3832 = vpack.c.b16 %v3572, %v3562
        %v3833 = vpack.c.b16 %v3573, %v3563
        %v3834 = vpack.c.b16 %v3574, %v3564
        %v3835 = vpack.c.b16 %v3575, %v3565
        %v3836 = vpack.c.b16 %v3576, %v3566
        %v3837 = vpack.c.b16 %v3577, %v3567
        %v3838 = vpack.c.b16 %v3578, %v3568
        %v3839 = vpack.c.b16 %v3589, %v3579
        %v3840 = vpack.c.b16 %v3590, %v3580
        %v3841 = vpack.c.b16 %v3591, %v3581
        %v3842 = vpack.c.b16 %v3592, %v3582
        %v3843 = vpack.c.b16 %v3593, %v3583
        %v3844 = vpack.c.b16 %v3594, %v3584
        %v3845 = vpack.c.b16 %v3595, %v3585
        %v3846 = vpack.c.b16 %v3596, %v3586
        %v3847 = vpack.c.b16 %v3597, %v3587
        %v3848 = vpack.c.b16 %v3598, %v3588
        %v3849 = vpack.c.b16 %v3609, %v3599
        %v3850 = vpack.c.b16 %v3610, %v3600
        %v3851 = vpack.c.b16 %v3611, %v3601
        %v3852 = vpack.c.b16 %v3612, %v3602
        %v3853 = vpack.c.b16 %v3613, %v3603
        %v3854 = vpack.c.b16 %v3614, %v3604
        %v3855 = vpack.c.b16 %v3615, %v3605
        %v3856 = vpack.c.b16 %v3616, %v3606
        %v3857 = vpack.c.b16 %v3617, %v3607
        %v3858 = vpack.c.b16 %v3618, %v3608
        %v3859 = vpack.c.b16 %v3629, %v3619
        %v3860 = vpack.c.b16 %v3630, %v3620
        %v3861 = vpack.c.b16 %v3631, %v3621
        %v3862 = vpack.c.b16 %v3632, %v3622
        %v3863 = vpack.c.b16 %v3633, %v3623
        %v3864 = vpack.c.b16 %v3634, %v3624
        %v3865 = vpack.c.b16 %v3635, %v3625
        %v3866 = vpack.c.b16 %v3636, %v3626
        %v3867 = vpack.c.b16 %v3637, %v3627
        %v3868 = vpack.c.b16 %v3638, %v3628
        %v3869 = vpack.c.b16 %v3649, %v3639
        %v3870 = vpack.c.b16 %v3650, %v3640
        %v3871 = vpack.c.b16 %v3651, %v3641
        %v3872 = vpack.c.b16 %v3652, %v3642
        %v3873 = vpack.c.b16 %v3653, %v3643
        %v3874 = vpack.c.b16 %v3654, %v3644
        %v3875 = vpack.c.b16 %v3655, %v3645
        %v3876 = vpack.c.b16 %v3656, %v3646
        %v3877 = vpack.c.b16 %v3657, %v3647
        %v3878 = vpack.c.b16 %v3658, %v3648
        %v3879 = vpack.c.b16 %v3669, %v3659
        %v3880 = vpack.c.b16 %v3670, %v3660
        %v3881 = vpack.c.b16 %v3671, %v3661
        %v3882 = vpack.c.b16 %v3672, %v3662
        %v3883 = vpack.c.b16 %v3673, %v3663
        %v3884 = vpack.c.b16 %v3674, %v3664
        %v3885 = vpack.c.b16 %v3675, %v3665
        %v3886 = vpack.c.b16 %v3676, %v3666
        %v3887 = vpack.c.b16 %v3677, %v3667
        %v3888 = vpack.c.b16 %v3678, %v3668
        %v3889 = vpack.c.b16 %v3689, %v3679
        %v3890 = vpack.c.b16 %v3690, %v3680
        %v3891 = vpack.c.b16 %v3691, %v3681
        %v3892 = vpack.c.b16 %v3692, %v3682
        %v3893 = vpack.c.b16 %v3693, %v3683
        %v3894 = vpack.c.b16 %v3694, %v3684
        %v3895 = vpack.c.b16 %v3695, %v3685
        %v3896 = vpack.c.b16 %v3696, %v3686
        %v3897 = vpack.c.b16 %v3697, %v3687
        %v3898 = vpack.c.b16 %v3698, %v3688
        %v3899 = vpack.c.b16 %v3709, %v3699
        %v3900 = vpack.c.b16 %v3710, %v3700
        %v3901 = vpack.c.b16 %v3711, %v3701
        %v3902 = vpack.c.b16 %v3712, %v3702
        %v3903 = vpack.c.b16 %v3713, %v3703
        %v3904 = vpack.c.b16 %v3714, %v3704
        %v3905 = vpack.c.b16 %v3715, %v3705
        %v3906 = vpack.c.b16 %v3716, %v3706
        %v3907 = vpack.c.b16 %v3717, %v3707
        %v3908 = vpack.c.b16 %v3718, %v3708
        %v3909 = vpack.c.b16 %v3729, %v3719
        %v3910 = vpack.c.b16 %v3730, %v3720
        %v3911 = vpack.c.b16 %v3731, %v3721
        %v3912 = vpack.c.b16 %v3732, %v3722
        %v3913 = vpack.c.b16 %v3733, %v3723
        %v3914 = vpack.c.b16 %v3734, %v3724
        %v3915 = vpack.c.b16 %v3735, %v3725
        %v3916 = vpack.c.b16 %v3736, %v3726
        %v3917 = vpack.c.b16 %v3737, %v3727
        %v3918 = vpack.c.b16 %v3738, %v3728
        %v3919 = vpack.c.b16 %v3749, %v3739
        %v3920 = vpack.c.b16 %v3750, %v3740
        %v3921 = vpack.c.b16 %v3751, %v3741
        %v3922 = vpack.c.b16 %v3752, %v3742
        %v3923 = vpack.c.b16 %v3753, %v3743
        %v3924 = vpack.c.b16 %v3754, %v3744
        %v3925 = vpack.c.b16 %v3755, %v3745
        %v3926 = vpack.c.b16 %v3756, %v3746
        %v3927 = vpack.c.b16 %v3757, %v3747
        %v3928 = vpack.c.b16 %v3758, %v3748
        %v3929 = vpack.c.b16 %v3769, %v3759
        %v3930 = vpack.c.b16 %v3770, %v3760
        %v3931 = vpack.c.b16 %v3771, %v3761
        %v3932 = vpack.c.b16 %v3772, %v3762
        %v3933 = vpack.c.b16 %v3773, %v3763
        %v3934 = vpack.c.b16 %v3774, %v3764
        %v3935 = vpack.c.b16 %v3775, %v3765
        %v3936 = vpack.c.b16 %v3776, %v3766
        %v3937 = vpack.c.b16 %v3777, %v3767
        %v3938 = vpack.c.b16 %v3778, %v3768
        %4099 = vmatprep.subr.bf16.mxu0 %v3850
        %4100 = vmatpush1.bf16.msra.mxu0 %v3849
        %4101 = vmatprep.subr.bf16.mxu0 %v3840
        %4102 = vmatpush1.bf16.msra.mxu0 %v3839
        %4103 = vmatprep.subr.bf16.mxu0 %v3830
        %4104 = vmatpush1.bf16.msra.mxu0 %v3829
        %4105 = vmatprep.subr.bf16.mxu0 %v3820
        %4106 = vmatpush1.bf16.msra.mxu0 %v3819
        %4107 = vmatprep.subr.bf16.mxu0 %v3810
        %4108 = vmatpush1.bf16.msra.mxu0 %v3809
        %4109 = vmatprep.subr.bf16.mxu0 %v3800
        %4110 = vmatpush1.bf16.msra.mxu0 %v3799
        %4111 = vmatprep.subr.bf16.mxu0 %v3790
        %4112 = vmatpush1.bf16.msra.mxu0 %v3789
        %4113 = vmatprep.subr.bf16.mxu0 %v3780
        %4114 = vmatpush1.bf16.msra.mxu0 %v3779
        %4115 = vmatprep.subr.bf16.mxu0 %v3930
        %4116 = vmatpush2.bf16.msra.mxu0 %v3929
        %4117 = vmatprep.subr.bf16.mxu0 %v3920
        %4118 = vmatpush2.bf16.msra.mxu0 %v3919
        %4119 = vmatprep.subr.bf16.mxu0 %v3910
        %4120 = vmatpush2.bf16.msra.mxu0 %v3909
        %4121 = vmatprep.subr.bf16.mxu0 %v3900
        %4122 = vmatpush2.bf16.msra.mxu0 %v3899
        %4123 = vmatprep.subr.bf16.mxu0 %v3890
        %4124 = vmatpush2.bf16.msra.mxu0 %v3889
        %4125 = vmatprep.subr.bf16.mxu0 %v3880
        %4126 = vmatpush2.bf16.msra.mxu0 %v3879
        %4127 = vmatprep.subr.bf16.mxu0 %v3870
        %4128 = vmatpush2.bf16.msra.mxu0 %v3869
        %4129 = vmatprep.subr.bf16.mxu0 %v3860
        %4130 = vmatpush2.bf16.msra.mxu0 %v3859
        %4131 = vmatprep.mubr.bf16.mxu0 %v3294
        %4132 = vmatmul.mubr.bf16.gmra.mxu0 %v3291
        %v4133 = vpop.f32.mrf.mxu0
        %v4134 = vadd.f32 0.0, %v4133
        %v4135 = vpop.f32.mrf.mxu0
        %v4136 = vadd.f32 0.0, %v4135
        %v4137 = vpop.f32.mrf.mxu0
        %v4138 = vadd.f32 0.0, %v4137
        %v4139 = vpop.f32.mrf.mxu0
        %v4140 = vadd.f32 0.0, %v4139
        %4141 = vmatprep.mubr.bf16.mxu0 %v3293
        %4142 = vmatmul.mubr.bf16.gmra.mxu0 %v3290
        %v4143 = vpop.f32.mrf.mxu0
        %v4144 = vadd.f32 0.0, %v4143
        %v4145 = vpop.f32.mrf.mxu0
        %v4146 = vadd.f32 0.0, %v4145
        %v4147 = vpop.f32.mrf.mxu0
        %v4148 = vpop.f32.mrf.mxu0
        %4149 = vdwg.mxu0
        %4150 = vmatprep.subr.bf16.mxu0 %v3852
        %4151 = vmatpush1.bf16.msra.mxu0 %v3851
        %4152 = vmatprep.subr.bf16.mxu0 %v3842
        %4153 = vmatpush1.bf16.msra.mxu0 %v3841
        %4154 = vmatprep.subr.bf16.mxu0 %v3832
        %4155 = vmatpush1.bf16.msra.mxu0 %v3831
        %4156 = vmatprep.subr.bf16.mxu0 %v3822
        %4157 = vmatpush1.bf16.msra.mxu0 %v3821
        %4158 = vmatprep.subr.bf16.mxu0 %v3812
        %4159 = vmatpush1.bf16.msra.mxu0 %v3811
        %4160 = vmatprep.subr.bf16.mxu0 %v3802
        %4161 = vmatpush1.bf16.msra.mxu0 %v3801
        %4162 = vmatprep.subr.bf16.mxu0 %v3792
        %4163 = vmatpush1.bf16.msra.mxu0 %v3791
        %4164 = vmatprep.subr.bf16.mxu0 %v3782
        %4165 = vmatpush1.bf16.msra.mxu0 %v3781
        %4166 = vmatprep.subr.bf16.mxu0 %v3932
        %4167 = vmatpush2.bf16.msra.mxu0 %v3931
        %4168 = vmatprep.subr.bf16.mxu0 %v3922
        %4169 = vmatpush2.bf16.msra.mxu0 %v3921
        %4170 = vmatprep.subr.bf16.mxu0 %v3912
        %4171 = vmatpush2.bf16.msra.mxu0 %v3911
        %4172 = vmatprep.subr.bf16.mxu0 %v3902
        %4173 = vmatpush2.bf16.msra.mxu0 %v3901
        %4174 = vmatprep.subr.bf16.mxu0 %v3892
        %4175 = vmatpush2.bf16.msra.mxu0 %v3891
        %4176 = vmatprep.subr.bf16.mxu0 %v3882
        %4177 = vmatpush2.bf16.msra.mxu0 %v3881
        %4178 = vmatprep.subr.bf16.mxu0 %v3872
        %4179 = vmatpush2.bf16.msra.mxu0 %v3871
        %4180 = vmatprep.subr.bf16.mxu0 %v3862
        %4181 = vmatpush2.bf16.msra.mxu0 %v3861
        %4182 = vmatprep.mubr.bf16.mxu0 %v3294
        %4183 = vmatmul.mubr.bf16.gmra.mxu0 %v3291
        %v4184 = vpop.f32.mrf.mxu0
        %v4185 = vadd.f32 0.0, %v4184
        %v4186 = vpop.f32.mrf.mxu0
        %v4187 = vadd.f32 0.0, %v4186
        %v4188 = vpop.f32.mrf.mxu0
        %v4189 = vadd.f32 0.0, %v4188
        %v4190 = vpop.f32.mrf.mxu0
        %v4191 = vadd.f32 0.0, %v4190
        %4192 = vmatprep.mubr.bf16.mxu0 %v3293
        %4193 = vmatmul.mubr.bf16.gmra.mxu0 %v3290
        %v4194 = vpop.f32.mrf.mxu0
        %v4195 = vadd.f32 0.0, %v4194
        %v4196 = vpop.f32.mrf.mxu0
        %v4197 = vadd.f32 0.0, %v4196
        %v4198 = vpop.f32.mrf.mxu0
        %v4199 = vpop.f32.mrf.mxu0
        %4200 = vdwg.mxu0
        %4201 = vmatprep.subr.bf16.mxu0 %v3854
        %4202 = vmatpush1.bf16.msra.mxu0 %v3853
        %4203 = vmatprep.subr.bf16.mxu0 %v3844
        %4204 = vmatpush1.bf16.msra.mxu0 %v3843
        %4205 = vmatprep.subr.bf16.mxu0 %v3834
        %4206 = vmatpush1.bf16.msra.mxu0 %v3833
        %4207 = vmatprep.subr.bf16.mxu0 %v3824
        %4208 = vmatpush1.bf16.msra.mxu0 %v3823
        %4209 = vmatprep.subr.bf16.mxu0 %v3814
        %4210 = vmatpush1.bf16.msra.mxu0 %v3813
        %4211 = vmatprep.subr.bf16.mxu0 %v3804
        %4212 = vmatpush1.bf16.msra.mxu0 %v3803
        %4213 = vmatprep.subr.bf16.mxu0 %v3794
        %4214 = vmatpush1.bf16.msra.mxu0 %v3793
        %4215 = vmatprep.subr.bf16.mxu0 %v3784
        %4216 = vmatpush1.bf16.msra.mxu0 %v3783
        %4217 = vmatprep.subr.bf16.mxu0 %v3934
        %4218 = vmatpush2.bf16.msra.mxu0 %v3933
        %4219 = vmatprep.subr.bf16.mxu0 %v3924
        %4220 = vmatpush2.bf16.msra.mxu0 %v3923
        %4221 = vmatprep.subr.bf16.mxu0 %v3914
        %4222 = vmatpush2.bf16.msra.mxu0 %v3913
        %4223 = vmatprep.subr.bf16.mxu0 %v3904
        %4224 = vmatpush2.bf16.msra.mxu0 %v3903
        %4225 = vmatprep.subr.bf16.mxu0 %v3894
        %4226 = vmatpush2.bf16.msra.mxu0 %v3893
        %4227 = vmatprep.subr.bf16.mxu0 %v3884
        %4228 = vmatpush2.bf16.msra.mxu0 %v3883
        %4229 = vmatprep.subr.bf16.mxu0 %v3874
        %4230 = vmatpush2.bf16.msra.mxu0 %v3873
        %4231 = vmatprep.subr.bf16.mxu0 %v3864
        %4232 = vmatpush2.bf16.msra.mxu0 %v3863
        %4233 = vmatprep.mubr.bf16.mxu0 %v3294
        %4234 = vmatmul.mubr.bf16.gmra.mxu0 %v3291
        %v4235 = vpop.f32.mrf.mxu0
        %v4236 = vadd.f32 0.0, %v4235
        %v4237 = vpop.f32.mrf.mxu0
        %v4238 = vadd.f32 0.0, %v4237
        %v4239 = vpop.f32.mrf.mxu0
        %v4240 = vadd.f32 0.0, %v4239
        %v4241 = vpop.f32.mrf.mxu0
        %v4242 = vadd.f32 0.0, %v4241
        %4243 = vmatprep.mubr.bf16.mxu0 %v3293
        %4244 = vmatmul.mubr.bf16.gmra.mxu0 %v3290
        %v4245 = vpop.f32.mrf.mxu0
        %v4246 = vadd.f32 0.0, %v4245
        %v4247 = vpop.f32.mrf.mxu0
        %v4248 = vadd.f32 0.0, %v4247
        %v4249 = vpop.f32.mrf.mxu0
        %v4250 = vpop.f32.mrf.mxu0
        %4251 = vdwg.mxu0
        %4252 = vmatprep.subr.bf16.mxu0 %v3856
        %4253 = vmatpush1.bf16.msra.mxu0 %v3855
        %4254 = vmatprep.subr.bf16.mxu0 %v3846
        %4255 = vmatpush1.bf16.msra.mxu0 %v3845
        %4256 = vmatprep.subr.bf16.mxu0 %v3836
        %4257 = vmatpush1.bf16.msra.mxu0 %v3835
        %4258 = vmatprep.subr.bf16.mxu0 %v3826
        %4259 = vmatpush1.bf16.msra.mxu0 %v3825
        %4260 = vmatprep.subr.bf16.mxu0 %v3816
        %4261 = vmatpush1.bf16.msra.mxu0 %v3815
        %4262 = vmatprep.subr.bf16.mxu0 %v3806
        %4263 = vmatpush1.bf16.msra.mxu0 %v3805
        %4264 = vmatprep.subr.bf16.mxu0 %v3796
        %4265 = vmatpush1.bf16.msra.mxu0 %v3795
        %4266 = vmatprep.subr.bf16.mxu0 %v3786
        %4267 = vmatpush1.bf16.msra.mxu0 %v3785
        %4268 = vmatprep.subr.bf16.mxu0 %v3936
        %4269 = vmatpush2.bf16.msra.mxu0 %v3935
        %4270 = vmatprep.subr.bf16.mxu0 %v3926
        %4271 = vmatpush2.bf16.msra.mxu0 %v3925
        %4272 = vmatprep.subr.bf16.mxu0 %v3916
        %4273 = vmatpush2.bf16.msra.mxu0 %v3915
        %4274 = vmatprep.subr.bf16.mxu0 %v3906
        %4275 = vmatpush2.bf16.msra.mxu0 %v3905
        %4276 = vmatprep.subr.bf16.mxu0 %v3896
        %4277 = vmatpush2.bf16.msra.mxu0 %v3895
        %4278 = vmatprep.subr.bf16.mxu0 %v3886
        %4279 = vmatpush2.bf16.msra.mxu0 %v3885
        %4280 = vmatprep.subr.bf16.mxu0 %v3876
        %4281 = vmatpush2.bf16.msra.mxu0 %v3875
        %4282 = vmatprep.subr.bf16.mxu0 %v3866
        %4283 = vmatpush2.bf16.msra.mxu0 %v3865
        %4284 = vmatprep.mubr.bf16.mxu0 %v3294
        %4285 = vmatmul.mubr.bf16.gmra.mxu0 %v3291
        %v4286 = vpop.f32.mrf.mxu0
        %v4287 = vadd.f32 0.0, %v4286
        %v4288 = vpop.f32.mrf.mxu0
        %v4289 = vadd.f32 0.0, %v4288
        %v4290 = vpop.f32.mrf.mxu0
        %v4291 = vadd.f32 0.0, %v4290
        %v4292 = vpop.f32.mrf.mxu0
        %v4293 = vadd.f32 0.0, %v4292
        %4294 = vmatprep.mubr.bf16.mxu0 %v3293
        %4295 = vmatmul.mubr.bf16.gmra.mxu0 %v3290
        %v4296 = vpop.f32.mrf.mxu0
        %v4297 = vadd.f32 0.0, %v4296
        %v4298 = vpop.f32.mrf.mxu0
        %v4299 = vadd.f32 0.0, %v4298
        %v4300 = vpop.f32.mrf.mxu0
        %v4301 = vpop.f32.mrf.mxu0
        %4302 = vdwg.mxu0
        %4303 = vmatprep.subr.bf16.mxu0 %v3858
        %4304 = vmatpush1.bf16.msra.mxu0 %v3857
        %4305 = vmatprep.subr.bf16.mxu0 %v3848
        %4306 = vmatpush1.bf16.msra.mxu0 %v3847
        %4307 = vmatprep.subr.bf16.mxu0 %v3838
        %4308 = vmatpush1.bf16.msra.mxu0 %v3837
        %4309 = vmatprep.subr.bf16.mxu0 %v3828
        %4310 = vmatpush1.bf16.msra.mxu0 %v3827
        %4311 = vmatprep.subr.bf16.mxu0 %v3818
        %4312 = vmatpush1.bf16.msra.mxu0 %v3817
        %4313 = vmatprep.subr.bf16.mxu0 %v3808
        %4314 = vmatpush1.bf16.msra.mxu0 %v3807
        %4315 = vmatprep.subr.bf16.mxu0 %v3798
        %4316 = vmatpush1.bf16.msra.mxu0 %v3797
        %4317 = vmatprep.subr.bf16.mxu0 %v3788
        %4318 = vmatpush1.bf16.msra.mxu0 %v3787
        %4319 = vmatprep.subr.bf16.mxu0 %v3938
        %4320 = vmatpush2.bf16.msra.mxu0 %v3937
        %4321 = vmatprep.subr.bf16.mxu0 %v3928
        %4322 = vmatpush2.bf16.msra.mxu0 %v3927
        %4323 = vmatprep.subr.bf16.mxu0 %v3918
        %4324 = vmatpush2.bf16.msra.mxu0 %v3917
        %4325 = vmatprep.subr.bf16.mxu0 %v3908
        %4326 = vmatpush2.bf16.msra.mxu0 %v3907
        %4327 = vmatprep.subr.bf16.mxu0 %v3898
        %4328 = vmatpush2.bf16.msra.mxu0 %v3897
        %4329 = vmatprep.subr.bf16.mxu0 %v3888
        %4330 = vmatpush2.bf16.msra.mxu0 %v3887
        %4331 = vmatprep.subr.bf16.mxu0 %v3878
        %4332 = vmatpush2.bf16.msra.mxu0 %v3877
        %4333 = vmatprep.subr.bf16.mxu0 %v3868
        %4334 = vmatpush2.bf16.msra.mxu0 %v3867
        %4335 = vmatprep.mubr.bf16.mxu0 %v3294
        %4336 = vmatmul.mubr.bf16.gmra.mxu0 %v3291
        %v4337 = vpop.f32.mrf.mxu0
        %v4338 = vadd.f32 0.0, %v4337
        %v4339 = vpop.f32.mrf.mxu0
        %v4340 = vadd.f32 0.0, %v4339
        %v4341 = vpop.f32.mrf.mxu0
        %v4342 = vadd.f32 0.0, %v4341
        %v4343 = vpop.f32.mrf.mxu0
        %v4344 = vadd.f32 0.0, %v4343
        %4345 = vmatprep.mubr.bf16.mxu0 %v3293
        %4346 = vmatmul.mubr.bf16.gmra.mxu0 %v3290
        %v4347 = vpop.f32.mrf.mxu0
        %v4348 = vadd.f32 0.0, %v4347
        %v4349 = vpop.f32.mrf.mxu0
        %v4350 = vadd.f32 0.0, %v4349
        %v4351 = vpop.f32.mrf.mxu0
        %v4352 = vpop.f32.mrf.mxu0
        %4353 = vdwg.mxu0
        %v4354 = vadd.f32 %v2903, %v4134
        %v4355 = vadd.f32 %v2905, %v4136
        %v4356 = vadd.f32 %v2954, %v4185
        %v4357 = vadd.f32 %v2956, %v4187
        %v4358 = vadd.f32 %v3005, %v4236
        %v4359 = vadd.f32 %v3007, %v4238
        %v4360 = vadd.f32 %v3056, %v4287
        %v4361 = vadd.f32 %v3058, %v4289
        %v4362 = vadd.f32 %v3107, %v4338
        %v4363 = vadd.f32 %v3109, %v4340
        %v4364 = vadd.f32 %v2907, %v4138
        %v4365 = vadd.f32 %v2909, %v4140
        %v4366 = vadd.f32 %v2958, %v4189
        %v4367 = vadd.f32 %v2960, %v4191
        %v4368 = vadd.f32 %v3009, %v4240
        %v4369 = vadd.f32 %v3011, %v4242
        %v4370 = vadd.f32 %v3060, %v4291
        %v4371 = vadd.f32 %v3062, %v4293
        %v4372 = vadd.f32 %v3111, %v4342
        %v4373 = vadd.f32 %v3113, %v4344
        %v4374 = vadd.f32 %v2913, %v4144
        %v4375 = vadd.f32 %v2915, %v4146
        %v4376 = vadd.f32 %v2964, %v4195
        %v4377 = vadd.f32 %v2966, %v4197
        %v4378 = vadd.f32 %v3015, %v4246
        %v4379 = vadd.f32 %v3017, %v4248
        %v4380 = vadd.f32 %v3066, %v4297
        %v4381 = vadd.f32 %v3068, %v4299
        %v4382 = vadd.f32 %v3117, %v4348
        %v4383 = vadd.f32 %v3119, %v4350
        %s4384 = scalar_lea.vmem [#allocation3], 3840
        %v4385 = vld [vmem:[%s4384] sm:$0xff]
        %v4386 = vld [vmem:[%s4384 + $0x8] sm:$0xff]
        %v4387 = vld [vmem:[%s4384 + $0x10] sm:$0xff]
        %v4388 = vld [vmem:[%s4384 + $0x18] sm:$0xff]
        %v4389 = vld [vmem:[%s4384 + $0x20] sm:$0xff]
        %v4390 = vld [vmem:[%s4384 + $0x28] sm:$0xff]
        %v4391 = vld [vmem:[%s4384 + $0x30] sm:$0xff]
        %v4392 = vld [vmem:[%s4384 + $0x38] sm:$0xff]
        %v4393 = vld [vmem:[%s4384 + $0x40] sm:$0xff]
        %v4394 = vld [vmem:[%s4384 + $0x48] sm:$0xff]
        %v4395 = vld [vmem:[%s4384 + $0x50] sm:$0xff]
        %v4396 = vld [vmem:[%s4384 + $0x58] sm:$0xff]
        %v4397 = vld [vmem:[%s4384 + $0x60] sm:$0xff]
        %v4398 = vld [vmem:[%s4384 + $0x68] sm:$0xff]
        %v4399 = vld [vmem:[%s4384 + $0x70] sm:$0xff]
        %v4400 = vld [vmem:[%s4384 + $0x78] sm:$0xff]
        %v4401 = vld [vmem:[%s4384 + $0x80] sm:$0xff]
        %v4402 = vld [vmem:[%s4384 + $0x88] sm:$0xff]
        %v4403 = vld [vmem:[%s4384 + $0x90] sm:$0xff]
        %v4404 = vld [vmem:[%s4384 + $0x98] sm:$0xff]
        %v4405 = vld [vmem:[%s4384 + $0xa0] sm:$0xff]
        %v4406 = vld [vmem:[%s4384 + $0xa8] sm:$0xff]
        %v4407 = vld [vmem:[%s4384 + $0xb0] sm:$0xff]
        %v4408 = vld [vmem:[%s4384 + $0xb8] sm:$0xff]
        %v4409 = vld [vmem:[%s4384 + $0xc0] sm:$0xff]
        %v4410 = vld [vmem:[%s4384 + $0xc8] sm:$0xff]
        %v4411 = vld [vmem:[%s4384 + $0xd0] sm:$0xff]
        %v4412 = vld [vmem:[%s4384 + $0xd8] sm:$0xff]
        %v4413 = vld [vmem:[%s4384 + $0xe0] sm:$0xff]
        %v4414 = vld [vmem:[%s4384 + $0xe8] sm:$0xff]
        %v4415 = vld [vmem:[%s4384 + $0xf0] sm:$0xff]
        %v4416 = vld [vmem:[%s4384 + $0xf8] sm:$0xff]
        %v4417 = vld [vmem:[%s4384 + $0x100] sm:$0xff]
        %v4418 = vld [vmem:[%s4384 + $0x108] sm:$0xff]
        %v4419 = vld [vmem:[%s4384 + $0x110] sm:$0xff]
        %v4420 = vld [vmem:[%s4384 + $0x118] sm:$0xff]
        %v4421 = vld [vmem:[%s4384 + $0x120] sm:$0xff]
        %v4422 = vld [vmem:[%s4384 + $0x128] sm:$0xff]
        %v4423 = vld [vmem:[%s4384 + $0x130] sm:$0xff]
        %v4424 = vld [vmem:[%s4384 + $0x138] sm:$0xff]
        %v4425 = vld [vmem:[%s4384 + $0x140] sm:$0xff]
        %v4426 = vld [vmem:[%s4384 + $0x148] sm:$0xff]
        %v4427 = vld [vmem:[%s4384 + $0x150] sm:$0xff]
        %v4428 = vld [vmem:[%s4384 + $0x158] sm:$0xff]
        %v4429 = vld [vmem:[%s4384 + $0x160] sm:$0xff]
        %v4430 = vld [vmem:[%s4384 + $0x168] sm:$0xff]
        %v4431 = vld [vmem:[%s4384 + $0x170] sm:$0xff]
        %v4432 = vld [vmem:[%s4384 + $0x178] sm:$0xff]
        %v4433 = vld [vmem:[%s4384 + $0x180] sm:$0xff]
        %v4434 = vld [vmem:[%s4384 + $0x188] sm:$0xff]
        %v4435 = vld [vmem:[%s4384 + $0x190] sm:$0xff]
        %v4436 = vld [vmem:[%s4384 + $0x198] sm:$0xff]
        %v4437 = vld [vmem:[%s4384 + $0x1a0] sm:$0xff]
        %v4438 = vld [vmem:[%s4384 + $0x1a8] sm:$0xff]
        %v4439 = vld [vmem:[%s4384 + $0x1b0] sm:$0xff]
        %v4440 = vld [vmem:[%s4384 + $0x1b8] sm:$0xff]
        %v4441 = vld [vmem:[%s4384 + $0x1c0] sm:$0xff]
        %v4442 = vld [vmem:[%s4384 + $0x1c8] sm:$0xff]
        %v4443 = vld [vmem:[%s4384 + $0x1d0] sm:$0xff]
        %v4444 = vld [vmem:[%s4384 + $0x1d8] sm:$0xff]
        %v4445 = vld [vmem:[%s4384 + $0x1e0] sm:$0xff]
        %v4446 = vld [vmem:[%s4384 + $0x1e8] sm:$0xff]
        %v4447 = vld [vmem:[%s4384 + $0x1f0] sm:$0xff]
        %v4448 = vld [vmem:[%s4384 + $0x1f8] sm:$0xff]
        %v4449 = vld [vmem:[%s4384 + $0x200] sm:$0xff]
        %v4450 = vld [vmem:[%s4384 + $0x208] sm:$0xff]
        %v4451 = vld [vmem:[%s4384 + $0x210] sm:$0xff]
        %v4452 = vld [vmem:[%s4384 + $0x218] sm:$0xff]
        %v4453 = vld [vmem:[%s4384 + $0x220] sm:$0xff]
        %v4454 = vld [vmem:[%s4384 + $0x228] sm:$0xff]
        %v4455 = vld [vmem:[%s4384 + $0x230] sm:$0xff]
        %v4456 = vld [vmem:[%s4384 + $0x238] sm:$0xff]
        %v4457 = vld [vmem:[%s4384 + $0x240] sm:$0xff]
        %v4458 = vld [vmem:[%s4384 + $0x248] sm:$0xff]
        %v4459 = vld [vmem:[%s4384 + $0x250] sm:$0xff]
        %v4460 = vld [vmem:[%s4384 + $0x258] sm:$0xff]
        %v4461 = vld [vmem:[%s4384 + $0x260] sm:$0xff]
        %v4462 = vld [vmem:[%s4384 + $0x268] sm:$0xff]
        %v4463 = vld [vmem:[%s4384 + $0x270] sm:$0xff]
        %v4464 = vld [vmem:[%s4384 + $0x278] sm:$0xff]
        %v4465 = vld [vmem:[%s4384 + $0x280] sm:$0xff]
        %v4466 = vld [vmem:[%s4384 + $0x288] sm:$0xff]
        %v4467 = vld [vmem:[%s4384 + $0x290] sm:$0xff]
        %v4468 = vld [vmem:[%s4384 + $0x298] sm:$0xff]
        %v4469 = vld [vmem:[%s4384 + $0x2a0] sm:$0xff]
        %v4470 = vld [vmem:[%s4384 + $0x2a8] sm:$0xff]
        %v4471 = vld [vmem:[%s4384 + $0x2b0] sm:$0xff]
        %v4472 = vld [vmem:[%s4384 + $0x2b8] sm:$0xff]
        %v4473 = vld [vmem:[%s4384 + $0x2c0] sm:$0xff]
        %v4474 = vld [vmem:[%s4384 + $0x2c8] sm:$0xff]
        %v4475 = vld [vmem:[%s4384 + $0x2d0] sm:$0xff]
        %v4476 = vld [vmem:[%s4384 + $0x2d8] sm:$0xff]
        %v4477 = vld [vmem:[%s4384 + $0x2e0] sm:$0xff]
        %v4478 = vld [vmem:[%s4384 + $0x2e8] sm:$0xff]
        %v4479 = vld [vmem:[%s4384 + $0x2f0] sm:$0xff]
        %v4480 = vld [vmem:[%s4384 + $0x2f8] sm:$0xff]
        %v4481 = vld [vmem:[%s4384 + $0x300] sm:$0xff]
        %v4482 = vld [vmem:[%s4384 + $0x308] sm:$0xff]
        %v4483 = vld [vmem:[%s4384 + $0x310] sm:$0xff]
        %v4484 = vld [vmem:[%s4384 + $0x318] sm:$0xff]
        %v4485 = vld [vmem:[%s4384 + $0x320] sm:$0xff]
        %v4486 = vld [vmem:[%s4384 + $0x328] sm:$0xff]
        %v4487 = vld [vmem:[%s4384 + $0x330] sm:$0xff]
        %v4488 = vld [vmem:[%s4384 + $0x338] sm:$0xff]
        %v4489 = vld [vmem:[%s4384 + $0x340] sm:$0xff]
        %v4490 = vld [vmem:[%s4384 + $0x348] sm:$0xff]
        %v4491 = vld [vmem:[%s4384 + $0x350] sm:$0xff]
        %v4492 = vld [vmem:[%s4384 + $0x358] sm:$0xff]
        %v4493 = vld [vmem:[%s4384 + $0x360] sm:$0xff]
        %v4494 = vld [vmem:[%s4384 + $0x368] sm:$0xff]
        %v4495 = vld [vmem:[%s4384 + $0x370] sm:$0xff]
        %v4496 = vld [vmem:[%s4384 + $0x378] sm:$0xff]
        %v4497 = vld [vmem:[%s4384 + $0x380] sm:$0xff]
        %v4498 = vld [vmem:[%s4384 + $0x388] sm:$0xff]
        %v4499 = vld [vmem:[%s4384 + $0x390] sm:$0xff]
        %v4500 = vld [vmem:[%s4384 + $0x398] sm:$0xff]
        %v4501 = vld [vmem:[%s4384 + $0x3a0] sm:$0xff]
        %v4502 = vld [vmem:[%s4384 + $0x3a8] sm:$0xff]
        %v4503 = vld [vmem:[%s4384 + $0x3b0] sm:$0xff]
        %v4504 = vld [vmem:[%s4384 + $0x3b8] sm:$0xff]
        %v4505 = vld [vmem:[%s4384 + $0x3c0] sm:$0xff]
        %v4506 = vld [vmem:[%s4384 + $0x3c8] sm:$0xff]
        %v4507 = vld [vmem:[%s4384 + $0x3d0] sm:$0xff]
        %v4508 = vld [vmem:[%s4384 + $0x3d8] sm:$0xff]
        %v4509 = vld [vmem:[%s4384 + $0x3e0] sm:$0xff]
        %v4510 = vld [vmem:[%s4384 + $0x3e8] sm:$0xff]
        %v4511 = vld [vmem:[%s4384 + $0x3f0] sm:$0xff]
        %v4512 = vld [vmem:[%s4384 + $0x3f8] sm:$0xff]
        %v4513 = vld [vmem:[%s4384 + $0x400] sm:$0xff]
        %v4514 = vld [vmem:[%s4384 + $0x408] sm:$0xff]
        %v4515 = vld [vmem:[%s4384 + $0x410] sm:$0xff]
        %v4516 = vld [vmem:[%s4384 + $0x418] sm:$0xff]
        %v4517 = vld [vmem:[%s4384 + $0x420] sm:$0xff]
        %v4518 = vld [vmem:[%s4384 + $0x428] sm:$0xff]
        %v4519 = vld [vmem:[%s4384 + $0x430] sm:$0xff]
        %v4520 = vld [vmem:[%s4384 + $0x438] sm:$0xff]
        %v4521 = vld [vmem:[%s4384 + $0x440] sm:$0xff]
        %v4522 = vld [vmem:[%s4384 + $0x448] sm:$0xff]
        %v4523 = vld [vmem:[%s4384 + $0x450] sm:$0xff]
        %v4524 = vld [vmem:[%s4384 + $0x458] sm:$0xff]
        %v4525 = vld [vmem:[%s4384 + $0x460] sm:$0xff]
        %v4526 = vld [vmem:[%s4384 + $0x468] sm:$0xff]
        %v4527 = vld [vmem:[%s4384 + $0x470] sm:$0xff]
        %v4528 = vld [vmem:[%s4384 + $0x478] sm:$0xff]
        %v4529 = vld [vmem:[%s4384 + $0x480] sm:$0xff]
        %v4530 = vld [vmem:[%s4384 + $0x488] sm:$0xff]
        %v4531 = vld [vmem:[%s4384 + $0x490] sm:$0xff]
        %v4532 = vld [vmem:[%s4384 + $0x498] sm:$0xff]
        %v4533 = vld [vmem:[%s4384 + $0x4a0] sm:$0xff]
        %v4534 = vld [vmem:[%s4384 + $0x4a8] sm:$0xff]
        %v4535 = vld [vmem:[%s4384 + $0x4b0] sm:$0xff]
        %v4536 = vld [vmem:[%s4384 + $0x4b8] sm:$0xff]
        %v4537 = vld [vmem:[%s4384 + $0x4c0] sm:$0xff]
        %v4538 = vld [vmem:[%s4384 + $0x4c8] sm:$0xff]
        %v4539 = vld [vmem:[%s4384 + $0x4d0] sm:$0xff]
        %v4540 = vld [vmem:[%s4384 + $0x4d8] sm:$0xff]
        %v4541 = vld [vmem:[%s4384 + $0x4e0] sm:$0xff]
        %v4542 = vld [vmem:[%s4384 + $0x4e8] sm:$0xff]
        %v4543 = vld [vmem:[%s4384 + $0x4f0] sm:$0xff]
        %v4544 = vld [vmem:[%s4384 + $0x4f8] sm:$0xff]
        %vm4545 = vsmask.f32 6400
        %v4546 = vrot.slane %v982, 1
        %v4547 = vrot.slane %v984, 2
        %v4548 = vor.u32 %v4546, %v4547
        %v4549 = vrot.slane %v1005, 1
        %v4550 = vrot.slane %v989, 2
        %v4551 = vor.u32 %v4549, %v4550
        %v4552 = vsel %vm4545, %v4548, %v4551
        %v4553 = vrot.slane %v994, 1
        %v4554 = vrot.slane %v996, 2
        %v4555 = vor.u32 %v4553, %v4554
        %v4556 = vrot.slane %v1007, 1
        %v4557 = vrot.slane %v1001, 2
        %v4558 = vor.u32 %v4556, %v4557
        %v4559 = vsel %vm4545, %v4555, %v4558
        %v4724 = vunpack.c.l.b16 %v4385
        %v4725 = vunpack.c.h.b16 %v4385
        %v4726 = vunpack.c.l.b16 %v4386
        %v4727 = vunpack.c.h.b16 %v4386
        %v4728 = vunpack.c.l.b16 %v4387
        %v4729 = vunpack.c.h.b16 %v4387
        %v4730 = vunpack.c.l.b16 %v4388
        %v4731 = vunpack.c.h.b16 %v4388
        %v4732 = vunpack.c.l.b16 %v4389
        %v4733 = vunpack.c.h.b16 %v4389
        %v4734 = vunpack.c.l.b16 %v4390
        %v4735 = vunpack.c.h.b16 %v4390
        %v4736 = vunpack.c.l.b16 %v4391
        %v4737 = vunpack.c.h.b16 %v4391
        %v4738 = vunpack.c.l.b16 %v4392
        %v4739 = vunpack.c.h.b16 %v4392
        %v4740 = vunpack.c.l.b16 %v4393
        %v4741 = vunpack.c.h.b16 %v4393
        %v4742 = vunpack.c.l.b16 %v4394
        %v4743 = vunpack.c.h.b16 %v4394
        %v4744 = vunpack.c.l.b16 %v4395
        %v4745 = vunpack.c.h.b16 %v4395
        %v4746 = vunpack.c.l.b16 %v4396
        %v4747 = vunpack.c.h.b16 %v4396
        %v4748 = vunpack.c.l.b16 %v4397
        %v4749 = vunpack.c.h.b16 %v4397
        %v4750 = vunpack.c.l.b16 %v4398
        %v4751 = vunpack.c.h.b16 %v4398
        %v4752 = vunpack.c.l.b16 %v4399
        %v4753 = vunpack.c.h.b16 %v4399
        %v4754 = vunpack.c.l.b16 %v4400
        %v4755 = vunpack.c.h.b16 %v4400
        %v4756 = vunpack.c.l.b16 %v4401
        %v4757 = vunpack.c.h.b16 %v4401
        %v4758 = vunpack.c.l.b16 %v4402
        %v4759 = vunpack.c.h.b16 %v4402
        %v4760 = vunpack.c.l.b16 %v4403
        %v4761 = vunpack.c.h.b16 %v4403
        %v4762 = vunpack.c.l.b16 %v4404
        %v4763 = vunpack.c.h.b16 %v4404
        %v4764 = vunpack.c.l.b16 %v4405
        %v4765 = vunpack.c.h.b16 %v4405
        %v4766 = vunpack.c.l.b16 %v4406
        %v4767 = vunpack.c.h.b16 %v4406
        %v4768 = vunpack.c.l.b16 %v4407
        %v4769 = vunpack.c.h.b16 %v4407
        %v4770 = vunpack.c.l.b16 %v4408
        %v4771 = vunpack.c.h.b16 %v4408
        %v4772 = vunpack.c.l.b16 %v4409
        %v4773 = vunpack.c.h.b16 %v4409
        %v4774 = vunpack.c.l.b16 %v4410
        %v4775 = vunpack.c.h.b16 %v4410
        %v4776 = vunpack.c.l.b16 %v4411
        %v4777 = vunpack.c.h.b16 %v4411
        %v4778 = vunpack.c.l.b16 %v4412
        %v4779 = vunpack.c.h.b16 %v4412
        %v4780 = vunpack.c.l.b16 %v4413
        %v4781 = vunpack.c.h.b16 %v4413
        %v4782 = vunpack.c.l.b16 %v4414
        %v4783 = vunpack.c.h.b16 %v4414
        %v4784 = vunpack.c.l.b16 %v4415
        %v4785 = vunpack.c.h.b16 %v4415
        %v4786 = vunpack.c.l.b16 %v4416
        %v4787 = vunpack.c.h.b16 %v4416
        %v4788 = vunpack.c.l.b16 %v4417
        %v4789 = vunpack.c.h.b16 %v4417
        %v4790 = vunpack.c.l.b16 %v4418
        %v4791 = vunpack.c.h.b16 %v4418
        %v4792 = vunpack.c.l.b16 %v4419
        %v4793 = vunpack.c.h.b16 %v4419
        %v4794 = vunpack.c.l.b16 %v4420
        %v4795 = vunpack.c.h.b16 %v4420
        %v4796 = vunpack.c.l.b16 %v4421
        %v4797 = vunpack.c.h.b16 %v4421
        %v4798 = vunpack.c.l.b16 %v4422
        %v4799 = vunpack.c.h.b16 %v4422
        %v4800 = vunpack.c.l.b16 %v4423
        %v4801 = vunpack.c.h.b16 %v4423
        %v4802 = vunpack.c.l.b16 %v4424
        %v4803 = vunpack.c.h.b16 %v4424
        %v4804 = vunpack.c.l.b16 %v4425
        %v4805 = vunpack.c.h.b16 %v4425
        %v4806 = vunpack.c.l.b16 %v4426
        %v4807 = vunpack.c.h.b16 %v4426
        %v4808 = vunpack.c.l.b16 %v4427
        %v4809 = vunpack.c.h.b16 %v4427
        %v4810 = vunpack.c.l.b16 %v4428
        %v4811 = vunpack.c.h.b16 %v4428
        %v4812 = vunpack.c.l.b16 %v4429
        %v4813 = vunpack.c.h.b16 %v4429
        %v4814 = vunpack.c.l.b16 %v4430
        %v4815 = vunpack.c.h.b16 %v4430
        %v4816 = vunpack.c.l.b16 %v4431
        %v4817 = vunpack.c.h.b16 %v4431
        %v4818 = vunpack.c.l.b16 %v4432
        %v4819 = vunpack.c.h.b16 %v4432
        %v4820 = vunpack.c.l.b16 %v4433
        %v4821 = vunpack.c.h.b16 %v4433
        %v4822 = vunpack.c.l.b16 %v4434
        %v4823 = vunpack.c.h.b16 %v4434
        %v4824 = vunpack.c.l.b16 %v4435
        %v4825 = vunpack.c.h.b16 %v4435
        %v4826 = vunpack.c.l.b16 %v4436
        %v4827 = vunpack.c.h.b16 %v4436
        %v4828 = vunpack.c.l.b16 %v4437
        %v4829 = vunpack.c.h.b16 %v4437
        %v4830 = vunpack.c.l.b16 %v4438
        %v4831 = vunpack.c.h.b16 %v4438
        %v4832 = vunpack.c.l.b16 %v4439
        %v4833 = vunpack.c.h.b16 %v4439
        %v4834 = vunpack.c.l.b16 %v4440
        %v4835 = vunpack.c.h.b16 %v4440
        %v4836 = vunpack.c.l.b16 %v4441
        %v4837 = vunpack.c.h.b16 %v4441
        %v4838 = vunpack.c.l.b16 %v4442
        %v4839 = vunpack.c.h.b16 %v4442
        %v4840 = vunpack.c.l.b16 %v4443
        %v4841 = vunpack.c.h.b16 %v4443
        %v4842 = vunpack.c.l.b16 %v4444
        %v4843 = vunpack.c.h.b16 %v4444
        %v4844 = vunpack.c.l.b16 %v4445
        %v4845 = vunpack.c.h.b16 %v4445
        %v4846 = vunpack.c.l.b16 %v4446
        %v4847 = vunpack.c.h.b16 %v4446
        %v4848 = vunpack.c.l.b16 %v4447
        %v4849 = vunpack.c.h.b16 %v4447
        %v4850 = vunpack.c.l.b16 %v4448
        %v4851 = vunpack.c.h.b16 %v4448
        %v4852 = vunpack.c.l.b16 %v4449
        %v4853 = vunpack.c.h.b16 %v4449
        %v4854 = vunpack.c.l.b16 %v4450
        %v4855 = vunpack.c.h.b16 %v4450
        %v4856 = vunpack.c.l.b16 %v4451
        %v4857 = vunpack.c.h.b16 %v4451
        %v4858 = vunpack.c.l.b16 %v4452
        %v4859 = vunpack.c.h.b16 %v4452
        %v4860 = vunpack.c.l.b16 %v4453
        %v4861 = vunpack.c.h.b16 %v4453
        %v4862 = vunpack.c.l.b16 %v4454
        %v4863 = vunpack.c.h.b16 %v4454
        %v4864 = vunpack.c.l.b16 %v4455
        %v4865 = vunpack.c.h.b16 %v4455
        %v4866 = vunpack.c.l.b16 %v4456
        %v4867 = vunpack.c.h.b16 %v4456
        %v4868 = vunpack.c.l.b16 %v4457
        %v4869 = vunpack.c.h.b16 %v4457
        %v4870 = vunpack.c.l.b16 %v4458
        %v4871 = vunpack.c.h.b16 %v4458
        %v4872 = vunpack.c.l.b16 %v4459
        %v4873 = vunpack.c.h.b16 %v4459
        %v4874 = vunpack.c.l.b16 %v4460
        %v4875 = vunpack.c.h.b16 %v4460
        %v4876 = vunpack.c.l.b16 %v4461
        %v4877 = vunpack.c.h.b16 %v4461
        %v4878 = vunpack.c.l.b16 %v4462
        %v4879 = vunpack.c.h.b16 %v4462
        %v4880 = vunpack.c.l.b16 %v4463
        %v4881 = vunpack.c.h.b16 %v4463
        %v4882 = vunpack.c.l.b16 %v4464
        %v4883 = vunpack.c.h.b16 %v4464
        %v4884 = vunpack.c.l.b16 %v4465
        %v4885 = vunpack.c.h.b16 %v4465
        %v4886 = vunpack.c.l.b16 %v4466
        %v4887 = vunpack.c.h.b16 %v4466
        %v4888 = vunpack.c.l.b16 %v4467
        %v4889 = vunpack.c.h.b16 %v4467
        %v4890 = vunpack.c.l.b16 %v4468
        %v4891 = vunpack.c.h.b16 %v4468
        %v4892 = vunpack.c.l.b16 %v4469
        %v4893 = vunpack.c.h.b16 %v4469
        %v4894 = vunpack.c.l.b16 %v4470
        %v4895 = vunpack.c.h.b16 %v4470
        %v4896 = vunpack.c.l.b16 %v4471
        %v4897 = vunpack.c.h.b16 %v4471
        %v4898 = vunpack.c.l.b16 %v4472
        %v4899 = vunpack.c.h.b16 %v4472
        %v4900 = vunpack.c.l.b16 %v4473
        %v4901 = vunpack.c.h.b16 %v4473
        %v4902 = vunpack.c.l.b16 %v4474
        %v4903 = vunpack.c.h.b16 %v4474
        %v4904 = vunpack.c.l.b16 %v4475
        %v4905 = vunpack.c.h.b16 %v4475
        %v4906 = vunpack.c.l.b16 %v4476
        %v4907 = vunpack.c.h.b16 %v4476
        %v4908 = vunpack.c.l.b16 %v4477
        %v4909 = vunpack.c.h.b16 %v4477
        %v4910 = vunpack.c.l.b16 %v4478
        %v4911 = vunpack.c.h.b16 %v4478
        %v4912 = vunpack.c.l.b16 %v4479
        %v4913 = vunpack.c.h.b16 %v4479
        %v4914 = vunpack.c.l.b16 %v4480
        %v4915 = vunpack.c.h.b16 %v4480
        %v4916 = vunpack.c.l.b16 %v4481
        %v4917 = vunpack.c.h.b16 %v4481
        %v4918 = vunpack.c.l.b16 %v4482
        %v4919 = vunpack.c.h.b16 %v4482
        %v4920 = vunpack.c.l.b16 %v4483
        %v4921 = vunpack.c.h.b16 %v4483
        %v4922 = vunpack.c.l.b16 %v4484
        %v4923 = vunpack.c.h.b16 %v4484
        %v4924 = vunpack.c.l.b16 %v4485
        %v4925 = vunpack.c.h.b16 %v4485
        %v4926 = vunpack.c.l.b16 %v4486
        %v4927 = vunpack.c.h.b16 %v4486
        %v4928 = vunpack.c.l.b16 %v4487
        %v4929 = vunpack.c.h.b16 %v4487
        %v4930 = vunpack.c.l.b16 %v4488
        %v4931 = vunpack.c.h.b16 %v4488
        %v4932 = vunpack.c.l.b16 %v4489
        %v4933 = vunpack.c.h.b16 %v4489
        %v4934 = vunpack.c.l.b16 %v4490
        %v4935 = vunpack.c.h.b16 %v4490
        %v4936 = vunpack.c.l.b16 %v4491
        %v4937 = vunpack.c.h.b16 %v4491
        %v4938 = vunpack.c.l.b16 %v4492
        %v4939 = vunpack.c.h.b16 %v4492
        %v4940 = vunpack.c.l.b16 %v4493
        %v4941 = vunpack.c.h.b16 %v4493
        %v4942 = vunpack.c.l.b16 %v4494
        %v4943 = vunpack.c.h.b16 %v4494
        %v4944 = vunpack.c.l.b16 %v4495
        %v4945 = vunpack.c.h.b16 %v4495
        %v4946 = vunpack.c.l.b16 %v4496
        %v4947 = vunpack.c.h.b16 %v4496
        %v4948 = vunpack.c.l.b16 %v4497
        %v4949 = vunpack.c.h.b16 %v4497
        %v4950 = vunpack.c.l.b16 %v4498
        %v4951 = vunpack.c.h.b16 %v4498
        %v4952 = vunpack.c.l.b16 %v4499
        %v4953 = vunpack.c.h.b16 %v4499
        %v4954 = vunpack.c.l.b16 %v4500
        %v4955 = vunpack.c.h.b16 %v4500
        %v4956 = vunpack.c.l.b16 %v4501
        %v4957 = vunpack.c.h.b16 %v4501
        %v4958 = vunpack.c.l.b16 %v4502
        %v4959 = vunpack.c.h.b16 %v4502
        %v4960 = vunpack.c.l.b16 %v4503
        %v4961 = vunpack.c.h.b16 %v4503
        %v4962 = vunpack.c.l.b16 %v4504
        %v4963 = vunpack.c.h.b16 %v4504
        %v4964 = vunpack.c.l.b16 %v4505
        %v4965 = vunpack.c.h.b16 %v4505
        %v4966 = vunpack.c.l.b16 %v4506
        %v4967 = vunpack.c.h.b16 %v4506
        %v4968 = vunpack.c.l.b16 %v4507
        %v4969 = vunpack.c.h.b16 %v4507
        %v4970 = vunpack.c.l.b16 %v4508
        %v4971 = vunpack.c.h.b16 %v4508
        %v4972 = vunpack.c.l.b16 %v4509
        %v4973 = vunpack.c.h.b16 %v4509
        %v4974 = vunpack.c.l.b16 %v4510
        %v4975 = vunpack.c.h.b16 %v4510
        %v4976 = vunpack.c.l.b16 %v4511
        %v4977 = vunpack.c.h.b16 %v4511
        %v4978 = vunpack.c.l.b16 %v4512
        %v4979 = vunpack.c.h.b16 %v4512
        %v4980 = vunpack.c.l.b16 %v4513
        %v4981 = vunpack.c.h.b16 %v4513
        %v4982 = vunpack.c.l.b16 %v4514
        %v4983 = vunpack.c.h.b16 %v4514
        %v4984 = vunpack.c.l.b16 %v4515
        %v4985 = vunpack.c.h.b16 %v4515
        %v4986 = vunpack.c.l.b16 %v4516
        %v4987 = vunpack.c.h.b16 %v4516
        %v4988 = vunpack.c.l.b16 %v4517
        %v4989 = vunpack.c.h.b16 %v4517
        %v4990 = vunpack.c.l.b16 %v4518
        %v4991 = vunpack.c.h.b16 %v4518
        %v4992 = vunpack.c.l.b16 %v4519
        %v4993 = vunpack.c.h.b16 %v4519
        %v4994 = vunpack.c.l.b16 %v4520
        %v4995 = vunpack.c.h.b16 %v4520
        %v4996 = vunpack.c.l.b16 %v4521
        %v4997 = vunpack.c.h.b16 %v4521
        %v4998 = vunpack.c.l.b16 %v4522
        %v4999 = vunpack.c.h.b16 %v4522
        %v5000 = vunpack.c.l.b16 %v4523
        %v5001 = vunpack.c.h.b16 %v4523
        %v5002 = vunpack.c.l.b16 %v4524
        %v5003 = vunpack.c.h.b16 %v4524
        %v5004 = vunpack.c.l.b16 %v4525
        %v5005 = vunpack.c.h.b16 %v4525
        %v5006 = vunpack.c.l.b16 %v4526
        %v5007 = vunpack.c.h.b16 %v4526
        %v5008 = vunpack.c.l.b16 %v4527
        %v5009 = vunpack.c.h.b16 %v4527
        %v5010 = vunpack.c.l.b16 %v4528
        %v5011 = vunpack.c.h.b16 %v4528
        %v5012 = vunpack.c.l.b16 %v4529
        %v5013 = vunpack.c.h.b16 %v4529
        %v5014 = vunpack.c.l.b16 %v4530
        %v5015 = vunpack.c.h.b16 %v4530
        %v5016 = vunpack.c.l.b16 %v4531
        %v5017 = vunpack.c.h.b16 %v4531
        %v5018 = vunpack.c.l.b16 %v4532
        %v5019 = vunpack.c.h.b16 %v4532
        %v5020 = vunpack.c.l.b16 %v4533
        %v5021 = vunpack.c.h.b16 %v4533
        %v5022 = vunpack.c.l.b16 %v4534
        %v5023 = vunpack.c.h.b16 %v4534
        %v5024 = vunpack.c.l.b16 %v4535
        %v5025 = vunpack.c.h.b16 %v4535
        %v5026 = vunpack.c.l.b16 %v4536
        %v5027 = vunpack.c.h.b16 %v4536
        %v5028 = vunpack.c.l.b16 %v4537
        %v5029 = vunpack.c.h.b16 %v4537
        %v5030 = vunpack.c.l.b16 %v4538
        %v5031 = vunpack.c.h.b16 %v4538
        %v5032 = vunpack.c.l.b16 %v4539
        %v5033 = vunpack.c.h.b16 %v4539
        %v5034 = vunpack.c.l.b16 %v4540
        %v5035 = vunpack.c.h.b16 %v4540
        %v5036 = vunpack.c.l.b16 %v4541
        %v5037 = vunpack.c.h.b16 %v4541
        %v5038 = vunpack.c.l.b16 %v4542
        %v5039 = vunpack.c.h.b16 %v4542
        %v5040 = vunpack.c.l.b16 %v4543
        %v5041 = vunpack.c.h.b16 %v4543
        %v5042 = vunpack.c.l.b16 %v4544
        %v5043 = vunpack.c.h.b16 %v4544
        %v5044 = vpack.c.b16 %v4734, %v4724
        %v5045 = vpack.c.b16 %v4735, %v4725
        %v5046 = vpack.c.b16 %v4736, %v4726
        %v5047 = vpack.c.b16 %v4737, %v4727
        %v5048 = vpack.c.b16 %v4738, %v4728
        %v5049 = vpack.c.b16 %v4739, %v4729
        %v5050 = vpack.c.b16 %v4740, %v4730
        %v5051 = vpack.c.b16 %v4741, %v4731
        %v5052 = vpack.c.b16 %v4742, %v4732
        %v5053 = vpack.c.b16 %v4743, %v4733
        %v5054 = vpack.c.b16 %v4754, %v4744
        %v5055 = vpack.c.b16 %v4755, %v4745
        %v5056 = vpack.c.b16 %v4756, %v4746
        %v5057 = vpack.c.b16 %v4757, %v4747
        %v5058 = vpack.c.b16 %v4758, %v4748
        %v5059 = vpack.c.b16 %v4759, %v4749
        %v5060 = vpack.c.b16 %v4760, %v4750
        %v5061 = vpack.c.b16 %v4761, %v4751
        %v5062 = vpack.c.b16 %v4762, %v4752
        %v5063 = vpack.c.b16 %v4763, %v4753
        %v5064 = vpack.c.b16 %v4774, %v4764
        %v5065 = vpack.c.b16 %v4775, %v4765
        %v5066 = vpack.c.b16 %v4776, %v4766
        %v5067 = vpack.c.b16 %v4777, %v4767
        %v5068 = vpack.c.b16 %v4778, %v4768
        %v5069 = vpack.c.b16 %v4779, %v4769
        %v5070 = vpack.c.b16 %v4780, %v4770
        %v5071 = vpack.c.b16 %v4781, %v4771
        %v5072 = vpack.c.b16 %v4782, %v4772
        %v5073 = vpack.c.b16 %v4783, %v4773
        %v5074 = vpack.c.b16 %v4794, %v4784
        %v5075 = vpack.c.b16 %v4795, %v4785
        %v5076 = vpack.c.b16 %v4796, %v4786
        %v5077 = vpack.c.b16 %v4797, %v4787
        %v5078 = vpack.c.b16 %v4798, %v4788
        %v5079 = vpack.c.b16 %v4799, %v4789
        %v5080 = vpack.c.b16 %v4800, %v4790
        %v5081 = vpack.c.b16 %v4801, %v4791
        %v5082 = vpack.c.b16 %v4802, %v4792
        %v5083 = vpack.c.b16 %v4803, %v4793
        %v5084 = vpack.c.b16 %v4814, %v4804
        %v5085 = vpack.c.b16 %v4815, %v4805
        %v5086 = vpack.c.b16 %v4816, %v4806
        %v5087 = vpack.c.b16 %v4817, %v4807
        %v5088 = vpack.c.b16 %v4818, %v4808
        %v5089 = vpack.c.b16 %v4819, %v4809
        %v5090 = vpack.c.b16 %v4820, %v4810
        %v5091 = vpack.c.b16 %v4821, %v4811
        %v5092 = vpack.c.b16 %v4822, %v4812
        %v5093 = vpack.c.b16 %v4823, %v4813
        %v5094 = vpack.c.b16 %v4834, %v4824
        %v5095 = vpack.c.b16 %v4835, %v4825
        %v5096 = vpack.c.b16 %v4836, %v4826
        %v5097 = vpack.c.b16 %v4837, %v4827
        %v5098 = vpack.c.b16 %v4838, %v4828
        %v5099 = vpack.c.b16 %v4839, %v4829
        %v5100 = vpack.c.b16 %v4840, %v4830
        %v5101 = vpack.c.b16 %v4841, %v4831
        %v5102 = vpack.c.b16 %v4842, %v4832
        %v5103 = vpack.c.b16 %v4843, %v4833
        %v5104 = vpack.c.b16 %v4854, %v4844
        %v5105 = vpack.c.b16 %v4855, %v4845
        %v5106 = vpack.c.b16 %v4856, %v4846
        %v5107 = vpack.c.b16 %v4857, %v4847
        %v5108 = vpack.c.b16 %v4858, %v4848
        %v5109 = vpack.c.b16 %v4859, %v4849
        %v5110 = vpack.c.b16 %v4860, %v4850
        %v5111 = vpack.c.b16 %v4861, %v4851
        %v5112 = vpack.c.b16 %v4862, %v4852
        %v5113 = vpack.c.b16 %v4863, %v4853
        %v5114 = vpack.c.b16 %v4874, %v4864
        %v5115 = vpack.c.b16 %v4875, %v4865
        %v5116 = vpack.c.b16 %v4876, %v4866
        %v5117 = vpack.c.b16 %v4877, %v4867
        %v5118 = vpack.c.b16 %v4878, %v4868
        %v5119 = vpack.c.b16 %v4879, %v4869
        %v5120 = vpack.c.b16 %v4880, %v4870
        %v5121 = vpack.c.b16 %v4881, %v4871
        %v5122 = vpack.c.b16 %v4882, %v4872
        %v5123 = vpack.c.b16 %v4883, %v4873
        %v5124 = vpack.c.b16 %v4894, %v4884
        %v5125 = vpack.c.b16 %v4895, %v4885
        %v5126 = vpack.c.b16 %v4896, %v4886
        %v5127 = vpack.c.b16 %v4897, %v4887
        %v5128 = vpack.c.b16 %v4898, %v4888
        %v5129 = vpack.c.b16 %v4899, %v4889
        %v5130 = vpack.c.b16 %v4900, %v4890
        %v5131 = vpack.c.b16 %v4901, %v4891
        %v5132 = vpack.c.b16 %v4902, %v4892
        %v5133 = vpack.c.b16 %v4903, %v4893
        %v5134 = vpack.c.b16 %v4914, %v4904
        %v5135 = vpack.c.b16 %v4915, %v4905
        %v5136 = vpack.c.b16 %v4916, %v4906
        %v5137 = vpack.c.b16 %v4917, %v4907
        %v5138 = vpack.c.b16 %v4918, %v4908
        %v5139 = vpack.c.b16 %v4919, %v4909
        %v5140 = vpack.c.b16 %v4920, %v4910
        %v5141 = vpack.c.b16 %v4921, %v4911
        %v5142 = vpack.c.b16 %v4922, %v4912
        %v5143 = vpack.c.b16 %v4923, %v4913
        %v5144 = vpack.c.b16 %v4934, %v4924
        %v5145 = vpack.c.b16 %v4935, %v4925
        %v5146 = vpack.c.b16 %v4936, %v4926
        %v5147 = vpack.c.b16 %v4937, %v4927
        %v5148 = vpack.c.b16 %v4938, %v4928
        %v5149 = vpack.c.b16 %v4939, %v4929
        %v5150 = vpack.c.b16 %v4940, %v4930
        %v5151 = vpack.c.b16 %v4941, %v4931
        %v5152 = vpack.c.b16 %v4942, %v4932
        %v5153 = vpack.c.b16 %v4943, %v4933
        %v5154 = vpack.c.b16 %v4954, %v4944
        %v5155 = vpack.c.b16 %v4955, %v4945
        %v5156 = vpack.c.b16 %v4956, %v4946
        %v5157 = vpack.c.b16 %v4957, %v4947
        %v5158 = vpack.c.b16 %v4958, %v4948
        %v5159 = vpack.c.b16 %v4959, %v4949
        %v5160 = vpack.c.b16 %v4960, %v4950
        %v5161 = vpack.c.b16 %v4961, %v4951
        %v5162 = vpack.c.b16 %v4962, %v4952
        %v5163 = vpack.c.b16 %v4963, %v4953
        %v5164 = vpack.c.b16 %v4974, %v4964
        %v5165 = vpack.c.b16 %v4975, %v4965
        %v5166 = vpack.c.b16 %v4976, %v4966
        %v5167 = vpack.c.b16 %v4977, %v4967
        %v5168 = vpack.c.b16 %v4978, %v4968
        %v5169 = vpack.c.b16 %v4979, %v4969
        %v5170 = vpack.c.b16 %v4980, %v4970
        %v5171 = vpack.c.b16 %v4981, %v4971
        %v5172 = vpack.c.b16 %v4982, %v4972
        %v5173 = vpack.c.b16 %v4983, %v4973
        %v5174 = vpack.c.b16 %v4994, %v4984
        %v5175 = vpack.c.b16 %v4995, %v4985
        %v5176 = vpack.c.b16 %v4996, %v4986
        %v5177 = vpack.c.b16 %v4997, %v4987
        %v5178 = vpack.c.b16 %v4998, %v4988
        %v5179 = vpack.c.b16 %v4999, %v4989
        %v5180 = vpack.c.b16 %v5000, %v4990
        %v5181 = vpack.c.b16 %v5001, %v4991
        %v5182 = vpack.c.b16 %v5002, %v4992
        %v5183 = vpack.c.b16 %v5003, %v4993
        %v5184 = vpack.c.b16 %v5014, %v5004
        %v5185 = vpack.c.b16 %v5015, %v5005
        %v5186 = vpack.c.b16 %v5016, %v5006
        %v5187 = vpack.c.b16 %v5017, %v5007
        %v5188 = vpack.c.b16 %v5018, %v5008
        %v5189 = vpack.c.b16 %v5019, %v5009
        %v5190 = vpack.c.b16 %v5020, %v5010
        %v5191 = vpack.c.b16 %v5021, %v5011
        %v5192 = vpack.c.b16 %v5022, %v5012
        %v5193 = vpack.c.b16 %v5023, %v5013
        %v5194 = vpack.c.b16 %v5034, %v5024
        %v5195 = vpack.c.b16 %v5035, %v5025
        %v5196 = vpack.c.b16 %v5036, %v5026
        %v5197 = vpack.c.b16 %v5037, %v5027
        %v5198 = vpack.c.b16 %v5038, %v5028
        %v5199 = vpack.c.b16 %v5039, %v5029
        %v5200 = vpack.c.b16 %v5040, %v5030
        %v5201 = vpack.c.b16 %v5041, %v5031
        %v5202 = vpack.c.b16 %v5042, %v5032
        %v5203 = vpack.c.b16 %v5043, %v5033
        %5364 = vmatprep.subr.bf16.mxu0 %v5115
        %5365 = vmatpush1.bf16.msra.mxu0 %v5114
        %5366 = vmatprep.subr.bf16.mxu0 %v5105
        %5367 = vmatpush1.bf16.msra.mxu0 %v5104
        %5368 = vmatprep.subr.bf16.mxu0 %v5095
        %5369 = vmatpush1.bf16.msra.mxu0 %v5094
        %5370 = vmatprep.subr.bf16.mxu0 %v5085
        %5371 = vmatpush1.bf16.msra.mxu0 %v5084
        %5372 = vmatprep.subr.bf16.mxu0 %v5075
        %5373 = vmatpush1.bf16.msra.mxu0 %v5074
        %5374 = vmatprep.subr.bf16.mxu0 %v5065
        %5375 = vmatpush1.bf16.msra.mxu0 %v5064
        %5376 = vmatprep.subr.bf16.mxu0 %v5055
        %5377 = vmatpush1.bf16.msra.mxu0 %v5054
        %5378 = vmatprep.subr.bf16.mxu0 %v5045
        %5379 = vmatpush1.bf16.msra.mxu0 %v5044
        %5380 = vmatprep.subr.bf16.mxu0 %v5195
        %5381 = vmatpush2.bf16.msra.mxu0 %v5194
        %5382 = vmatprep.subr.bf16.mxu0 %v5185
        %5383 = vmatpush2.bf16.msra.mxu0 %v5184
        %5384 = vmatprep.subr.bf16.mxu0 %v5175
        %5385 = vmatpush2.bf16.msra.mxu0 %v5174
        %5386 = vmatprep.subr.bf16.mxu0 %v5165
        %5387 = vmatpush2.bf16.msra.mxu0 %v5164
        %5388 = vmatprep.subr.bf16.mxu0 %v5155
        %5389 = vmatpush2.bf16.msra.mxu0 %v5154
        %5390 = vmatprep.subr.bf16.mxu0 %v5145
        %5391 = vmatpush2.bf16.msra.mxu0 %v5144
        %5392 = vmatprep.subr.bf16.mxu0 %v5135
        %5393 = vmatpush2.bf16.msra.mxu0 %v5134
        %5394 = vmatprep.subr.bf16.mxu0 %v5125
        %5395 = vmatpush2.bf16.msra.mxu0 %v5124
        %5396 = vmatprep.mubr.bf16.mxu0 %v4559
        %5397 = vmatmul.mubr.bf16.gmra.mxu0 %v4552
        %v5398 = vpop.f32.mrf.mxu0
        %v5399 = vadd.f32 0.0, %v5398
        %v5400 = vpop.f32.mrf.mxu0
        %v5401 = vadd.f32 0.0, %v5400
        %v5402 = vpop.f32.mrf.mxu0
        %v5403 = vadd.f32 0.0, %v5402
        %v5404 = vpop.f32.mrf.mxu0
        %v5405 = vadd.f32 0.0, %v5404
        %5406 = vmatprep.mubr.bf16.mxu0 %v4556
        %5407 = vmatmul.mubr.bf16.gmra.mxu0 %v4549
        %v5408 = vpop.f32.mrf.mxu0
        %v5409 = vadd.f32 0.0, %v5408
        %v5410 = vpop.f32.mrf.mxu0
        %v5411 = vadd.f32 0.0, %v5410
        %v5412 = vpop.f32.mrf.mxu0
        %v5413 = vpop.f32.mrf.mxu0
        %5414 = vdwg.mxu0
        %5415 = vmatprep.subr.bf16.mxu0 %v5117
        %5416 = vmatpush1.bf16.msra.mxu0 %v5116
        %5417 = vmatprep.subr.bf16.mxu0 %v5107
        %5418 = vmatpush1.bf16.msra.mxu0 %v5106
        %5419 = vmatprep.subr.bf16.mxu0 %v5097
        %5420 = vmatpush1.bf16.msra.mxu0 %v5096
        %5421 = vmatprep.subr.bf16.mxu0 %v5087
        %5422 = vmatpush1.bf16.msra.mxu0 %v5086
        %5423 = vmatprep.subr.bf16.mxu0 %v5077
        %5424 = vmatpush1.bf16.msra.mxu0 %v5076
        %5425 = vmatprep.subr.bf16.mxu0 %v5067
        %5426 = vmatpush1.bf16.msra.mxu0 %v5066
        %5427 = vmatprep.subr.bf16.mxu0 %v5057
        %5428 = vmatpush1.bf16.msra.mxu0 %v5056
        %5429 = vmatprep.subr.bf16.mxu0 %v5047
        %5430 = vmatpush1.bf16.msra.mxu0 %v5046
        %5431 = vmatprep.subr.bf16.mxu0 %v5197
        %5432 = vmatpush2.bf16.msra.mxu0 %v5196
        %5433 = vmatprep.subr.bf16.mxu0 %v5187
        %5434 = vmatpush2.bf16.msra.mxu0 %v5186
        %5435 = vmatprep.subr.bf16.mxu0 %v5177
        %5436 = vmatpush2.bf16.msra.mxu0 %v5176
        %5437 = vmatprep.subr.bf16.mxu0 %v5167
        %5438 = vmatpush2.bf16.msra.mxu0 %v5166
        %5439 = vmatprep.subr.bf16.mxu0 %v5157
        %5440 = vmatpush2.bf16.msra.mxu0 %v5156
        %5441 = vmatprep.subr.bf16.mxu0 %v5147
        %5442 = vmatpush2.bf16.msra.mxu0 %v5146
        %5443 = vmatprep.subr.bf16.mxu0 %v5137
        %5444 = vmatpush2.bf16.msra.mxu0 %v5136
        %5445 = vmatprep.subr.bf16.mxu0 %v5127
        %5446 = vmatpush2.bf16.msra.mxu0 %v5126
        %5447 = vmatprep.mubr.bf16.mxu0 %v4559
        %5448 = vmatmul.mubr.bf16.gmra.mxu0 %v4552
        %v5449 = vpop.f32.mrf.mxu0
        %v5450 = vadd.f32 0.0, %v5449
        %v5451 = vpop.f32.mrf.mxu0
        %v5452 = vadd.f32 0.0, %v5451
        %v5453 = vpop.f32.mrf.mxu0
        %v5454 = vadd.f32 0.0, %v5453
        %v5455 = vpop.f32.mrf.mxu0
        %v5456 = vadd.f32 0.0, %v5455
        %5457 = vmatprep.mubr.bf16.mxu0 %v4556
        %5458 = vmatmul.mubr.bf16.gmra.mxu0 %v4549
        %v5459 = vpop.f32.mrf.mxu0
        %v5460 = vadd.f32 0.0, %v5459
        %v5461 = vpop.f32.mrf.mxu0
        %v5462 = vadd.f32 0.0, %v5461
        %v5463 = vpop.f32.mrf.mxu0
        %v5464 = vpop.f32.mrf.mxu0
        %5465 = vdwg.mxu0
        %5466 = vmatprep.subr.bf16.mxu0 %v5119
        %5467 = vmatpush1.bf16.msra.mxu0 %v5118
        %5468 = vmatprep.subr.bf16.mxu0 %v5109
        %5469 = vmatpush1.bf16.msra.mxu0 %v5108
        %5470 = vmatprep.subr.bf16.mxu0 %v5099
        %5471 = vmatpush1.bf16.msra.mxu0 %v5098
        %5472 = vmatprep.subr.bf16.mxu0 %v5089
        %5473 = vmatpush1.bf16.msra.mxu0 %v5088
        %5474 = vmatprep.subr.bf16.mxu0 %v5079
        %5475 = vmatpush1.bf16.msra.mxu0 %v5078
        %5476 = vmatprep.subr.bf16.mxu0 %v5069
        %5477 = vmatpush1.bf16.msra.mxu0 %v5068
        %5478 = vmatprep.subr.bf16.mxu0 %v5059
        %5479 = vmatpush1.bf16.msra.mxu0 %v5058
        %5480 = vmatprep.subr.bf16.mxu0 %v5049
        %5481 = vmatpush1.bf16.msra.mxu0 %v5048
        %5482 = vmatprep.subr.bf16.mxu0 %v5199
        %5483 = vmatpush2.bf16.msra.mxu0 %v5198
        %5484 = vmatprep.subr.bf16.mxu0 %v5189
        %5485 = vmatpush2.bf16.msra.mxu0 %v5188
        %5486 = vmatprep.subr.bf16.mxu0 %v5179
        %5487 = vmatpush2.bf16.msra.mxu0 %v5178
        %5488 = vmatprep.subr.bf16.mxu0 %v5169
        %5489 = vmatpush2.bf16.msra.mxu0 %v5168
        %5490 = vmatprep.subr.bf16.mxu0 %v5159
        %5491 = vmatpush2.bf16.msra.mxu0 %v5158
        %5492 = vmatprep.subr.bf16.mxu0 %v5149
        %5493 = vmatpush2.bf16.msra.mxu0 %v5148
        %5494 = vmatprep.subr.bf16.mxu0 %v5139
        %5495 = vmatpush2.bf16.msra.mxu0 %v5138
        %5496 = vmatprep.subr.bf16.mxu0 %v5129
        %5497 = vmatpush2.bf16.msra.mxu0 %v5128
        %5498 = vmatprep.mubr.bf16.mxu0 %v4559
        %5499 = vmatmul.mubr.bf16.gmra.mxu0 %v4552
        %v5500 = vpop.f32.mrf.mxu0
        %v5501 = vadd.f32 0.0, %v5500
        %v5502 = vpop.f32.mrf.mxu0
        %v5503 = vadd.f32 0.0, %v5502
        %v5504 = vpop.f32.mrf.mxu0
        %v5505 = vadd.f32 0.0, %v5504
        %v5506 = vpop.f32.mrf.mxu0
        %v5507 = vadd.f32 0.0, %v5506
        %5508 = vmatprep.mubr.bf16.mxu0 %v4556
        %5509 = vmatmul.mubr.bf16.gmra.mxu0 %v4549
        %v5510 = vpop.f32.mrf.mxu0
        %v5511 = vadd.f32 0.0, %v5510
        %v5512 = vpop.f32.mrf.mxu0
        %v5513 = vadd.f32 0.0, %v5512
        %v5514 = vpop.f32.mrf.mxu0
        %v5515 = vpop.f32.mrf.mxu0
        %5516 = vdwg.mxu0
        %5517 = vmatprep.subr.bf16.mxu0 %v5121
        %5518 = vmatpush1.bf16.msra.mxu0 %v5120
        %5519 = vmatprep.subr.bf16.mxu0 %v5111
        %5520 = vmatpush1.bf16.msra.mxu0 %v5110
        %5521 = vmatprep.subr.bf16.mxu0 %v5101
        %5522 = vmatpush1.bf16.msra.mxu0 %v5100
        %5523 = vmatprep.subr.bf16.mxu0 %v5091
        %5524 = vmatpush1.bf16.msra.mxu0 %v5090
        %5525 = vmatprep.subr.bf16.mxu0 %v5081
        %5526 = vmatpush1.bf16.msra.mxu0 %v5080
        %5527 = vmatprep.subr.bf16.mxu0 %v5071
        %5528 = vmatpush1.bf16.msra.mxu0 %v5070
        %5529 = vmatprep.subr.bf16.mxu0 %v5061
        %5530 = vmatpush1.bf16.msra.mxu0 %v5060
        %5531 = vmatprep.subr.bf16.mxu0 %v5051
        %5532 = vmatpush1.bf16.msra.mxu0 %v5050
        %5533 = vmatprep.subr.bf16.mxu0 %v5201
        %5534 = vmatpush2.bf16.msra.mxu0 %v5200
        %5535 = vmatprep.subr.bf16.mxu0 %v5191
        %5536 = vmatpush2.bf16.msra.mxu0 %v5190
        %5537 = vmatprep.subr.bf16.mxu0 %v5181
        %5538 = vmatpush2.bf16.msra.mxu0 %v5180
        %5539 = vmatprep.subr.bf16.mxu0 %v5171
        %5540 = vmatpush2.bf16.msra.mxu0 %v5170
        %5541 = vmatprep.subr.bf16.mxu0 %v5161
        %5542 = vmatpush2.bf16.msra.mxu0 %v5160
        %5543 = vmatprep.subr.bf16.mxu0 %v5151
        %5544 = vmatpush2.bf16.msra.mxu0 %v5150
        %5545 = vmatprep.subr.bf16.mxu0 %v5141
        %5546 = vmatpush2.bf16.msra.mxu0 %v5140
        %5547 = vmatprep.subr.bf16.mxu0 %v5131
        %5548 = vmatpush2.bf16.msra.mxu0 %v5130
        %5549 = vmatprep.mubr.bf16.mxu0 %v4559
        %5550 = vmatmul.mubr.bf16.gmra.mxu0 %v4552
        %v5551 = vpop.f32.mrf.mxu0
        %v5552 = vadd.f32 0.0, %v5551
        %v5553 = vpop.f32.mrf.mxu0
        %v5554 = vadd.f32 0.0, %v5553
        %v5555 = vpop.f32.mrf.mxu0
        %v5556 = vadd.f32 0.0, %v5555
        %v5557 = vpop.f32.mrf.mxu0
        %v5558 = vadd.f32 0.0, %v5557
        %5559 = vmatprep.mubr.bf16.mxu0 %v4556
        %5560 = vmatmul.mubr.bf16.gmra.mxu0 %v4549
        %v5561 = vpop.f32.mrf.mxu0
        %v5562 = vadd.f32 0.0, %v5561
        %v5563 = vpop.f32.mrf.mxu0
        %v5564 = vadd.f32 0.0, %v5563
        %v5565 = vpop.f32.mrf.mxu0
        %v5566 = vpop.f32.mrf.mxu0
        %5567 = vdwg.mxu0
        %5568 = vmatprep.subr.bf16.mxu0 %v5123
        %5569 = vmatpush1.bf16.msra.mxu0 %v5122
        %5570 = vmatprep.subr.bf16.mxu0 %v5113
        %5571 = vmatpush1.bf16.msra.mxu0 %v5112
        %5572 = vmatprep.subr.bf16.mxu0 %v5103
        %5573 = vmatpush1.bf16.msra.mxu0 %v5102
        %5574 = vmatprep.subr.bf16.mxu0 %v5093
        %5575 = vmatpush1.bf16.msra.mxu0 %v5092
        %5576 = vmatprep.subr.bf16.mxu0 %v5083
        %5577 = vmatpush1.bf16.msra.mxu0 %v5082
        %5578 = vmatprep.subr.bf16.mxu0 %v5073
        %5579 = vmatpush1.bf16.msra.mxu0 %v5072
        %5580 = vmatprep.subr.bf16.mxu0 %v5063
        %5581 = vmatpush1.bf16.msra.mxu0 %v5062
        %5582 = vmatprep.subr.bf16.mxu0 %v5053
        %5583 = vmatpush1.bf16.msra.mxu0 %v5052
        %5584 = vmatprep.subr.bf16.mxu0 %v5203
        %5585 = vmatpush2.bf16.msra.mxu0 %v5202
        %5586 = vmatprep.subr.bf16.mxu0 %v5193
        %5587 = vmatpush2.bf16.msra.mxu0 %v5192
        %5588 = vmatprep.subr.bf16.mxu0 %v5183
        %5589 = vmatpush2.bf16.msra.mxu0 %v5182
        %5590 = vmatprep.subr.bf16.mxu0 %v5173
        %5591 = vmatpush2.bf16.msra.mxu0 %v5172
        %5592 = vmatprep.subr.bf16.mxu0 %v5163
        %5593 = vmatpush2.bf16.msra.mxu0 %v5162
        %5594 = vmatprep.subr.bf16.mxu0 %v5153
        %5595 = vmatpush2.bf16.msra.mxu0 %v5152
        %5596 = vmatprep.subr.bf16.mxu0 %v5143
        %5597 = vmatpush2.bf16.msra.mxu0 %v5142
        %5598 = vmatprep.subr.bf16.mxu0 %v5133
        %5599 = vmatpush2.bf16.msra.mxu0 %v5132
        %5600 = vmatprep.mubr.bf16.mxu0 %v4559
        %5601 = vmatmul.mubr.bf16.gmra.mxu0 %v4552
        %v5602 = vpop.f32.mrf.mxu0
        %v5603 = vadd.f32 0.0, %v5602
        %v5604 = vpop.f32.mrf.mxu0
        %v5605 = vadd.f32 0.0, %v5604
        %v5606 = vpop.f32.mrf.mxu0
        %v5607 = vadd.f32 0.0, %v5606
        %v5608 = vpop.f32.mrf.mxu0
        %v5609 = vadd.f32 0.0, %v5608
        %5610 = vmatprep.mubr.bf16.mxu0 %v4556
        %5611 = vmatmul.mubr.bf16.gmra.mxu0 %v4549
        %v5612 = vpop.f32.mrf.mxu0
        %v5613 = vadd.f32 0.0, %v5612
        %v5614 = vpop.f32.mrf.mxu0
        %v5615 = vadd.f32 0.0, %v5614
        %v5616 = vpop.f32.mrf.mxu0
        %v5617 = vpop.f32.mrf.mxu0
        %5618 = vdwg.mxu0
        %v5619 = vadd.f32 %v4354, %v5399
        %v5620 = vadd.f32 %v4355, %v5401
        %v5621 = vadd.f32 %v4356, %v5450
        %v5622 = vadd.f32 %v4357, %v5452
        %v5623 = vadd.f32 %v4358, %v5501
        %v5624 = vadd.f32 %v4359, %v5503
        %v5625 = vadd.f32 %v4360, %v5552
        %v5626 = vadd.f32 %v4361, %v5554
        %v5627 = vadd.f32 %v4362, %v5603
        %v5628 = vadd.f32 %v4363, %v5605
        %v5629 = vadd.f32 %v4364, %v5403
        %v5630 = vadd.f32 %v4365, %v5405
        %v5631 = vadd.f32 %v4366, %v5454
        %v5632 = vadd.f32 %v4367, %v5456
        %v5633 = vadd.f32 %v4368, %v5505
        %v5634 = vadd.f32 %v4369, %v5507
        %v5635 = vadd.f32 %v4370, %v5556
        %v5636 = vadd.f32 %v4371, %v5558
        %v5637 = vadd.f32 %v4372, %v5607
        %v5638 = vadd.f32 %v4373, %v5609
        %v5639 = vadd.f32 %v4374, %v5409
        %v5640 = vadd.f32 %v4375, %v5411
        %v5641 = vadd.f32 %v4376, %v5460
        %v5642 = vadd.f32 %v4377, %v5462
        %v5643 = vadd.f32 %v4378, %v5511
        %v5644 = vadd.f32 %v4379, %v5513
        %v5645 = vadd.f32 %v4380, %v5562
        %v5646 = vadd.f32 %v4381, %v5564
        %v5647 = vadd.f32 %v4382, %v5613
        %v5648 = vadd.f32 %v4383, %v5615
        %v5649 = vmul.f32 %v5619, %v5619
        %v5650 = vmul.f32 %v5620, %v5620
        %v5651 = vmul.f32 %v5621, %v5621
        %v5652 = vmul.f32 %v5622, %v5622
        %v5653 = vmul.f32 %v5623, %v5623
        %v5654 = vmul.f32 %v5629, %v5629
        %v5655 = vmul.f32 %v5630, %v5630
        %v5656 = vmul.f32 %v5631, %v5631
        %v5657 = vmul.f32 %v5632, %v5632
        %v5658 = vmul.f32 %v5633, %v5633
        %v5659 = vmul.f32 %v5639, %v5639
        %v5660 = vmul.f32 %v5640, %v5640
        %v5661 = vmul.f32 %v5641, %v5641
        %v5662 = vmul.f32 %v5642, %v5642
        %v5663 = vmul.f32 %v5643, %v5643
        %v5664 = vmul.f32 %v5624, %v5624
        %v5665 = vmul.f32 %v5625, %v5625
        %v5666 = vmul.f32 %v5626, %v5626
        %v5667 = vmul.f32 %v5627, %v5627
        %v5668 = vmul.f32 %v5628, %v5628
        %v5669 = vmul.f32 %v5634, %v5634
        %v5670 = vmul.f32 %v5635, %v5635
        %v5671 = vmul.f32 %v5636, %v5636
        %v5672 = vmul.f32 %v5637, %v5637
        %v5673 = vmul.f32 %v5638, %v5638
        %v5674 = vmul.f32 %v5644, %v5644
        %v5675 = vmul.f32 %v5645, %v5645
        %v5676 = vmul.f32 %v5646, %v5646
        %v5677 = vmul.f32 %v5647, %v5647
        %v5678 = vmul.f32 %v5648, %v5648
        %v5679 = vadd.f32 %v5649, %v5664
        %v5680 = vadd.f32 %v5650, %v5665
        %v5681 = vadd.f32 %v5651, %v5666
        %v5682 = vadd.f32 %v5652, %v5667
        %v5683 = vadd.f32 %v5653, %v5668
        %v5684 = vadd.f32 %v5654, %v5669
        %v5685 = vadd.f32 %v5655, %v5670
        %v5686 = vadd.f32 %v5656, %v5671
        %v5687 = vadd.f32 %v5657, %v5672
        %v5688 = vadd.f32 %v5658, %v5673
        %v5689 = vadd.f32 %v5659, %v5674
        %v5690 = vadd.f32 %v5660, %v5675
        %v5691 = vadd.f32 %v5661, %v5676
        %v5692 = vadd.f32 %v5662, %v5677
        %v5693 = vadd.f32 %v5663, %v5678
        %vm5709 = vcmask 1040384
        %v5710 = vrot.slane %v5679, 7
        %v5711 = vrot.slane %v5680, 7
        %v5712 = vrot.slane %v5681, 7
        %v5713 = vrot.slane %v5682, 7
        %v5714 = vrot.slane %v5683, 7
        %v5715 = vrot.slane %v5684, 7
        %v5716 = vsel %vm5709, %v5710, %v5715
        %v5717 = vrot.slane %v5685, 7
        %v5718 = vsel %vm5709, %v5711, %v5717
        %v5719 = vrot.slane %v5686, 7
        %v5720 = vsel %vm5709, %v5712, %v5719
        %v5721 = vrot.slane %v5687, 7
        %v5722 = vsel %vm5709, %v5713, %v5721
        %v5723 = vrot.slane %v5688, 7
        %v5724 = vsel %vm5709, %v5714, %v5723
        %v5725 = vrot.slane %v5689, 7
        %v5726 = vsel %vm5709, %v5715, %v5725
        %v5727 = vrot.slane %v5690, 7
        %v5728 = vsel %vm5709, %v5717, %v5727
        %v5729 = vrot.slane %v5691, 7
        %v5730 = vsel %vm5709, %v5719, %v5729
        %v5731 = vrot.slane %v5692, 7
        %v5732 = vsel %vm5709, %v5721, %v5731
        %v5733 = vrot.slane %v5693, 7
        %v5734 = vsel %vm5709, %v5723, %v5733
        %v5750 = vsel %vm5709, 0.0, %v5710
        %v5751 = vsel %vm5709, 0.0, %v5711
        %v5752 = vsel %vm5709, 0.0, %v5712
        %v5753 = vsel %vm5709, 0.0, %v5713
        %v5754 = vsel %vm5709, 0.0, %v5714
        %vm5755 = vcmask 1041408
        %v5756 = vsel %vm5755, %v5726, 0.0
        %v5757 = vsel %vm5755, %v5728, 0.0
        %v5758 = vsel %vm5755, %v5730, 0.0
        %v5759 = vsel %vm5755, %v5732, 0.0
        %v5760 = vsel %vm5755, %v5734, 0.0
        %v5761 = vpack.c.bf16 %v5716, %v5750
        %v5762 = vpack.c.bf16 %v5718, %v5751
        %v5763 = vpack.c.bf16 %v5720, %v5752
        %v5764 = vpack.c.bf16 %v5722, %v5753
        %v5765 = vpack.c.bf16 %v5724, %v5754
        %v5766 = vpack.c.bf16 %v5756, %v5756
        %v5767 = vpack.c.bf16 %v5757, %v5757
        %v5768 = vpack.c.bf16 %v5758, %v5758
        %v5769 = vpack.c.bf16 %v5759, %v5759
        %v5770 = vpack.c.bf16 %v5760, %v5760
        %v5771 = vld [vmem:[%s2] sm:$0xf]
        %v5772 = vld [vmem:[%s2 + $0x4] sm:$0xf]
        %v5773 = vld [vmem:[%s2 + $0x8] sm:$0xf]
        %v5774 = vld [vmem:[%s2 + $0xc] sm:$0xf]
        %v5775 = vld [vmem:[%s2 + $0x10] sm:$0xf]
        %v5776 = vld [vmem:[%s2 + $0x14] sm:$0xf]
        %v5777 = vld [vmem:[%s2 + $0x18] sm:$0xf]
        %v5778 = vld [vmem:[%s2 + $0x1c] sm:$0xf]
        %v5779 = vld [vmem:[%s2 + $0x20] sm:$0xf]
        %v5780 = vld [vmem:[%s2 + $0x24] sm:$0xf]
        %v5781 = vld [vmem:[%s2 + $0x28] sm:$0xf]
        %v5782 = vld [vmem:[%s2 + $0x2c] sm:$0xf]
        %v5783 = vld [vmem:[%s2 + $0x30] sm:$0xf]
        %v5784 = vld [vmem:[%s2 + $0x34] sm:$0xf]
        %v5785 = vld [vmem:[%s2 + $0x38] sm:$0xf]
        %v5786 = vld [vmem:[%s2 + $0x3c] sm:$0xf]
        %v5787 = vld [vmem:[%s2 + $0x40] sm:$0xf]
        %v5788 = vld [vmem:[%s2 + $0x44] sm:$0xf]
        %v5789 = vld [vmem:[%s2 + $0x48] sm:$0xf]
        %v5790 = vld [vmem:[%s2 + $0x4c] sm:$0xf]
        %v5791 = vld [vmem:[%s2 + $0x50] sm:$0xf]
        %v5792 = vld [vmem:[%s2 + $0x54] sm:$0xf]
        %v5793 = vld [vmem:[%s2 + $0x58] sm:$0xf]
        %v5794 = vld [vmem:[%s2 + $0x5c] sm:$0xf]
        %v5795 = vld [vmem:[%s2 + $0x60] sm:$0xf]
        %v5796 = vld [vmem:[%s2 + $0x64] sm:$0xf]
        %v5797 = vld [vmem:[%s2 + $0x68] sm:$0xf]
        %v5798 = vld [vmem:[%s2 + $0x6c] sm:$0xf]
        %v5799 = vld [vmem:[%s2 + $0x70] sm:$0xf]
        %v5800 = vld [vmem:[%s2 + $0x74] sm:$0xf]
        %v5801 = vld [vmem:[%s2 + $0x78] sm:$0xf]
        %v5802 = vld [vmem:[%s2 + $0x7c] sm:$0xf]
        %v5803 = vld [vmem:[%s2 + $0x80] sm:$0xf]
        %v5804 = vld [vmem:[%s2 + $0x84] sm:$0xf]
        %v5805 = vld [vmem:[%s2 + $0x88] sm:$0xf]
        %v5806 = vld [vmem:[%s2 + $0x8c] sm:$0xf]
        %v5807 = vld [vmem:[%s2 + $0x90] sm:$0xf]
        %v5808 = vld [vmem:[%s2 + $0x94] sm:$0xf]
        %v5809 = vld [vmem:[%s2 + $0x98] sm:$0xf]
        %v5810 = vld [vmem:[%s2 + $0x9c] sm:$0xf]
        %v5811 = vld [vmem:[%s2 + $0xa0] sm:$0xf]
        %v5812 = vld [vmem:[%s2 + $0xa4] sm:$0xf]
        %v5813 = vld [vmem:[%s2 + $0xa8] sm:$0xf]
        %v5814 = vld [vmem:[%s2 + $0xac] sm:$0xf]
        %v5815 = vld [vmem:[%s2 + $0xb0] sm:$0xf]
        %v5816 = vld [vmem:[%s2 + $0xb4] sm:$0xf]
        %v5817 = vld [vmem:[%s2 + $0xb8] sm:$0xf]
        %v5818 = vld [vmem:[%s2 + $0xbc] sm:$0xf]
        %v5819 = vld [vmem:[%s2 + $0xc0] sm:$0xf]
        %v5820 = vld [vmem:[%s2 + $0xc4] sm:$0xf]
        %v5821 = vld [vmem:[%s2 + $0xc8] sm:$0xf]
        %v5822 = vld [vmem:[%s2 + $0xcc] sm:$0xf]
        %v5823 = vld [vmem:[%s2 + $0xd0] sm:$0xf]
        %v5824 = vld [vmem:[%s2 + $0xd4] sm:$0xf]
        %v5825 = vld [vmem:[%s2 + $0xd8] sm:$0xf]
        %v5826 = vld [vmem:[%s2 + $0xdc] sm:$0xf]
        %v5827 = vld [vmem:[%s2 + $0xe0] sm:$0xf]
        %v5828 = vld [vmem:[%s2 + $0xe4] sm:$0xf]
        %v5829 = vld [vmem:[%s2 + $0xe8] sm:$0xf]
        %v5830 = vld [vmem:[%s2 + $0xec] sm:$0xf]
        %v5831 = vld [vmem:[%s2 + $0xf0] sm:$0xf]
        %v5832 = vld [vmem:[%s2 + $0xf4] sm:$0xf]
        %v5833 = vld [vmem:[%s2 + $0xf8] sm:$0xf]
        %v5834 = vld [vmem:[%s2 + $0xfc] sm:$0xf]
        %v5835 = vld [vmem:[%s2 + $0x100] sm:$0xf]
        %v5836 = vld [vmem:[%s2 + $0x104] sm:$0xf]
        %v5837 = vld [vmem:[%s2 + $0x108] sm:$0xf]
        %v5838 = vld [vmem:[%s2 + $0x10c] sm:$0xf]
        %v5839 = vld [vmem:[%s2 + $0x110] sm:$0xf]
        %v5840 = vld [vmem:[%s2 + $0x114] sm:$0xf]
        %v5841 = vld [vmem:[%s2 + $0x118] sm:$0xf]
        %v5842 = vld [vmem:[%s2 + $0x11c] sm:$0xf]
        %v5843 = vld [vmem:[%s2 + $0x120] sm:$0xf]
        %v5844 = vld [vmem:[%s2 + $0x124] sm:$0xf]
        %v5845 = vld [vmem:[%s2 + $0x128] sm:$0xf]
        %v5846 = vld [vmem:[%s2 + $0x12c] sm:$0xf]
        %v5847 = vld [vmem:[%s2 + $0x130] sm:$0xf]
        %v5848 = vld [vmem:[%s2 + $0x134] sm:$0xf]
        %v5849 = vld [vmem:[%s2 + $0x138] sm:$0xf]
        %v5850 = vld [vmem:[%s2 + $0x13c] sm:$0xf]
        %s5851 = scalar_lea.vmem %s2, 320
        %v5852 = vld [vmem:[%s5851] sm:$0xf]
        %v5853 = vld [vmem:[%s5851 + $0x4] sm:$0xf]
        %v5854 = vld [vmem:[%s5851 + $0x8] sm:$0xf]
        %v5855 = vld [vmem:[%s5851 + $0xc] sm:$0xf]
        %v5856 = vld [vmem:[%s5851 + $0x10] sm:$0xf]
        %v5857 = vld [vmem:[%s5851 + $0x14] sm:$0xf]
        %v5858 = vld [vmem:[%s5851 + $0x18] sm:$0xf]
        %v5859 = vld [vmem:[%s5851 + $0x1c] sm:$0xf]
        %v5860 = vld [vmem:[%s5851 + $0x20] sm:$0xf]
        %v5861 = vld [vmem:[%s5851 + $0x24] sm:$0xf]
        %v5862 = vld [vmem:[%s5851 + $0x28] sm:$0xf]
        %v5863 = vld [vmem:[%s5851 + $0x2c] sm:$0xf]
        %v5864 = vld [vmem:[%s5851 + $0x30] sm:$0xf]
        %v5865 = vld [vmem:[%s5851 + $0x34] sm:$0xf]
        %v5866 = vld [vmem:[%s5851 + $0x38] sm:$0xf]
        %v5867 = vld [vmem:[%s5851 + $0x3c] sm:$0xf]
        %v5868 = vld [vmem:[%s5851 + $0x40] sm:$0xf]
        %v5869 = vld [vmem:[%s5851 + $0x44] sm:$0xf]
        %v5870 = vld [vmem:[%s5851 + $0x48] sm:$0xf]
        %v5871 = vld [vmem:[%s5851 + $0x4c] sm:$0xf]
        %v5872 = vld [vmem:[%s5851 + $0x50] sm:$0xf]
        %v5873 = vld [vmem:[%s5851 + $0x54] sm:$0xf]
        %v5874 = vld [vmem:[%s5851 + $0x58] sm:$0xf]
        %v5875 = vld [vmem:[%s5851 + $0x5c] sm:$0xf]
        %v5876 = vld [vmem:[%s5851 + $0x60] sm:$0xf]
        %v5877 = vld [vmem:[%s5851 + $0x64] sm:$0xf]
        %v5878 = vld [vmem:[%s5851 + $0x68] sm:$0xf]
        %v5879 = vld [vmem:[%s5851 + $0x6c] sm:$0xf]
        %v5880 = vld [vmem:[%s5851 + $0x70] sm:$0xf]
        %v5881 = vld [vmem:[%s5851 + $0x74] sm:$0xf]
        %v5882 = vld [vmem:[%s5851 + $0x78] sm:$0xf]
        %v5883 = vld [vmem:[%s5851 + $0x7c] sm:$0xf]
        %v5884 = vld [vmem:[%s5851 + $0x80] sm:$0xf]
        %v5885 = vld [vmem:[%s5851 + $0x84] sm:$0xf]
        %v5886 = vld [vmem:[%s5851 + $0x88] sm:$0xf]
        %v5887 = vld [vmem:[%s5851 + $0x8c] sm:$0xf]
        %v5888 = vld [vmem:[%s5851 + $0x90] sm:$0xf]
        %v5889 = vld [vmem:[%s5851 + $0x94] sm:$0xf]
        %v5890 = vld [vmem:[%s5851 + $0x98] sm:$0xf]
        %v5891 = vld [vmem:[%s5851 + $0x9c] sm:$0xf]
        %v5892 = vld [vmem:[%s5851 + $0xa0] sm:$0xf]
        %v5893 = vld [vmem:[%s5851 + $0xa4] sm:$0xf]
        %v5894 = vld [vmem:[%s5851 + $0xa8] sm:$0xf]
        %v5895 = vld [vmem:[%s5851 + $0xac] sm:$0xf]
        %v5896 = vld [vmem:[%s5851 + $0xb0] sm:$0xf]
        %v5897 = vld [vmem:[%s5851 + $0xb4] sm:$0xf]
        %v5898 = vld [vmem:[%s5851 + $0xb8] sm:$0xf]
        %v5899 = vld [vmem:[%s5851 + $0xbc] sm:$0xf]
        %v5900 = vld [vmem:[%s5851 + $0xc0] sm:$0xf]
        %v5901 = vld [vmem:[%s5851 + $0xc4] sm:$0xf]
        %v5902 = vld [vmem:[%s5851 + $0xc8] sm:$0xf]
        %v5903 = vld [vmem:[%s5851 + $0xcc] sm:$0xf]
        %v5904 = vld [vmem:[%s5851 + $0xd0] sm:$0xf]
        %v5905 = vld [vmem:[%s5851 + $0xd4] sm:$0xf]
        %v5906 = vld [vmem:[%s5851 + $0xd8] sm:$0xf]
        %v5907 = vld [vmem:[%s5851 + $0xdc] sm:$0xf]
        %v5908 = vld [vmem:[%s5851 + $0xe0] sm:$0xf]
        %v5909 = vld [vmem:[%s5851 + $0xe4] sm:$0xf]
        %v5910 = vld [vmem:[%s5851 + $0xe8] sm:$0xf]
        %v5911 = vld [vmem:[%s5851 + $0xec] sm:$0xf]
        %v5912 = vld [vmem:[%s5851 + $0xf0] sm:$0xf]
        %v5913 = vld [vmem:[%s5851 + $0xf4] sm:$0xf]
        %v5914 = vld [vmem:[%s5851 + $0xf8] sm:$0xf]
        %v5915 = vld [vmem:[%s5851 + $0xfc] sm:$0xf]
        %v5916 = vld [vmem:[%s5851 + $0x100] sm:$0xf]
        %v5917 = vld [vmem:[%s5851 + $0x104] sm:$0xf]
        %v5918 = vld [vmem:[%s5851 + $0x108] sm:$0xf]
        %v5919 = vld [vmem:[%s5851 + $0x10c] sm:$0xf]
        %v5920 = vld [vmem:[%s5851 + $0x110] sm:$0xf]
        %v5921 = vld [vmem:[%s5851 + $0x114] sm:$0xf]
        %v5922 = vld [vmem:[%s5851 + $0x118] sm:$0xf]
        %v5923 = vld [vmem:[%s5851 + $0x11c] sm:$0xf]
        %v5924 = vld [vmem:[%s5851 + $0x120] sm:$0xf]
        %v5925 = vld [vmem:[%s5851 + $0x124] sm:$0xf]
        %v5926 = vld [vmem:[%s5851 + $0x128] sm:$0xf]
        %v5927 = vld [vmem:[%s5851 + $0x12c] sm:$0xf]
        %v5928 = vld [vmem:[%s5851 + $0x130] sm:$0xf]
        %v5929 = vld [vmem:[%s5851 + $0x134] sm:$0xf]
        %v5930 = vld [vmem:[%s5851 + $0x138] sm:$0xf]
        %v5931 = vld [vmem:[%s5851 + $0x13c] sm:$0xf]
        %v5933 = vshrl.u32 %v5761, 16
        %v5935 = vshll.u32 %v5761, 16
        %v5937 = vrot.slane %v5935, 1
        %v5938 = vor.u32 %v5933, %v5937
        %v5940 = vshll.u32 %v5766, 16
        %v5942 = vrot.slane %v5940, 1
        %v5943 = vsel %vm980, %v5938, %v5942
        %v5945 = vshrl.u32 %v5762, 16
        %v5947 = vshll.u32 %v5762, 16
        %v5949 = vrot.slane %v5947, 1
        %v5950 = vor.u32 %v5945, %v5949
        %v5952 = vshll.u32 %v5767, 16
        %v5954 = vrot.slane %v5952, 1
        %v5955 = vsel %vm980, %v5950, %v5954
        %v5957 = vshrl.u32 %v5763, 16
        %v5959 = vshll.u32 %v5763, 16
        %v5961 = vrot.slane %v5959, 1
        %v5962 = vor.u32 %v5957, %v5961
        %v5964 = vshll.u32 %v5768, 16
        %v5966 = vrot.slane %v5964, 1
        %v5967 = vsel %vm980, %v5962, %v5966
        %v5969 = vshrl.u32 %v5764, 16
        %v5971 = vshll.u32 %v5764, 16
        %v5973 = vrot.slane %v5971, 1
        %v5974 = vor.u32 %v5969, %v5973
        %v5976 = vshll.u32 %v5769, 16
        %v5978 = vrot.slane %v5976, 1
        %v5979 = vsel %vm980, %v5974, %v5978
        %v5981 = vshrl.u32 %v5765, 16
        %v5983 = vshll.u32 %v5765, 16
        %v5985 = vrot.slane %v5983, 1
        %v5986 = vor.u32 %v5981, %v5985
        %v5988 = vshll.u32 %v5770, 16
        %v5990 = vrot.slane %v5988, 1
        %v5991 = vsel %vm980, %v5986, %v5990
        %v5992 = vshrl.u32 %v5766, 16
        %v5994 = vshrl.u32 %v5767, 16
        %v5996 = vshrl.u32 %v5768, 16
        %v5998 = vshrl.u32 %v5769, 16
        %v6000 = vshrl.u32 %v5770, 16
        %v6092 = vunpack.c.l.b16 %v5852
        %v6093 = vunpack.c.l.b16 %v5853
        %v6094 = vunpack.c.l.b16 %v5854
        %v6095 = vunpack.c.l.b16 %v5855
        %v6096 = vunpack.c.l.b16 %v5856
        %v6097 = vunpack.c.l.b16 %v5857
        %v6098 = vunpack.c.l.b16 %v5858
        %v6099 = vunpack.c.l.b16 %v5859
        %v6100 = vunpack.c.l.b16 %v5860
        %v6101 = vunpack.c.l.b16 %v5861
        %v6102 = vunpack.c.l.b16 %v5862
        %v6103 = vunpack.c.l.b16 %v5863
        %v6104 = vunpack.c.l.b16 %v5864
        %v6105 = vunpack.c.l.b16 %v5865
        %v6106 = vunpack.c.l.b16 %v5866
        %v6107 = vunpack.c.l.b16 %v5867
        %v6108 = vunpack.c.l.b16 %v5868
        %v6109 = vunpack.c.l.b16 %v5869
        %v6110 = vunpack.c.l.b16 %v5870
        %v6111 = vunpack.c.l.b16 %v5871
        %v6112 = vunpack.c.l.b16 %v5872
        %v6113 = vunpack.c.l.b16 %v5873
        %v6114 = vunpack.c.l.b16 %v5874
        %v6115 = vunpack.c.l.b16 %v5875
        %v6116 = vunpack.c.l.b16 %v5876
        %v6117 = vunpack.c.l.b16 %v5877
        %v6118 = vunpack.c.l.b16 %v5878
        %v6119 = vunpack.c.l.b16 %v5879
        %v6120 = vunpack.c.l.b16 %v5880
        %v6121 = vunpack.c.l.b16 %v5881
        %v6122 = vunpack.c.l.b16 %v5882
        %v6123 = vunpack.c.l.b16 %v5883
        %v6124 = vunpack.c.l.b16 %v5884
        %v6125 = vunpack.c.l.b16 %v5885
        %v6126 = vunpack.c.l.b16 %v5886
        %v6127 = vunpack.c.l.b16 %v5887
        %v6128 = vunpack.c.l.b16 %v5888
        %v6129 = vunpack.c.l.b16 %v5889
        %v6130 = vunpack.c.l.b16 %v5890
        %v6131 = vunpack.c.l.b16 %v5891
        %v6132 = vunpack.c.l.b16 %v5892
        %v6133 = vunpack.c.l.b16 %v5893
        %v6134 = vunpack.c.l.b16 %v5894
        %v6135 = vunpack.c.l.b16 %v5895
        %v6136 = vunpack.c.l.b16 %v5896
        %v6137 = vunpack.c.l.b16 %v5897
        %v6138 = vunpack.c.l.b16 %v5898
        %v6139 = vunpack.c.l.b16 %v5899
        %v6140 = vunpack.c.l.b16 %v5900
        %v6141 = vunpack.c.l.b16 %v5901
        %v6142 = vunpack.c.l.b16 %v5902
        %v6143 = vunpack.c.l.b16 %v5903
        %v6144 = vunpack.c.l.b16 %v5904
        %v6145 = vunpack.c.l.b16 %v5905
        %v6146 = vunpack.c.l.b16 %v5906
        %v6147 = vunpack.c.l.b16 %v5907
        %v6148 = vunpack.c.l.b16 %v5908
        %v6149 = vunpack.c.l.b16 %v5909
        %v6150 = vunpack.c.l.b16 %v5910
        %v6151 = vunpack.c.l.b16 %v5911
        %v6152 = vunpack.c.l.b16 %v5912
        %v6153 = vunpack.c.l.b16 %v5913
        %v6154 = vunpack.c.l.b16 %v5914
        %v6155 = vunpack.c.l.b16 %v5915
        %v6156 = vunpack.c.l.b16 %v5916
        %v6157 = vunpack.c.l.b16 %v5917
        %v6158 = vunpack.c.l.b16 %v5918
        %v6159 = vunpack.c.l.b16 %v5919
        %v6160 = vunpack.c.l.b16 %v5920
        %v6161 = vunpack.c.l.b16 %v5921
        %v6162 = vunpack.c.l.b16 %v5922
        %v6163 = vunpack.c.l.b16 %v5923
        %v6164 = vunpack.c.l.b16 %v5924
        %v6165 = vunpack.c.l.b16 %v5925
        %v6166 = vunpack.c.l.b16 %v5926
        %v6167 = vunpack.c.l.b16 %v5927
        %v6168 = vunpack.c.l.b16 %v5928
        %v6169 = vunpack.c.l.b16 %v5929
        %v6170 = vunpack.c.l.b16 %v5930
        %v6171 = vunpack.c.l.b16 %v5931
        %v6172 = vpack.c.b16 %v6093, %v6092
        %v6173 = vpack.c.b16 %v6095, %v6094
        %v6174 = vpack.c.b16 %v6097, %v6096
        %v6175 = vpack.c.b16 %v6099, %v6098
        %v6176 = vpack.c.b16 %v6101, %v6100
        %v6177 = vpack.c.b16 %v6103, %v6102
        %v6178 = vpack.c.b16 %v6105, %v6104
        %v6179 = vpack.c.b16 %v6107, %v6106
        %v6180 = vpack.c.b16 %v6109, %v6108
        %v6181 = vpack.c.b16 %v6111, %v6110
        %v6182 = vpack.c.b16 %v6113, %v6112
        %v6183 = vpack.c.b16 %v6115, %v6114
        %v6184 = vpack.c.b16 %v6117, %v6116
        %v6185 = vpack.c.b16 %v6119, %v6118
        %v6186 = vpack.c.b16 %v6121, %v6120
        %v6187 = vpack.c.b16 %v6123, %v6122
        %v6188 = vpack.c.b16 %v6125, %v6124
        %v6189 = vpack.c.b16 %v6127, %v6126
        %v6190 = vpack.c.b16 %v6129, %v6128
        %v6191 = vpack.c.b16 %v6131, %v6130
        %v6192 = vpack.c.b16 %v6133, %v6132
        %v6193 = vpack.c.b16 %v6135, %v6134
        %v6194 = vpack.c.b16 %v6137, %v6136
        %v6195 = vpack.c.b16 %v6139, %v6138
        %v6196 = vpack.c.b16 %v6141, %v6140
        %v6197 = vpack.c.b16 %v6143, %v6142
        %v6198 = vpack.c.b16 %v6145, %v6144
        %v6199 = vpack.c.b16 %v6147, %v6146
        %v6200 = vpack.c.b16 %v6149, %v6148
        %v6201 = vpack.c.b16 %v6151, %v6150
        %v6202 = vpack.c.b16 %v6153, %v6152
        %v6203 = vpack.c.b16 %v6155, %v6154
        %v6204 = vpack.c.b16 %v6157, %v6156
        %v6205 = vpack.c.b16 %v6159, %v6158
        %v6206 = vpack.c.b16 %v6161, %v6160
        %v6207 = vpack.c.b16 %v6163, %v6162
        %v6208 = vpack.c.b16 %v6165, %v6164
        %v6209 = vpack.c.b16 %v6167, %v6166
        %v6210 = vpack.c.b16 %v6169, %v6168
        %v6211 = vpack.c.b16 %v6171, %v6170
        %6252 = vmatprep.subr.bf16.mxu0 0
        %6253 = vmatpush1.bf16.msra.mxu0 %v6179
        %6254 = vmatprep.subr.bf16.mxu0 0
        %6255 = vmatpush1.bf16.msra.mxu0 %v6178
        %6256 = vmatprep.subr.bf16.mxu0 0
        %6257 = vmatpush1.bf16.msra.mxu0 %v6177
        %6258 = vmatprep.subr.bf16.mxu0 0
        %6259 = vmatpush1.bf16.msra.mxu0 %v6176
        %6260 = vmatprep.subr.bf16.mxu0 0
        %6261 = vmatpush1.bf16.msra.mxu0 %v6175
        %6262 = vmatprep.subr.bf16.mxu0 0
        %6263 = vmatpush1.bf16.msra.mxu0 %v6174
        %6264 = vmatprep.subr.bf16.mxu0 0
        %6265 = vmatpush1.bf16.msra.mxu0 %v6173
        %6266 = vmatprep.subr.bf16.mxu0 0
        %6267 = vmatpush1.bf16.msra.mxu0 %v6172
        %6268 = vmatprep.subr.bf16.mxu0 0
        %6269 = vmatpush2.bf16.msra.mxu0 %v6187
        %6270 = vmatprep.subr.bf16.mxu0 0
        %6271 = vmatpush2.bf16.msra.mxu0 %v6186
        %6272 = vmatprep.subr.bf16.mxu0 0
        %6273 = vmatpush2.bf16.msra.mxu0 %v6185
        %6274 = vmatprep.subr.bf16.mxu0 0
        %6275 = vmatpush2.bf16.msra.mxu0 %v6184
        %6276 = vmatprep.subr.bf16.mxu0 0
        %6277 = vmatpush2.bf16.msra.mxu0 %v6183
        %6278 = vmatprep.subr.bf16.mxu0 0
        %6279 = vmatpush2.bf16.msra.mxu0 %v6182
        %6280 = vmatprep.subr.bf16.mxu0 0
        %6281 = vmatpush2.bf16.msra.mxu0 %v6181
        %6282 = vmatprep.subr.bf16.mxu0 0
        %6283 = vmatpush2.bf16.msra.mxu0 %v6180
        %6284 = vmatprep.mubr.bf16.mxu0 %v5955
        %6285 = vmatmul.mubr.bf16.gmra.mxu0 %v5943
        %v6286 = vpop.f32.mrf.mxu0
        %v6287 = vadd.f32 0.0, %v6286
        %v6288 = vpop.f32.mrf.mxu0
        %v6289 = vpop.f32.mrf.mxu0
        %v6290 = vadd.f32 0.0, %v6289
        %v6291 = vpop.f32.mrf.mxu0
        %6292 = vmatprep.mubr.bf16.mxu0 %v5994
        %6293 = vmatmul.mubr.bf16.gmra.mxu0 %v5992
        %v6294 = vpop.f32.mrf.mxu0
        %v6295 = vadd.f32 0.0, %v6294
        %v6296 = vpop.f32.mrf.mxu0
        %v6297 = vpop.f32.mrf.mxu0
        %v6298 = vpop.f32.mrf.mxu0
        %6299 = vdwg.mxu0
        %6300 = vmatprep.subr.bf16.mxu0 0
        %6301 = vmatpush1.bf16.msra.mxu0 %v6195
        %6302 = vmatprep.subr.bf16.mxu0 0
        %6303 = vmatpush1.bf16.msra.mxu0 %v6194
        %6304 = vmatprep.subr.bf16.mxu0 0
        %6305 = vmatpush1.bf16.msra.mxu0 %v6193
        %6306 = vmatprep.subr.bf16.mxu0 0
        %6307 = vmatpush1.bf16.msra.mxu0 %v6192
        %6308 = vmatprep.subr.bf16.mxu0 0
        %6309 = vmatpush1.bf16.msra.mxu0 %v6191
        %6310 = vmatprep.subr.bf16.mxu0 0
        %6311 = vmatpush1.bf16.msra.mxu0 %v6190
        %6312 = vmatprep.subr.bf16.mxu0 0
        %6313 = vmatpush1.bf16.msra.mxu0 %v6189
        %6314 = vmatprep.subr.bf16.mxu0 0
        %6315 = vmatpush1.bf16.msra.mxu0 %v6188
        %6316 = vmatprep.subr.bf16.mxu0 0
        %6317 = vmatpush2.bf16.msra.mxu0 %v6203
        %6318 = vmatprep.subr.bf16.mxu0 0
        %6319 = vmatpush2.bf16.msra.mxu0 %v6202
        %6320 = vmatprep.subr.bf16.mxu0 0
        %6321 = vmatpush2.bf16.msra.mxu0 %v6201
        %6322 = vmatprep.subr.bf16.mxu0 0
        %6323 = vmatpush2.bf16.msra.mxu0 %v6200
        %6324 = vmatprep.subr.bf16.mxu0 0
        %6325 = vmatpush2.bf16.msra.mxu0 %v6199
        %6326 = vmatprep.subr.bf16.mxu0 0
        %6327 = vmatpush2.bf16.msra.mxu0 %v6198
        %6328 = vmatprep.subr.bf16.mxu0 0
        %6329 = vmatpush2.bf16.msra.mxu0 %v6197
        %6330 = vmatprep.subr.bf16.mxu0 0
        %6331 = vmatpush2.bf16.msra.mxu0 %v6196
        %6332 = vmatprep.mubr.bf16.mxu0 %v5979
        %6333 = vmatmul.mubr.bf16.gmra.mxu0 %v5967
        %v6334 = vpop.f32.mrf.mxu0
        %v6335 = vadd.f32 %v6287, %v6334
        %v6336 = vpop.f32.mrf.mxu0
        %v6337 = vpop.f32.mrf.mxu0
        %v6338 = vadd.f32 %v6290, %v6337
        %v6339 = vpop.f32.mrf.mxu0
        %6340 = vmatprep.mubr.bf16.mxu0 %v5998
        %6341 = vmatmul.mubr.bf16.gmra.mxu0 %v5996
        %v6342 = vpop.f32.mrf.mxu0
        %v6343 = vadd.f32 %v6295, %v6342
        %v6344 = vpop.f32.mrf.mxu0
        %v6345 = vpop.f32.mrf.mxu0
        %v6346 = vpop.f32.mrf.mxu0
        %6347 = vdwg.mxu0
        %6348 = vmatprep.subr.bf16.mxu0 0
        %6349 = vmatpush1.bf16.msra.mxu0 %v6211
        %6350 = vmatprep.subr.bf16.mxu0 0
        %6351 = vmatpush1.bf16.msra.mxu0 %v6210
        %6352 = vmatprep.subr.bf16.mxu0 0
        %6353 = vmatpush1.bf16.msra.mxu0 %v6209
        %6354 = vmatprep.subr.bf16.mxu0 0
        %6355 = vmatpush1.bf16.msra.mxu0 %v6208
        %6356 = vmatprep.subr.bf16.mxu0 0
        %6357 = vmatpush1.bf16.msra.mxu0 %v6207
        %6358 = vmatprep.subr.bf16.mxu0 0
        %6359 = vmatpush1.bf16.msra.mxu0 %v6206
        %6360 = vmatprep.subr.bf16.mxu0 0
        %6361 = vmatpush1.bf16.msra.mxu0 %v6205
        %6362 = vmatprep.subr.bf16.mxu0 0
        %6363 = vmatpush1.bf16.msra.mxu0 %v6204
        %6364 = vmatprep.subr.bf16.mxu0 0
        %6365 = vmatpush2.bf16.msra.mxu0 0
        %6366 = vmatprep.subr.bf16.mxu0 0
        %6367 = vmatpush2.bf16.msra.mxu0 0
        %6368 = vmatprep.subr.bf16.mxu0 0
        %6369 = vmatpush2.bf16.msra.mxu0 0
        %6370 = vmatprep.subr.bf16.mxu0 0
        %6371 = vmatpush2.bf16.msra.mxu0 0
        %6372 = vmatprep.subr.bf16.mxu0 0
        %6373 = vmatpush2.bf16.msra.mxu0 0
        %6374 = vmatprep.subr.bf16.mxu0 0
        %6375 = vmatpush2.bf16.msra.mxu0 0
        %6376 = vmatprep.subr.bf16.mxu0 0
        %6377 = vmatpush2.bf16.msra.mxu0 0
        %6378 = vmatprep.subr.bf16.mxu0 0
        %6379 = vmatpush2.bf16.msra.mxu0 0
        %6380 = vmatprep.mubr.bf16.mxu0 0
        %6381 = vmatmul.mubr.bf16.gmra.mxu0 %v5991
        %v6382 = vpop.f32.mrf.mxu0
        %v6383 = vadd.f32 %v6335, %v6382
        %v6384 = vpop.f32.mrf.mxu0
        %v6385 = vpop.f32.mrf.mxu0
        %v6386 = vadd.f32 %v6338, %v6385
        %v6387 = vpop.f32.mrf.mxu0
        %6388 = vmatprep.mubr.bf16.mxu0 0
        %6389 = vmatmul.mubr.bf16.gmra.mxu0 %v6000
        %v6390 = vpop.f32.mrf.mxu0
        %v6391 = vadd.f32 %v6343, %v6390
        %v6392 = vpop.f32.mrf.mxu0
        %v6393 = vpop.f32.mrf.mxu0
        %v6394 = vpop.f32.mrf.mxu0
        %6395 = vdwg.mxu0
        %v6476 = vunpack.c.l.b16 %v5771
        %v6477 = vunpack.c.l.b16 %v5772
        %v6478 = vunpack.c.l.b16 %v5773
        %v6479 = vunpack.c.l.b16 %v5774
        %v6480 = vunpack.c.l.b16 %v5775
        %v6481 = vunpack.c.l.b16 %v5776
        %v6482 = vunpack.c.l.b16 %v5777
        %v6483 = vunpack.c.l.b16 %v5778
        %v6484 = vunpack.c.l.b16 %v5779
        %v6485 = vunpack.c.l.b16 %v5780
        %v6486 = vunpack.c.l.b16 %v5781
        %v6487 = vunpack.c.l.b16 %v5782
        %v6488 = vunpack.c.l.b16 %v5783
        %v6489 = vunpack.c.l.b16 %v5784
        %v6490 = vunpack.c.l.b16 %v5785
        %v6491 = vunpack.c.l.b16 %v5786
        %v6492 = vunpack.c.l.b16 %v5787
        %v6493 = vunpack.c.l.b16 %v5788
        %v6494 = vunpack.c.l.b16 %v5789
        %v6495 = vunpack.c.l.b16 %v5790
        %v6496 = vunpack.c.l.b16 %v5791
        %v6497 = vunpack.c.l.b16 %v5792
        %v6498 = vunpack.c.l.b16 %v5793
        %v6499 = vunpack.c.l.b16 %v5794
        %v6500 = vunpack.c.l.b16 %v5795
        %v6501 = vunpack.c.l.b16 %v5796
        %v6502 = vunpack.c.l.b16 %v5797
        %v6503 = vunpack.c.l.b16 %v5798
        %v6504 = vunpack.c.l.b16 %v5799
        %v6505 = vunpack.c.l.b16 %v5800
        %v6506 = vunpack.c.l.b16 %v5801
        %v6507 = vunpack.c.l.b16 %v5802
        %v6508 = vunpack.c.l.b16 %v5803
        %v6509 = vunpack.c.l.b16 %v5804
        %v6510 = vunpack.c.l.b16 %v5805
        %v6511 = vunpack.c.l.b16 %v5806
        %v6512 = vunpack.c.l.b16 %v5807
        %v6513 = vunpack.c.l.b16 %v5808
        %v6514 = vunpack.c.l.b16 %v5809
        %v6515 = vunpack.c.l.b16 %v5810
        %v6516 = vunpack.c.l.b16 %v5811
        %v6517 = vunpack.c.l.b16 %v5812
        %v6518 = vunpack.c.l.b16 %v5813
        %v6519 = vunpack.c.l.b16 %v5814
        %v6520 = vunpack.c.l.b16 %v5815
        %v6521 = vunpack.c.l.b16 %v5816
        %v6522 = vunpack.c.l.b16 %v5817
        %v6523 = vunpack.c.l.b16 %v5818
        %v6524 = vunpack.c.l.b16 %v5819
        %v6525 = vunpack.c.l.b16 %v5820
        %v6526 = vunpack.c.l.b16 %v5821
        %v6527 = vunpack.c.l.b16 %v5822
        %v6528 = vunpack.c.l.b16 %v5823
        %v6529 = vunpack.c.l.b16 %v5824
        %v6530 = vunpack.c.l.b16 %v5825
        %v6531 = vunpack.c.l.b16 %v5826
        %v6532 = vunpack.c.l.b16 %v5827
        %v6533 = vunpack.c.l.b16 %v5828
        %v6534 = vunpack.c.l.b16 %v5829
        %v6535 = vunpack.c.l.b16 %v5830
        %v6536 = vunpack.c.l.b16 %v5831
        %v6537 = vunpack.c.l.b16 %v5832
        %v6538 = vunpack.c.l.b16 %v5833
        %v6539 = vunpack.c.l.b16 %v5834
        %v6540 = vunpack.c.l.b16 %v5835
        %v6541 = vunpack.c.l.b16 %v5836
        %v6542 = vunpack.c.l.b16 %v5837
        %v6543 = vunpack.c.l.b16 %v5838
        %v6544 = vunpack.c.l.b16 %v5839
        %v6545 = vunpack.c.l.b16 %v5840
        %v6546 = vunpack.c.l.b16 %v5841
        %v6547 = vunpack.c.l.b16 %v5842
        %v6548 = vunpack.c.l.b16 %v5843
        %v6549 = vunpack.c.l.b16 %v5844
        %v6550 = vunpack.c.l.b16 %v5845
        %v6551 = vunpack.c.l.b16 %v5846
        %v6552 = vunpack.c.l.b16 %v5847
        %v6553 = vunpack.c.l.b16 %v5848
        %v6554 = vunpack.c.l.b16 %v5849
        %v6555 = vunpack.c.l.b16 %v5850
        %v6556 = vpack.c.b16 %v6477, %v6476
        %v6557 = vpack.c.b16 %v6479, %v6478
        %v6558 = vpack.c.b16 %v6481, %v6480
        %v6559 = vpack.c.b16 %v6483, %v6482
        %v6560 = vpack.c.b16 %v6485, %v6484
        %v6561 = vpack.c.b16 %v6487, %v6486
        %v6562 = vpack.c.b16 %v6489, %v6488
        %v6563 = vpack.c.b16 %v6491, %v6490
        %v6564 = vpack.c.b16 %v6493, %v6492
        %v6565 = vpack.c.b16 %v6495, %v6494
        %v6566 = vpack.c.b16 %v6497, %v6496
        %v6567 = vpack.c.b16 %v6499, %v6498
        %v6568 = vpack.c.b16 %v6501, %v6500
        %v6569 = vpack.c.b16 %v6503, %v6502
        %v6570 = vpack.c.b16 %v6505, %v6504
        %v6571 = vpack.c.b16 %v6507, %v6506
        %v6572 = vpack.c.b16 %v6509, %v6508
        %v6573 = vpack.c.b16 %v6511, %v6510
        %v6574 = vpack.c.b16 %v6513, %v6512
        %v6575 = vpack.c.b16 %v6515, %v6514
        %v6576 = vpack.c.b16 %v6517, %v6516
        %v6577 = vpack.c.b16 %v6519, %v6518
        %v6578 = vpack.c.b16 %v6521, %v6520
        %v6579 = vpack.c.b16 %v6523, %v6522
        %v6580 = vpack.c.b16 %v6525, %v6524
        %v6581 = vpack.c.b16 %v6527, %v6526
        %v6582 = vpack.c.b16 %v6529, %v6528
        %v6583 = vpack.c.b16 %v6531, %v6530
        %v6584 = vpack.c.b16 %v6533, %v6532
        %v6585 = vpack.c.b16 %v6535, %v6534
        %v6586 = vpack.c.b16 %v6537, %v6536
        %v6587 = vpack.c.b16 %v6539, %v6538
        %v6588 = vpack.c.b16 %v6541, %v6540
        %v6589 = vpack.c.b16 %v6543, %v6542
        %v6590 = vpack.c.b16 %v6545, %v6544
        %v6591 = vpack.c.b16 %v6547, %v6546
        %v6592 = vpack.c.b16 %v6549, %v6548
        %v6593 = vpack.c.b16 %v6551, %v6550
        %v6594 = vpack.c.b16 %v6553, %v6552
        %v6595 = vpack.c.b16 %v6555, %v6554
        %6636 = vmatprep.subr.bf16.mxu0 0
        %6637 = vmatpush1.bf16.msra.mxu0 %v6563
        %6638 = vmatprep.subr.bf16.mxu0 0
        %6639 = vmatpush1.bf16.msra.mxu0 %v6562
        %6640 = vmatprep.subr.bf16.mxu0 0
        %6641 = vmatpush1.bf16.msra.mxu0 %v6561
        %6642 = vmatprep.subr.bf16.mxu0 0
        %6643 = vmatpush1.bf16.msra.mxu0 %v6560
        %6644 = vmatprep.subr.bf16.mxu0 0
        %6645 = vmatpush1.bf16.msra.mxu0 %v6559
        %6646 = vmatprep.subr.bf16.mxu0 0
        %6647 = vmatpush1.bf16.msra.mxu0 %v6558
        %6648 = vmatprep.subr.bf16.mxu0 0
        %6649 = vmatpush1.bf16.msra.mxu0 %v6557
        %6650 = vmatprep.subr.bf16.mxu0 0
        %6651 = vmatpush1.bf16.msra.mxu0 %v6556
        %6652 = vmatprep.subr.bf16.mxu0 0
        %6653 = vmatpush2.bf16.msra.mxu0 %v6571
        %6654 = vmatprep.subr.bf16.mxu0 0
        %6655 = vmatpush2.bf16.msra.mxu0 %v6570
        %6656 = vmatprep.subr.bf16.mxu0 0
        %6657 = vmatpush2.bf16.msra.mxu0 %v6569
        %6658 = vmatprep.subr.bf16.mxu0 0
        %6659 = vmatpush2.bf16.msra.mxu0 %v6568
        %6660 = vmatprep.subr.bf16.mxu0 0
        %6661 = vmatpush2.bf16.msra.mxu0 %v6567
        %6662 = vmatprep.subr.bf16.mxu0 0
        %6663 = vmatpush2.bf16.msra.mxu0 %v6566
        %6664 = vmatprep.subr.bf16.mxu0 0
        %6665 = vmatpush2.bf16.msra.mxu0 %v6565
        %6666 = vmatprep.subr.bf16.mxu0 0
        %6667 = vmatpush2.bf16.msra.mxu0 %v6564
        %6668 = vmatprep.mubr.bf16.mxu0 %v5762
        %6669 = vmatmul.mubr.bf16.gmra.mxu0 %v5761
        %v6670 = vpop.f32.mrf.mxu0
        %v6671 = vadd.f32 %v6383, %v6670
        %v6672 = vpop.f32.mrf.mxu0
        %v6673 = vpop.f32.mrf.mxu0
        %v6674 = vadd.f32 %v6386, %v6673
        %v6675 = vpop.f32.mrf.mxu0
        %6676 = vmatprep.mubr.bf16.mxu0 %v5767
        %6677 = vmatmul.mubr.bf16.gmra.mxu0 %v5766
        %v6678 = vpop.f32.mrf.mxu0
        %v6679 = vadd.f32 %v6391, %v6678
        %v6680 = vpop.f32.mrf.mxu0
        %v6681 = vpop.f32.mrf.mxu0
        %v6682 = vpop.f32.mrf.mxu0
        %6683 = vdwg.mxu0
        %6684 = vmatprep.subr.bf16.mxu0 0
        %6685 = vmatpush1.bf16.msra.mxu0 %v6579
        %6686 = vmatprep.subr.bf16.mxu0 0
        %6687 = vmatpush1.bf16.msra.mxu0 %v6578
        %6688 = vmatprep.subr.bf16.mxu0 0
        %6689 = vmatpush1.bf16.msra.mxu0 %v6577
        %6690 = vmatprep.subr.bf16.mxu0 0
        %6691 = vmatpush1.bf16.msra.mxu0 %v6576
        %6692 = vmatprep.subr.bf16.mxu0 0
        %6693 = vmatpush1.bf16.msra.mxu0 %v6575
        %6694 = vmatprep.subr.bf16.mxu0 0
        %6695 = vmatpush1.bf16.msra.mxu0 %v6574
        %6696 = vmatprep.subr.bf16.mxu0 0
        %6697 = vmatpush1.bf16.msra.mxu0 %v6573
        %6698 = vmatprep.subr.bf16.mxu0 0
        %6699 = vmatpush1.bf16.msra.mxu0 %v6572
        %6700 = vmatprep.subr.bf16.mxu0 0
        %6701 = vmatpush2.bf16.msra.mxu0 %v6587
        %6702 = vmatprep.subr.bf16.mxu0 0
        %6703 = vmatpush2.bf16.msra.mxu0 %v6586
        %6704 = vmatprep.subr.bf16.mxu0 0
        %6705 = vmatpush2.bf16.msra.mxu0 %v6585
        %6706 = vmatprep.subr.bf16.mxu0 0
        %6707 = vmatpush2.bf16.msra.mxu0 %v6584
        %6708 = vmatprep.subr.bf16.mxu0 0
        %6709 = vmatpush2.bf16.msra.mxu0 %v6583
        %6710 = vmatprep.subr.bf16.mxu0 0
        %6711 = vmatpush2.bf16.msra.mxu0 %v6582
        %6712 = vmatprep.subr.bf16.mxu0 0
        %6713 = vmatpush2.bf16.msra.mxu0 %v6581
        %6714 = vmatprep.subr.bf16.mxu0 0
        %6715 = vmatpush2.bf16.msra.mxu0 %v6580
        %6716 = vmatprep.mubr.bf16.mxu0 %v5764
        %6717 = vmatmul.mubr.bf16.gmra.mxu0 %v5763
        %v6718 = vpop.f32.mrf.mxu0
        %v6719 = vadd.f32 %v6671, %v6718
        %v6720 = vpop.f32.mrf.mxu0
        %v6721 = vpop.f32.mrf.mxu0
        %v6722 = vadd.f32 %v6674, %v6721
        %v6723 = vpop.f32.mrf.mxu0
        %6724 = vmatprep.mubr.bf16.mxu0 %v5769
        %6725 = vmatmul.mubr.bf16.gmra.mxu0 %v5768
        %v6726 = vpop.f32.mrf.mxu0
        %v6727 = vadd.f32 %v6679, %v6726
        %v6728 = vpop.f32.mrf.mxu0
        %v6729 = vpop.f32.mrf.mxu0
        %v6730 = vpop.f32.mrf.mxu0
        %6731 = vdwg.mxu0
        %6732 = vmatprep.subr.bf16.mxu0 0
        %6733 = vmatpush1.bf16.msra.mxu0 %v6595
        %6734 = vmatprep.subr.bf16.mxu0 0
        %6735 = vmatpush1.bf16.msra.mxu0 %v6594
        %6736 = vmatprep.subr.bf16.mxu0 0
        %6737 = vmatpush1.bf16.msra.mxu0 %v6593
        %6738 = vmatprep.subr.bf16.mxu0 0
        %6739 = vmatpush1.bf16.msra.mxu0 %v6592
        %6740 = vmatprep.subr.bf16.mxu0 0
        %6741 = vmatpush1.bf16.msra.mxu0 %v6591
        %6742 = vmatprep.subr.bf16.mxu0 0
        %6743 = vmatpush1.bf16.msra.mxu0 %v6590
        %6744 = vmatprep.subr.bf16.mxu0 0
        %6745 = vmatpush1.bf16.msra.mxu0 %v6589
        %6746 = vmatprep.subr.bf16.mxu0 0
        %6747 = vmatpush1.bf16.msra.mxu0 %v6588
        %6748 = vmatprep.subr.bf16.mxu0 0
        %6749 = vmatpush2.bf16.msra.mxu0 0
        %6750 = vmatprep.subr.bf16.mxu0 0
        %6751 = vmatpush2.bf16.msra.mxu0 0
        %6752 = vmatprep.subr.bf16.mxu0 0
        %6753 = vmatpush2.bf16.msra.mxu0 0
        %6754 = vmatprep.subr.bf16.mxu0 0
        %6755 = vmatpush2.bf16.msra.mxu0 0
        %6756 = vmatprep.subr.bf16.mxu0 0
        %6757 = vmatpush2.bf16.msra.mxu0 0
        %6758 = vmatprep.subr.bf16.mxu0 0
        %6759 = vmatpush2.bf16.msra.mxu0 0
        %6760 = vmatprep.subr.bf16.mxu0 0
        %6761 = vmatpush2.bf16.msra.mxu0 0
        %6762 = vmatprep.subr.bf16.mxu0 0
        %6763 = vmatpush2.bf16.msra.mxu0 0
        %6764 = vmatprep.mubr.bf16.mxu0 0
        %6765 = vmatmul.mubr.bf16.gmra.mxu0 %v5765
        %v6766 = vpop.f32.mrf.mxu0
        %v6767 = vadd.f32 %v6719, %v6766
        %v6768 = vpop.f32.mrf.mxu0
        %v6769 = vpop.f32.mrf.mxu0
        %v6770 = vadd.f32 %v6722, %v6769
        %v6771 = vpop.f32.mrf.mxu0
        %6772 = vmatprep.mubr.bf16.mxu0 0
        %6773 = vmatmul.mubr.bf16.gmra.mxu0 %v5770
        %v6774 = vpop.f32.mrf.mxu0
        %v6775 = vadd.f32 %v6727, %v6774
        %v6776 = vpop.f32.mrf.mxu0
        %v6777 = vpop.f32.mrf.mxu0
        %v6778 = vpop.f32.mrf.mxu0
        %6779 = vdwg.mxu0
        %s6780 = scalar_lea.vmem %s2, 640
        %v6781 = vld [vmem:[%s6780] sm:$0xf]
        %v6782 = vld [vmem:[%s6780 + $0x4] sm:$0xf]
        %v6783 = vld [vmem:[%s6780 + $0x8] sm:$0xf]
        %v6784 = vld [vmem:[%s6780 + $0xc] sm:$0xf]
        %v6785 = vld [vmem:[%s6780 + $0x10] sm:$0xf]
        %v6786 = vld [vmem:[%s6780 + $0x14] sm:$0xf]
        %v6787 = vld [vmem:[%s6780 + $0x18] sm:$0xf]
        %v6788 = vld [vmem:[%s6780 + $0x1c] sm:$0xf]
        %v6789 = vld [vmem:[%s6780 + $0x20] sm:$0xf]
        %v6790 = vld [vmem:[%s6780 + $0x24] sm:$0xf]
        %v6791 = vld [vmem:[%s6780 + $0x28] sm:$0xf]
        %v6792 = vld [vmem:[%s6780 + $0x2c] sm:$0xf]
        %v6793 = vld [vmem:[%s6780 + $0x30] sm:$0xf]
        %v6794 = vld [vmem:[%s6780 + $0x34] sm:$0xf]
        %v6795 = vld [vmem:[%s6780 + $0x38] sm:$0xf]
        %v6796 = vld [vmem:[%s6780 + $0x3c] sm:$0xf]
        %v6797 = vld [vmem:[%s6780 + $0x40] sm:$0xf]
        %v6798 = vld [vmem:[%s6780 + $0x44] sm:$0xf]
        %v6799 = vld [vmem:[%s6780 + $0x48] sm:$0xf]
        %v6800 = vld [vmem:[%s6780 + $0x4c] sm:$0xf]
        %v6801 = vld [vmem:[%s6780 + $0x50] sm:$0xf]
        %v6802 = vld [vmem:[%s6780 + $0x54] sm:$0xf]
        %v6803 = vld [vmem:[%s6780 + $0x58] sm:$0xf]
        %v6804 = vld [vmem:[%s6780 + $0x5c] sm:$0xf]
        %v6805 = vld [vmem:[%s6780 + $0x60] sm:$0xf]
        %v6806 = vld [vmem:[%s6780 + $0x64] sm:$0xf]
        %v6807 = vld [vmem:[%s6780 + $0x68] sm:$0xf]
        %v6808 = vld [vmem:[%s6780 + $0x6c] sm:$0xf]
        %v6809 = vld [vmem:[%s6780 + $0x70] sm:$0xf]
        %v6810 = vld [vmem:[%s6780 + $0x74] sm:$0xf]
        %v6811 = vld [vmem:[%s6780 + $0x78] sm:$0xf]
        %v6812 = vld [vmem:[%s6780 + $0x7c] sm:$0xf]
        %v6813 = vld [vmem:[%s6780 + $0x80] sm:$0xf]
        %v6814 = vld [vmem:[%s6780 + $0x84] sm:$0xf]
        %v6815 = vld [vmem:[%s6780 + $0x88] sm:$0xf]
        %v6816 = vld [vmem:[%s6780 + $0x8c] sm:$0xf]
        %v6817 = vld [vmem:[%s6780 + $0x90] sm:$0xf]
        %v6818 = vld [vmem:[%s6780 + $0x94] sm:$0xf]
        %v6819 = vld [vmem:[%s6780 + $0x98] sm:$0xf]
        %v6820 = vld [vmem:[%s6780 + $0x9c] sm:$0xf]
        %v6821 = vld [vmem:[%s6780 + $0xa0] sm:$0xf]
        %v6822 = vld [vmem:[%s6780 + $0xa4] sm:$0xf]
        %v6823 = vld [vmem:[%s6780 + $0xa8] sm:$0xf]
        %v6824 = vld [vmem:[%s6780 + $0xac] sm:$0xf]
        %v6825 = vld [vmem:[%s6780 + $0xb0] sm:$0xf]
        %v6826 = vld [vmem:[%s6780 + $0xb4] sm:$0xf]
        %v6827 = vld [vmem:[%s6780 + $0xb8] sm:$0xf]
        %v6828 = vld [vmem:[%s6780 + $0xbc] sm:$0xf]
        %v6829 = vld [vmem:[%s6780 + $0xc0] sm:$0xf]
        %v6830 = vld [vmem:[%s6780 + $0xc4] sm:$0xf]
        %v6831 = vld [vmem:[%s6780 + $0xc8] sm:$0xf]
        %v6832 = vld [vmem:[%s6780 + $0xcc] sm:$0xf]
        %v6833 = vld [vmem:[%s6780 + $0xd0] sm:$0xf]
        %v6834 = vld [vmem:[%s6780 + $0xd4] sm:$0xf]
        %v6835 = vld [vmem:[%s6780 + $0xd8] sm:$0xf]
        %v6836 = vld [vmem:[%s6780 + $0xdc] sm:$0xf]
        %v6837 = vld [vmem:[%s6780 + $0xe0] sm:$0xf]
        %v6838 = vld [vmem:[%s6780 + $0xe4] sm:$0xf]
        %v6839 = vld [vmem:[%s6780 + $0xe8] sm:$0xf]
        %v6840 = vld [vmem:[%s6780 + $0xec] sm:$0xf]
        %v6841 = vld [vmem:[%s6780 + $0xf0] sm:$0xf]
        %v6842 = vld [vmem:[%s6780 + $0xf4] sm:$0xf]
        %v6843 = vld [vmem:[%s6780 + $0xf8] sm:$0xf]
        %v6844 = vld [vmem:[%s6780 + $0xfc] sm:$0xf]
        %v6845 = vld [vmem:[%s6780 + $0x100] sm:$0xf]
        %v6846 = vld [vmem:[%s6780 + $0x104] sm:$0xf]
        %v6847 = vld [vmem:[%s6780 + $0x108] sm:$0xf]
        %v6848 = vld [vmem:[%s6780 + $0x10c] sm:$0xf]
        %v6849 = vld [vmem:[%s6780 + $0x110] sm:$0xf]
        %v6850 = vld [vmem:[%s6780 + $0x114] sm:$0xf]
        %v6851 = vld [vmem:[%s6780 + $0x118] sm:$0xf]
        %v6852 = vld [vmem:[%s6780 + $0x11c] sm:$0xf]
        %v6853 = vld [vmem:[%s6780 + $0x120] sm:$0xf]
        %v6854 = vld [vmem:[%s6780 + $0x124] sm:$0xf]
        %v6855 = vld [vmem:[%s6780 + $0x128] sm:$0xf]
        %v6856 = vld [vmem:[%s6780 + $0x12c] sm:$0xf]
        %v6857 = vld [vmem:[%s6780 + $0x130] sm:$0xf]
        %v6858 = vld [vmem:[%s6780 + $0x134] sm:$0xf]
        %v6859 = vld [vmem:[%s6780 + $0x138] sm:$0xf]
        %v6860 = vld [vmem:[%s6780 + $0x13c] sm:$0xf]
        %v6871 = vrot.slane %v5761, 1
        %v6872 = vrot.slane %v5766, 1
        %v6873 = vsel %vm3288, %v6871, %v6872
        %v6874 = vrot.slane %v5762, 1
        %v6875 = vrot.slane %v5767, 1
        %v6876 = vsel %vm3288, %v6874, %v6875
        %v6877 = vrot.slane %v5763, 1
        %v6878 = vrot.slane %v5768, 1
        %v6879 = vsel %vm3288, %v6877, %v6878
        %v6880 = vrot.slane %v5764, 1
        %v6881 = vrot.slane %v5769, 1
        %v6882 = vsel %vm3288, %v6880, %v6881
        %v6883 = vrot.slane %v5765, 1
        %v6884 = vrot.slane %v5770, 1
        %v6885 = vsel %vm3288, %v6883, %v6884
        %v6976 = vunpack.c.l.b16 %v6781
        %v6977 = vunpack.c.l.b16 %v6782
        %v6978 = vunpack.c.l.b16 %v6783
        %v6979 = vunpack.c.l.b16 %v6784
        %v6980 = vunpack.c.l.b16 %v6785
        %v6981 = vunpack.c.l.b16 %v6786
        %v6982 = vunpack.c.l.b16 %v6787
        %v6983 = vunpack.c.l.b16 %v6788
        %v6984 = vunpack.c.l.b16 %v6789
        %v6985 = vunpack.c.l.b16 %v6790
        %v6986 = vunpack.c.l.b16 %v6791
        %v6987 = vunpack.c.l.b16 %v6792
        %v6988 = vunpack.c.l.b16 %v6793
        %v6989 = vunpack.c.l.b16 %v6794
        %v6990 = vunpack.c.l.b16 %v6795
        %v6991 = vunpack.c.l.b16 %v6796
        %v6992 = vunpack.c.l.b16 %v6797
        %v6993 = vunpack.c.l.b16 %v6798
        %v6994 = vunpack.c.l.b16 %v6799
        %v6995 = vunpack.c.l.b16 %v6800
        %v6996 = vunpack.c.l.b16 %v6801
        %v6997 = vunpack.c.l.b16 %v6802
        %v6998 = vunpack.c.l.b16 %v6803
        %v6999 = vunpack.c.l.b16 %v6804
        %v7000 = vunpack.c.l.b16 %v6805
        %v7001 = vunpack.c.l.b16 %v6806
        %v7002 = vunpack.c.l.b16 %v6807
        %v7003 = vunpack.c.l.b16 %v6808
        %v7004 = vunpack.c.l.b16 %v6809
        %v7005 = vunpack.c.l.b16 %v6810
        %v7006 = vunpack.c.l.b16 %v6811
        %v7007 = vunpack.c.l.b16 %v6812
        %v7008 = vunpack.c.l.b16 %v6813
        %v7009 = vunpack.c.l.b16 %v6814
        %v7010 = vunpack.c.l.b16 %v6815
        %v7011 = vunpack.c.l.b16 %v6816
        %v7012 = vunpack.c.l.b16 %v6817
        %v7013 = vunpack.c.l.b16 %v6818
        %v7014 = vunpack.c.l.b16 %v6819
        %v7015 = vunpack.c.l.b16 %v6820
        %v7016 = vunpack.c.l.b16 %v6821
        %v7017 = vunpack.c.l.b16 %v6822
        %v7018 = vunpack.c.l.b16 %v6823
        %v7019 = vunpack.c.l.b16 %v6824
        %v7020 = vunpack.c.l.b16 %v6825
        %v7021 = vunpack.c.l.b16 %v6826
        %v7022 = vunpack.c.l.b16 %v6827
        %v7023 = vunpack.c.l.b16 %v6828
        %v7024 = vunpack.c.l.b16 %v6829
        %v7025 = vunpack.c.l.b16 %v6830
        %v7026 = vunpack.c.l.b16 %v6831
        %v7027 = vunpack.c.l.b16 %v6832
        %v7028 = vunpack.c.l.b16 %v6833
        %v7029 = vunpack.c.l.b16 %v6834
        %v7030 = vunpack.c.l.b16 %v6835
        %v7031 = vunpack.c.l.b16 %v6836
        %v7032 = vunpack.c.l.b16 %v6837
        %v7033 = vunpack.c.l.b16 %v6838
        %v7034 = vunpack.c.l.b16 %v6839
        %v7035 = vunpack.c.l.b16 %v6840
        %v7036 = vunpack.c.l.b16 %v6841
        %v7037 = vunpack.c.l.b16 %v6842
        %v7038 = vunpack.c.l.b16 %v6843
        %v7039 = vunpack.c.l.b16 %v6844
        %v7040 = vunpack.c.l.b16 %v6845
        %v7041 = vunpack.c.l.b16 %v6846
        %v7042 = vunpack.c.l.b16 %v6847
        %v7043 = vunpack.c.l.b16 %v6848
        %v7044 = vunpack.c.l.b16 %v6849
        %v7045 = vunpack.c.l.b16 %v6850
        %v7046 = vunpack.c.l.b16 %v6851
        %v7047 = vunpack.c.l.b16 %v6852
        %v7048 = vunpack.c.l.b16 %v6853
        %v7049 = vunpack.c.l.b16 %v6854
        %v7050 = vunpack.c.l.b16 %v6855
        %v7051 = vunpack.c.l.b16 %v6856
        %v7052 = vunpack.c.l.b16 %v6857
        %v7053 = vunpack.c.l.b16 %v6858
        %v7054 = vunpack.c.l.b16 %v6859
        %v7055 = vunpack.c.l.b16 %v6860
        %v7056 = vpack.c.b16 %v6977, %v6976
        %v7057 = vpack.c.b16 %v6979, %v6978
        %v7058 = vpack.c.b16 %v6981, %v6980
        %v7059 = vpack.c.b16 %v6983, %v6982
        %v7060 = vpack.c.b16 %v6985, %v6984
        %v7061 = vpack.c.b16 %v6987, %v6986
        %v7062 = vpack.c.b16 %v6989, %v6988
        %v7063 = vpack.c.b16 %v6991, %v6990
        %v7064 = vpack.c.b16 %v6993, %v6992
        %v7065 = vpack.c.b16 %v6995, %v6994
        %v7066 = vpack.c.b16 %v6997, %v6996
        %v7067 = vpack.c.b16 %v6999, %v6998
        %v7068 = vpack.c.b16 %v7001, %v7000
        %v7069 = vpack.c.b16 %v7003, %v7002
        %v7070 = vpack.c.b16 %v7005, %v7004
        %v7071 = vpack.c.b16 %v7007, %v7006
        %v7072 = vpack.c.b16 %v7009, %v7008
        %v7073 = vpack.c.b16 %v7011, %v7010
        %v7074 = vpack.c.b16 %v7013, %v7012
        %v7075 = vpack.c.b16 %v7015, %v7014
        %v7076 = vpack.c.b16 %v7017, %v7016
        %v7077 = vpack.c.b16 %v7019, %v7018
        %v7078 = vpack.c.b16 %v7021, %v7020
        %v7079 = vpack.c.b16 %v7023, %v7022
        %v7080 = vpack.c.b16 %v7025, %v7024
        %v7081 = vpack.c.b16 %v7027, %v7026
        %v7082 = vpack.c.b16 %v7029, %v7028
        %v7083 = vpack.c.b16 %v7031, %v7030
        %v7084 = vpack.c.b16 %v7033, %v7032
        %v7085 = vpack.c.b16 %v7035, %v7034
        %v7086 = vpack.c.b16 %v7037, %v7036
        %v7087 = vpack.c.b16 %v7039, %v7038
        %v7088 = vpack.c.b16 %v7041, %v7040
        %v7089 = vpack.c.b16 %v7043, %v7042
        %v7090 = vpack.c.b16 %v7045, %v7044
        %v7091 = vpack.c.b16 %v7047, %v7046
        %v7092 = vpack.c.b16 %v7049, %v7048
        %v7093 = vpack.c.b16 %v7051, %v7050
        %v7094 = vpack.c.b16 %v7053, %v7052
        %v7095 = vpack.c.b16 %v7055, %v7054
        %7136 = vmatprep.subr.bf16.mxu0 0
        %7137 = vmatpush1.bf16.msra.mxu0 %v7063
        %7138 = vmatprep.subr.bf16.mxu0 0
        %7139 = vmatpush1.bf16.msra.mxu0 %v7062
        %7140 = vmatprep.subr.bf16.mxu0 0
        %7141 = vmatpush1.bf16.msra.mxu0 %v7061
        %7142 = vmatprep.subr.bf16.mxu0 0
        %7143 = vmatpush1.bf16.msra.mxu0 %v7060
        %7144 = vmatprep.subr.bf16.mxu0 0
        %7145 = vmatpush1.bf16.msra.mxu0 %v7059
        %7146 = vmatprep.subr.bf16.mxu0 0
        %7147 = vmatpush1.bf16.msra.mxu0 %v7058
        %7148 = vmatprep.subr.bf16.mxu0 0
        %7149 = vmatpush1.bf16.msra.mxu0 %v7057
        %7150 = vmatprep.subr.bf16.mxu0 0
        %7151 = vmatpush1.bf16.msra.mxu0 %v7056
        %7152 = vmatprep.subr.bf16.mxu0 0
        %7153 = vmatpush2.bf16.msra.mxu0 %v7071
        %7154 = vmatprep.subr.bf16.mxu0 0
        %7155 = vmatpush2.bf16.msra.mxu0 %v7070
        %7156 = vmatprep.subr.bf16.mxu0 0
        %7157 = vmatpush2.bf16.msra.mxu0 %v7069
        %7158 = vmatprep.subr.bf16.mxu0 0
        %7159 = vmatpush2.bf16.msra.mxu0 %v7068
        %7160 = vmatprep.subr.bf16.mxu0 0
        %7161 = vmatpush2.bf16.msra.mxu0 %v7067
        %7162 = vmatprep.subr.bf16.mxu0 0
        %7163 = vmatpush2.bf16.msra.mxu0 %v7066
        %7164 = vmatprep.subr.bf16.mxu0 0
        %7165 = vmatpush2.bf16.msra.mxu0 %v7065
        %7166 = vmatprep.subr.bf16.mxu0 0
        %7167 = vmatpush2.bf16.msra.mxu0 %v7064
        %7168 = vmatprep.mubr.bf16.mxu0 %v6876
        %7169 = vmatmul.mubr.bf16.gmra.mxu0 %v6873
        %v7170 = vpop.f32.mrf.mxu0
        %v7171 = vadd.f32 0.0, %v7170
        %v7172 = vpop.f32.mrf.mxu0
        %v7173 = vpop.f32.mrf.mxu0
        %v7174 = vadd.f32 0.0, %v7173
        %v7175 = vpop.f32.mrf.mxu0
        %7176 = vmatprep.mubr.bf16.mxu0 %v6875
        %7177 = vmatmul.mubr.bf16.gmra.mxu0 %v6872
        %v7178 = vpop.f32.mrf.mxu0
        %v7179 = vadd.f32 0.0, %v7178
        %v7180 = vpop.f32.mrf.mxu0
        %v7181 = vpop.f32.mrf.mxu0
        %v7182 = vpop.f32.mrf.mxu0
        %7183 = vdwg.mxu0
        %7184 = vmatprep.subr.bf16.mxu0 0
        %7185 = vmatpush1.bf16.msra.mxu0 %v7079
        %7186 = vmatprep.subr.bf16.mxu0 0
        %7187 = vmatpush1.bf16.msra.mxu0 %v7078
        %7188 = vmatprep.subr.bf16.mxu0 0
        %7189 = vmatpush1.bf16.msra.mxu0 %v7077
        %7190 = vmatprep.subr.bf16.mxu0 0
        %7191 = vmatpush1.bf16.msra.mxu0 %v7076
        %7192 = vmatprep.subr.bf16.mxu0 0
        %7193 = vmatpush1.bf16.msra.mxu0 %v7075
        %7194 = vmatprep.subr.bf16.mxu0 0
        %7195 = vmatpush1.bf16.msra.mxu0 %v7074
        %7196 = vmatprep.subr.bf16.mxu0 0
        %7197 = vmatpush1.bf16.msra.mxu0 %v7073
        %7198 = vmatprep.subr.bf16.mxu0 0
        %7199 = vmatpush1.bf16.msra.mxu0 %v7072
        %7200 = vmatprep.subr.bf16.mxu0 0
        %7201 = vmatpush2.bf16.msra.mxu0 %v7087
        %7202 = vmatprep.subr.bf16.mxu0 0
        %7203 = vmatpush2.bf16.msra.mxu0 %v7086
        %7204 = vmatprep.subr.bf16.mxu0 0
        %7205 = vmatpush2.bf16.msra.mxu0 %v7085
        %7206 = vmatprep.subr.bf16.mxu0 0
        %7207 = vmatpush2.bf16.msra.mxu0 %v7084
        %7208 = vmatprep.subr.bf16.mxu0 0
        %7209 = vmatpush2.bf16.msra.mxu0 %v7083
        %7210 = vmatprep.subr.bf16.mxu0 0
        %7211 = vmatpush2.bf16.msra.mxu0 %v7082
        %7212 = vmatprep.subr.bf16.mxu0 0
        %7213 = vmatpush2.bf16.msra.mxu0 %v7081
        %7214 = vmatprep.subr.bf16.mxu0 0
        %7215 = vmatpush2.bf16.msra.mxu0 %v7080
        %7216 = vmatprep.mubr.bf16.mxu0 %v6882
        %7217 = vmatmul.mubr.bf16.gmra.mxu0 %v6879
        %v7218 = vpop.f32.mrf.mxu0
        %v7219 = vadd.f32 %v7171, %v7218
        %v7220 = vpop.f32.mrf.mxu0
        %v7221 = vpop.f32.mrf.mxu0
        %v7222 = vadd.f32 %v7174, %v7221
        %v7223 = vpop.f32.mrf.mxu0
        %7224 = vmatprep.mubr.bf16.mxu0 %v6881
        %7225 = vmatmul.mubr.bf16.gmra.mxu0 %v6878
        %v7226 = vpop.f32.mrf.mxu0
        %v7227 = vadd.f32 %v7179, %v7226
        %v7228 = vpop.f32.mrf.mxu0
        %v7229 = vpop.f32.mrf.mxu0
        %v7230 = vpop.f32.mrf.mxu0
        %7231 = vdwg.mxu0
        %7232 = vmatprep.subr.bf16.mxu0 0
        %7233 = vmatpush1.bf16.msra.mxu0 %v7095
        %7234 = vmatprep.subr.bf16.mxu0 0
        %7235 = vmatpush1.bf16.msra.mxu0 %v7094
        %7236 = vmatprep.subr.bf16.mxu0 0
        %7237 = vmatpush1.bf16.msra.mxu0 %v7093
        %7238 = vmatprep.subr.bf16.mxu0 0
        %7239 = vmatpush1.bf16.msra.mxu0 %v7092
        %7240 = vmatprep.subr.bf16.mxu0 0
        %7241 = vmatpush1.bf16.msra.mxu0 %v7091
        %7242 = vmatprep.subr.bf16.mxu0 0
        %7243 = vmatpush1.bf16.msra.mxu0 %v7090
        %7244 = vmatprep.subr.bf16.mxu0 0
        %7245 = vmatpush1.bf16.msra.mxu0 %v7089
        %7246 = vmatprep.subr.bf16.mxu0 0
        %7247 = vmatpush1.bf16.msra.mxu0 %v7088
        %7248 = vmatprep.subr.bf16.mxu0 0
        %7249 = vmatpush2.bf16.msra.mxu0 0
        %7250 = vmatprep.subr.bf16.mxu0 0
        %7251 = vmatpush2.bf16.msra.mxu0 0
        %7252 = vmatprep.subr.bf16.mxu0 0
        %7253 = vmatpush2.bf16.msra.mxu0 0
        %7254 = vmatprep.subr.bf16.mxu0 0
        %7255 = vmatpush2.bf16.msra.mxu0 0
        %7256 = vmatprep.subr.bf16.mxu0 0
        %7257 = vmatpush2.bf16.msra.mxu0 0
        %7258 = vmatprep.subr.bf16.mxu0 0
        %7259 = vmatpush2.bf16.msra.mxu0 0
        %7260 = vmatprep.subr.bf16.mxu0 0
        %7261 = vmatpush2.bf16.msra.mxu0 0
        %7262 = vmatprep.subr.bf16.mxu0 0
        %7263 = vmatpush2.bf16.msra.mxu0 0
        %7264 = vmatprep.mubr.bf16.mxu0 0
        %7265 = vmatmul.mubr.bf16.gmra.mxu0 %v6885
        %v7266 = vpop.f32.mrf.mxu0
        %v7267 = vadd.f32 %v7219, %v7266
        %v7268 = vpop.f32.mrf.mxu0
        %v7269 = vpop.f32.mrf.mxu0
        %v7270 = vadd.f32 %v7222, %v7269
        %v7271 = vpop.f32.mrf.mxu0
        %7272 = vmatprep.mubr.bf16.mxu0 0
        %7273 = vmatmul.mubr.bf16.gmra.mxu0 %v6884
        %v7274 = vpop.f32.mrf.mxu0
        %v7275 = vadd.f32 %v7227, %v7274
        %v7276 = vpop.f32.mrf.mxu0
        %v7277 = vpop.f32.mrf.mxu0
        %v7278 = vpop.f32.mrf.mxu0
        %7279 = vdwg.mxu0
        %v7280 = vadd.f32 %v6767, %v7267
        %v7281 = vadd.f32 %v6770, %v7270
        %v7282 = vadd.f32 %v6775, %v7275
        %v7283 = vld [vmem:[#allocation5] sm:$0x1]
        %v7285 = vlaneseq
        %v7286 = vshrl.u32 %v7285, 7
        %v7287 = vsub.s32 0, %v7286
        %v7288 = vrot.slane %v7283, %v7287
        %v7290 = vadd.f32 %v7280, %v7288
        %v7291 = vadd.f32 %v7281, %v7288
        %v7292 = vadd.f32 %v7282, %v7288
        %vm7293 = vcmp.ge.f32.partialorder %v7290, 0.0
        %vm7294 = vcmp.ge.f32.partialorder %v7291, 0.0
        %vm7295 = vcmp.ge.f32.partialorder %v7292, 0.0
        %v7296 = vmul.f32 %v7290, 0.2
        %v7297 = vmul.f32 %v7291, 0.2
        %v7298 = vmul.f32 %v7292, 0.2
        %v7299 = vsel %vm7293, %v7290, %v7296
        %v7300 = vsel %vm7294, %v7291, %v7297
        %v7301 = vsel %vm7295, %v7292, %v7298
        %v7305 = vrot.slane %v7299, 7
        %v7306 = vrot.slane %v7300, 7
        %v7307 = vsel %vm5709, %v7305, %v7306
        %v7308 = vrot.slane %v7301, 7
        %v7309 = vsel %vm5709, %v7306, %v7308
        %v7313 = vsel %vm5709, 0.0, %v7305
        %v7314 = vsel %vm5755, %v7309, 0.0
        %v7315 = vpack.c.bf16 %v7307, %v7313
        %v7316 = vpack.c.bf16 %v7314, %v7314
        %v7317 = vld [vmem:[#allocation7] sm:$0xf]
        %v7318 = vld [vmem:[#allocation7 + $0x4] sm:$0xf]
        %v7319 = vld [vmem:[#allocation7 + $0x8] sm:$0xf]
        %v7320 = vld [vmem:[#allocation7 + $0xc] sm:$0xf]
        %s7321 = scalar_lea.vmem [#allocation7], 16
        %v7322 = vld [vmem:[%s7321] sm:$0xf]
        %v7323 = vld [vmem:[%s7321 + $0x4] sm:$0xf]
        %v7324 = vld [vmem:[%s7321 + $0x8] sm:$0xf]
        %v7325 = vld [vmem:[%s7321 + $0xc] sm:$0xf]
        %v7327 = vshrl.u32 %v7315, 16
        %v7329 = vshll.u32 %v7315, 16
        %v7331 = vrot.slane %v7329, 1
        %v7332 = vor.u32 %v7327, %v7331
        %v7334 = vshll.u32 %v7316, 16
        %v7336 = vrot.slane %v7334, 1
        %v7337 = vsel %vm980, %v7332, %v7336
        %v7338 = vshrl.u32 %v7316, 16
        %v7344 = vunpack.c.l.b16 %v7322
        %v7345 = vunpack.c.l.b16 %v7323
        %v7346 = vunpack.c.l.b16 %v7324
        %v7347 = vunpack.c.l.b16 %v7325
        %v7348 = vpack.c.b16 %v7345, %v7344
        %v7349 = vpack.c.b16 %v7347, %v7346
        %vm7352 = vcmask 261120
        %v7354 = vsel %vm7352, %v7337, 0
        %v7357 = vsel %vm7352, %v7338, 0
        %7359 = vmatprep.subr.bf16.mxu0 0
        %7360 = vmatpush1.bf16.msra.mxu0 0
        %7361 = vmatprep.subr.bf16.mxu0 0
        %7362 = vmatpush1.bf16.msra.mxu0 0
        %7363 = vmatprep.subr.bf16.mxu0 0
        %7364 = vmatpush1.bf16.msra.mxu0 0
        %7365 = vmatprep.subr.bf16.mxu0 0
        %7366 = vmatpush1.bf16.msra.mxu0 0
        %7367 = vmatprep.subr.bf16.mxu0 0
        %7368 = vmatpush1.bf16.msra.mxu0 0
        %7369 = vmatprep.subr.bf16.mxu0 0
        %7370 = vmatpush1.bf16.msra.mxu0 0
        %7371 = vmatprep.subr.bf16.mxu0 0
        %7372 = vmatpush1.bf16.msra.mxu0 %v7349
        %7373 = vmatprep.subr.bf16.mxu0 0
        %7374 = vmatpush1.bf16.msra.mxu0 %v7348
        %7375 = vmatprep.subr.bf16.mxu0 0
        %7376 = vmatpush2.bf16.msra.mxu0 0
        %7377 = vmatprep.subr.bf16.mxu0 0
        %7378 = vmatpush2.bf16.msra.mxu0 0
        %7379 = vmatprep.subr.bf16.mxu0 0
        %7380 = vmatpush2.bf16.msra.mxu0 0
        %7381 = vmatprep.subr.bf16.mxu0 0
        %7382 = vmatpush2.bf16.msra.mxu0 0
        %7383 = vmatprep.subr.bf16.mxu0 0
        %7384 = vmatpush2.bf16.msra.mxu0 0
        %7385 = vmatprep.subr.bf16.mxu0 0
        %7386 = vmatpush2.bf16.msra.mxu0 0
        %7387 = vmatprep.subr.bf16.mxu0 0
        %7388 = vmatpush2.bf16.msra.mxu0 0
        %7389 = vmatprep.subr.bf16.mxu0 0
        %7390 = vmatpush2.bf16.msra.mxu0 0
        %7391 = vmatprep.mubr.bf16.mxu0 0
        %7392 = vmatmul.mubr.bf16.gmra.mxu0 %v7354
        %v7393 = vpop.f32.mrf.mxu0
        %v7394 = vadd.f32 0.0, %v7393
        %v7395 = vpop.f32.mrf.mxu0
        %v7396 = vpop.f32.mrf.mxu0
        %v7397 = vadd.f32 0.0, %v7396
        %v7398 = vpop.f32.mrf.mxu0
        %7399 = vmatprep.mubr.bf16.mxu0 0
        %7400 = vmatmul.mubr.bf16.gmra.mxu0 %v7357
        %v7401 = vpop.f32.mrf.mxu0
        %v7402 = vadd.f32 0.0, %v7401
        %v7403 = vpop.f32.mrf.mxu0
        %v7404 = vpop.f32.mrf.mxu0
        %v7405 = vpop.f32.mrf.mxu0
        %7406 = vdwg.mxu0
        %v7411 = vunpack.c.l.b16 %v7317
        %v7412 = vunpack.c.l.b16 %v7318
        %v7413 = vunpack.c.l.b16 %v7319
        %v7414 = vunpack.c.l.b16 %v7320
        %v7415 = vpack.c.b16 %v7412, %v7411
        %v7416 = vpack.c.b16 %v7414, %v7413
        %v7419 = vsel %vm7352, %v7315, 0
        %v7421 = vsel %vm7352, %v7316, 0
        %7423 = vmatprep.subr.bf16.mxu0 0
        %7424 = vmatpush1.bf16.msra.mxu0 0
        %7425 = vmatprep.subr.bf16.mxu0 0
        %7426 = vmatpush1.bf16.msra.mxu0 0
        %7427 = vmatprep.subr.bf16.mxu0 0
        %7428 = vmatpush1.bf16.msra.mxu0 0
        %7429 = vmatprep.subr.bf16.mxu0 0
        %7430 = vmatpush1.bf16.msra.mxu0 0
        %7431 = vmatprep.subr.bf16.mxu0 0
        %7432 = vmatpush1.bf16.msra.mxu0 0
        %7433 = vmatprep.subr.bf16.mxu0 0
        %7434 = vmatpush1.bf16.msra.mxu0 0
        %7435 = vmatprep.subr.bf16.mxu0 0
        %7436 = vmatpush1.bf16.msra.mxu0 %v7416
        %7437 = vmatprep.subr.bf16.mxu0 0
        %7438 = vmatpush1.bf16.msra.mxu0 %v7415
        %7439 = vmatprep.subr.bf16.mxu0 0
        %7440 = vmatpush2.bf16.msra.mxu0 0
        %7441 = vmatprep.subr.bf16.mxu0 0
        %7442 = vmatpush2.bf16.msra.mxu0 0
        %7443 = vmatprep.subr.bf16.mxu0 0
        %7444 = vmatpush2.bf16.msra.mxu0 0
        %7445 = vmatprep.subr.bf16.mxu0 0
        %7446 = vmatpush2.bf16.msra.mxu0 0
        %7447 = vmatprep.subr.bf16.mxu0 0
        %7448 = vmatpush2.bf16.msra.mxu0 0
        %7449 = vmatprep.subr.bf16.mxu0 0
        %7450 = vmatpush2.bf16.msra.mxu0 0
        %7451 = vmatprep.subr.bf16.mxu0 0
        %7452 = vmatpush2.bf16.msra.mxu0 0
        %7453 = vmatprep.subr.bf16.mxu0 0
        %7454 = vmatpush2.bf16.msra.mxu0 0
        %7455 = vmatprep.mubr.bf16.mxu0 0
        %7456 = vmatmul.mubr.bf16.gmra.mxu0 %v7419
        %v7457 = vpop.f32.mrf.mxu0
        %v7458 = vadd.f32 %v7394, %v7457
        %v7459 = vpop.f32.mrf.mxu0
        %v7460 = vpop.f32.mrf.mxu0
        %v7461 = vadd.f32 %v7397, %v7460
        %v7462 = vpop.f32.mrf.mxu0
        %7463 = vmatprep.mubr.bf16.mxu0 0
        %7464 = vmatmul.mubr.bf16.gmra.mxu0 %v7421
        %v7465 = vpop.f32.mrf.mxu0
        %v7466 = vadd.f32 %v7402, %v7465
        %v7467 = vpop.f32.mrf.mxu0
        %v7468 = vpop.f32.mrf.mxu0
        %v7469 = vpop.f32.mrf.mxu0
        %7470 = vdwg.mxu0
        %s7471 = scalar_lea.vmem [#allocation7], 32
        %v7472 = vld [vmem:[%s7471] sm:$0xf]
        %v7473 = vld [vmem:[%s7471 + $0x4] sm:$0xf]
        %v7474 = vld [vmem:[%s7471 + $0x8] sm:$0xf]
        %v7475 = vld [vmem:[%s7471 + $0xc] sm:$0xf]
        %v7478 = vrot.slane %v7315, 1
        %v7479 = vrot.slane %v7316, 1
        %v7480 = vsel %vm3288, %v7478, %v7479
        %v7485 = vunpack.c.l.b16 %v7472
        %v7486 = vunpack.c.l.b16 %v7473
        %v7487 = vunpack.c.l.b16 %v7474
        %v7488 = vunpack.c.l.b16 %v7475
        %v7489 = vpack.c.b16 %v7486, %v7485
        %v7490 = vpack.c.b16 %v7488, %v7487
        %v7494 = vsel %vm7352, %v7480, 0
        %v7497 = vsel %vm7352, %v7479, 0
        %7499 = vmatprep.subr.bf16.mxu0 0
        %7500 = vmatpush1.bf16.msra.mxu0 0
        %7501 = vmatprep.subr.bf16.mxu0 0
        %7502 = vmatpush1.bf16.msra.mxu0 0
        %7503 = vmatprep.subr.bf16.mxu0 0
        %7504 = vmatpush1.bf16.msra.mxu0 0
        %7505 = vmatprep.subr.bf16.mxu0 0
        %7506 = vmatpush1.bf16.msra.mxu0 0
        %7507 = vmatprep.subr.bf16.mxu0 0
        %7508 = vmatpush1.bf16.msra.mxu0 0
        %7509 = vmatprep.subr.bf16.mxu0 0
        %7510 = vmatpush1.bf16.msra.mxu0 0
        %7511 = vmatprep.subr.bf16.mxu0 0
        %7512 = vmatpush1.bf16.msra.mxu0 %v7490
        %7513 = vmatprep.subr.bf16.mxu0 0
        %7514 = vmatpush1.bf16.msra.mxu0 %v7489
        %7515 = vmatprep.subr.bf16.mxu0 0
        %7516 = vmatpush2.bf16.msra.mxu0 0
        %7517 = vmatprep.subr.bf16.mxu0 0
        %7518 = vmatpush2.bf16.msra.mxu0 0
        %7519 = vmatprep.subr.bf16.mxu0 0
        %7520 = vmatpush2.bf16.msra.mxu0 0
        %7521 = vmatprep.subr.bf16.mxu0 0
        %7522 = vmatpush2.bf16.msra.mxu0 0
        %7523 = vmatprep.subr.bf16.mxu0 0
        %7524 = vmatpush2.bf16.msra.mxu0 0
        %7525 = vmatprep.subr.bf16.mxu0 0
        %7526 = vmatpush2.bf16.msra.mxu0 0
        %7527 = vmatprep.subr.bf16.mxu0 0
        %7528 = vmatpush2.bf16.msra.mxu0 0
        %7529 = vmatprep.subr.bf16.mxu0 0
        %7530 = vmatpush2.bf16.msra.mxu0 0
        %7531 = vmatprep.mubr.bf16.mxu0 0
        %7532 = vmatmul.mubr.bf16.gmra.mxu0 %v7494
        %v7533 = vpop.f32.mrf.mxu0
        %v7534 = vadd.f32 0.0, %v7533
        %v7535 = vpop.f32.mrf.mxu0
        %v7536 = vpop.f32.mrf.mxu0
        %v7537 = vadd.f32 0.0, %v7536
        %v7538 = vpop.f32.mrf.mxu0
        %7539 = vmatprep.mubr.bf16.mxu0 0
        %7540 = vmatmul.mubr.bf16.gmra.mxu0 %v7497
        %v7541 = vpop.f32.mrf.mxu0
        %v7542 = vadd.f32 0.0, %v7541
        %v7543 = vpop.f32.mrf.mxu0
        %v7544 = vpop.f32.mrf.mxu0
        %v7545 = vpop.f32.mrf.mxu0
        %7546 = vdwg.mxu0
        %v7547 = vadd.f32 %v7458, %v7534
        %v7548 = vadd.f32 %v7461, %v7537
        %v7549 = vadd.f32 %v7466, %v7542
        %v7550 = vld [vmem:[#allocation8] sm:$0x1]
        %v7552 = vlaneseq
        %v7553 = vshrl.u32 %v7552, 7
        %v7554 = vsub.s32 0, %v7553
        %v7555 = vrot.slane %v7550, %v7554
        %v7557 = vadd.f32 %v7547, %v7555
        %v7558 = vadd.f32 %v7548, %v7555
        %v7559 = vadd.f32 %v7549, %v7555
        %v7560 = vlaneseq
        %v7561 = vshrl.u32 %v7560, 7
        %v7562 = vlaneseq
        %v7563 = vand.u32 %v7562, 127
        %v7564 = vmul.u32 %v7561, 2
        %vm7565 = vcmp.eq.s32.totalorder %v7563, %v7564
        %v7566 = vadd.s32 %v7564, 1
        %vm7567 = vcmp.eq.s32.totalorder %v7563, %v7566
        %vm7568 = vmor %vm7565, %vm7567
        %v7569 = vsel %vm7568, 0.5, 0.0
        %vm7570 = vcmask 138240
        %v7572 = vsel %vm7570, %v7569, 0
        %v7575 = vsel %vm5709, %v7559, 0
        %7577 = vmatprep.subr.mxu0 0.0
        %7578 = vmatpush1.msra.mxu0 0.0
        %7579 = vmatprep.subr.mxu0 0.0
        %7580 = vmatpush1.msra.mxu0 0.0
        %7581 = vmatprep.subr.mxu0 0.0
        %7582 = vmatpush1.msra.mxu0 0.0
        %7583 = vmatprep.subr.mxu0 0.0
        %7584 = vmatpush1.msra.mxu0 0.0
        %7585 = vmatprep.subr.mxu0 0.0
        %7586 = vmatpush1.msra.mxu0 0.0
        %7587 = vmatprep.subr.mxu0 0.0
        %7588 = vmatpush1.msra.mxu0 0.0
        %7589 = vmatprep.subr.mxu0 0.0
        %7590 = vmatpush1.msra.mxu0 0.0
        %7591 = vmatprep.subr.mxu0 0.0
        %7592 = vmatpush1.msra.mxu0 0.0
        %7593 = vmatprep.subr.mxu0 0.0
        %7594 = vmatpush1.msra.mxu0 0.0
        %7595 = vmatprep.subr.mxu0 0.0
        %7596 = vmatpush1.msra.mxu0 0.0
        %7597 = vmatprep.subr.mxu0 0.0
        %7598 = vmatpush1.msra.mxu0 0.0
        %7599 = vmatprep.subr.mxu0 0.0
        %7600 = vmatpush1.msra.mxu0 0.0
        %7601 = vmatprep.subr.mxu0 0.0
        %7602 = vmatpush1.msra.mxu0 0.0
        %7603 = vmatprep.subr.mxu0 0.0
        %7604 = vmatpush1.msra.mxu0 %v7575
        %7605 = vmatprep.subr.mxu0 0.0
        %7606 = vmatpush1.msra.mxu0 %v7558
        %7607 = vmatprep.subr.mxu0 0.0
        %7608 = vmatpush1.msra.mxu0 %v7557
        %7609 = vmatprep.subr.mxu0 0.0
        %7610 = vmatpush2.msra.mxu0 0.0
        %7611 = vmatprep.subr.mxu0 0.0
        %7612 = vmatpush2.msra.mxu0 0.0
        %7613 = vmatprep.subr.mxu0 0.0
        %7614 = vmatpush2.msra.mxu0 0.0
        %7615 = vmatprep.subr.mxu0 0.0
        %7616 = vmatpush2.msra.mxu0 0.0
        %7617 = vmatprep.subr.mxu0 0.0
        %7618 = vmatpush2.msra.mxu0 0.0
        %7619 = vmatprep.subr.mxu0 0.0
        %7620 = vmatpush2.msra.mxu0 0.0
        %7621 = vmatprep.subr.mxu0 0.0
        %7622 = vmatpush2.msra.mxu0 0.0
        %7623 = vmatprep.subr.mxu0 0.0
        %7624 = vmatpush2.msra.mxu0 0.0
        %7625 = vmatprep.subr.mxu0 0.0
        %7626 = vmatpush2.msra.mxu0 0.0
        %7627 = vmatprep.subr.mxu0 0.0
        %7628 = vmatpush2.msra.mxu0 0.0
        %7629 = vmatprep.subr.mxu0 0.0
        %7630 = vmatpush2.msra.mxu0 0.0
        %7631 = vmatprep.subr.mxu0 0.0
        %7632 = vmatpush2.msra.mxu0 0.0
        %7633 = vmatprep.subr.mxu0 0.0
        %7634 = vmatpush2.msra.mxu0 0.0
        %7635 = vmatprep.subr.mxu0 0.0
        %7636 = vmatpush2.msra.mxu0 0.0
        %7637 = vmatprep.subr.mxu0 0.0
        %7638 = vmatpush2.msra.mxu0 0.0
        %7639 = vmatprep.subr.mxu0 0.0
        %7640 = vmatpush2.msra.mxu0 0.0
        %7641 = vmatprep.mubr.f32.mxu0 0.0
        %7642 = vmatmul.mubr.f32.gmra.mxu0 %v7572
        %v7643 = vpop.f32.mrf.mxu0
        %v7644 = vadd.f32 0.0, %v7643
        %v7645 = vpop.f32.mrf.mxu0
        %7646 = vdwg.mxu0
        %vm7647 = vcmp.ge.f32.partialorder %v7644, 0.0
        %v7648 = vmul.f32 %v7644, 0.2
        %v7649 = vsel %vm7647, %v7644, %v7648
        %v7651 = vrot.slane %v7649, 7
        %v7653 = vsel %vm5709, 0.0, %v7651
        %v7654 = vsel %vm5709, %v7651, 0.0
        %v7655 = vpack.c.bf16 %v7654, %v7653
        %v7656 = vld [vmem:[#allocation10] sm:$0xf]
        %v7657 = vld [vmem:[#allocation10 + $0x4] sm:$0xf]
        %v7658 = vld [vmem:[#allocation10 + $0x8] sm:$0xf]
        %v7659 = vld [vmem:[#allocation10 + $0xc] sm:$0xf]
        %v7660 = vld [vmem:[#allocation10 + $0x10] sm:$0xf]
        %v7661 = vld [vmem:[#allocation10 + $0x14] sm:$0xf]
        %v7662 = vld [vmem:[#allocation10 + $0x18] sm:$0xf]
        %v7663 = vld [vmem:[#allocation10 + $0x1c] sm:$0xf]
        %s7664 = scalar_lea.vmem [#allocation10], 32
        %v7665 = vld [vmem:[%s7664] sm:$0xf]
        %v7666 = vld [vmem:[%s7664 + $0x4] sm:$0xf]
        %v7667 = vld [vmem:[%s7664 + $0x8] sm:$0xf]
        %v7668 = vld [vmem:[%s7664 + $0xc] sm:$0xf]
        %v7669 = vld [vmem:[%s7664 + $0x10] sm:$0xf]
        %v7670 = vld [vmem:[%s7664 + $0x14] sm:$0xf]
        %v7671 = vld [vmem:[%s7664 + $0x18] sm:$0xf]
        %v7672 = vld [vmem:[%s7664 + $0x1c] sm:$0xf]
        %v7674 = vshrl.u32 %v7655, 16
        %v7676 = vshll.u32 %v7655, 16
        %v7678 = vrot.slane %v7676, 1
        %v7679 = vor.u32 %v7674, %v7678
        %v7688 = vunpack.c.l.b16 %v7665
        %v7689 = vunpack.c.l.b16 %v7666
        %v7690 = vunpack.c.l.b16 %v7667
        %v7691 = vunpack.c.l.b16 %v7668
        %v7692 = vunpack.c.l.b16 %v7669
        %v7693 = vunpack.c.l.b16 %v7670
        %v7694 = vunpack.c.l.b16 %v7671
        %v7695 = vunpack.c.l.b16 %v7672
        %v7696 = vpack.c.b16 %v7689, %v7688
        %v7697 = vpack.c.b16 %v7691, %v7690
        %v7698 = vpack.c.b16 %v7693, %v7692
        %v7699 = vpack.c.b16 %v7695, %v7694
        %vm7704 = vcmask 523264
        %v7706 = vsel %vm7704, %v7679, 0
        %7708 = vmatprep.subr.bf16.mxu0 0
        %7709 = vmatpush1.bf16.msra.mxu0 0
        %7710 = vmatprep.subr.bf16.mxu0 0
        %7711 = vmatpush1.bf16.msra.mxu0 0
        %7712 = vmatprep.subr.bf16.mxu0 0
        %7713 = vmatpush1.bf16.msra.mxu0 0
        %7714 = vmatprep.subr.bf16.mxu0 0
        %7715 = vmatpush1.bf16.msra.mxu0 0
        %7716 = vmatprep.subr.bf16.mxu0 0
        %7717 = vmatpush1.bf16.msra.mxu0 %v7699
        %7718 = vmatprep.subr.bf16.mxu0 0
        %7719 = vmatpush1.bf16.msra.mxu0 %v7698
        %7720 = vmatprep.subr.bf16.mxu0 0
        %7721 = vmatpush1.bf16.msra.mxu0 %v7697
        %7722 = vmatprep.subr.bf16.mxu0 0
        %7723 = vmatpush1.bf16.msra.mxu0 %v7696
        %7724 = vmatprep.subr.bf16.mxu0 0
        %7725 = vmatpush2.bf16.msra.mxu0 0
        %7726 = vmatprep.subr.bf16.mxu0 0
        %7727 = vmatpush2.bf16.msra.mxu0 0
        %7728 = vmatprep.subr.bf16.mxu0 0
        %7729 = vmatpush2.bf16.msra.mxu0 0
        %7730 = vmatprep.subr.bf16.mxu0 0
        %7731 = vmatpush2.bf16.msra.mxu0 0
        %7732 = vmatprep.subr.bf16.mxu0 0
        %7733 = vmatpush2.bf16.msra.mxu0 0
        %7734 = vmatprep.subr.bf16.mxu0 0
        %7735 = vmatpush2.bf16.msra.mxu0 0
        %7736 = vmatprep.subr.bf16.mxu0 0
        %7737 = vmatpush2.bf16.msra.mxu0 0
        %7738 = vmatprep.subr.bf16.mxu0 0
        %7739 = vmatpush2.bf16.msra.mxu0 0
        %7740 = vmatprep.mubr.bf16.mxu0 0
        %7741 = vmatmul.mubr.bf16.gmra.mxu0 %v7706
        %v7742 = vpop.f32.mrf.mxu0
        %v7743 = vadd.f32 0.0, %v7742
        %v7744 = vpop.f32.mrf.mxu0
        %v7745 = vpop.f32.mrf.mxu0
        %v7746 = vpop.f32.mrf.mxu0
        %7747 = vdwg.mxu0
        %v7756 = vunpack.c.l.b16 %v7656
        %v7757 = vunpack.c.l.b16 %v7657
        %v7758 = vunpack.c.l.b16 %v7658
        %v7759 = vunpack.c.l.b16 %v7659
        %v7760 = vunpack.c.l.b16 %v7660
        %v7761 = vunpack.c.l.b16 %v7661
        %v7762 = vunpack.c.l.b16 %v7662
        %v7763 = vunpack.c.l.b16 %v7663
        %v7764 = vpack.c.b16 %v7757, %v7756
        %v7765 = vpack.c.b16 %v7759, %v7758
        %v7766 = vpack.c.b16 %v7761, %v7760
        %v7767 = vpack.c.b16 %v7763, %v7762
        %v7772 = vsel %vm7704, %v7655, 0
        %7774 = vmatprep.subr.bf16.mxu0 0
        %7775 = vmatpush1.bf16.msra.mxu0 0
        %7776 = vmatprep.subr.bf16.mxu0 0
        %7777 = vmatpush1.bf16.msra.mxu0 0
        %7778 = vmatprep.subr.bf16.mxu0 0
        %7779 = vmatpush1.bf16.msra.mxu0 0
        %7780 = vmatprep.subr.bf16.mxu0 0
        %7781 = vmatpush1.bf16.msra.mxu0 0
        %7782 = vmatprep.subr.bf16.mxu0 0
        %7783 = vmatpush1.bf16.msra.mxu0 %v7767
        %7784 = vmatprep.subr.bf16.mxu0 0
        %7785 = vmatpush1.bf16.msra.mxu0 %v7766
        %7786 = vmatprep.subr.bf16.mxu0 0
        %7787 = vmatpush1.bf16.msra.mxu0 %v7765
        %7788 = vmatprep.subr.bf16.mxu0 0
        %7789 = vmatpush1.bf16.msra.mxu0 %v7764
        %7790 = vmatprep.subr.bf16.mxu0 0
        %7791 = vmatpush2.bf16.msra.mxu0 0
        %7792 = vmatprep.subr.bf16.mxu0 0
        %7793 = vmatpush2.bf16.msra.mxu0 0
        %7794 = vmatprep.subr.bf16.mxu0 0
        %7795 = vmatpush2.bf16.msra.mxu0 0
        %7796 = vmatprep.subr.bf16.mxu0 0
        %7797 = vmatpush2.bf16.msra.mxu0 0
        %7798 = vmatprep.subr.bf16.mxu0 0
        %7799 = vmatpush2.bf16.msra.mxu0 0
        %7800 = vmatprep.subr.bf16.mxu0 0
        %7801 = vmatpush2.bf16.msra.mxu0 0
        %7802 = vmatprep.subr.bf16.mxu0 0
        %7803 = vmatpush2.bf16.msra.mxu0 0
        %7804 = vmatprep.subr.bf16.mxu0 0
        %7805 = vmatpush2.bf16.msra.mxu0 0
        %7806 = vmatprep.mubr.bf16.mxu0 0
        %7807 = vmatmul.mubr.bf16.gmra.mxu0 %v7772
        %v7808 = vpop.f32.mrf.mxu0
        %v7809 = vadd.f32 %v7743, %v7808
        %v7810 = vpop.f32.mrf.mxu0
        %v7811 = vpop.f32.mrf.mxu0
        %v7812 = vpop.f32.mrf.mxu0
        %7813 = vdwg.mxu0
        %s7814 = scalar_lea.vmem [#allocation10], 64
        %v7815 = vld [vmem:[%s7814] sm:$0xf]
        %v7816 = vld [vmem:[%s7814 + $0x4] sm:$0xf]
        %v7817 = vld [vmem:[%s7814 + $0x8] sm:$0xf]
        %v7818 = vld [vmem:[%s7814 + $0xc] sm:$0xf]
        %v7819 = vld [vmem:[%s7814 + $0x10] sm:$0xf]
        %v7820 = vld [vmem:[%s7814 + $0x14] sm:$0xf]
        %v7821 = vld [vmem:[%s7814 + $0x18] sm:$0xf]
        %v7822 = vld [vmem:[%s7814 + $0x1c] sm:$0xf]
        %v7824 = vrot.slane %v7655, 1
        %v7833 = vunpack.c.l.b16 %v7815
        %v7834 = vunpack.c.l.b16 %v7816
        %v7835 = vunpack.c.l.b16 %v7817
        %v7836 = vunpack.c.l.b16 %v7818
        %v7837 = vunpack.c.l.b16 %v7819
        %v7838 = vunpack.c.l.b16 %v7820
        %v7839 = vunpack.c.l.b16 %v7821
        %v7840 = vunpack.c.l.b16 %v7822
        %v7841 = vpack.c.b16 %v7834, %v7833
        %v7842 = vpack.c.b16 %v7836, %v7835
        %v7843 = vpack.c.b16 %v7838, %v7837
        %v7844 = vpack.c.b16 %v7840, %v7839
        %v7850 = vsel %vm7704, %v7824, 0
        %7852 = vmatprep.subr.bf16.mxu0 0
        %7853 = vmatpush1.bf16.msra.mxu0 0
        %7854 = vmatprep.subr.bf16.mxu0 0
        %7855 = vmatpush1.bf16.msra.mxu0 0
        %7856 = vmatprep.subr.bf16.mxu0 0
        %7857 = vmatpush1.bf16.msra.mxu0 0
        %7858 = vmatprep.subr.bf16.mxu0 0
        %7859 = vmatpush1.bf16.msra.mxu0 0
        %7860 = vmatprep.subr.bf16.mxu0 0
        %7861 = vmatpush1.bf16.msra.mxu0 %v7844
        %7862 = vmatprep.subr.bf16.mxu0 0
        %7863 = vmatpush1.bf16.msra.mxu0 %v7843
        %7864 = vmatprep.subr.bf16.mxu0 0
        %7865 = vmatpush1.bf16.msra.mxu0 %v7842
        %7866 = vmatprep.subr.bf16.mxu0 0
        %7867 = vmatpush1.bf16.msra.mxu0 %v7841
        %7868 = vmatprep.subr.bf16.mxu0 0
        %7869 = vmatpush2.bf16.msra.mxu0 0
        %7870 = vmatprep.subr.bf16.mxu0 0
        %7871 = vmatpush2.bf16.msra.mxu0 0
        %7872 = vmatprep.subr.bf16.mxu0 0
        %7873 = vmatpush2.bf16.msra.mxu0 0
        %7874 = vmatprep.subr.bf16.mxu0 0
        %7875 = vmatpush2.bf16.msra.mxu0 0
        %7876 = vmatprep.subr.bf16.mxu0 0
        %7877 = vmatpush2.bf16.msra.mxu0 0
        %7878 = vmatprep.subr.bf16.mxu0 0
        %7879 = vmatpush2.bf16.msra.mxu0 0
        %7880 = vmatprep.subr.bf16.mxu0 0
        %7881 = vmatpush2.bf16.msra.mxu0 0
        %7882 = vmatprep.subr.bf16.mxu0 0
        %7883 = vmatpush2.bf16.msra.mxu0 0
        %7884 = vmatprep.mubr.bf16.mxu0 0
        %7885 = vmatmul.mubr.bf16.gmra.mxu0 %v7850
        %v7886 = vpop.f32.mrf.mxu0
        %v7887 = vadd.f32 0.0, %v7886
        %v7888 = vpop.f32.mrf.mxu0
        %v7889 = vpop.f32.mrf.mxu0
        %v7890 = vpop.f32.mrf.mxu0
        %7891 = vdwg.mxu0
        %v7892 = vadd.f32 %v7809, %v7887
        %v7893 = vld [vmem:[#allocation11] sm:$0x1]
        %v7895 = vlaneseq
        %v7896 = vshrl.u32 %v7895, 7
        %v7897 = vsub.s32 0, %v7896
        %v7898 = vrot.slane %v7893, %v7897
        %v7900 = vadd.f32 %v7892, %v7898
        %vm7901 = vcmask 64512
        %v7902 = vsel %vm7901, %v7569, 0
        %7904 = vmatprep.subr.mxu0 0.0
        %7905 = vmatpush1.msra.mxu0 0.0
        %7906 = vmatprep.subr.mxu0 0.0
        %7907 = vmatpush1.msra.mxu0 0.0
        %7908 = vmatprep.subr.mxu0 0.0
        %7909 = vmatpush1.msra.mxu0 0.0
        %7910 = vmatprep.subr.mxu0 0.0
        %7911 = vmatpush1.msra.mxu0 0.0
        %7912 = vmatprep.subr.mxu0 0.0
        %7913 = vmatpush1.msra.mxu0 0.0
        %7914 = vmatprep.subr.mxu0 0.0
        %7915 = vmatpush1.msra.mxu0 0.0
        %7916 = vmatprep.subr.mxu0 0.0
        %7917 = vmatpush1.msra.mxu0 0.0
        %7918 = vmatprep.subr.mxu0 0.0
        %7919 = vmatpush1.msra.mxu0 0.0
        %7920 = vmatprep.subr.mxu0 0.0
        %7921 = vmatpush1.msra.mxu0 0.0
        %7922 = vmatprep.subr.mxu0 0.0
        %7923 = vmatpush1.msra.mxu0 0.0
        %7924 = vmatprep.subr.mxu0 0.0
        %7925 = vmatpush1.msra.mxu0 0.0
        %7926 = vmatprep.subr.mxu0 0.0
        %7927 = vmatpush1.msra.mxu0 0.0
        %7928 = vmatprep.subr.mxu0 0.0
        %7929 = vmatpush1.msra.mxu0 0.0
        %7930 = vmatprep.subr.mxu0 0.0
        %7931 = vmatpush1.msra.mxu0 0.0
        %7932 = vmatprep.subr.mxu0 0.0
        %7933 = vmatpush1.msra.mxu0 0.0
        %7934 = vmatprep.subr.mxu0 0.0
        %7935 = vmatpush1.msra.mxu0 %v7900
        %7936 = vmatprep.subr.mxu0 0.0
        %7937 = vmatpush2.msra.mxu0 0.0
        %7938 = vmatprep.subr.mxu0 0.0
        %7939 = vmatpush2.msra.mxu0 0.0
        %7940 = vmatprep.subr.mxu0 0.0
        %7941 = vmatpush2.msra.mxu0 0.0
        %7942 = vmatprep.subr.mxu0 0.0
        %7943 = vmatpush2.msra.mxu0 0.0
        %7944 = vmatprep.subr.mxu0 0.0
        %7945 = vmatpush2.msra.mxu0 0.0
        %7946 = vmatprep.subr.mxu0 0.0
        %7947 = vmatpush2.msra.mxu0 0.0
        %7948 = vmatprep.subr.mxu0 0.0
        %7949 = vmatpush2.msra.mxu0 0.0
        %7950 = vmatprep.subr.mxu0 0.0
        %7951 = vmatpush2.msra.mxu0 0.0
        %7952 = vmatprep.subr.mxu0 0.0
        %7953 = vmatpush2.msra.mxu0 0.0
        %7954 = vmatprep.subr.mxu0 0.0
        %7955 = vmatpush2.msra.mxu0 0.0
        %7956 = vmatprep.subr.mxu0 0.0
        %7957 = vmatpush2.msra.mxu0 0.0
        %7958 = vmatprep.subr.mxu0 0.0
        %7959 = vmatpush2.msra.mxu0 0.0
        %7960 = vmatprep.subr.mxu0 0.0
        %7961 = vmatpush2.msra.mxu0 0.0
        %7962 = vmatprep.subr.mxu0 0.0
        %7963 = vmatpush2.msra.mxu0 0.0
        %7964 = vmatprep.subr.mxu0 0.0
        %7965 = vmatpush2.msra.mxu0 0.0
        %7966 = vmatprep.subr.mxu0 0.0
        %7967 = vmatpush2.msra.mxu0 0.0
        %7968 = vmatprep.mubr.f32.mxu0 0.0
        %7969 = vmatmul.mubr.f32.gmra.mxu0 %v7902
        %v7970 = vpop.f32.mrf.mxu0
        %v7971 = vadd.f32 0.0, %v7970
        %v7972 = vpop.f32.mrf.mxu0
        %7973 = vdwg.mxu0
        %vm7974 = vcmp.ge.f32.partialorder %v7971, 0.0
        %v7975 = vmul.f32 %v7971, 0.2
        %v7976 = vsel %vm7974, %v7971, %v7975
        %v7978 = vrot.slane %v7976, 7
        %v7980 = vsel %vm5709, 0.0, %v7978
        %vm7981 = vcmask 1044480
        %v7982 = vsel %vm7981, %v7980, 0.0
        %v7983 = vpack.c.bf16 %v7982, %v7982
        %v7984 = vld [vmem:[#allocation13] sm:$0xff]
        %v7985 = vld [vmem:[#allocation13 + $0x8] sm:$0xff]
        %v7986 = vld [vmem:[#allocation13 + $0x10] sm:$0xff]
        %v7987 = vld [vmem:[#allocation13 + $0x18] sm:$0xff]
        %v7988 = vld [vmem:[#allocation13 + $0x20] sm:$0xff]
        %v7989 = vld [vmem:[#allocation13 + $0x28] sm:$0xff]
        %v7990 = vld [vmem:[#allocation13 + $0x30] sm:$0xff]
        %v7991 = vld [vmem:[#allocation13 + $0x38] sm:$0xff]
        %v7992 = vld [vmem:[#allocation13 + $0x40] sm:$0xff]
        %v7993 = vld [vmem:[#allocation13 + $0x48] sm:$0xff]
        %v7994 = vld [vmem:[#allocation13 + $0x50] sm:$0xff]
        %v7995 = vld [vmem:[#allocation13 + $0x58] sm:$0xff]
        %v7996 = vld [vmem:[#allocation13 + $0x60] sm:$0xff]
        %v7997 = vld [vmem:[#allocation13 + $0x68] sm:$0xff]
        %v7998 = vld [vmem:[#allocation13 + $0x70] sm:$0xff]
        %v7999 = vld [vmem:[#allocation13 + $0x78] sm:$0xff]
        %s8000 = scalar_lea.vmem [#allocation13], 128
        %v8001 = vld [vmem:[%s8000] sm:$0xff]
        %v8002 = vld [vmem:[%s8000 + $0x8] sm:$0xff]
        %v8003 = vld [vmem:[%s8000 + $0x10] sm:$0xff]
        %v8004 = vld [vmem:[%s8000 + $0x18] sm:$0xff]
        %v8005 = vld [vmem:[%s8000 + $0x20] sm:$0xff]
        %v8006 = vld [vmem:[%s8000 + $0x28] sm:$0xff]
        %v8007 = vld [vmem:[%s8000 + $0x30] sm:$0xff]
        %v8008 = vld [vmem:[%s8000 + $0x38] sm:$0xff]
        %v8009 = vld [vmem:[%s8000 + $0x40] sm:$0xff]
        %v8010 = vld [vmem:[%s8000 + $0x48] sm:$0xff]
        %v8011 = vld [vmem:[%s8000 + $0x50] sm:$0xff]
        %v8012 = vld [vmem:[%s8000 + $0x58] sm:$0xff]
        %v8013 = vld [vmem:[%s8000 + $0x60] sm:$0xff]
        %v8014 = vld [vmem:[%s8000 + $0x68] sm:$0xff]
        %v8015 = vld [vmem:[%s8000 + $0x70] sm:$0xff]
        %v8016 = vld [vmem:[%s8000 + $0x78] sm:$0xff]
        %v8018 = vshrl.u32 %v7983, 16
        %v8020 = vshll.u32 %v7983, 16
        %v8022 = vrot.slane %v8020, 1
        %v8023 = vor.u32 %v8018, %v8022
        %v8041 = vunpack.c.l.b16 %v8001
        %v8042 = vunpack.c.h.b16 %v8001
        %v8043 = vunpack.c.l.b16 %v8002
        %v8044 = vunpack.c.h.b16 %v8002
        %v8045 = vunpack.c.l.b16 %v8003
        %v8046 = vunpack.c.h.b16 %v8003
        %v8047 = vunpack.c.l.b16 %v8004
        %v8048 = vunpack.c.h.b16 %v8004
        %v8049 = vunpack.c.l.b16 %v8005
        %v8050 = vunpack.c.h.b16 %v8005
        %v8051 = vunpack.c.l.b16 %v8006
        %v8052 = vunpack.c.h.b16 %v8006
        %v8053 = vunpack.c.l.b16 %v8007
        %v8054 = vunpack.c.h.b16 %v8007
        %v8055 = vunpack.c.l.b16 %v8008
        %v8056 = vunpack.c.h.b16 %v8008
        %v8057 = vunpack.c.l.b16 %v8009
        %v8058 = vunpack.c.h.b16 %v8009
        %v8059 = vunpack.c.l.b16 %v8010
        %v8060 = vunpack.c.h.b16 %v8010
        %v8061 = vunpack.c.l.b16 %v8011
        %v8062 = vunpack.c.h.b16 %v8011
        %v8063 = vunpack.c.l.b16 %v8012
        %v8064 = vunpack.c.h.b16 %v8012
        %v8065 = vunpack.c.l.b16 %v8013
        %v8066 = vunpack.c.h.b16 %v8013
        %v8067 = vunpack.c.l.b16 %v8014
        %v8068 = vunpack.c.h.b16 %v8014
        %v8069 = vunpack.c.l.b16 %v8015
        %v8070 = vunpack.c.h.b16 %v8015
        %v8071 = vunpack.c.l.b16 %v8016
        %v8072 = vunpack.c.h.b16 %v8016
        %v8073 = vpack.c.b16 %v8043, %v8041
        %v8074 = vpack.c.b16 %v8044, %v8042
        %v8075 = vpack.c.b16 %v8047, %v8045
        %v8076 = vpack.c.b16 %v8048, %v8046
        %v8077 = vpack.c.b16 %v8051, %v8049
        %v8078 = vpack.c.b16 %v8052, %v8050
        %v8079 = vpack.c.b16 %v8055, %v8053
        %v8080 = vpack.c.b16 %v8056, %v8054
        %v8081 = vpack.c.b16 %v8059, %v8057
        %v8082 = vpack.c.b16 %v8060, %v8058
        %v8083 = vpack.c.b16 %v8063, %v8061
        %v8084 = vpack.c.b16 %v8064, %v8062
        %v8085 = vpack.c.b16 %v8067, %v8065
        %v8086 = vpack.c.b16 %v8068, %v8066
        %v8087 = vpack.c.b16 %v8071, %v8069
        %v8088 = vpack.c.b16 %v8072, %v8070
        %8105 = vmatprep.subr.bf16.mxu0 %v8088
        %8106 = vmatpush1.bf16.msra.mxu0 %v8087
        %8107 = vmatprep.subr.bf16.mxu0 %v8086
        %8108 = vmatpush1.bf16.msra.mxu0 %v8085
        %8109 = vmatprep.subr.bf16.mxu0 %v8084
        %8110 = vmatpush1.bf16.msra.mxu0 %v8083
        %8111 = vmatprep.subr.bf16.mxu0 %v8082
        %8112 = vmatpush1.bf16.msra.mxu0 %v8081
        %8113 = vmatprep.subr.bf16.mxu0 %v8080
        %8114 = vmatpush1.bf16.msra.mxu0 %v8079
        %8115 = vmatprep.subr.bf16.mxu0 %v8078
        %8116 = vmatpush1.bf16.msra.mxu0 %v8077
        %8117 = vmatprep.subr.bf16.mxu0 %v8076
        %8118 = vmatpush1.bf16.msra.mxu0 %v8075
        %8119 = vmatprep.subr.bf16.mxu0 %v8074
        %8120 = vmatpush1.bf16.msra.mxu0 %v8073
        %8121 = vmatprep.subr.bf16.mxu0 0
        %8122 = vmatpush2.bf16.msra.mxu0 0
        %8123 = vmatprep.subr.bf16.mxu0 0
        %8124 = vmatpush2.bf16.msra.mxu0 0
        %8125 = vmatprep.subr.bf16.mxu0 0
        %8126 = vmatpush2.bf16.msra.mxu0 0
        %8127 = vmatprep.subr.bf16.mxu0 0
        %8128 = vmatpush2.bf16.msra.mxu0 0
        %8129 = vmatprep.subr.bf16.mxu0 0
        %8130 = vmatpush2.bf16.msra.mxu0 0
        %8131 = vmatprep.subr.bf16.mxu0 0
        %8132 = vmatpush2.bf16.msra.mxu0 0
        %8133 = vmatprep.subr.bf16.mxu0 0
        %8134 = vmatpush2.bf16.msra.mxu0 0
        %8135 = vmatprep.subr.bf16.mxu0 0
        %8136 = vmatpush2.bf16.msra.mxu0 0
        %8137 = vmatprep.mubr.bf16.mxu0 0
        %8138 = vmatmul.mubr.bf16.gmra.mxu0 %v8023
        %v8139 = vpop.f32.mrf.mxu0
        %v8140 = vadd.f32 0.0, %v8139
        %v8141 = vpop.f32.mrf.mxu0
        %v8142 = vadd.f32 0.0, %v8141
        %v8143 = vpop.f32.mrf.mxu0
        %v8144 = vpop.f32.mrf.mxu0
        %8145 = vdwg.mxu0
        %v8162 = vunpack.c.l.b16 %v7984
        %v8163 = vunpack.c.h.b16 %v7984
        %v8164 = vunpack.c.l.b16 %v7985
        %v8165 = vunpack.c.h.b16 %v7985
        %v8166 = vunpack.c.l.b16 %v7986
        %v8167 = vunpack.c.h.b16 %v7986
        %v8168 = vunpack.c.l.b16 %v7987
        %v8169 = vunpack.c.h.b16 %v7987
        %v8170 = vunpack.c.l.b16 %v7988
        %v8171 = vunpack.c.h.b16 %v7988
        %v8172 = vunpack.c.l.b16 %v7989
        %v8173 = vunpack.c.h.b16 %v7989
        %v8174 = vunpack.c.l.b16 %v7990
        %v8175 = vunpack.c.h.b16 %v7990
        %v8176 = vunpack.c.l.b16 %v7991
        %v8177 = vunpack.c.h.b16 %v7991
        %v8178 = vunpack.c.l.b16 %v7992
        %v8179 = vunpack.c.h.b16 %v7992
        %v8180 = vunpack.c.l.b16 %v7993
        %v8181 = vunpack.c.h.b16 %v7993
        %v8182 = vunpack.c.l.b16 %v7994
        %v8183 = vunpack.c.h.b16 %v7994
        %v8184 = vunpack.c.l.b16 %v7995
        %v8185 = vunpack.c.h.b16 %v7995
        %v8186 = vunpack.c.l.b16 %v7996
        %v8187 = vunpack.c.h.b16 %v7996
        %v8188 = vunpack.c.l.b16 %v7997
        %v8189 = vunpack.c.h.b16 %v7997
        %v8190 = vunpack.c.l.b16 %v7998
        %v8191 = vunpack.c.h.b16 %v7998
        %v8192 = vunpack.c.l.b16 %v7999
        %v8193 = vunpack.c.h.b16 %v7999
        %v8194 = vpack.c.b16 %v8164, %v8162
        %v8195 = vpack.c.b16 %v8165, %v8163
        %v8196 = vpack.c.b16 %v8168, %v8166
        %v8197 = vpack.c.b16 %v8169, %v8167
        %v8198 = vpack.c.b16 %v8172, %v8170
        %v8199 = vpack.c.b16 %v8173, %v8171
        %v8200 = vpack.c.b16 %v8176, %v8174
        %v8201 = vpack.c.b16 %v8177, %v8175
        %v8202 = vpack.c.b16 %v8180, %v8178
        %v8203 = vpack.c.b16 %v8181, %v8179
        %v8204 = vpack.c.b16 %v8184, %v8182
        %v8205 = vpack.c.b16 %v8185, %v8183
        %v8206 = vpack.c.b16 %v8188, %v8186
        %v8207 = vpack.c.b16 %v8189, %v8187
        %v8208 = vpack.c.b16 %v8192, %v8190
        %v8209 = vpack.c.b16 %v8193, %v8191
        %8226 = vmatprep.subr.bf16.mxu0 %v8209
        %8227 = vmatpush1.bf16.msra.mxu0 %v8208
        %8228 = vmatprep.subr.bf16.mxu0 %v8207
        %8229 = vmatpush1.bf16.msra.mxu0 %v8206
        %8230 = vmatprep.subr.bf16.mxu0 %v8205
        %8231 = vmatpush1.bf16.msra.mxu0 %v8204
        %8232 = vmatprep.subr.bf16.mxu0 %v8203
        %8233 = vmatpush1.bf16.msra.mxu0 %v8202
        %8234 = vmatprep.subr.bf16.mxu0 %v8201
        %8235 = vmatpush1.bf16.msra.mxu0 %v8200
        %8236 = vmatprep.subr.bf16.mxu0 %v8199
        %8237 = vmatpush1.bf16.msra.mxu0 %v8198
        %8238 = vmatprep.subr.bf16.mxu0 %v8197
        %8239 = vmatpush1.bf16.msra.mxu0 %v8196
        %8240 = vmatprep.subr.bf16.mxu0 %v8195
        %8241 = vmatpush1.bf16.msra.mxu0 %v8194
        %8242 = vmatprep.subr.bf16.mxu0 0
        %8243 = vmatpush2.bf16.msra.mxu0 0
        %8244 = vmatprep.subr.bf16.mxu0 0
        %8245 = vmatpush2.bf16.msra.mxu0 0
        %8246 = vmatprep.subr.bf16.mxu0 0
        %8247 = vmatpush2.bf16.msra.mxu0 0
        %8248 = vmatprep.subr.bf16.mxu0 0
        %8249 = vmatpush2.bf16.msra.mxu0 0
        %8250 = vmatprep.subr.bf16.mxu0 0
        %8251 = vmatpush2.bf16.msra.mxu0 0
        %8252 = vmatprep.subr.bf16.mxu0 0
        %8253 = vmatpush2.bf16.msra.mxu0 0
        %8254 = vmatprep.subr.bf16.mxu0 0
        %8255 = vmatpush2.bf16.msra.mxu0 0
        %8256 = vmatprep.subr.bf16.mxu0 0
        %8257 = vmatpush2.bf16.msra.mxu0 0
        %8258 = vmatprep.mubr.bf16.mxu0 0
        %8259 = vmatmul.mubr.bf16.gmra.mxu0 %v7983
        %v8260 = vpop.f32.mrf.mxu0
        %v8261 = vadd.f32 %v8140, %v8260
        %v8262 = vpop.f32.mrf.mxu0
        %v8263 = vadd.f32 %v8142, %v8262
        %v8264 = vpop.f32.mrf.mxu0
        %v8265 = vpop.f32.mrf.mxu0
        %8266 = vdwg.mxu0
        %s8267 = scalar_lea.vmem [#allocation13], 256
        %v8268 = vld [vmem:[%s8267] sm:$0xff]
        %v8269 = vld [vmem:[%s8267 + $0x8] sm:$0xff]
        %v8270 = vld [vmem:[%s8267 + $0x10] sm:$0xff]
        %v8271 = vld [vmem:[%s8267 + $0x18] sm:$0xff]
        %v8272 = vld [vmem:[%s8267 + $0x20] sm:$0xff]
        %v8273 = vld [vmem:[%s8267 + $0x28] sm:$0xff]
        %v8274 = vld [vmem:[%s8267 + $0x30] sm:$0xff]
        %v8275 = vld [vmem:[%s8267 + $0x38] sm:$0xff]
        %v8276 = vld [vmem:[%s8267 + $0x40] sm:$0xff]
        %v8277 = vld [vmem:[%s8267 + $0x48] sm:$0xff]
        %v8278 = vld [vmem:[%s8267 + $0x50] sm:$0xff]
        %v8279 = vld [vmem:[%s8267 + $0x58] sm:$0xff]
        %v8280 = vld [vmem:[%s8267 + $0x60] sm:$0xff]
        %v8281 = vld [vmem:[%s8267 + $0x68] sm:$0xff]
        %v8282 = vld [vmem:[%s8267 + $0x70] sm:$0xff]
        %v8283 = vld [vmem:[%s8267 + $0x78] sm:$0xff]
        %v8285 = vrot.slane %v7983, 1
        %v8303 = vunpack.c.l.b16 %v8268
        %v8304 = vunpack.c.h.b16 %v8268
        %v8305 = vunpack.c.l.b16 %v8269
        %v8306 = vunpack.c.h.b16 %v8269
        %v8307 = vunpack.c.l.b16 %v8270
        %v8308 = vunpack.c.h.b16 %v8270
        %v8309 = vunpack.c.l.b16 %v8271
        %v8310 = vunpack.c.h.b16 %v8271
        %v8311 = vunpack.c.l.b16 %v8272
        %v8312 = vunpack.c.h.b16 %v8272
        %v8313 = vunpack.c.l.b16 %v8273
        %v8314 = vunpack.c.h.b16 %v8273
        %v8315 = vunpack.c.l.b16 %v8274
        %v8316 = vunpack.c.h.b16 %v8274
        %v8317 = vunpack.c.l.b16 %v8275
        %v8318 = vunpack.c.h.b16 %v8275
        %v8319 = vunpack.c.l.b16 %v8276
        %v8320 = vunpack.c.h.b16 %v8276
        %v8321 = vunpack.c.l.b16 %v8277
        %v8322 = vunpack.c.h.b16 %v8277
        %v8323 = vunpack.c.l.b16 %v8278
        %v8324 = vunpack.c.h.b16 %v8278
        %v8325 = vunpack.c.l.b16 %v8279
        %v8326 = vunpack.c.h.b16 %v8279
        %v8327 = vunpack.c.l.b16 %v8280
        %v8328 = vunpack.c.h.b16 %v8280
        %v8329 = vunpack.c.l.b16 %v8281
        %v8330 = vunpack.c.h.b16 %v8281
        %v8331 = vunpack.c.l.b16 %v8282
        %v8332 = vunpack.c.h.b16 %v8282
        %v8333 = vunpack.c.l.b16 %v8283
        %v8334 = vunpack.c.h.b16 %v8283
        %v8335 = vpack.c.b16 %v8305, %v8303
        %v8336 = vpack.c.b16 %v8306, %v8304
        %v8337 = vpack.c.b16 %v8309, %v8307
        %v8338 = vpack.c.b16 %v8310, %v8308
        %v8339 = vpack.c.b16 %v8313, %v8311
        %v8340 = vpack.c.b16 %v8314, %v8312
        %v8341 = vpack.c.b16 %v8317, %v8315
        %v8342 = vpack.c.b16 %v8318, %v8316
        %v8343 = vpack.c.b16 %v8321, %v8319
        %v8344 = vpack.c.b16 %v8322, %v8320
        %v8345 = vpack.c.b16 %v8325, %v8323
        %v8346 = vpack.c.b16 %v8326, %v8324
        %v8347 = vpack.c.b16 %v8329, %v8327
        %v8348 = vpack.c.b16 %v8330, %v8328
        %v8349 = vpack.c.b16 %v8333, %v8331
        %v8350 = vpack.c.b16 %v8334, %v8332
        %8367 = vmatprep.subr.bf16.mxu0 %v8350
        %8368 = vmatpush1.bf16.msra.mxu0 %v8349
        %8369 = vmatprep.subr.bf16.mxu0 %v8348
        %8370 = vmatpush1.bf16.msra.mxu0 %v8347
        %8371 = vmatprep.subr.bf16.mxu0 %v8346
        %8372 = vmatpush1.bf16.msra.mxu0 %v8345
        %8373 = vmatprep.subr.bf16.mxu0 %v8344
        %8374 = vmatpush1.bf16.msra.mxu0 %v8343
        %8375 = vmatprep.subr.bf16.mxu0 %v8342
        %8376 = vmatpush1.bf16.msra.mxu0 %v8341
        %8377 = vmatprep.subr.bf16.mxu0 %v8340
        %8378 = vmatpush1.bf16.msra.mxu0 %v8339
        %8379 = vmatprep.subr.bf16.mxu0 %v8338
        %8380 = vmatpush1.bf16.msra.mxu0 %v8337
        %8381 = vmatprep.subr.bf16.mxu0 %v8336
        %8382 = vmatpush1.bf16.msra.mxu0 %v8335
        %8383 = vmatprep.subr.bf16.mxu0 0
        %8384 = vmatpush2.bf16.msra.mxu0 0
        %8385 = vmatprep.subr.bf16.mxu0 0
        %8386 = vmatpush2.bf16.msra.mxu0 0
        %8387 = vmatprep.subr.bf16.mxu0 0
        %8388 = vmatpush2.bf16.msra.mxu0 0
        %8389 = vmatprep.subr.bf16.mxu0 0
        %8390 = vmatpush2.bf16.msra.mxu0 0
        %8391 = vmatprep.subr.bf16.mxu0 0
        %8392 = vmatpush2.bf16.msra.mxu0 0
        %8393 = vmatprep.subr.bf16.mxu0 0
        %8394 = vmatpush2.bf16.msra.mxu0 0
        %8395 = vmatprep.subr.bf16.mxu0 0
        %8396 = vmatpush2.bf16.msra.mxu0 0
        %8397 = vmatprep.subr.bf16.mxu0 0
        %8398 = vmatpush2.bf16.msra.mxu0 0
        %8399 = vmatprep.mubr.bf16.mxu0 0
        %8400 = vmatmul.mubr.bf16.gmra.mxu0 %v8285
        %v8401 = vpop.f32.mrf.mxu0
        %v8402 = vadd.f32 0.0, %v8401
        %v8403 = vpop.f32.mrf.mxu0
        %v8404 = vadd.f32 0.0, %v8403
        %v8405 = vpop.f32.mrf.mxu0
        %v8406 = vpop.f32.mrf.mxu0
        %8407 = vdwg.mxu0
        %v8408 = vadd.f32 %v8261, %v8402
        %v8409 = vadd.f32 %v8263, %v8404
        %v8410 = vld [vmem:[#allocation14] sm:$0x3]
        %v8412 = vlaneseq
        %v8413 = vshrl.u32 %v8412, 7
        %v8414 = vsub.s32 0, %v8413
        %v8415 = vrot.slane %v8410, %v8414
        %v8416 = vlaneseq
        %v8417 = vshrl.u32 %v8416, 7
        %v8418 = vsub.s32 1, %v8417
        %v8419 = vrot.slane %v8410, %v8418
        %v8422 = vadd.f32 %v8408, %v8415
        %v8423 = vadd.f32 %v8409, %v8419
        %vm8424 = vcmask 31744
        %v8425 = vsel %vm8424, %v7569, 0
        %v8428 = vsel %vm633, %v8422, 0
        %v8431 = vsel %vm633, %v8423, 0
        %8433 = vmatprep.subr.mxu0 0.0
        %8434 = vmatpush1.msra.mxu0 0.0
        %8435 = vmatprep.subr.mxu0 0.0
        %8436 = vmatpush1.msra.mxu0 0.0
        %8437 = vmatprep.subr.mxu0 0.0
        %8438 = vmatpush1.msra.mxu0 0.0
        %8439 = vmatprep.subr.mxu0 0.0
        %8440 = vmatpush1.msra.mxu0 0.0
        %8441 = vmatprep.subr.mxu0 0.0
        %8442 = vmatpush1.msra.mxu0 0.0
        %8443 = vmatprep.subr.mxu0 0.0
        %8444 = vmatpush1.msra.mxu0 0.0
        %8445 = vmatprep.subr.mxu0 0.0
        %8446 = vmatpush1.msra.mxu0 0.0
        %8447 = vmatprep.subr.mxu0 0.0
        %8448 = vmatpush1.msra.mxu0 0.0
        %8449 = vmatprep.subr.mxu0 0.0
        %8450 = vmatpush1.msra.mxu0 0.0
        %8451 = vmatprep.subr.mxu0 0.0
        %8452 = vmatpush1.msra.mxu0 0.0
        %8453 = vmatprep.subr.mxu0 0.0
        %8454 = vmatpush1.msra.mxu0 0.0
        %8455 = vmatprep.subr.mxu0 0.0
        %8456 = vmatpush1.msra.mxu0 0.0
        %8457 = vmatprep.subr.mxu0 0.0
        %8458 = vmatpush1.msra.mxu0 0.0
        %8459 = vmatprep.subr.mxu0 0.0
        %8460 = vmatpush1.msra.mxu0 0.0
        %8461 = vmatprep.subr.mxu0 0.0
        %8462 = vmatpush1.msra.mxu0 0.0
        %8463 = vmatprep.subr.mxu0 %v8431
        %8464 = vmatpush1.msra.mxu0 %v8428
        %8465 = vmatprep.subr.mxu0 0.0
        %8466 = vmatpush2.msra.mxu0 0.0
        %8467 = vmatprep.subr.mxu0 0.0
        %8468 = vmatpush2.msra.mxu0 0.0
        %8469 = vmatprep.subr.mxu0 0.0
        %8470 = vmatpush2.msra.mxu0 0.0
        %8471 = vmatprep.subr.mxu0 0.0
        %8472 = vmatpush2.msra.mxu0 0.0
        %8473 = vmatprep.subr.mxu0 0.0
        %8474 = vmatpush2.msra.mxu0 0.0
        %8475 = vmatprep.subr.mxu0 0.0
        %8476 = vmatpush2.msra.mxu0 0.0
        %8477 = vmatprep.subr.mxu0 0.0
        %8478 = vmatpush2.msra.mxu0 0.0
        %8479 = vmatprep.subr.mxu0 0.0
        %8480 = vmatpush2.msra.mxu0 0.0
        %8481 = vmatprep.subr.mxu0 0.0
        %8482 = vmatpush2.msra.mxu0 0.0
        %8483 = vmatprep.subr.mxu0 0.0
        %8484 = vmatpush2.msra.mxu0 0.0
        %8485 = vmatprep.subr.mxu0 0.0
        %8486 = vmatpush2.msra.mxu0 0.0
        %8487 = vmatprep.subr.mxu0 0.0
        %8488 = vmatpush2.msra.mxu0 0.0
        %8489 = vmatprep.subr.mxu0 0.0
        %8490 = vmatpush2.msra.mxu0 0.0
        %8491 = vmatprep.subr.mxu0 0.0
        %8492 = vmatpush2.msra.mxu0 0.0
        %8493 = vmatprep.subr.mxu0 0.0
        %8494 = vmatpush2.msra.mxu0 0.0
        %8495 = vmatprep.subr.mxu0 0.0
        %8496 = vmatpush2.msra.mxu0 0.0
        %8497 = vmatprep.mubr.f32.mxu0 0.0
        %8498 = vmatmul.mubr.f32.gmra.mxu0 %v8425
        %v8499 = vpop.f32.mrf.mxu0
        %v8500 = vadd.f32 0.0, %v8499
        %v8501 = vpop.f32.mrf.mxu0
        %v8502 = vadd.f32 0.0, %v8501
        %8503 = vdwg.mxu0
        %vm8504 = vcmp.ge.f32.partialorder %v8500, 0.0
        %vm8505 = vcmp.ge.f32.partialorder %v8502, 0.0
        %v8506 = vmul.f32 %v8500, 0.2
        %v8507 = vmul.f32 %v8502, 0.2
        %v8508 = vsel %vm8504, %v8500, %v8506
        %v8509 = vsel %vm8505, %v8502, %v8507
        %v8512 = vrot.slane %v8508, 7
        %v8513 = vrot.slane %v8509, 7
        %v8516 = vsel %vm5709, 0.0, %v8512
        %v8517 = vsel %vm5709, 0.0, %v8513
        %vm8518 = vcmask 1042432
        %v8519 = vsel %vm8518, %v8516, 0.0
        %v8520 = vsel %vm8518, %v8517, 0.0
        %v8521 = vpack.c.bf16 %v8519, %v8519
        %v8522 = vpack.c.bf16 %v8520, %v8520
        %v8523 = vld [vmem:[#allocation16] sm:$0xff]
        %v8524 = vld [vmem:[#allocation16 + $0x8] sm:$0xff]
        %v8525 = vld [vmem:[#allocation16 + $0x10] sm:$0xff]
        %v8526 = vld [vmem:[#allocation16 + $0x18] sm:$0xff]
        %v8527 = vld [vmem:[#allocation16 + $0x20] sm:$0xff]
        %v8528 = vld [vmem:[#allocation16 + $0x28] sm:$0xff]
        %v8529 = vld [vmem:[#allocation16 + $0x30] sm:$0xff]
        %v8530 = vld [vmem:[#allocation16 + $0x38] sm:$0xff]
        %v8531 = vld [vmem:[#allocation16 + $0x40] sm:$0xff]
        %v8532 = vld [vmem:[#allocation16 + $0x48] sm:$0xff]
        %v8533 = vld [vmem:[#allocation16 + $0x50] sm:$0xff]
        %v8534 = vld [vmem:[#allocation16 + $0x58] sm:$0xff]
        %v8535 = vld [vmem:[#allocation16 + $0x60] sm:$0xff]
        %v8536 = vld [vmem:[#allocation16 + $0x68] sm:$0xff]
        %v8537 = vld [vmem:[#allocation16 + $0x70] sm:$0xff]
        %v8538 = vld [vmem:[#allocation16 + $0x78] sm:$0xff]
        %v8539 = vld [vmem:[#allocation16 + $0x80] sm:$0xff]
        %v8540 = vld [vmem:[#allocation16 + $0x88] sm:$0xff]
        %v8541 = vld [vmem:[#allocation16 + $0x90] sm:$0xff]
        %v8542 = vld [vmem:[#allocation16 + $0x98] sm:$0xff]
        %v8543 = vld [vmem:[#allocation16 + $0xa0] sm:$0xff]
        %v8544 = vld [vmem:[#allocation16 + $0xa8] sm:$0xff]
        %v8545 = vld [vmem:[#allocation16 + $0xb0] sm:$0xff]
        %v8546 = vld [vmem:[#allocation16 + $0xb8] sm:$0xff]
        %v8547 = vld [vmem:[#allocation16 + $0xc0] sm:$0xff]
        %v8548 = vld [vmem:[#allocation16 + $0xc8] sm:$0xff]
        %v8549 = vld [vmem:[#allocation16 + $0xd0] sm:$0xff]
        %v8550 = vld [vmem:[#allocation16 + $0xd8] sm:$0xff]
        %v8551 = vld [vmem:[#allocation16 + $0xe0] sm:$0xff]
        %v8552 = vld [vmem:[#allocation16 + $0xe8] sm:$0xff]
        %v8553 = vld [vmem:[#allocation16 + $0xf0] sm:$0xff]
        %v8554 = vld [vmem:[#allocation16 + $0xf8] sm:$0xff]
        %v8555 = vld [vmem:[#allocation16 + $0x100] sm:$0xff]
        %v8556 = vld [vmem:[#allocation16 + $0x108] sm:$0xff]
        %v8557 = vld [vmem:[#allocation16 + $0x110] sm:$0xff]
        %v8558 = vld [vmem:[#allocation16 + $0x118] sm:$0xff]
        %v8559 = vld [vmem:[#allocation16 + $0x120] sm:$0xff]
        %v8560 = vld [vmem:[#allocation16 + $0x128] sm:$0xff]
        %v8561 = vld [vmem:[#allocation16 + $0x130] sm:$0xff]
        %v8562 = vld [vmem:[#allocation16 + $0x138] sm:$0xff]
        %v8563 = vld [vmem:[#allocation16 + $0x140] sm:$0xff]
        %v8564 = vld [vmem:[#allocation16 + $0x148] sm:$0xff]
        %v8565 = vld [vmem:[#allocation16 + $0x150] sm:$0xff]
        %v8566 = vld [vmem:[#allocation16 + $0x158] sm:$0xff]
        %v8567 = vld [vmem:[#allocation16 + $0x160] sm:$0xff]
        %v8568 = vld [vmem:[#allocation16 + $0x168] sm:$0xff]
        %v8569 = vld [vmem:[#allocation16 + $0x170] sm:$0xff]
        %v8570 = vld [vmem:[#allocation16 + $0x178] sm:$0xff]
        %v8571 = vld [vmem:[#allocation16 + $0x180] sm:$0xff]
        %v8572 = vld [vmem:[#allocation16 + $0x188] sm:$0xff]
        %v8573 = vld [vmem:[#allocation16 + $0x190] sm:$0xff]
        %v8574 = vld [vmem:[#allocation16 + $0x198] sm:$0xff]
        %v8575 = vld [vmem:[#allocation16 + $0x1a0] sm:$0xff]
        %v8576 = vld [vmem:[#allocation16 + $0x1a8] sm:$0xff]
        %v8577 = vld [vmem:[#allocation16 + $0x1b0] sm:$0xff]
        %v8578 = vld [vmem:[#allocation16 + $0x1b8] sm:$0xff]
        %v8579 = vld [vmem:[#allocation16 + $0x1c0] sm:$0xff]
        %v8580 = vld [vmem:[#allocation16 + $0x1c8] sm:$0xff]
        %v8581 = vld [vmem:[#allocation16 + $0x1d0] sm:$0xff]
        %v8582 = vld [vmem:[#allocation16 + $0x1d8] sm:$0xff]
        %v8583 = vld [vmem:[#allocation16 + $0x1e0] sm:$0xff]
        %v8584 = vld [vmem:[#allocation16 + $0x1e8] sm:$0xff]
        %v8585 = vld [vmem:[#allocation16 + $0x1f0] sm:$0xff]
        %v8586 = vld [vmem:[#allocation16 + $0x1f8] sm:$0xff]
        %s8587 = scalar_lea.vmem [#allocation16], 512
        %v8588 = vld [vmem:[%s8587] sm:$0xff]
        %v8589 = vld [vmem:[%s8587 + $0x8] sm:$0xff]
        %v8590 = vld [vmem:[%s8587 + $0x10] sm:$0xff]
        %v8591 = vld [vmem:[%s8587 + $0x18] sm:$0xff]
        %v8592 = vld [vmem:[%s8587 + $0x20] sm:$0xff]
        %v8593 = vld [vmem:[%s8587 + $0x28] sm:$0xff]
        %v8594 = vld [vmem:[%s8587 + $0x30] sm:$0xff]
        %v8595 = vld [vmem:[%s8587 + $0x38] sm:$0xff]
        %v8596 = vld [vmem:[%s8587 + $0x40] sm:$0xff]
        %v8597 = vld [vmem:[%s8587 + $0x48] sm:$0xff]
        %v8598 = vld [vmem:[%s8587 + $0x50] sm:$0xff]
        %v8599 = vld [vmem:[%s8587 + $0x58] sm:$0xff]
        %v8600 = vld [vmem:[%s8587 + $0x60] sm:$0xff]
        %v8601 = vld [vmem:[%s8587 + $0x68] sm:$0xff]
        %v8602 = vld [vmem:[%s8587 + $0x70] sm:$0xff]
        %v8603 = vld [vmem:[%s8587 + $0x78] sm:$0xff]
        %v8604 = vld [vmem:[%s8587 + $0x80] sm:$0xff]
        %v8605 = vld [vmem:[%s8587 + $0x88] sm:$0xff]
        %v8606 = vld [vmem:[%s8587 + $0x90] sm:$0xff]
        %v8607 = vld [vmem:[%s8587 + $0x98] sm:$0xff]
        %v8608 = vld [vmem:[%s8587 + $0xa0] sm:$0xff]
        %v8609 = vld [vmem:[%s8587 + $0xa8] sm:$0xff]
        %v8610 = vld [vmem:[%s8587 + $0xb0] sm:$0xff]
        %v8611 = vld [vmem:[%s8587 + $0xb8] sm:$0xff]
        %v8612 = vld [vmem:[%s8587 + $0xc0] sm:$0xff]
        %v8613 = vld [vmem:[%s8587 + $0xc8] sm:$0xff]
        %v8614 = vld [vmem:[%s8587 + $0xd0] sm:$0xff]
        %v8615 = vld [vmem:[%s8587 + $0xd8] sm:$0xff]
        %v8616 = vld [vmem:[%s8587 + $0xe0] sm:$0xff]
        %v8617 = vld [vmem:[%s8587 + $0xe8] sm:$0xff]
        %v8618 = vld [vmem:[%s8587 + $0xf0] sm:$0xff]
        %v8619 = vld [vmem:[%s8587 + $0xf8] sm:$0xff]
        %v8620 = vld [vmem:[%s8587 + $0x100] sm:$0xff]
        %v8621 = vld [vmem:[%s8587 + $0x108] sm:$0xff]
        %v8622 = vld [vmem:[%s8587 + $0x110] sm:$0xff]
        %v8623 = vld [vmem:[%s8587 + $0x118] sm:$0xff]
        %v8624 = vld [vmem:[%s8587 + $0x120] sm:$0xff]
        %v8625 = vld [vmem:[%s8587 + $0x128] sm:$0xff]
        %v8626 = vld [vmem:[%s8587 + $0x130] sm:$0xff]
        %v8627 = vld [vmem:[%s8587 + $0x138] sm:$0xff]
        %v8628 = vld [vmem:[%s8587 + $0x140] sm:$0xff]
        %v8629 = vld [vmem:[%s8587 + $0x148] sm:$0xff]
        %v8630 = vld [vmem:[%s8587 + $0x150] sm:$0xff]
        %v8631 = vld [vmem:[%s8587 + $0x158] sm:$0xff]
        %v8632 = vld [vmem:[%s8587 + $0x160] sm:$0xff]
        %v8633 = vld [vmem:[%s8587 + $0x168] sm:$0xff]
        %v8634 = vld [vmem:[%s8587 + $0x170] sm:$0xff]
        %v8635 = vld [vmem:[%s8587 + $0x178] sm:$0xff]
        %v8636 = vld [vmem:[%s8587 + $0x180] sm:$0xff]
        %v8637 = vld [vmem:[%s8587 + $0x188] sm:$0xff]
        %v8638 = vld [vmem:[%s8587 + $0x190] sm:$0xff]
        %v8639 = vld [vmem:[%s8587 + $0x198] sm:$0xff]
        %v8640 = vld [vmem:[%s8587 + $0x1a0] sm:$0xff]
        %v8641 = vld [vmem:[%s8587 + $0x1a8] sm:$0xff]
        %v8642 = vld [vmem:[%s8587 + $0x1b0] sm:$0xff]
        %v8643 = vld [vmem:[%s8587 + $0x1b8] sm:$0xff]
        %v8644 = vld [vmem:[%s8587 + $0x1c0] sm:$0xff]
        %v8645 = vld [vmem:[%s8587 + $0x1c8] sm:$0xff]
        %v8646 = vld [vmem:[%s8587 + $0x1d0] sm:$0xff]
        %v8647 = vld [vmem:[%s8587 + $0x1d8] sm:$0xff]
        %v8648 = vld [vmem:[%s8587 + $0x1e0] sm:$0xff]
        %v8649 = vld [vmem:[%s8587 + $0x1e8] sm:$0xff]
        %v8650 = vld [vmem:[%s8587 + $0x1f0] sm:$0xff]
        %v8651 = vld [vmem:[%s8587 + $0x1f8] sm:$0xff]
        %v8653 = vshrl.u32 %v8521, 16
        %v8655 = vshll.u32 %v8521, 16
        %v8657 = vrot.slane %v8655, 1
        %v8658 = vor.u32 %v8653, %v8657
        %v8660 = vshrl.u32 %v8522, 16
        %v8662 = vshll.u32 %v8522, 16
        %v8664 = vrot.slane %v8662, 1
        %v8665 = vor.u32 %v8660, %v8664
        %v8732 = vunpack.c.l.b16 %v8588
        %v8733 = vunpack.c.h.b16 %v8588
        %v8734 = vunpack.c.l.b16 %v8589
        %v8735 = vunpack.c.h.b16 %v8589
        %v8736 = vunpack.c.l.b16 %v8590
        %v8737 = vunpack.c.h.b16 %v8590
        %v8738 = vunpack.c.l.b16 %v8591
        %v8739 = vunpack.c.h.b16 %v8591
        %v8740 = vunpack.c.l.b16 %v8592
        %v8741 = vunpack.c.h.b16 %v8592
        %v8742 = vunpack.c.l.b16 %v8593
        %v8743 = vunpack.c.h.b16 %v8593
        %v8744 = vunpack.c.l.b16 %v8594
        %v8745 = vunpack.c.h.b16 %v8594
        %v8746 = vunpack.c.l.b16 %v8595
        %v8747 = vunpack.c.h.b16 %v8595
        %v8748 = vunpack.c.l.b16 %v8596
        %v8749 = vunpack.c.h.b16 %v8596
        %v8750 = vunpack.c.l.b16 %v8597
        %v8751 = vunpack.c.h.b16 %v8597
        %v8752 = vunpack.c.l.b16 %v8598
        %v8753 = vunpack.c.h.b16 %v8598
        %v8754 = vunpack.c.l.b16 %v8599
        %v8755 = vunpack.c.h.b16 %v8599
        %v8756 = vunpack.c.l.b16 %v8600
        %v8757 = vunpack.c.h.b16 %v8600
        %v8758 = vunpack.c.l.b16 %v8601
        %v8759 = vunpack.c.h.b16 %v8601
        %v8760 = vunpack.c.l.b16 %v8602
        %v8761 = vunpack.c.h.b16 %v8602
        %v8762 = vunpack.c.l.b16 %v8603
        %v8763 = vunpack.c.h.b16 %v8603
        %v8764 = vunpack.c.l.b16 %v8604
        %v8765 = vunpack.c.h.b16 %v8604
        %v8766 = vunpack.c.l.b16 %v8605
        %v8767 = vunpack.c.h.b16 %v8605
        %v8768 = vunpack.c.l.b16 %v8606
        %v8769 = vunpack.c.h.b16 %v8606
        %v8770 = vunpack.c.l.b16 %v8607
        %v8771 = vunpack.c.h.b16 %v8607
        %v8772 = vunpack.c.l.b16 %v8608
        %v8773 = vunpack.c.h.b16 %v8608
        %v8774 = vunpack.c.l.b16 %v8609
        %v8775 = vunpack.c.h.b16 %v8609
        %v8776 = vunpack.c.l.b16 %v8610
        %v8777 = vunpack.c.h.b16 %v8610
        %v8778 = vunpack.c.l.b16 %v8611
        %v8779 = vunpack.c.h.b16 %v8611
        %v8780 = vunpack.c.l.b16 %v8612
        %v8781 = vunpack.c.h.b16 %v8612
        %v8782 = vunpack.c.l.b16 %v8613
        %v8783 = vunpack.c.h.b16 %v8613
        %v8784 = vunpack.c.l.b16 %v8614
        %v8785 = vunpack.c.h.b16 %v8614
        %v8786 = vunpack.c.l.b16 %v8615
        %v8787 = vunpack.c.h.b16 %v8615
        %v8788 = vunpack.c.l.b16 %v8616
        %v8789 = vunpack.c.h.b16 %v8616
        %v8790 = vunpack.c.l.b16 %v8617
        %v8791 = vunpack.c.h.b16 %v8617
        %v8792 = vunpack.c.l.b16 %v8618
        %v8793 = vunpack.c.h.b16 %v8618
        %v8794 = vunpack.c.l.b16 %v8619
        %v8795 = vunpack.c.h.b16 %v8619
        %v8796 = vunpack.c.l.b16 %v8620
        %v8797 = vunpack.c.h.b16 %v8620
        %v8798 = vunpack.c.l.b16 %v8621
        %v8799 = vunpack.c.h.b16 %v8621
        %v8800 = vunpack.c.l.b16 %v8622
        %v8801 = vunpack.c.h.b16 %v8622
        %v8802 = vunpack.c.l.b16 %v8623
        %v8803 = vunpack.c.h.b16 %v8623
        %v8804 = vunpack.c.l.b16 %v8624
        %v8805 = vunpack.c.h.b16 %v8624
        %v8806 = vunpack.c.l.b16 %v8625
        %v8807 = vunpack.c.h.b16 %v8625
        %v8808 = vunpack.c.l.b16 %v8626
        %v8809 = vunpack.c.h.b16 %v8626
        %v8810 = vunpack.c.l.b16 %v8627
        %v8811 = vunpack.c.h.b16 %v8627
        %v8812 = vunpack.c.l.b16 %v8628
        %v8813 = vunpack.c.h.b16 %v8628
        %v8814 = vunpack.c.l.b16 %v8629
        %v8815 = vunpack.c.h.b16 %v8629
        %v8816 = vunpack.c.l.b16 %v8630
        %v8817 = vunpack.c.h.b16 %v8630
        %v8818 = vunpack.c.l.b16 %v8631
        %v8819 = vunpack.c.h.b16 %v8631
        %v8820 = vunpack.c.l.b16 %v8632
        %v8821 = vunpack.c.h.b16 %v8632
        %v8822 = vunpack.c.l.b16 %v8633
        %v8823 = vunpack.c.h.b16 %v8633
        %v8824 = vunpack.c.l.b16 %v8634
        %v8825 = vunpack.c.h.b16 %v8634
        %v8826 = vunpack.c.l.b16 %v8635
        %v8827 = vunpack.c.h.b16 %v8635
        %v8828 = vunpack.c.l.b16 %v8636
        %v8829 = vunpack.c.h.b16 %v8636
        %v8830 = vunpack.c.l.b16 %v8637
        %v8831 = vunpack.c.h.b16 %v8637
        %v8832 = vunpack.c.l.b16 %v8638
        %v8833 = vunpack.c.h.b16 %v8638
        %v8834 = vunpack.c.l.b16 %v8639
        %v8835 = vunpack.c.h.b16 %v8639
        %v8836 = vunpack.c.l.b16 %v8640
        %v8837 = vunpack.c.h.b16 %v8640
        %v8838 = vunpack.c.l.b16 %v8641
        %v8839 = vunpack.c.h.b16 %v8641
        %v8840 = vunpack.c.l.b16 %v8642
        %v8841 = vunpack.c.h.b16 %v8642
        %v8842 = vunpack.c.l.b16 %v8643
        %v8843 = vunpack.c.h.b16 %v8643
        %v8844 = vunpack.c.l.b16 %v8644
        %v8845 = vunpack.c.h.b16 %v8644
        %v8846 = vunpack.c.l.b16 %v8645
        %v8847 = vunpack.c.h.b16 %v8645
        %v8848 = vunpack.c.l.b16 %v8646
        %v8849 = vunpack.c.h.b16 %v8646
        %v8850 = vunpack.c.l.b16 %v8647
        %v8851 = vunpack.c.h.b16 %v8647
        %v8852 = vunpack.c.l.b16 %v8648
        %v8853 = vunpack.c.h.b16 %v8648
        %v8854 = vunpack.c.l.b16 %v8649
        %v8855 = vunpack.c.h.b16 %v8649
        %v8856 = vunpack.c.l.b16 %v8650
        %v8857 = vunpack.c.h.b16 %v8650
        %v8858 = vunpack.c.l.b16 %v8651
        %v8859 = vunpack.c.h.b16 %v8651
        %v8860 = vpack.c.b16 %v8736, %v8732
        %v8861 = vpack.c.b16 %v8737, %v8733
        %v8862 = vpack.c.b16 %v8738, %v8734
        %v8863 = vpack.c.b16 %v8739, %v8735
        %v8864 = vpack.c.b16 %v8744, %v8740
        %v8865 = vpack.c.b16 %v8745, %v8741
        %v8866 = vpack.c.b16 %v8746, %v8742
        %v8867 = vpack.c.b16 %v8747, %v8743
        %v8868 = vpack.c.b16 %v8752, %v8748
        %v8869 = vpack.c.b16 %v8753, %v8749
        %v8870 = vpack.c.b16 %v8754, %v8750
        %v8871 = vpack.c.b16 %v8755, %v8751
        %v8872 = vpack.c.b16 %v8760, %v8756
        %v8873 = vpack.c.b16 %v8761, %v8757
        %v8874 = vpack.c.b16 %v8762, %v8758
        %v8875 = vpack.c.b16 %v8763, %v8759
        %v8876 = vpack.c.b16 %v8768, %v8764
        %v8877 = vpack.c.b16 %v8769, %v8765
        %v8878 = vpack.c.b16 %v8770, %v8766
        %v8879 = vpack.c.b16 %v8771, %v8767
        %v8880 = vpack.c.b16 %v8776, %v8772
        %v8881 = vpack.c.b16 %v8777, %v8773
        %v8882 = vpack.c.b16 %v8778, %v8774
        %v8883 = vpack.c.b16 %v8779, %v8775
        %v8884 = vpack.c.b16 %v8784, %v8780
        %v8885 = vpack.c.b16 %v8785, %v8781
        %v8886 = vpack.c.b16 %v8786, %v8782
        %v8887 = vpack.c.b16 %v8787, %v8783
        %v8888 = vpack.c.b16 %v8792, %v8788
        %v8889 = vpack.c.b16 %v8793, %v8789
        %v8890 = vpack.c.b16 %v8794, %v8790
        %v8891 = vpack.c.b16 %v8795, %v8791
        %v8892 = vpack.c.b16 %v8800, %v8796
        %v8893 = vpack.c.b16 %v8801, %v8797
        %v8894 = vpack.c.b16 %v8802, %v8798
        %v8895 = vpack.c.b16 %v8803, %v8799
        %v8896 = vpack.c.b16 %v8808, %v8804
        %v8897 = vpack.c.b16 %v8809, %v8805
        %v8898 = vpack.c.b16 %v8810, %v8806
        %v8899 = vpack.c.b16 %v8811, %v8807
        %v8900 = vpack.c.b16 %v8816, %v8812
        %v8901 = vpack.c.b16 %v8817, %v8813
        %v8902 = vpack.c.b16 %v8818, %v8814
        %v8903 = vpack.c.b16 %v8819, %v8815
        %v8904 = vpack.c.b16 %v8824, %v8820
        %v8905 = vpack.c.b16 %v8825, %v8821
        %v8906 = vpack.c.b16 %v8826, %v8822
        %v8907 = vpack.c.b16 %v8827, %v8823
        %v8908 = vpack.c.b16 %v8832, %v8828
        %v8909 = vpack.c.b16 %v8833, %v8829
        %v8910 = vpack.c.b16 %v8834, %v8830
        %v8911 = vpack.c.b16 %v8835, %v8831
        %v8912 = vpack.c.b16 %v8840, %v8836
        %v8913 = vpack.c.b16 %v8841, %v8837
        %v8914 = vpack.c.b16 %v8842, %v8838
        %v8915 = vpack.c.b16 %v8843, %v8839
        %v8916 = vpack.c.b16 %v8848, %v8844
        %v8917 = vpack.c.b16 %v8849, %v8845
        %v8918 = vpack.c.b16 %v8850, %v8846
        %v8919 = vpack.c.b16 %v8851, %v8847
        %v8920 = vpack.c.b16 %v8856, %v8852
        %v8921 = vpack.c.b16 %v8857, %v8853
        %v8922 = vpack.c.b16 %v8858, %v8854
        %v8923 = vpack.c.b16 %v8859, %v8855
        %8988 = vmatprep.subr.bf16.mxu0 %v8889
        %8989 = vmatpush1.bf16.msra.mxu0 %v8888
        %8990 = vmatprep.subr.bf16.mxu0 %v8885
        %8991 = vmatpush1.bf16.msra.mxu0 %v8884
        %8992 = vmatprep.subr.bf16.mxu0 %v8881
        %8993 = vmatpush1.bf16.msra.mxu0 %v8880
        %8994 = vmatprep.subr.bf16.mxu0 %v8877
        %8995 = vmatpush1.bf16.msra.mxu0 %v8876
        %8996 = vmatprep.subr.bf16.mxu0 %v8873
        %8997 = vmatpush1.bf16.msra.mxu0 %v8872
        %8998 = vmatprep.subr.bf16.mxu0 %v8869
        %8999 = vmatpush1.bf16.msra.mxu0 %v8868
        %9000 = vmatprep.subr.bf16.mxu0 %v8865
        %9001 = vmatpush1.bf16.msra.mxu0 %v8864
        %9002 = vmatprep.subr.bf16.mxu0 %v8861
        %9003 = vmatpush1.bf16.msra.mxu0 %v8860
        %9004 = vmatprep.subr.bf16.mxu0 %v8921
        %9005 = vmatpush2.bf16.msra.mxu0 %v8920
        %9006 = vmatprep.subr.bf16.mxu0 %v8917
        %9007 = vmatpush2.bf16.msra.mxu0 %v8916
        %9008 = vmatprep.subr.bf16.mxu0 %v8913
        %9009 = vmatpush2.bf16.msra.mxu0 %v8912
        %9010 = vmatprep.subr.bf16.mxu0 %v8909
        %9011 = vmatpush2.bf16.msra.mxu0 %v8908
        %9012 = vmatprep.subr.bf16.mxu0 %v8905
        %9013 = vmatpush2.bf16.msra.mxu0 %v8904
        %9014 = vmatprep.subr.bf16.mxu0 %v8901
        %9015 = vmatpush2.bf16.msra.mxu0 %v8900
        %9016 = vmatprep.subr.bf16.mxu0 %v8897
        %9017 = vmatpush2.bf16.msra.mxu0 %v8896
        %9018 = vmatprep.subr.bf16.mxu0 %v8893
        %9019 = vmatpush2.bf16.msra.mxu0 %v8892
        %9020 = vmatprep.mubr.bf16.mxu0 %v8665
        %9021 = vmatmul.mubr.bf16.gmra.mxu0 %v8658
        %v9022 = vpop.f32.mrf.mxu0
        %v9023 = vadd.f32 0.0, %v9022
        %v9024 = vpop.f32.mrf.mxu0
        %v9025 = vadd.f32 0.0, %v9024
        %v9026 = vpop.f32.mrf.mxu0
        %v9027 = vpop.f32.mrf.mxu0
        %9028 = vdwg.mxu0
        %9029 = vmatprep.subr.bf16.mxu0 %v8891
        %9030 = vmatpush1.bf16.msra.mxu0 %v8890
        %9031 = vmatprep.subr.bf16.mxu0 %v8887
        %9032 = vmatpush1.bf16.msra.mxu0 %v8886
        %9033 = vmatprep.subr.bf16.mxu0 %v8883
        %9034 = vmatpush1.bf16.msra.mxu0 %v8882
        %9035 = vmatprep.subr.bf16.mxu0 %v8879
        %9036 = vmatpush1.bf16.msra.mxu0 %v8878
        %9037 = vmatprep.subr.bf16.mxu0 %v8875
        %9038 = vmatpush1.bf16.msra.mxu0 %v8874
        %9039 = vmatprep.subr.bf16.mxu0 %v8871
        %9040 = vmatpush1.bf16.msra.mxu0 %v8870
        %9041 = vmatprep.subr.bf16.mxu0 %v8867
        %9042 = vmatpush1.bf16.msra.mxu0 %v8866
        %9043 = vmatprep.subr.bf16.mxu0 %v8863
        %9044 = vmatpush1.bf16.msra.mxu0 %v8862
        %9045 = vmatprep.subr.bf16.mxu0 %v8923
        %9046 = vmatpush2.bf16.msra.mxu0 %v8922
        %9047 = vmatprep.subr.bf16.mxu0 %v8919
        %9048 = vmatpush2.bf16.msra.mxu0 %v8918
        %9049 = vmatprep.subr.bf16.mxu0 %v8915
        %9050 = vmatpush2.bf16.msra.mxu0 %v8914
        %9051 = vmatprep.subr.bf16.mxu0 %v8911
        %9052 = vmatpush2.bf16.msra.mxu0 %v8910
        %9053 = vmatprep.subr.bf16.mxu0 %v8907
        %9054 = vmatpush2.bf16.msra.mxu0 %v8906
        %9055 = vmatprep.subr.bf16.mxu0 %v8903
        %9056 = vmatpush2.bf16.msra.mxu0 %v8902
        %9057 = vmatprep.subr.bf16.mxu0 %v8899
        %9058 = vmatpush2.bf16.msra.mxu0 %v8898
        %9059 = vmatprep.subr.bf16.mxu0 %v8895
        %9060 = vmatpush2.bf16.msra.mxu0 %v8894
        %9061 = vmatprep.mubr.bf16.mxu0 %v8665
        %9062 = vmatmul.mubr.bf16.gmra.mxu0 %v8658
        %v9063 = vpop.f32.mrf.mxu0
        %v9064 = vadd.f32 0.0, %v9063
        %v9065 = vpop.f32.mrf.mxu0
        %v9066 = vadd.f32 0.0, %v9065
        %v9067 = vpop.f32.mrf.mxu0
        %v9068 = vpop.f32.mrf.mxu0
        %9069 = vdwg.mxu0
        %v9134 = vunpack.c.l.b16 %v8523
        %v9135 = vunpack.c.h.b16 %v8523
        %v9136 = vunpack.c.l.b16 %v8524
        %v9137 = vunpack.c.h.b16 %v8524
        %v9138 = vunpack.c.l.b16 %v8525
        %v9139 = vunpack.c.h.b16 %v8525
        %v9140 = vunpack.c.l.b16 %v8526
        %v9141 = vunpack.c.h.b16 %v8526
        %v9142 = vunpack.c.l.b16 %v8527
        %v9143 = vunpack.c.h.b16 %v8527
        %v9144 = vunpack.c.l.b16 %v8528
        %v9145 = vunpack.c.h.b16 %v8528
        %v9146 = vunpack.c.l.b16 %v8529
        %v9147 = vunpack.c.h.b16 %v8529
        %v9148 = vunpack.c.l.b16 %v8530
        %v9149 = vunpack.c.h.b16 %v8530
        %v9150 = vunpack.c.l.b16 %v8531
        %v9151 = vunpack.c.h.b16 %v8531
        %v9152 = vunpack.c.l.b16 %v8532
        %v9153 = vunpack.c.h.b16 %v8532
        %v9154 = vunpack.c.l.b16 %v8533
        %v9155 = vunpack.c.h.b16 %v8533
        %v9156 = vunpack.c.l.b16 %v8534
        %v9157 = vunpack.c.h.b16 %v8534
        %v9158 = vunpack.c.l.b16 %v8535
        %v9159 = vunpack.c.h.b16 %v8535
        %v9160 = vunpack.c.l.b16 %v8536
        %v9161 = vunpack.c.h.b16 %v8536
        %v9162 = vunpack.c.l.b16 %v8537
        %v9163 = vunpack.c.h.b16 %v8537
        %v9164 = vunpack.c.l.b16 %v8538
        %v9165 = vunpack.c.h.b16 %v8538
        %v9166 = vunpack.c.l.b16 %v8539
        %v9167 = vunpack.c.h.b16 %v8539
        %v9168 = vunpack.c.l.b16 %v8540
        %v9169 = vunpack.c.h.b16 %v8540
        %v9170 = vunpack.c.l.b16 %v8541
        %v9171 = vunpack.c.h.b16 %v8541
        %v9172 = vunpack.c.l.b16 %v8542
        %v9173 = vunpack.c.h.b16 %v8542
        %v9174 = vunpack.c.l.b16 %v8543
        %v9175 = vunpack.c.h.b16 %v8543
        %v9176 = vunpack.c.l.b16 %v8544
        %v9177 = vunpack.c.h.b16 %v8544
        %v9178 = vunpack.c.l.b16 %v8545
        %v9179 = vunpack.c.h.b16 %v8545
        %v9180 = vunpack.c.l.b16 %v8546
        %v9181 = vunpack.c.h.b16 %v8546
        %v9182 = vunpack.c.l.b16 %v8547
        %v9183 = vunpack.c.h.b16 %v8547
        %v9184 = vunpack.c.l.b16 %v8548
        %v9185 = vunpack.c.h.b16 %v8548
        %v9186 = vunpack.c.l.b16 %v8549
        %v9187 = vunpack.c.h.b16 %v8549
        %v9188 = vunpack.c.l.b16 %v8550
        %v9189 = vunpack.c.h.b16 %v8550
        %v9190 = vunpack.c.l.b16 %v8551
        %v9191 = vunpack.c.h.b16 %v8551
        %v9192 = vunpack.c.l.b16 %v8552
        %v9193 = vunpack.c.h.b16 %v8552
        %v9194 = vunpack.c.l.b16 %v8553
        %v9195 = vunpack.c.h.b16 %v8553
        %v9196 = vunpack.c.l.b16 %v8554
        %v9197 = vunpack.c.h.b16 %v8554
        %v9198 = vunpack.c.l.b16 %v8555
        %v9199 = vunpack.c.h.b16 %v8555
        %v9200 = vunpack.c.l.b16 %v8556
        %v9201 = vunpack.c.h.b16 %v8556
        %v9202 = vunpack.c.l.b16 %v8557
        %v9203 = vunpack.c.h.b16 %v8557
        %v9204 = vunpack.c.l.b16 %v8558
        %v9205 = vunpack.c.h.b16 %v8558
        %v9206 = vunpack.c.l.b16 %v8559
        %v9207 = vunpack.c.h.b16 %v8559
        %v9208 = vunpack.c.l.b16 %v8560
        %v9209 = vunpack.c.h.b16 %v8560
        %v9210 = vunpack.c.l.b16 %v8561
        %v9211 = vunpack.c.h.b16 %v8561
        %v9212 = vunpack.c.l.b16 %v8562
        %v9213 = vunpack.c.h.b16 %v8562
        %v9214 = vunpack.c.l.b16 %v8563
        %v9215 = vunpack.c.h.b16 %v8563
        %v9216 = vunpack.c.l.b16 %v8564
        %v9217 = vunpack.c.h.b16 %v8564
        %v9218 = vunpack.c.l.b16 %v8565
        %v9219 = vunpack.c.h.b16 %v8565
        %v9220 = vunpack.c.l.b16 %v8566
        %v9221 = vunpack.c.h.b16 %v8566
        %v9222 = vunpack.c.l.b16 %v8567
        %v9223 = vunpack.c.h.b16 %v8567
        %v9224 = vunpack.c.l.b16 %v8568
        %v9225 = vunpack.c.h.b16 %v8568
        %v9226 = vunpack.c.l.b16 %v8569
        %v9227 = vunpack.c.h.b16 %v8569
        %v9228 = vunpack.c.l.b16 %v8570
        %v9229 = vunpack.c.h.b16 %v8570
        %v9230 = vunpack.c.l.b16 %v8571
        %v9231 = vunpack.c.h.b16 %v8571
        %v9232 = vunpack.c.l.b16 %v8572
        %v9233 = vunpack.c.h.b16 %v8572
        %v9234 = vunpack.c.l.b16 %v8573
        %v9235 = vunpack.c.h.b16 %v8573
        %v9236 = vunpack.c.l.b16 %v8574
        %v9237 = vunpack.c.h.b16 %v8574
        %v9238 = vunpack.c.l.b16 %v8575
        %v9239 = vunpack.c.h.b16 %v8575
        %v9240 = vunpack.c.l.b16 %v8576
        %v9241 = vunpack.c.h.b16 %v8576
        %v9242 = vunpack.c.l.b16 %v8577
        %v9243 = vunpack.c.h.b16 %v8577
        %v9244 = vunpack.c.l.b16 %v8578
        %v9245 = vunpack.c.h.b16 %v8578
        %v9246 = vunpack.c.l.b16 %v8579
        %v9247 = vunpack.c.h.b16 %v8579
        %v9248 = vunpack.c.l.b16 %v8580
        %v9249 = vunpack.c.h.b16 %v8580
        %v9250 = vunpack.c.l.b16 %v8581
        %v9251 = vunpack.c.h.b16 %v8581
        %v9252 = vunpack.c.l.b16 %v8582
        %v9253 = vunpack.c.h.b16 %v8582
        %v9254 = vunpack.c.l.b16 %v8583
        %v9255 = vunpack.c.h.b16 %v8583
        %v9256 = vunpack.c.l.b16 %v8584
        %v9257 = vunpack.c.h.b16 %v8584
        %v9258 = vunpack.c.l.b16 %v8585
        %v9259 = vunpack.c.h.b16 %v8585
        %v9260 = vunpack.c.l.b16 %v8586
        %v9261 = vunpack.c.h.b16 %v8586
        %v9262 = vpack.c.b16 %v9138, %v9134
        %v9263 = vpack.c.b16 %v9139, %v9135
        %v9264 = vpack.c.b16 %v9140, %v9136
        %v9265 = vpack.c.b16 %v9141, %v9137
        %v9266 = vpack.c.b16 %v9146, %v9142
        %v9267 = vpack.c.b16 %v9147, %v9143
        %v9268 = vpack.c.b16 %v9148, %v9144
        %v9269 = vpack.c.b16 %v9149, %v9145
        %v9270 = vpack.c.b16 %v9154, %v9150
        %v9271 = vpack.c.b16 %v9155, %v9151
        %v9272 = vpack.c.b16 %v9156, %v9152
        %v9273 = vpack.c.b16 %v9157, %v9153
        %v9274 = vpack.c.b16 %v9162, %v9158
        %v9275 = vpack.c.b16 %v9163, %v9159
        %v9276 = vpack.c.b16 %v9164, %v9160
        %v9277 = vpack.c.b16 %v9165, %v9161
        %v9278 = vpack.c.b16 %v9170, %v9166
        %v9279 = vpack.c.b16 %v9171, %v9167
        %v9280 = vpack.c.b16 %v9172, %v9168
        %v9281 = vpack.c.b16 %v9173, %v9169
        %v9282 = vpack.c.b16 %v9178, %v9174
        %v9283 = vpack.c.b16 %v9179, %v9175
        %v9284 = vpack.c.b16 %v9180, %v9176
        %v9285 = vpack.c.b16 %v9181, %v9177
        %v9286 = vpack.c.b16 %v9186, %v9182
        %v9287 = vpack.c.b16 %v9187, %v9183
        %v9288 = vpack.c.b16 %v9188, %v9184
        %v9289 = vpack.c.b16 %v9189, %v9185
        %v9290 = vpack.c.b16 %v9194, %v9190
        %v9291 = vpack.c.b16 %v9195, %v9191
        %v9292 = vpack.c.b16 %v9196, %v9192
        %v9293 = vpack.c.b16 %v9197, %v9193
        %v9294 = vpack.c.b16 %v9202, %v9198
        %v9295 = vpack.c.b16 %v9203, %v9199
        %v9296 = vpack.c.b16 %v9204, %v9200
        %v9297 = vpack.c.b16 %v9205, %v9201
        %v9298 = vpack.c.b16 %v9210, %v9206
        %v9299 = vpack.c.b16 %v9211, %v9207
        %v9300 = vpack.c.b16 %v9212, %v9208
        %v9301 = vpack.c.b16 %v9213, %v9209
        %v9302 = vpack.c.b16 %v9218, %v9214
        %v9303 = vpack.c.b16 %v9219, %v9215
        %v9304 = vpack.c.b16 %v9220, %v9216
        %v9305 = vpack.c.b16 %v9221, %v9217
        %v9306 = vpack.c.b16 %v9226, %v9222
        %v9307 = vpack.c.b16 %v9227, %v9223
        %v9308 = vpack.c.b16 %v9228, %v9224
        %v9309 = vpack.c.b16 %v9229, %v9225
        %v9310 = vpack.c.b16 %v9234, %v9230
        %v9311 = vpack.c.b16 %v9235, %v9231
        %v9312 = vpack.c.b16 %v9236, %v9232
        %v9313 = vpack.c.b16 %v9237, %v9233
        %v9314 = vpack.c.b16 %v9242, %v9238
        %v9315 = vpack.c.b16 %v9243, %v9239
        %v9316 = vpack.c.b16 %v9244, %v9240
        %v9317 = vpack.c.b16 %v9245, %v9241
        %v9318 = vpack.c.b16 %v9250, %v9246
        %v9319 = vpack.c.b16 %v9251, %v9247
        %v9320 = vpack.c.b16 %v9252, %v9248
        %v9321 = vpack.c.b16 %v9253, %v9249
        %v9322 = vpack.c.b16 %v9258, %v9254
        %v9323 = vpack.c.b16 %v9259, %v9255
        %v9324 = vpack.c.b16 %v9260, %v9256
        %v9325 = vpack.c.b16 %v9261, %v9257
        %9390 = vmatprep.subr.bf16.mxu0 %v9291
        %9391 = vmatpush1.bf16.msra.mxu0 %v9290
        %9392 = vmatprep.subr.bf16.mxu0 %v9287
        %9393 = vmatpush1.bf16.msra.mxu0 %v9286
        %9394 = vmatprep.subr.bf16.mxu0 %v9283
        %9395 = vmatpush1.bf16.msra.mxu0 %v9282
        %9396 = vmatprep.subr.bf16.mxu0 %v9279
        %9397 = vmatpush1.bf16.msra.mxu0 %v9278
        %9398 = vmatprep.subr.bf16.mxu0 %v9275
        %9399 = vmatpush1.bf16.msra.mxu0 %v9274
        %9400 = vmatprep.subr.bf16.mxu0 %v9271
        %9401 = vmatpush1.bf16.msra.mxu0 %v9270
        %9402 = vmatprep.subr.bf16.mxu0 %v9267
        %9403 = vmatpush1.bf16.msra.mxu0 %v9266
        %9404 = vmatprep.subr.bf16.mxu0 %v9263
        %9405 = vmatpush1.bf16.msra.mxu0 %v9262
        %9406 = vmatprep.subr.bf16.mxu0 %v9323
        %9407 = vmatpush2.bf16.msra.mxu0 %v9322
        %9408 = vmatprep.subr.bf16.mxu0 %v9319
        %9409 = vmatpush2.bf16.msra.mxu0 %v9318
        %9410 = vmatprep.subr.bf16.mxu0 %v9315
        %9411 = vmatpush2.bf16.msra.mxu0 %v9314
        %9412 = vmatprep.subr.bf16.mxu0 %v9311
        %9413 = vmatpush2.bf16.msra.mxu0 %v9310
        %9414 = vmatprep.subr.bf16.mxu0 %v9307
        %9415 = vmatpush2.bf16.msra.mxu0 %v9306
        %9416 = vmatprep.subr.bf16.mxu0 %v9303
        %9417 = vmatpush2.bf16.msra.mxu0 %v9302
        %9418 = vmatprep.subr.bf16.mxu0 %v9299
        %9419 = vmatpush2.bf16.msra.mxu0 %v9298
        %9420 = vmatprep.subr.bf16.mxu0 %v9295
        %9421 = vmatpush2.bf16.msra.mxu0 %v9294
        %9422 = vmatprep.mubr.bf16.mxu0 %v8522
        %9423 = vmatmul.mubr.bf16.gmra.mxu0 %v8521
        %v9424 = vpop.f32.mrf.mxu0
        %v9425 = vadd.f32 %v9023, %v9424
        %v9426 = vpop.f32.mrf.mxu0
        %v9427 = vadd.f32 %v9025, %v9426
        %v9428 = vpop.f32.mrf.mxu0
        %v9429 = vpop.f32.mrf.mxu0
        %9430 = vdwg.mxu0
        %9431 = vmatprep.subr.bf16.mxu0 %v9293
        %9432 = vmatpush1.bf16.msra.mxu0 %v9292
        %9433 = vmatprep.subr.bf16.mxu0 %v9289
        %9434 = vmatpush1.bf16.msra.mxu0 %v9288
        %9435 = vmatprep.subr.bf16.mxu0 %v9285
        %9436 = vmatpush1.bf16.msra.mxu0 %v9284
        %9437 = vmatprep.subr.bf16.mxu0 %v9281
        %9438 = vmatpush1.bf16.msra.mxu0 %v9280
        %9439 = vmatprep.subr.bf16.mxu0 %v9277
        %9440 = vmatpush1.bf16.msra.mxu0 %v9276
        %9441 = vmatprep.subr.bf16.mxu0 %v9273
        %9442 = vmatpush1.bf16.msra.mxu0 %v9272
        %9443 = vmatprep.subr.bf16.mxu0 %v9269
        %9444 = vmatpush1.bf16.msra.mxu0 %v9268
        %9445 = vmatprep.subr.bf16.mxu0 %v9265
        %9446 = vmatpush1.bf16.msra.mxu0 %v9264
        %9447 = vmatprep.subr.bf16.mxu0 %v9325
        %9448 = vmatpush2.bf16.msra.mxu0 %v9324
        %9449 = vmatprep.subr.bf16.mxu0 %v9321
        %9450 = vmatpush2.bf16.msra.mxu0 %v9320
        %9451 = vmatprep.subr.bf16.mxu0 %v9317
        %9452 = vmatpush2.bf16.msra.mxu0 %v9316
        %9453 = vmatprep.subr.bf16.mxu0 %v9313
        %9454 = vmatpush2.bf16.msra.mxu0 %v9312
        %9455 = vmatprep.subr.bf16.mxu0 %v9309
        %9456 = vmatpush2.bf16.msra.mxu0 %v9308
        %9457 = vmatprep.subr.bf16.mxu0 %v9305
        %9458 = vmatpush2.bf16.msra.mxu0 %v9304
        %9459 = vmatprep.subr.bf16.mxu0 %v9301
        %9460 = vmatpush2.bf16.msra.mxu0 %v9300
        %9461 = vmatprep.subr.bf16.mxu0 %v9297
        %9462 = vmatpush2.bf16.msra.mxu0 %v9296
        %9463 = vmatprep.mubr.bf16.mxu0 %v8522
        %9464 = vmatmul.mubr.bf16.gmra.mxu0 %v8521
        %v9465 = vpop.f32.mrf.mxu0
        %v9466 = vadd.f32 %v9064, %v9465
        %v9467 = vpop.f32.mrf.mxu0
        %v9468 = vadd.f32 %v9066, %v9467
        %v9469 = vpop.f32.mrf.mxu0
        %v9470 = vpop.f32.mrf.mxu0
        %9471 = vdwg.mxu0
        %s9472 = scalar_lea.vmem [#allocation16], 1024
        %v9473 = vld [vmem:[%s9472] sm:$0xff]
        %v9474 = vld [vmem:[%s9472 + $0x8] sm:$0xff]
        %v9475 = vld [vmem:[%s9472 + $0x10] sm:$0xff]
        %v9476 = vld [vmem:[%s9472 + $0x18] sm:$0xff]
        %v9477 = vld [vmem:[%s9472 + $0x20] sm:$0xff]
        %v9478 = vld [vmem:[%s9472 + $0x28] sm:$0xff]
        %v9479 = vld [vmem:[%s9472 + $0x30] sm:$0xff]
        %v9480 = vld [vmem:[%s9472 + $0x38] sm:$0xff]
        %v9481 = vld [vmem:[%s9472 + $0x40] sm:$0xff]
        %v9482 = vld [vmem:[%s9472 + $0x48] sm:$0xff]
        %v9483 = vld [vmem:[%s9472 + $0x50] sm:$0xff]
        %v9484 = vld [vmem:[%s9472 + $0x58] sm:$0xff]
        %v9485 = vld [vmem:[%s9472 + $0x60] sm:$0xff]
        %v9486 = vld [vmem:[%s9472 + $0x68] sm:$0xff]
        %v9487 = vld [vmem:[%s9472 + $0x70] sm:$0xff]
        %v9488 = vld [vmem:[%s9472 + $0x78] sm:$0xff]
        %v9489 = vld [vmem:[%s9472 + $0x80] sm:$0xff]
        %v9490 = vld [vmem:[%s9472 + $0x88] sm:$0xff]
        %v9491 = vld [vmem:[%s9472 + $0x90] sm:$0xff]
        %v9492 = vld [vmem:[%s9472 + $0x98] sm:$0xff]
        %v9493 = vld [vmem:[%s9472 + $0xa0] sm:$0xff]
        %v9494 = vld [vmem:[%s9472 + $0xa8] sm:$0xff]
        %v9495 = vld [vmem:[%s9472 + $0xb0] sm:$0xff]
        %v9496 = vld [vmem:[%s9472 + $0xb8] sm:$0xff]
        %v9497 = vld [vmem:[%s9472 + $0xc0] sm:$0xff]
        %v9498 = vld [vmem:[%s9472 + $0xc8] sm:$0xff]
        %v9499 = vld [vmem:[%s9472 + $0xd0] sm:$0xff]
        %v9500 = vld [vmem:[%s9472 + $0xd8] sm:$0xff]
        %v9501 = vld [vmem:[%s9472 + $0xe0] sm:$0xff]
        %v9502 = vld [vmem:[%s9472 + $0xe8] sm:$0xff]
        %v9503 = vld [vmem:[%s9472 + $0xf0] sm:$0xff]
        %v9504 = vld [vmem:[%s9472 + $0xf8] sm:$0xff]
        %v9505 = vld [vmem:[%s9472 + $0x100] sm:$0xff]
        %v9506 = vld [vmem:[%s9472 + $0x108] sm:$0xff]
        %v9507 = vld [vmem:[%s9472 + $0x110] sm:$0xff]
        %v9508 = vld [vmem:[%s9472 + $0x118] sm:$0xff]
        %v9509 = vld [vmem:[%s9472 + $0x120] sm:$0xff]
        %v9510 = vld [vmem:[%s9472 + $0x128] sm:$0xff]
        %v9511 = vld [vmem:[%s9472 + $0x130] sm:$0xff]
        %v9512 = vld [vmem:[%s9472 + $0x138] sm:$0xff]
        %v9513 = vld [vmem:[%s9472 + $0x140] sm:$0xff]
        %v9514 = vld [vmem:[%s9472 + $0x148] sm:$0xff]
        %v9515 = vld [vmem:[%s9472 + $0x150] sm:$0xff]
        %v9516 = vld [vmem:[%s9472 + $0x158] sm:$0xff]
        %v9517 = vld [vmem:[%s9472 + $0x160] sm:$0xff]
        %v9518 = vld [vmem:[%s9472 + $0x168] sm:$0xff]
        %v9519 = vld [vmem:[%s9472 + $0x170] sm:$0xff]
        %v9520 = vld [vmem:[%s9472 + $0x178] sm:$0xff]
        %v9521 = vld [vmem:[%s9472 + $0x180] sm:$0xff]
        %v9522 = vld [vmem:[%s9472 + $0x188] sm:$0xff]
        %v9523 = vld [vmem:[%s9472 + $0x190] sm:$0xff]
        %v9524 = vld [vmem:[%s9472 + $0x198] sm:$0xff]
        %v9525 = vld [vmem:[%s9472 + $0x1a0] sm:$0xff]
        %v9526 = vld [vmem:[%s9472 + $0x1a8] sm:$0xff]
        %v9527 = vld [vmem:[%s9472 + $0x1b0] sm:$0xff]
        %v9528 = vld [vmem:[%s9472 + $0x1b8] sm:$0xff]
        %v9529 = vld [vmem:[%s9472 + $0x1c0] sm:$0xff]
        %v9530 = vld [vmem:[%s9472 + $0x1c8] sm:$0xff]
        %v9531 = vld [vmem:[%s9472 + $0x1d0] sm:$0xff]
        %v9532 = vld [vmem:[%s9472 + $0x1d8] sm:$0xff]
        %v9533 = vld [vmem:[%s9472 + $0x1e0] sm:$0xff]
        %v9534 = vld [vmem:[%s9472 + $0x1e8] sm:$0xff]
        %v9535 = vld [vmem:[%s9472 + $0x1f0] sm:$0xff]
        %v9536 = vld [vmem:[%s9472 + $0x1f8] sm:$0xff]
        %v9539 = vrot.slane %v8521, 1
        %v9540 = vrot.slane %v8522, 1
        %v9607 = vunpack.c.l.b16 %v9473
        %v9608 = vunpack.c.h.b16 %v9473
        %v9609 = vunpack.c.l.b16 %v9474
        %v9610 = vunpack.c.h.b16 %v9474
        %v9611 = vunpack.c.l.b16 %v9475
        %v9612 = vunpack.c.h.b16 %v9475
        %v9613 = vunpack.c.l.b16 %v9476
        %v9614 = vunpack.c.h.b16 %v9476
        %v9615 = vunpack.c.l.b16 %v9477
        %v9616 = vunpack.c.h.b16 %v9477
        %v9617 = vunpack.c.l.b16 %v9478
        %v9618 = vunpack.c.h.b16 %v9478
        %v9619 = vunpack.c.l.b16 %v9479
        %v9620 = vunpack.c.h.b16 %v9479
        %v9621 = vunpack.c.l.b16 %v9480
        %v9622 = vunpack.c.h.b16 %v9480
        %v9623 = vunpack.c.l.b16 %v9481
        %v9624 = vunpack.c.h.b16 %v9481
        %v9625 = vunpack.c.l.b16 %v9482
        %v9626 = vunpack.c.h.b16 %v9482
        %v9627 = vunpack.c.l.b16 %v9483
        %v9628 = vunpack.c.h.b16 %v9483
        %v9629 = vunpack.c.l.b16 %v9484
        %v9630 = vunpack.c.h.b16 %v9484
        %v9631 = vunpack.c.l.b16 %v9485
        %v9632 = vunpack.c.h.b16 %v9485
        %v9633 = vunpack.c.l.b16 %v9486
        %v9634 = vunpack.c.h.b16 %v9486
        %v9635 = vunpack.c.l.b16 %v9487
        %v9636 = vunpack.c.h.b16 %v9487
        %v9637 = vunpack.c.l.b16 %v9488
        %v9638 = vunpack.c.h.b16 %v9488
        %v9639 = vunpack.c.l.b16 %v9489
        %v9640 = vunpack.c.h.b16 %v9489
        %v9641 = vunpack.c.l.b16 %v9490
        %v9642 = vunpack.c.h.b16 %v9490
        %v9643 = vunpack.c.l.b16 %v9491
        %v9644 = vunpack.c.h.b16 %v9491
        %v9645 = vunpack.c.l.b16 %v9492
        %v9646 = vunpack.c.h.b16 %v9492
        %v9647 = vunpack.c.l.b16 %v9493
        %v9648 = vunpack.c.h.b16 %v9493
        %v9649 = vunpack.c.l.b16 %v9494
        %v9650 = vunpack.c.h.b16 %v9494
        %v9651 = vunpack.c.l.b16 %v9495
        %v9652 = vunpack.c.h.b16 %v9495
        %v9653 = vunpack.c.l.b16 %v9496
        %v9654 = vunpack.c.h.b16 %v9496
        %v9655 = vunpack.c.l.b16 %v9497
        %v9656 = vunpack.c.h.b16 %v9497
        %v9657 = vunpack.c.l.b16 %v9498
        %v9658 = vunpack.c.h.b16 %v9498
        %v9659 = vunpack.c.l.b16 %v9499
        %v9660 = vunpack.c.h.b16 %v9499
        %v9661 = vunpack.c.l.b16 %v9500
        %v9662 = vunpack.c.h.b16 %v9500
        %v9663 = vunpack.c.l.b16 %v9501
        %v9664 = vunpack.c.h.b16 %v9501
        %v9665 = vunpack.c.l.b16 %v9502
        %v9666 = vunpack.c.h.b16 %v9502
        %v9667 = vunpack.c.l.b16 %v9503
        %v9668 = vunpack.c.h.b16 %v9503
        %v9669 = vunpack.c.l.b16 %v9504
        %v9670 = vunpack.c.h.b16 %v9504
        %v9671 = vunpack.c.l.b16 %v9505
        %v9672 = vunpack.c.h.b16 %v9505
        %v9673 = vunpack.c.l.b16 %v9506
        %v9674 = vunpack.c.h.b16 %v9506
        %v9675 = vunpack.c.l.b16 %v9507
        %v9676 = vunpack.c.h.b16 %v9507
        %v9677 = vunpack.c.l.b16 %v9508
        %v9678 = vunpack.c.h.b16 %v9508
        %v9679 = vunpack.c.l.b16 %v9509
        %v9680 = vunpack.c.h.b16 %v9509
        %v9681 = vunpack.c.l.b16 %v9510
        %v9682 = vunpack.c.h.b16 %v9510
        %v9683 = vunpack.c.l.b16 %v9511
        %v9684 = vunpack.c.h.b16 %v9511
        %v9685 = vunpack.c.l.b16 %v9512
        %v9686 = vunpack.c.h.b16 %v9512
        %v9687 = vunpack.c.l.b16 %v9513
        %v9688 = vunpack.c.h.b16 %v9513
        %v9689 = vunpack.c.l.b16 %v9514
        %v9690 = vunpack.c.h.b16 %v9514
        %v9691 = vunpack.c.l.b16 %v9515
        %v9692 = vunpack.c.h.b16 %v9515
        %v9693 = vunpack.c.l.b16 %v9516
        %v9694 = vunpack.c.h.b16 %v9516
        %v9695 = vunpack.c.l.b16 %v9517
        %v9696 = vunpack.c.h.b16 %v9517
        %v9697 = vunpack.c.l.b16 %v9518
        %v9698 = vunpack.c.h.b16 %v9518
        %v9699 = vunpack.c.l.b16 %v9519
        %v9700 = vunpack.c.h.b16 %v9519
        %v9701 = vunpack.c.l.b16 %v9520
        %v9702 = vunpack.c.h.b16 %v9520
        %v9703 = vunpack.c.l.b16 %v9521
        %v9704 = vunpack.c.h.b16 %v9521
        %v9705 = vunpack.c.l.b16 %v9522
        %v9706 = vunpack.c.h.b16 %v9522
        %v9707 = vunpack.c.l.b16 %v9523
        %v9708 = vunpack.c.h.b16 %v9523
        %v9709 = vunpack.c.l.b16 %v9524
        %v9710 = vunpack.c.h.b16 %v9524
        %v9711 = vunpack.c.l.b16 %v9525
        %v9712 = vunpack.c.h.b16 %v9525
        %v9713 = vunpack.c.l.b16 %v9526
        %v9714 = vunpack.c.h.b16 %v9526
        %v9715 = vunpack.c.l.b16 %v9527
        %v9716 = vunpack.c.h.b16 %v9527
        %v9717 = vunpack.c.l.b16 %v9528
        %v9718 = vunpack.c.h.b16 %v9528
        %v9719 = vunpack.c.l.b16 %v9529
        %v9720 = vunpack.c.h.b16 %v9529
        %v9721 = vunpack.c.l.b16 %v9530
        %v9722 = vunpack.c.h.b16 %v9530
        %v9723 = vunpack.c.l.b16 %v9531
        %v9724 = vunpack.c.h.b16 %v9531
        %v9725 = vunpack.c.l.b16 %v9532
        %v9726 = vunpack.c.h.b16 %v9532
        %v9727 = vunpack.c.l.b16 %v9533
        %v9728 = vunpack.c.h.b16 %v9533
        %v9729 = vunpack.c.l.b16 %v9534
        %v9730 = vunpack.c.h.b16 %v9534
        %v9731 = vunpack.c.l.b16 %v9535
        %v9732 = vunpack.c.h.b16 %v9535
        %v9733 = vunpack.c.l.b16 %v9536
        %v9734 = vunpack.c.h.b16 %v9536
        %v9735 = vpack.c.b16 %v9611, %v9607
        %v9736 = vpack.c.b16 %v9612, %v9608
        %v9737 = vpack.c.b16 %v9613, %v9609
        %v9738 = vpack.c.b16 %v9614, %v9610
        %v9739 = vpack.c.b16 %v9619, %v9615
        %v9740 = vpack.c.b16 %v9620, %v9616
        %v9741 = vpack.c.b16 %v9621, %v9617
        %v9742 = vpack.c.b16 %v9622, %v9618
        %v9743 = vpack.c.b16 %v9627, %v9623
        %v9744 = vpack.c.b16 %v9628, %v9624
        %v9745 = vpack.c.b16 %v9629, %v9625
        %v9746 = vpack.c.b16 %v9630, %v9626
        %v9747 = vpack.c.b16 %v9635, %v9631
        %v9748 = vpack.c.b16 %v9636, %v9632
        %v9749 = vpack.c.b16 %v9637, %v9633
        %v9750 = vpack.c.b16 %v9638, %v9634
        %v9751 = vpack.c.b16 %v9643, %v9639
        %v9752 = vpack.c.b16 %v9644, %v9640
        %v9753 = vpack.c.b16 %v9645, %v9641
        %v9754 = vpack.c.b16 %v9646, %v9642
        %v9755 = vpack.c.b16 %v9651, %v9647
        %v9756 = vpack.c.b16 %v9652, %v9648
        %v9757 = vpack.c.b16 %v9653, %v9649
        %v9758 = vpack.c.b16 %v9654, %v9650
        %v9759 = vpack.c.b16 %v9659, %v9655
        %v9760 = vpack.c.b16 %v9660, %v9656
        %v9761 = vpack.c.b16 %v9661, %v9657
        %v9762 = vpack.c.b16 %v9662, %v9658
        %v9763 = vpack.c.b16 %v9667, %v9663
        %v9764 = vpack.c.b16 %v9668, %v9664
        %v9765 = vpack.c.b16 %v9669, %v9665
        %v9766 = vpack.c.b16 %v9670, %v9666
        %v9767 = vpack.c.b16 %v9675, %v9671
        %v9768 = vpack.c.b16 %v9676, %v9672
        %v9769 = vpack.c.b16 %v9677, %v9673
        %v9770 = vpack.c.b16 %v9678, %v9674
        %v9771 = vpack.c.b16 %v9683, %v9679
        %v9772 = vpack.c.b16 %v9684, %v9680
        %v9773 = vpack.c.b16 %v9685, %v9681
        %v9774 = vpack.c.b16 %v9686, %v9682
        %v9775 = vpack.c.b16 %v9691, %v9687
        %v9776 = vpack.c.b16 %v9692, %v9688
        %v9777 = vpack.c.b16 %v9693, %v9689
        %v9778 = vpack.c.b16 %v9694, %v9690
        %v9779 = vpack.c.b16 %v9699, %v9695
        %v9780 = vpack.c.b16 %v9700, %v9696
        %v9781 = vpack.c.b16 %v9701, %v9697
        %v9782 = vpack.c.b16 %v9702, %v9698
        %v9783 = vpack.c.b16 %v9707, %v9703
        %v9784 = vpack.c.b16 %v9708, %v9704
        %v9785 = vpack.c.b16 %v9709, %v9705
        %v9786 = vpack.c.b16 %v9710, %v9706
        %v9787 = vpack.c.b16 %v9715, %v9711
        %v9788 = vpack.c.b16 %v9716, %v9712
        %v9789 = vpack.c.b16 %v9717, %v9713
        %v9790 = vpack.c.b16 %v9718, %v9714
        %v9791 = vpack.c.b16 %v9723, %v9719
        %v9792 = vpack.c.b16 %v9724, %v9720
        %v9793 = vpack.c.b16 %v9725, %v9721
        %v9794 = vpack.c.b16 %v9726, %v9722
        %v9795 = vpack.c.b16 %v9731, %v9727
        %v9796 = vpack.c.b16 %v9732, %v9728
        %v9797 = vpack.c.b16 %v9733, %v9729
        %v9798 = vpack.c.b16 %v9734, %v9730
        %9863 = vmatprep.subr.bf16.mxu0 %v9764
        %9864 = vmatpush1.bf16.msra.mxu0 %v9763
        %9865 = vmatprep.subr.bf16.mxu0 %v9760
        %9866 = vmatpush1.bf16.msra.mxu0 %v9759
        %9867 = vmatprep.subr.bf16.mxu0 %v9756
        %9868 = vmatpush1.bf16.msra.mxu0 %v9755
        %9869 = vmatprep.subr.bf16.mxu0 %v9752
        %9870 = vmatpush1.bf16.msra.mxu0 %v9751
        %9871 = vmatprep.subr.bf16.mxu0 %v9748
        %9872 = vmatpush1.bf16.msra.mxu0 %v9747
        %9873 = vmatprep.subr.bf16.mxu0 %v9744
        %9874 = vmatpush1.bf16.msra.mxu0 %v9743
        %9875 = vmatprep.subr.bf16.mxu0 %v9740
        %9876 = vmatpush1.bf16.msra.mxu0 %v9739
        %9877 = vmatprep.subr.bf16.mxu0 %v9736
        %9878 = vmatpush1.bf16.msra.mxu0 %v9735
        %9879 = vmatprep.subr.bf16.mxu0 %v9796
        %9880 = vmatpush2.bf16.msra.mxu0 %v9795
        %9881 = vmatprep.subr.bf16.mxu0 %v9792
        %9882 = vmatpush2.bf16.msra.mxu0 %v9791
        %9883 = vmatprep.subr.bf16.mxu0 %v9788
        %9884 = vmatpush2.bf16.msra.mxu0 %v9787
        %9885 = vmatprep.subr.bf16.mxu0 %v9784
        %9886 = vmatpush2.bf16.msra.mxu0 %v9783
        %9887 = vmatprep.subr.bf16.mxu0 %v9780
        %9888 = vmatpush2.bf16.msra.mxu0 %v9779
        %9889 = vmatprep.subr.bf16.mxu0 %v9776
        %9890 = vmatpush2.bf16.msra.mxu0 %v9775
        %9891 = vmatprep.subr.bf16.mxu0 %v9772
        %9892 = vmatpush2.bf16.msra.mxu0 %v9771
        %9893 = vmatprep.subr.bf16.mxu0 %v9768
        %9894 = vmatpush2.bf16.msra.mxu0 %v9767
        %9895 = vmatprep.mubr.bf16.mxu0 %v9540
        %9896 = vmatmul.mubr.bf16.gmra.mxu0 %v9539
        %v9897 = vpop.f32.mrf.mxu0
        %v9898 = vadd.f32 0.0, %v9897
        %v9899 = vpop.f32.mrf.mxu0
        %v9900 = vadd.f32 0.0, %v9899
        %v9901 = vpop.f32.mrf.mxu0
        %v9902 = vpop.f32.mrf.mxu0
        %9903 = vdwg.mxu0
        %9904 = vmatprep.subr.bf16.mxu0 %v9766
        %9905 = vmatpush1.bf16.msra.mxu0 %v9765
        %9906 = vmatprep.subr.bf16.mxu0 %v9762
        %9907 = vmatpush1.bf16.msra.mxu0 %v9761
        %9908 = vmatprep.subr.bf16.mxu0 %v9758
        %9909 = vmatpush1.bf16.msra.mxu0 %v9757
        %9910 = vmatprep.subr.bf16.mxu0 %v9754
        %9911 = vmatpush1.bf16.msra.mxu0 %v9753
        %9912 = vmatprep.subr.bf16.mxu0 %v9750
        %9913 = vmatpush1.bf16.msra.mxu0 %v9749
        %9914 = vmatprep.subr.bf16.mxu0 %v9746
        %9915 = vmatpush1.bf16.msra.mxu0 %v9745
        %9916 = vmatprep.subr.bf16.mxu0 %v9742
        %9917 = vmatpush1.bf16.msra.mxu0 %v9741
        %9918 = vmatprep.subr.bf16.mxu0 %v9738
        %9919 = vmatpush1.bf16.msra.mxu0 %v9737
        %9920 = vmatprep.subr.bf16.mxu0 %v9798
        %9921 = vmatpush2.bf16.msra.mxu0 %v9797
        %9922 = vmatprep.subr.bf16.mxu0 %v9794
        %9923 = vmatpush2.bf16.msra.mxu0 %v9793
        %9924 = vmatprep.subr.bf16.mxu0 %v9790
        %9925 = vmatpush2.bf16.msra.mxu0 %v9789
        %9926 = vmatprep.subr.bf16.mxu0 %v9786
        %9927 = vmatpush2.bf16.msra.mxu0 %v9785
        %9928 = vmatprep.subr.bf16.mxu0 %v9782
        %9929 = vmatpush2.bf16.msra.mxu0 %v9781
        %9930 = vmatprep.subr.bf16.mxu0 %v9778
        %9931 = vmatpush2.bf16.msra.mxu0 %v9777
        %9932 = vmatprep.subr.bf16.mxu0 %v9774
        %9933 = vmatpush2.bf16.msra.mxu0 %v9773
        %9934 = vmatprep.subr.bf16.mxu0 %v9770
        %9935 = vmatpush2.bf16.msra.mxu0 %v9769
        %9936 = vmatprep.mubr.bf16.mxu0 %v9540
        %9937 = vmatmul.mubr.bf16.gmra.mxu0 %v9539
        %v9938 = vpop.f32.mrf.mxu0
        %v9939 = vadd.f32 0.0, %v9938
        %v9940 = vpop.f32.mrf.mxu0
        %v9941 = vadd.f32 0.0, %v9940
        %v9942 = vpop.f32.mrf.mxu0
        %v9943 = vpop.f32.mrf.mxu0
        %9944 = vdwg.mxu0
        %v9945 = vadd.f32 %v9425, %v9898
        %v9946 = vadd.f32 %v9427, %v9900
        %v9947 = vadd.f32 %v9466, %v9939
        %v9948 = vadd.f32 %v9468, %v9941
        %v9949 = vld [vmem:[#allocation17] sm:$0xf]
        %v9951 = vlaneseq
        %v9952 = vshrl.u32 %v9951, 7
        %v9953 = vsub.s32 0, %v9952
        %v9954 = vrot.slane %v9949, %v9953
        %v9955 = vlaneseq
        %v9956 = vshrl.u32 %v9955, 7
        %v9957 = vsub.s32 1, %v9956
        %v9958 = vrot.slane %v9949, %v9957
        %v9959 = vlaneseq
        %v9960 = vshrl.u32 %v9959, 7
        %v9961 = vsub.s32 2, %v9960
        %v9962 = vrot.slane %v9949, %v9961
        %v9963 = vlaneseq
        %v9964 = vshrl.u32 %v9963, 7
        %v9965 = vsub.s32 3, %v9964
        %v9966 = vrot.slane %v9949, %v9965
        %v9971 = vadd.f32 %v9945, %v9954
        %v9972 = vadd.f32 %v9946, %v9958
        %v9973 = vadd.f32 %v9947, %v9962
        %v9974 = vadd.f32 %v9948, %v9966
        %vm9975 = vcmask 15360
        %v9976 = vsel %vm9975, %v7569, 0
        %v9979 = vsel %vm5755, %v9971, 0
        %v9982 = vsel %vm5755, %v9972, 0
        %v9985 = vsel %vm5755, %v9973, 0
        %v9988 = vsel %vm5755, %v9974, 0
        %9990 = vmatprep.subr.mxu0 0.0
        %9991 = vmatpush1.msra.mxu0 0.0
        %9992 = vmatprep.subr.mxu0 0.0
        %9993 = vmatpush1.msra.mxu0 0.0
        %9994 = vmatprep.subr.mxu0 0.0
        %9995 = vmatpush1.msra.mxu0 0.0
        %9996 = vmatprep.subr.mxu0 0.0
        %9997 = vmatpush1.msra.mxu0 0.0
        %9998 = vmatprep.subr.mxu0 0.0
        %9999 = vmatpush1.msra.mxu0 0.0
        %10000 = vmatprep.subr.mxu0 0.0
        %10001 = vmatpush1.msra.mxu0 0.0
        %10002 = vmatprep.subr.mxu0 0.0
        %10003 = vmatpush1.msra.mxu0 0.0
        %10004 = vmatprep.subr.mxu0 0.0
        %10005 = vmatpush1.msra.mxu0 0.0
        %10006 = vmatprep.subr.mxu0 0.0
        %10007 = vmatpush1.msra.mxu0 0.0
        %10008 = vmatprep.subr.mxu0 0.0
        %10009 = vmatpush1.msra.mxu0 0.0
        %10010 = vmatprep.subr.mxu0 0.0
        %10011 = vmatpush1.msra.mxu0 0.0
        %10012 = vmatprep.subr.mxu0 0.0
        %10013 = vmatpush1.msra.mxu0 0.0
        %10014 = vmatprep.subr.mxu0 0.0
        %10015 = vmatpush1.msra.mxu0 0.0
        %10016 = vmatprep.subr.mxu0 0.0
        %10017 = vmatpush1.msra.mxu0 0.0
        %10018 = vmatprep.subr.mxu0 0.0
        %10019 = vmatpush1.msra.mxu0 0.0
        %10020 = vmatprep.subr.mxu0 %v9982
        %10021 = vmatpush1.msra.mxu0 %v9979
        %10022 = vmatprep.subr.mxu0 0.0
        %10023 = vmatpush2.msra.mxu0 0.0
        %10024 = vmatprep.subr.mxu0 0.0
        %10025 = vmatpush2.msra.mxu0 0.0
        %10026 = vmatprep.subr.mxu0 0.0
        %10027 = vmatpush2.msra.mxu0 0.0
        %10028 = vmatprep.subr.mxu0 0.0
        %10029 = vmatpush2.msra.mxu0 0.0
        %10030 = vmatprep.subr.mxu0 0.0
        %10031 = vmatpush2.msra.mxu0 0.0
        %10032 = vmatprep.subr.mxu0 0.0
        %10033 = vmatpush2.msra.mxu0 0.0
        %10034 = vmatprep.subr.mxu0 0.0
        %10035 = vmatpush2.msra.mxu0 0.0
        %10036 = vmatprep.subr.mxu0 0.0
        %10037 = vmatpush2.msra.mxu0 0.0
        %10038 = vmatprep.subr.mxu0 0.0
        %10039 = vmatpush2.msra.mxu0 0.0
        %10040 = vmatprep.subr.mxu0 0.0
        %10041 = vmatpush2.msra.mxu0 0.0
        %10042 = vmatprep.subr.mxu0 0.0
        %10043 = vmatpush2.msra.mxu0 0.0
        %10044 = vmatprep.subr.mxu0 0.0
        %10045 = vmatpush2.msra.mxu0 0.0
        %10046 = vmatprep.subr.mxu0 0.0
        %10047 = vmatpush2.msra.mxu0 0.0
        %10048 = vmatprep.subr.mxu0 0.0
        %10049 = vmatpush2.msra.mxu0 0.0
        %10050 = vmatprep.subr.mxu0 0.0
        %10051 = vmatpush2.msra.mxu0 0.0
        %10052 = vmatprep.subr.mxu0 0.0
        %10053 = vmatpush2.msra.mxu0 0.0
        %10054 = vmatprep.mubr.f32.mxu0 0.0
        %10055 = vmatmul.mubr.f32.gmra.mxu0 %v9976
        %v10056 = vpop.f32.mrf.mxu0
        %v10057 = vadd.f32 0.0, %v10056
        %v10058 = vpop.f32.mrf.mxu0
        %v10059 = vadd.f32 0.0, %v10058
        %10060 = vdwg.mxu0
        %10061 = vmatprep.subr.mxu0 0.0
        %10062 = vmatpush1.msra.mxu0 0.0
        %10063 = vmatprep.subr.mxu0 0.0
        %10064 = vmatpush1.msra.mxu0 0.0
        %10065 = vmatprep.subr.mxu0 0.0
        %10066 = vmatpush1.msra.mxu0 0.0
        %10067 = vmatprep.subr.mxu0 0.0
        %10068 = vmatpush1.msra.mxu0 0.0
        %10069 = vmatprep.subr.mxu0 0.0
        %10070 = vmatpush1.msra.mxu0 0.0
        %10071 = vmatprep.subr.mxu0 0.0
        %10072 = vmatpush1.msra.mxu0 0.0
        %10073 = vmatprep.subr.mxu0 0.0
        %10074 = vmatpush1.msra.mxu0 0.0
        %10075 = vmatprep.subr.mxu0 0.0
        %10076 = vmatpush1.msra.mxu0 0.0
        %10077 = vmatprep.subr.mxu0 0.0
        %10078 = vmatpush1.msra.mxu0 0.0
        %10079 = vmatprep.subr.mxu0 0.0
        %10080 = vmatpush1.msra.mxu0 0.0
        %10081 = vmatprep.subr.mxu0 0.0
        %10082 = vmatpush1.msra.mxu0 0.0
        %10083 = vmatprep.subr.mxu0 0.0
        %10084 = vmatpush1.msra.mxu0 0.0
        %10085 = vmatprep.subr.mxu0 0.0
        %10086 = vmatpush1.msra.mxu0 0.0
        %10087 = vmatprep.subr.mxu0 0.0
        %10088 = vmatpush1.msra.mxu0 0.0
        %10089 = vmatprep.subr.mxu0 0.0
        %10090 = vmatpush1.msra.mxu0 0.0
        %10091 = vmatprep.subr.mxu0 %v9988
        %10092 = vmatpush1.msra.mxu0 %v9985
        %10093 = vmatprep.subr.mxu0 0.0
        %10094 = vmatpush2.msra.mxu0 0.0
        %10095 = vmatprep.subr.mxu0 0.0
        %10096 = vmatpush2.msra.mxu0 0.0
        %10097 = vmatprep.subr.mxu0 0.0
        %10098 = vmatpush2.msra.mxu0 0.0
        %10099 = vmatprep.subr.mxu0 0.0
        %10100 = vmatpush2.msra.mxu0 0.0
        %10101 = vmatprep.subr.mxu0 0.0
        %10102 = vmatpush2.msra.mxu0 0.0
        %10103 = vmatprep.subr.mxu0 0.0
        %10104 = vmatpush2.msra.mxu0 0.0
        %10105 = vmatprep.subr.mxu0 0.0
        %10106 = vmatpush2.msra.mxu0 0.0
        %10107 = vmatprep.subr.mxu0 0.0
        %10108 = vmatpush2.msra.mxu0 0.0
        %10109 = vmatprep.subr.mxu0 0.0
        %10110 = vmatpush2.msra.mxu0 0.0
        %10111 = vmatprep.subr.mxu0 0.0
        %10112 = vmatpush2.msra.mxu0 0.0
        %10113 = vmatprep.subr.mxu0 0.0
        %10114 = vmatpush2.msra.mxu0 0.0
        %10115 = vmatprep.subr.mxu0 0.0
        %10116 = vmatpush2.msra.mxu0 0.0
        %10117 = vmatprep.subr.mxu0 0.0
        %10118 = vmatpush2.msra.mxu0 0.0
        %10119 = vmatprep.subr.mxu0 0.0
        %10120 = vmatpush2.msra.mxu0 0.0
        %10121 = vmatprep.subr.mxu0 0.0
        %10122 = vmatpush2.msra.mxu0 0.0
        %10123 = vmatprep.subr.mxu0 0.0
        %10124 = vmatpush2.msra.mxu0 0.0
        %10125 = vmatprep.mubr.f32.mxu0 0.0
        %10126 = vmatmul.mubr.f32.gmra.mxu0 %v9976
        %v10127 = vpop.f32.mrf.mxu0
        %v10128 = vadd.f32 0.0, %v10127
        %v10129 = vpop.f32.mrf.mxu0
        %v10130 = vadd.f32 0.0, %v10129
        %10131 = vdwg.mxu0
        %v10132 = vadd.f32 %v10057, 0.0
        %v10133 = vadd.f32 %v10059, 0.0
        %v10134 = vadd.f32 %v10128, 0.0
        %v10135 = vadd.f32 %v10130, 0.0
        %v10136 = vld [vmem:[#allocation19] sm:$0xf]
        %v10138 = vlaneseq
        %v10139 = vshrl.u32 %v10138, 7
        %v10140 = vsub.s32 0, %v10139
        %v10141 = vrot.slane %v10136, %v10140
        %v10142 = vlaneseq
        %v10143 = vshrl.u32 %v10142, 7
        %v10144 = vsub.s32 1, %v10143
        %v10145 = vrot.slane %v10136, %v10144
        %v10146 = vlaneseq
        %v10147 = vshrl.u32 %v10146, 7
        %v10148 = vsub.s32 2, %v10147
        %v10149 = vrot.slane %v10136, %v10148
        %v10150 = vlaneseq
        %v10151 = vshrl.u32 %v10150, 7
        %v10152 = vsub.s32 3, %v10151
        %v10153 = vrot.slane %v10136, %v10152
        %v10158 = vmul.f32 %v10132, %v10141
        %v10159 = vmul.f32 %v10133, %v10145
        %v10160 = vmul.f32 %v10134, %v10149
        %v10161 = vmul.f32 %v10135, %v10153
        %v10162 = vsel %vm5709, %v10158, 0.0
        %v10163 = vsel %vm5709, %v10159, 0.0
        %v10164 = vadd.f32 %v10162, %v10163
        %v10165 = vsel %vm5709, %v10160, 0.0
        %v10166 = vadd.f32 %v10164, %v10165
        %v10167 = vsel %vm5709, %v10161, 0.0
        %v10168 = vadd.f32 %v10166, %v10167
        %10169 = vadd.xlane.f32.xlu0 %v10168
        %v10170 = vpop.xlane.xlu0 %10169
        %v10171 = vld [vmem:[#allocation2] sm:$0x1]
        %v10172 = vadd.f32 %v10170, %v10171
        %vm10173 = vcmask 0
        %10174 = vst.msk [vmem:[%s613] sm:$0x1] %vm10173, %v10172
        %p10175 = scmp.lt.s32.totalorder %s33, 1
        %s10176 = scalar_select %p10175, %s33, 1
        %s10177 = scalar_lea.vmem %s14, %s10176
        // Predicated region
        $region121: #{predictor_forward.1} parent=75 // pred_check
          %p10178 = pneg %p350
        $region122: #{predictor_forward.1} parent=75 // pred_check_branch
          %10180 = sbr.rel (%p10178) target = $region124
        $region123: #{predictor_forward.1} parent=75 // pred_region
          _
        $region124: #{predictor_forward.1} parent=75 // pred_fallthru
          _
      $region76: #{predictor_forward.1} parent=5 // pred_fallthru
        _
      %p10181 = scmp.le.s32.totalorder 2, %s28
      // Predicated region
      $region125: #{predictor_forward.1} parent=5 // pred_check
        %p10182 = pneg %p10181
      $region126: #{predictor_forward.1} parent=5 // pred_check_branch
        %10184 = sbr.rel (%p10182) target = $region128
      $region127: #{predictor_forward.1} parent=5 // pred_region
        %s10185 = ssub.s32 %s28, 2
        // Predicated region
        $region129: #{predictor_forward.1} parent=127 // pred_check
          %p10186 = pneg %p356
        $region130: #{predictor_forward.1} parent=127 // pred_check_branch
          %10188 = sbr.rel (%p10186) target = $region132
        $region131: #{predictor_forward.1} parent=127 // pred_region
          %p10189 = scmp.lt.s32.totalorder %s34, 1
          %s10190 = scalar_select %p10189, %s34, 1
          %s10191 = scalar_lea.vmem %s14, %s10190
        $region132: #{predictor_forward.1} parent=127 // pred_fallthru
          _
      $region128: #{predictor_forward.1} parent=5 // pred_fallthru
        _
    $region6: #{predictor_forward.1} parent=1 // loop_footer
      %s32 = sadd.s32 1, %s28
    $region7: #{predictor_forward.1} parent=1 // loop_footer_branch
      %27 = sbr.rel target = $region3
    $region8: #{predictor_forward.1} parent=1 // loop_exit
      _
    %10192 = vsyncpa [#allocation4], 1
    %s10193 = scalar_lea.sflag [#allocation4], 1
    %10194 = vsyncpa %s10193, 1
    %10195 = vsyncpa [#allocation6], 1
    %10196 = vsyncpa [#allocation9], 1
    %10197 = vsyncpa [#allocation12], 1
    %10198 = vsyncpa [#allocation15], 1
    %10199 = vsyncpa [#allocation18], 1

</llo_original>
